<compile_context>
chip_gen: v6e
topology: v6e:2x2x1
jax: 0.10.0
libtpu: 0.0.40
codegen_flags: <defaults>
</compile_context>

<pallas_src>
import jax
import jax.numpy as jnp
from jax.experimental import pallas as pl
from jax.experimental.pallas import tpu as pltpu


def _vmem():
    return pl.BlockSpec(memory_space=pltpu.MemorySpace.VMEM)


# ---------------------------------------------------------------------------
# Fused kernel: base MLP on stacked (2B, emb) input + ranking head.
# ---------------------------------------------------------------------------
def ranknet_fused_kernel(x_ref,
                         w1_ref, b1_ref, w2_ref, b2_ref, w3_ref, b3_ref,
                         w4a_ref, w4b_ref, b4_ref, w5_ref, b5_ref,
                         o_ref):
    # x_ref: (2B, emb) f32  = concat([item_1, item_2], axis=0)
    # w*:    bf16 weights, b*: f32 biases, w5_ref: (1, 256) f32 row, b5_ref: (1, 1)
    B = o_ref.shape[0]

    x = x_ref[...]

    # ---- base_layers (shared weights, both items in one batch) -------------
    h = jnp.dot(x.astype(jnp.bfloat16), w1_ref[...],
                preferred_element_type=jnp.float32) + b1_ref[...]
    h = jnp.maximum(h, 0.0)

    h = jnp.dot(h.astype(jnp.bfloat16), w2_ref[...],
                preferred_element_type=jnp.float32) + b2_ref[...]
    h = jnp.maximum(h, 0.0)
    # Dropout(p=0.1) is identity in inference / eval mode.

    h = jnp.dot(h.astype(jnp.bfloat16), w3_ref[...],
                preferred_element_type=jnp.float32) + b3_ref[...]
    f = jnp.maximum(h, 0.0)                       # (2B, 256), stays in VMEM

    f1 = f[:B]                                    # item_1 features
    f2 = f[B:]                                    # item_2 features

    # ---- output head: concat fold as split matmul --------------------------
    h4 = (jnp.dot(f1.astype(jnp.bfloat16), w4a_ref[...],
                  preferred_element_type=jnp.float32)
          + jnp.dot(f2.astype(jnp.bfloat16), w4b_ref[...],
                    preferred_element_type=jnp.float32)
          + b4_ref[...])
    h4 = jnp.maximum(h4, 0.0)                     # (B, 256)

    # Final Linear(256 -> 1) as VPU multiply + lane reduction (no degenerate
    # width-1 MXU matmul).
    logit = jnp.sum(h4 * w5_ref[...], axis=-1, keepdims=True) + b5_ref[...]
    o_ref[...] = jax.nn.sigmoid(logit).astype(o_ref.dtype)


def ranknet_pallas(params, item_1, item_2):
    B = item_1.shape[0]
    # Stack both items: base MLP weights are streamed from HBM exactly once.
    x = jnp.concatenate([item_1, item_2], axis=0)       # (2B, emb)
    return pl.pallas_call(
        ranknet_fused_kernel,
        out_shape=jax.ShapeDtypeStruct((B, 1), jnp.float32),
        in_specs=[_vmem()] * 12,
        out_specs=_vmem(),
        compiler_params=pltpu.CompilerParams(
            # bf16 weights (~5 MB) + small activations; explicit budget with
            # headroom, within every generation's physical VMEM.
            vmem_limit_bytes=32 * 1024 * 1024,
        ),
    )(x,
      params["w1"], params["b1"], params["w2"], params["b2"],
      params["w3"], params["b3"],
      params["w4a"], params["w4b"], params["b4"],
      params["w5_row"], params["b5"])
    # For large batches: add a batch grid axis ("parallel") with constant
    # index_maps for the weights so they stay resident (v7x: 2 TCs, 64 MiB VMEM).


# ---------------------------------------------------------------------------
# Params (PyTorch-style uniform init; weights cast to bf16, biases kept f32)
# ---------------------------------------------------------------------------
def init_params(key, embeddings_size):
    def dense(k, fan_in, fan_out):
        kw, kb = jax.random.split(k)
        bound = 1.0 / jnp.sqrt(fan_in)
        w = jax.random.uniform(kw, (fan_in, fan_out), jnp.float32, -bound, bound)
        b = jax.random.uniform(kb, (1, fan_out), jnp.float32, -bound, bound)
        return w, b

    keys = jax.random.split(key, 5)
    w1, b1 = dense(keys[0], embeddings_size, 2048)
    w2, b2 = dense(keys[1], 2048, 1024)
    w3, b3 = dense(keys[2], 1024, 256)
    w4, b4 = dense(keys[3], 512, 256)
    w5, b5 = dense(keys[4], 256, 1)

    p = {
        # bf16 weights (MXU native, half the HBM traffic); f32 biases.
        "w1": w1.astype(jnp.bfloat16), "b1": b1,
        "w2": w2.astype(jnp.bfloat16), "b2": b2,
        "w3": w3.astype(jnp.bfloat16), "b3": b3,
        # Precompute the concat-fold split of w4 once at init time.
        "w4a": w4[:256].astype(jnp.bfloat16),
        "w4b": w4[256:].astype(jnp.bfloat16),
        "b4": b4,
        # Final layer as a (1, 256) f32 row for the VPU reduction.
        "w5_row": w5.reshape(1, 256),
        "b5": b5.reshape(1, 1),
    }
    return p


@jax.jit
def ranknet_forward(params, item_1, item_2):
    return ranknet_pallas(params, item_1, item_2)


# ---------------------------------------------------------------------------
# Pure-JAX reference (same bf16-weight math as the kernel)
# ---------------------------------------------------------------------------
def ranknet_forward_ref(params, item_1, item_2):
    def base(x):
        h = jnp.dot(x.astype(jnp.bfloat16), params["w1"],
                    preferred_element_type=jnp.float32) + params["b1"]
        h = jnp.maximum(h, 0.0)
        h = jnp.dot(h.astype(jnp.bfloat16), params["w2"],
                    preferred_element_type=jnp.float32) + params["b2"]
        h = jnp.maximum(h, 0.0)
        h = jnp.dot(h.astype(jnp.bfloat16), params["w3"],
                    preferred_element_type=jnp.float32) + params["b3"]
        return jnp.maximum(h, 0.0)

    f1, f2 = base(item_1), base(item_2)
    h = (jnp.dot(f1.astype(jnp.bfloat16), params["w4a"],
                 preferred_element_type=jnp.float32)
         + jnp.dot(f2.astype(jnp.bfloat16), params["w4b"],
                   preferred_element_type=jnp.float32)
         + params["b4"])
    h = jnp.maximum(h, 0.0)
    logit = jnp.sum(h * params["w5_row"], axis=-1, keepdims=True) + params["b5"]
    return jax.nn.sigmoid(logit)


if __name__ == "__main__":
    key = jax.random.PRNGKey(0)
    kp, k1, k2 = jax.random.split(key, 3)

    batch = 2
    embeddings_size = 32
    params = init_params(kp, embeddings_size)

    item_1 = jax.random.normal(k1, (batch, embeddings_size), jnp.float32)
    item_2 = jax.random.normal(k2, (batch, embeddings_size), jnp.float32)

    out = ranknet_forward(params, item_1, item_2)
    out = jax.block_until_ready(out)

    ref = ranknet_forward_ref(params, item_1, item_2)
    assert out.shape == (batch, 1), out.shape
    assert jnp.all(jnp.isfinite(out)), out
    assert jnp.allclose(out, ref, atol=1e-3, rtol=1e-3), (out, ref)

    print("KERNEL_OK")
</pallas_src>

<mosaic_0001>
module attributes {stable_mosaic.version = 11 : i64} {
  func.func @ranknet_fused_kernel(%arg0: memref<4x32xf32, #tpu.memory_space<vmem>>, %arg1: memref<32x2048xbf16, #tpu.memory_space<vmem>>, %arg2: memref<1x2048xf32, #tpu.memory_space<vmem>>, %arg3: memref<2048x1024xbf16, #tpu.memory_space<vmem>>, %arg4: memref<1x1024xf32, #tpu.memory_space<vmem>>, %arg5: memref<1024x256xbf16, #tpu.memory_space<vmem>>, %arg6: memref<1x256xf32, #tpu.memory_space<vmem>>, %arg7: memref<256x256xbf16, #tpu.memory_space<vmem>>, %arg8: memref<256x256xbf16, #tpu.memory_space<vmem>>, %arg9: memref<1x256xf32, #tpu.memory_space<vmem>>, %arg10: memref<1x256xf32, #tpu.memory_space<vmem>>, %arg11: memref<1x1xf32, #tpu.memory_space<vmem>>, %arg12: memref<2x1xf32, #tpu.memory_space<vmem>>) attributes {dimension_semantics = [], scalar_prefetch = 0 : i64, scratch_operands = 0 : i64, tpu.core_type = #tpu.core_type<tc>} {
    %c0 = arith.constant 0 : index
    %c0_0 = arith.constant 0 : index
    %0 = vector.load %arg0[%c0, %c0_0] : memref<4x32xf32, #tpu.memory_space<vmem>>, vector<4x32xf32>
    %1 = arith.truncf %0 : vector<4x32xf32> to vector<4x32xbf16>
    %c0_1 = arith.constant 0 : index
    %c0_2 = arith.constant 0 : index
    %2 = vector.load %arg1[%c0_1, %c0_2] : memref<32x2048xbf16, #tpu.memory_space<vmem>>, vector<32x2048xbf16>
    %cst = arith.constant dense<0.000000e+00> : vector<4x2048xf32>
    %3 = tpu.matmul %1, %2, %cst {dimension_numbers = #tpu.dot_dimension_numbers<[1], [0], [0], [1], [0, 0, 1, 1], [], []>} : vector<4x32xbf16>, vector<32x2048xbf16>, vector<4x2048xf32> -> vector<4x2048xf32>
    %c0_3 = arith.constant 0 : index
    %c0_4 = arith.constant 0 : index
    %4 = vector.load %arg2[%c0_3, %c0_4] : memref<1x2048xf32, #tpu.memory_space<vmem>>, vector<1x2048xf32>
    %5 = vector.broadcast %4 : vector<1x2048xf32> to vector<4x2048xf32>
    %6 = arith.addf %3, %5 : vector<4x2048xf32>
    %cst_5 = arith.constant 0.000000e+00 : f32
    %7 = vector.broadcast %cst_5 : f32 to vector<4x2048xf32>
    %8 = arith.maximumf %6, %7 : vector<4x2048xf32>
    %9 = arith.truncf %8 : vector<4x2048xf32> to vector<4x2048xbf16>
    %c0_6 = arith.constant 0 : index
    %c0_7 = arith.constant 0 : index
    %10 = vector.load %arg3[%c0_6, %c0_7] : memref<2048x1024xbf16, #tpu.memory_space<vmem>>, vector<2048x1024xbf16>
    %cst_8 = arith.constant dense<0.000000e+00> : vector<4x1024xf32>
    %11 = tpu.matmul %9, %10, %cst_8 {dimension_numbers = #tpu.dot_dimension_numbers<[1], [0], [0], [1], [0, 0, 1, 1], [], []>} : vector<4x2048xbf16>, vector<2048x1024xbf16>, vector<4x1024xf32> -> vector<4x1024xf32>
    %c0_9 = arith.constant 0 : index
    %c0_10 = arith.constant 0 : index
    %12 = vector.load %arg4[%c0_9, %c0_10] : memref<1x1024xf32, #tpu.memory_space<vmem>>, vector<1x1024xf32>
    %13 = vector.broadcast %12 : vector<1x1024xf32> to vector<4x1024xf32>
    %14 = arith.addf %11, %13 : vector<4x1024xf32>
    %cst_11 = arith.constant 0.000000e+00 : f32
    %15 = vector.broadcast %cst_11 : f32 to vector<4x1024xf32>
    %16 = arith.maximumf %14, %15 : vector<4x1024xf32>
    %17 = arith.truncf %16 : vector<4x1024xf32> to vector<4x1024xbf16>
    %c0_12 = arith.constant 0 : index
    %c0_13 = arith.constant 0 : index
    %18 = vector.load %arg5[%c0_12, %c0_13] : memref<1024x256xbf16, #tpu.memory_space<vmem>>, vector<1024x256xbf16>
    %cst_14 = arith.constant dense<0.000000e+00> : vector<4x256xf32>
    %19 = tpu.matmul %17, %18, %cst_14 {dimension_numbers = #tpu.dot_dimension_numbers<[1], [0], [0], [1], [0, 0, 1, 1], [], []>} : vector<4x1024xbf16>, vector<1024x256xbf16>, vector<4x256xf32> -> vector<4x256xf32>
    %c0_15 = arith.constant 0 : index
    %c0_16 = arith.constant 0 : index
    %20 = vector.load %arg6[%c0_15, %c0_16] : memref<1x256xf32, #tpu.memory_space<vmem>>, vector<1x256xf32>
    %21 = vector.broadcast %20 : vector<1x256xf32> to vector<4x256xf32>
    %22 = arith.addf %19, %21 : vector<4x256xf32>
    %cst_17 = arith.constant 0.000000e+00 : f32
    %23 = vector.broadcast %cst_17 : f32 to vector<4x256xf32>
    %24 = arith.maximumf %22, %23 : vector<4x256xf32>
    %25 = vector.extract_strided_slice %24 {offsets = [0, 0], sizes = [2, 256], strides = [1, 1]} : vector<4x256xf32> to vector<2x256xf32>
    %26 = vector.extract_strided_slice %24 {offsets = [2, 0], sizes = [2, 256], strides = [1, 1]} : vector<4x256xf32> to vector<2x256xf32>
    %27 = arith.truncf %25 : vector<2x256xf32> to vector<2x256xbf16>
    %c0_18 = arith.constant 0 : index
    %c0_19 = arith.constant 0 : index
    %28 = vector.load %arg7[%c0_18, %c0_19] : memref<256x256xbf16, #tpu.memory_space<vmem>>, vector<256x256xbf16>
    %cst_20 = arith.constant dense<0.000000e+00> : vector<2x256xf32>
    %29 = tpu.matmul %27, %28, %cst_20 {dimension_numbers = #tpu.dot_dimension_numbers<[1], [0], [0], [1], [0, 0, 1, 1], [], []>} : vector<2x256xbf16>, vector<256x256xbf16>, vector<2x256xf32> -> vector<2x256xf32>
    %30 = arith.truncf %26 : vector<2x256xf32> to vector<2x256xbf16>
    %c0_21 = arith.constant 0 : index
    %c0_22 = arith.constant 0 : index
    %31 = vector.load %arg8[%c0_21, %c0_22] : memref<256x256xbf16, #tpu.memory_space<vmem>>, vector<256x256xbf16>
    %cst_23 = arith.constant dense<0.000000e+00> : vector<2x256xf32>
    %32 = tpu.matmul %30, %31, %cst_23 {dimension_numbers = #tpu.dot_dimension_numbers<[1], [0], [0], [1], [0, 0, 1, 1], [], []>} : vector<2x256xbf16>, vector<256x256xbf16>, vector<2x256xf32> -> vector<2x256xf32>
    %33 = arith.addf %29, %32 : vector<2x256xf32>
    %c0_24 = arith.constant 0 : index
    %c0_25 = arith.constant 0 : index
    %34 = vector.load %arg9[%c0_24, %c0_25] : memref<1x256xf32, #tpu.memory_space<vmem>>, vector<1x256xf32>
    %35 = vector.broadcast %34 : vector<1x256xf32> to vector<2x256xf32>
    %36 = arith.addf %33, %35 : vector<2x256xf32>
    %cst_26 = arith.constant 0.000000e+00 : f32
    %37 = vector.broadcast %cst_26 : f32 to vector<2x256xf32>
    %38 = arith.maximumf %36, %37 : vector<2x256xf32>
    %c0_27 = arith.constant 0 : index
    %c0_28 = arith.constant 0 : index
    %39 = vector.load %arg10[%c0_27, %c0_28] : memref<1x256xf32, #tpu.memory_space<vmem>>, vector<1x256xf32>
    %40 = vector.broadcast %39 : vector<1x256xf32> to vector<2x256xf32>
    %41 = arith.mulf %38, %40 : vector<2x256xf32>
    %cst_29 = arith.constant dense<0.000000e+00> : vector<2xf32>
    %42 = vector.multi_reduction <add>, %41, %cst_29 [1] : vector<2x256xf32> to vector<2xf32>
    %43 = vector.shape_cast %42 : vector<2xf32> to vector<2x1xf32>
    %c0_30 = arith.constant 0 : index
    %c0_31 = arith.constant 0 : index
    %44 = vector.load %arg11[%c0_30, %c0_31] : memref<1x1xf32, #tpu.memory_space<vmem>>, vector<1x1xf32>
    %45 = vector.broadcast %44 : vector<1x1xf32> to vector<2x1xf32>
    %46 = arith.addf %43, %45 : vector<2x1xf32>
    %47 = arith.negf %46 : vector<2x1xf32>
    %48 = math.exp %47 : vector<2x1xf32>
    %cst_32 = arith.constant 1.000000e+00 : f32
    %49 = vector.broadcast %cst_32 : f32 to vector<2x1xf32>
    %50 = arith.addf %49, %48 : vector<2x1xf32>
    %51 = arith.divf %49, %50 : vector<2x1xf32>
    %c0_33 = arith.constant 0 : index
    %c0_34 = arith.constant 0 : index
    %52 = vector.load %arg12[%c0_33, %c0_34] : memref<2x1xf32, #tpu.memory_space<vmem>>, vector<2x1xf32>
    tpu.vector_store %arg12[%c0_33, %c0_34], %51 {strides = array<i32>} : memref<2x1xf32, #tpu.memory_space<vmem>>, vector<2x1xf32>,
    return
  }
}

</mosaic_0001>

<llo_original>
// kernel: ranknet_forward.1
$region0: #{ranknet_forward.1}
  #allocation0 [shape = 'u32[]', space=smem, size = 0x4, offset = 0x4, fixed_abs, tag = 'smem constant byte address 0x4 - core index']
  #allocation1 [shape = 'u32[144,128]{1,0:T(1,128)}', space=vmem, size = 0x12000, scoped, tag = 'internal scratch']
  #allocation2 [shape = 'f32[1,1]{1,0:T(1,128)S(1)}', space=vmem, size = 0x200, scoped, tag = 'scoped memory for ranknet_forward.1']
  %s0 = inlined_call_operand.vmem [shape: f32[4,32], index: 0, kind: input, shape index: {}]
  %s1 = inlined_call_operand.hbm [shape: bf16[32,2048], index: 1, kind: input, shape index: {}]
  %s2 = inlined_call_operand.hbm [shape: f32[1,2048], index: 2, kind: input, shape index: {}]
  %s3 = inlined_call_operand.hbm [shape: bf16[2048,1024], index: 3, kind: input, shape index: {}]
  %s4 = inlined_call_operand.hbm [shape: f32[1,1024], index: 4, kind: input, shape index: {}]
  %s5 = inlined_call_operand.hbm [shape: bf16[1024,256], index: 5, kind: input, shape index: {}]
  %s6 = inlined_call_operand.hbm [shape: f32[1,256], index: 6, kind: input, shape index: {}]
  %s7 = inlined_call_operand.hbm [shape: bf16[256,256], index: 7, kind: input, shape index: {}]
  %s8 = inlined_call_operand.hbm [shape: bf16[256,256], index: 8, kind: input, shape index: {}]
  %s9 = inlined_call_operand.hbm [shape: f32[1,256], index: 9, kind: input, shape index: {}]
  %s10 = inlined_call_operand.hbm [shape: f32[1,256], index: 10, kind: input, shape index: {}]
  %s11 = inlined_call_operand.<no memory space> [shape: f32[1,1], index: 11, kind: input, shape index: {}]
  %s12 = inlined_call_operand.vmem [shape: f32[2,1], index: 12, kind: output, shape index: {}]
  %s13 = sld [smem:[#allocation0]]
  $region98: #{ranknet_forward.1} parent=0
    _
  %s15 = ssub.s32 1, %s13
  %s16 = scalar_select 0, %s15, %s13
  %v17 = vstv %s11
  %18 = vst [vmem:[#allocation2] sm:$0x1] %v17
  $region1: #{ranknet_forward.1} parent=0
    #allocation3 [shape = 'u8[131072]{0}', space=vmem, size = 0x20000, scoped, tag = 'input window, operand 1, single buffered']
    #allocation4 [shape = 's32[1]{0}', space=sflag, size = 0x4, scoped, tag = 'scoped memory for ranknet_forward.1']
    #allocation5 [shape = 'u8[8192]{0}', space=vmem, size = 0x2000, scoped, tag = 'input window, operand 2, single buffered']
    #allocation6 [shape = 's32[1]{0}', space=sflag, size = 0x4, scoped, tag = 'scoped memory for ranknet_forward.1']
    #allocation7 [shape = 'u8[4194304]{0}', space=vmem, size = 0x400000, scoped, tag = 'input window, operand 3, single buffered']
    #allocation8 [shape = 'u8[4096]{0}', space=vmem, size = 0x1000, scoped, tag = 'input window, operand 4, single buffered']
    #allocation9 [shape = 's32[1]{0}', space=sflag, size = 0x4, scoped, tag = 'scoped memory for ranknet_forward.1']
    #allocation10 [shape = 'u8[524288]{0}', space=vmem, size = 0x80000, scoped, tag = 'input window, operand 5, single buffered']
    #allocation11 [shape = 'u8[1024]{0}', space=vmem, size = 0x400, scoped, tag = 'input window, operand 6, single buffered']
    #allocation12 [shape = 's32[1]{0}', space=sflag, size = 0x4, scoped, tag = 'scoped memory for ranknet_forward.1']
    #allocation13 [shape = 'u8[131072]{0}', space=vmem, size = 0x20000, scoped, tag = 'input window, operand 7, single buffered']
    #allocation14 [shape = 'u8[131072]{0}', space=vmem, size = 0x20000, scoped, tag = 'input window, operand 8, single buffered']
    #allocation15 [shape = 's32[1]{0}', space=sflag, size = 0x4, scoped, tag = 'scoped memory for ranknet_forward.1']
    #allocation16 [shape = 'u8[1024]{0}', space=vmem, size = 0x400, scoped, tag = 'input window, operand 9, single buffered']
    #allocation17 [shape = 'u8[1024]{0}', space=vmem, size = 0x400, scoped, tag = 'input window, operand 10, single buffered']
    #allocation18 [shape = 's32[1]{0}', space=sflag, size = 0x4, scoped, tag = 'scoped memory for ranknet_forward.1']
    %19 = vsyncpa [#allocation4], 0
    %20 = vsyncpa [#allocation6], 0
    %21 = vsyncpa [#allocation9], 0
    %22 = vsyncpa [#allocation12], 0
    %23 = vsyncpa [#allocation15], 0
    %24 = vsyncpa [#allocation18], 0
    // Predicated region
    $region2: #{ranknet_forward.1} parent=1 // pred_check
      _
    $region3: #{ranknet_forward.1} parent=1 // pred_check_branch
      %26 = sbr.rel (0) target = $region5
    $region4: #{ranknet_forward.1} parent=1 // pred_region
      _
    $region5: #{ranknet_forward.1} parent=1 // pred_fallthru
      _
    // Predicated region
    $region6: #{ranknet_forward.1} parent=1 // pred_check
      _
    $region7: #{ranknet_forward.1} parent=1 // pred_check_branch
      %28 = sbr.rel (0) target = $region9
    $region8: #{ranknet_forward.1} parent=1 // pred_region
      %s30 = ssub.s32 4096, 4096
      %31 = vsyncadd [#allocation4], %s30
      %s32 = sshll.u32 [#allocation3], 4
      %s33 = int_to_ptr.vmem [resolvable:$true] %s32
      %38 = dma.hbm_to_vmem [thread:$0]  %s1, 4096, %s33, [#allocation4], 1024, 1024, 64
    $region9: #{ranknet_forward.1} parent=1 // pred_fallthru
      _
    // Predicated region
    $region10: #{ranknet_forward.1} parent=1 // pred_check
      _
    $region11: #{ranknet_forward.1} parent=1 // pred_check_branch
      %40 = sbr.rel (0) target = $region13
    $region12: #{ranknet_forward.1} parent=1 // pred_region
      %s42 = ssub.s32 256, 256
      %43 = vsyncadd [#allocation6], %s42
      %s45 = sshll.u32 [#allocation5], 4
      %s46 = int_to_ptr.vmem [resolvable:$true] %s45
      %48 = dma.hbm_to_vmem [thread:$0]  %s2, 256, %s46, [#allocation6]
    $region13: #{ranknet_forward.1} parent=1 // pred_fallthru
      _
    // Predicated region
    $region14: #{ranknet_forward.1} parent=1 // pred_check
      _
    $region15: #{ranknet_forward.1} parent=1 // pred_check_branch
      %50 = sbr.rel (0) target = $region17
    $region16: #{ranknet_forward.1} parent=1 // pred_region
      %s52 = ssub.s32 131072, 131072
      %53 = vsyncadd [#allocation6], %s52
      %s54 = sshll.u32 [#allocation7], 4
      %s55 = int_to_ptr.vmem [resolvable:$true] %s54
      %60 = dma.hbm_to_vmem [thread:$0]  %s3, 131072, %s55, [#allocation6], 512, 512, 32
    $region17: #{ranknet_forward.1} parent=1 // pred_fallthru
      _
    // Predicated region
    $region18: #{ranknet_forward.1} parent=1 // pred_check
      _
    $region19: #{ranknet_forward.1} parent=1 // pred_check_branch
      %62 = sbr.rel (0) target = $region21
    $region20: #{ranknet_forward.1} parent=1 // pred_region
      %s64 = ssub.s32 128, 128
      %65 = vsyncadd [#allocation9], %s64
      %s67 = sshll.u32 [#allocation8], 4
      %s68 = int_to_ptr.vmem [resolvable:$true] %s67
      %70 = dma.hbm_to_vmem [thread:$0]  %s4, 128, %s68, [#allocation9]
    $region21: #{ranknet_forward.1} parent=1 // pred_fallthru
      _
    // Predicated region
    $region22: #{ranknet_forward.1} parent=1 // pred_check
      _
    $region23: #{ranknet_forward.1} parent=1 // pred_check_branch
      %72 = sbr.rel (0) target = $region25
    $region24: #{ranknet_forward.1} parent=1 // pred_region
      %s74 = ssub.s32 16384, 16384
      %75 = vsyncadd [#allocation9], %s74
      %s76 = sshll.u32 [#allocation10], 4
      %s77 = int_to_ptr.vmem [resolvable:$true] %s76
      %82 = dma.hbm_to_vmem [thread:$0]  %s5, 16384, %s77, [#allocation9], 128, 128, 8
    $region25: #{ranknet_forward.1} parent=1 // pred_fallthru
      _
    // Predicated region
    $region26: #{ranknet_forward.1} parent=1 // pred_check
      _
    $region27: #{ranknet_forward.1} parent=1 // pred_check_branch
      %84 = sbr.rel (0) target = $region29
    $region28: #{ranknet_forward.1} parent=1 // pred_region
      %s86 = ssub.s32 32, 32
      %87 = vsyncadd [#allocation12], %s86
      %s89 = sshll.u32 [#allocation11], 4
      %s90 = int_to_ptr.vmem [resolvable:$true] %s89
      %92 = dma.hbm_to_vmem [thread:$0]  %s6, 32, %s90, [#allocation12]
    $region29: #{ranknet_forward.1} parent=1 // pred_fallthru
      _
    // Predicated region
    $region30: #{ranknet_forward.1} parent=1 // pred_check
      _
    $region31: #{ranknet_forward.1} parent=1 // pred_check_branch
      %94 = sbr.rel (0) target = $region33
    $region32: #{ranknet_forward.1} parent=1 // pred_region
      %s96 = ssub.s32 4096, 4096
      %97 = vsyncadd [#allocation12], %s96
      %s98 = sshll.u32 [#allocation13], 4
      %s99 = int_to_ptr.vmem [resolvable:$true] %s98
      %104 = dma.hbm_to_vmem [thread:$0]  %s7, 4096, %s99, [#allocation12], 128, 128, 8
    $region33: #{ranknet_forward.1} parent=1 // pred_fallthru
      _
    // Predicated region
    $region34: #{ranknet_forward.1} parent=1 // pred_check
      _
    $region35: #{ranknet_forward.1} parent=1 // pred_check_branch
      %106 = sbr.rel (0) target = $region37
    $region36: #{ranknet_forward.1} parent=1 // pred_region
      %s108 = ssub.s32 4096, 4096
      %109 = vsyncadd [#allocation15], %s108
      %s110 = sshll.u32 [#allocation14], 4
      %s111 = int_to_ptr.vmem [resolvable:$true] %s110
      %116 = dma.hbm_to_vmem [thread:$0]  %s8, 4096, %s111, [#allocation15], 128, 128, 8
    $region37: #{ranknet_forward.1} parent=1 // pred_fallthru
      _
    // Predicated region
    $region38: #{ranknet_forward.1} parent=1 // pred_check
      _
    $region39: #{ranknet_forward.1} parent=1 // pred_check_branch
      %118 = sbr.rel (0) target = $region41
    $region40: #{ranknet_forward.1} parent=1 // pred_region
      %s120 = ssub.s32 32, 32
      %121 = vsyncadd [#allocation15], %s120
      %s123 = sshll.u32 [#allocation16], 4
      %s124 = int_to_ptr.vmem [resolvable:$true] %s123
      %126 = dma.hbm_to_vmem [thread:$0]  %s9, 32, %s124, [#allocation15]
    $region41: #{ranknet_forward.1} parent=1 // pred_fallthru
      _
    // Predicated region
    $region42: #{ranknet_forward.1} parent=1 // pred_check
      _
    $region43: #{ranknet_forward.1} parent=1 // pred_check_branch
      %128 = sbr.rel (0) target = $region45
    $region44: #{ranknet_forward.1} parent=1 // pred_region
      %s130 = ssub.s32 32, 32
      %131 = vsyncadd [#allocation18], %s130
      %s133 = sshll.u32 [#allocation17], 4
      %s134 = int_to_ptr.vmem [resolvable:$true] %s133
      %136 = dma.hbm_to_vmem [thread:$0]  %s10, 32, %s134, [#allocation18]
    $region45: #{ranknet_forward.1} parent=1 // pred_fallthru
      _
    // Predicated region
    $region46: #{ranknet_forward.1} parent=1 // pred_check
      _
    $region47: #{ranknet_forward.1} parent=1 // pred_check_branch
      %138 = sbr.rel (0) target = $region49
    $region48: #{ranknet_forward.1} parent=1 // pred_region
      _
    $region49: #{ranknet_forward.1} parent=1 // pred_fallthru
      _
    // Predicated region
    $region50: #{ranknet_forward.1} parent=1 // pred_check
      _
    $region51: #{ranknet_forward.1} parent=1 // pred_check_branch
      %140 = sbr.rel (0) target = $region53
    $region52: #{ranknet_forward.1} parent=1 // pred_region
      %141 = dma.done [#allocation4], 4096
    $region53: #{ranknet_forward.1} parent=1 // pred_fallthru
      _
    // Predicated region
    $region54: #{ranknet_forward.1} parent=1 // pred_check
      _
    $region55: #{ranknet_forward.1} parent=1 // pred_check_branch
      %143 = sbr.rel (0) target = $region57
    $region56: #{ranknet_forward.1} parent=1 // pred_region
      %144 = dma.done [#allocation6], 256
    $region57: #{ranknet_forward.1} parent=1 // pred_fallthru
      _
    // Predicated region
    $region58: #{ranknet_forward.1} parent=1 // pred_check
      _
    $region59: #{ranknet_forward.1} parent=1 // pred_check_branch
      %146 = sbr.rel (0) target = $region61
    $region60: #{ranknet_forward.1} parent=1 // pred_region
      %147 = dma.done [#allocation6], 131072
    $region61: #{ranknet_forward.1} parent=1 // pred_fallthru
      _
    // Predicated region
    $region62: #{ranknet_forward.1} parent=1 // pred_check
      _
    $region63: #{ranknet_forward.1} parent=1 // pred_check_branch
      %149 = sbr.rel (0) target = $region65
    $region64: #{ranknet_forward.1} parent=1 // pred_region
      %150 = dma.done [#allocation9], 128
    $region65: #{ranknet_forward.1} parent=1 // pred_fallthru
      _
    // Predicated region
    $region66: #{ranknet_forward.1} parent=1 // pred_check
      _
    $region67: #{ranknet_forward.1} parent=1 // pred_check_branch
      %152 = sbr.rel (0) target = $region69
    $region68: #{ranknet_forward.1} parent=1 // pred_region
      %153 = dma.done [#allocation9], 16384
    $region69: #{ranknet_forward.1} parent=1 // pred_fallthru
      _
    // Predicated region
    $region70: #{ranknet_forward.1} parent=1 // pred_check
      _
    $region71: #{ranknet_forward.1} parent=1 // pred_check_branch
      %155 = sbr.rel (0) target = $region73
    $region72: #{ranknet_forward.1} parent=1 // pred_region
      %156 = dma.done [#allocation12], 32
    $region73: #{ranknet_forward.1} parent=1 // pred_fallthru
      _
    // Predicated region
    $region74: #{ranknet_forward.1} parent=1 // pred_check
      _
    $region75: #{ranknet_forward.1} parent=1 // pred_check_branch
      %158 = sbr.rel (0) target = $region77
    $region76: #{ranknet_forward.1} parent=1 // pred_region
      %159 = dma.done [#allocation12], 4096
    $region77: #{ranknet_forward.1} parent=1 // pred_fallthru
      _
    // Predicated region
    $region78: #{ranknet_forward.1} parent=1 // pred_check
      _
    $region79: #{ranknet_forward.1} parent=1 // pred_check_branch
      %161 = sbr.rel (0) target = $region81
    $region80: #{ranknet_forward.1} parent=1 // pred_region
      %162 = dma.done [#allocation15], 4096
    $region81: #{ranknet_forward.1} parent=1 // pred_fallthru
      _
    // Predicated region
    $region82: #{ranknet_forward.1} parent=1 // pred_check
      _
    $region83: #{ranknet_forward.1} parent=1 // pred_check_branch
      %164 = sbr.rel (0) target = $region85
    $region84: #{ranknet_forward.1} parent=1 // pred_region
      %165 = dma.done [#allocation15], 32
    $region85: #{ranknet_forward.1} parent=1 // pred_fallthru
      _
    // Predicated region
    $region86: #{ranknet_forward.1} parent=1 // pred_check
      _
    $region87: #{ranknet_forward.1} parent=1 // pred_check_branch
      %167 = sbr.rel (0) target = $region89
    $region88: #{ranknet_forward.1} parent=1 // pred_region
      %168 = dma.done [#allocation18], 32
    $region89: #{ranknet_forward.1} parent=1 // pred_fallthru
      _
    %v170 = vld [vmem:[%s0] sm:$0xf]
    %v171 = vpack.c.bf16 %v170, %v170
    %v172 = vld [vmem:[#allocation3] sm:$0xff]
    %v173 = vld [vmem:[#allocation3 + $0x8] sm:$0xff]
    %v174 = vld [vmem:[#allocation3 + $0x10] sm:$0xff]
    %v175 = vld [vmem:[#allocation3 + $0x18] sm:$0xff]
    %v176 = vld [vmem:[#allocation3 + $0x20] sm:$0xff]
    %v177 = vld [vmem:[#allocation3 + $0x28] sm:$0xff]
    %v178 = vld [vmem:[#allocation3 + $0x30] sm:$0xff]
    %v179 = vld [vmem:[#allocation3 + $0x38] sm:$0xff]
    %v180 = vld [vmem:[#allocation3 + $0x40] sm:$0xff]
    %v181 = vld [vmem:[#allocation3 + $0x48] sm:$0xff]
    %v182 = vld [vmem:[#allocation3 + $0x50] sm:$0xff]
    %v183 = vld [vmem:[#allocation3 + $0x58] sm:$0xff]
    %v184 = vld [vmem:[#allocation3 + $0x60] sm:$0xff]
    %v185 = vld [vmem:[#allocation3 + $0x68] sm:$0xff]
    %v186 = vld [vmem:[#allocation3 + $0x70] sm:$0xff]
    %v187 = vld [vmem:[#allocation3 + $0x78] sm:$0xff]
    %v188 = vld [vmem:[#allocation3 + $0x80] sm:$0xff]
    %v189 = vld [vmem:[#allocation3 + $0x88] sm:$0xff]
    %v190 = vld [vmem:[#allocation3 + $0x90] sm:$0xff]
    %v191 = vld [vmem:[#allocation3 + $0x98] sm:$0xff]
    %v192 = vld [vmem:[#allocation3 + $0xa0] sm:$0xff]
    %v193 = vld [vmem:[#allocation3 + $0xa8] sm:$0xff]
    %v194 = vld [vmem:[#allocation3 + $0xb0] sm:$0xff]
    %v195 = vld [vmem:[#allocation3 + $0xb8] sm:$0xff]
    %v196 = vld [vmem:[#allocation3 + $0xc0] sm:$0xff]
    %v197 = vld [vmem:[#allocation3 + $0xc8] sm:$0xff]
    %v198 = vld [vmem:[#allocation3 + $0xd0] sm:$0xff]
    %v199 = vld [vmem:[#allocation3 + $0xd8] sm:$0xff]
    %v200 = vld [vmem:[#allocation3 + $0xe0] sm:$0xff]
    %v201 = vld [vmem:[#allocation3 + $0xe8] sm:$0xff]
    %v202 = vld [vmem:[#allocation3 + $0xf0] sm:$0xff]
    %v203 = vld [vmem:[#allocation3 + $0xf8] sm:$0xff]
    %v204 = vld [vmem:[#allocation5] sm:$0xff]
    %v205 = vld [vmem:[#allocation5 + $0x8] sm:$0xff]
    %v208 = vlaneseq
    %v209 = vshrl.u32 %v208, 7
    %v210 = vsub.s32 0, %v209
    %v211 = vrot.slane %v204, %v210
    %v212 = vlaneseq
    %v213 = vshrl.u32 %v212, 7
    %v214 = vsub.s32 1, %v213
    %v215 = vrot.slane %v204, %v214
    %v216 = vlaneseq
    %v217 = vshrl.u32 %v216, 7
    %v218 = vsub.s32 2, %v217
    %v219 = vrot.slane %v204, %v218
    %v220 = vlaneseq
    %v221 = vshrl.u32 %v220, 7
    %v222 = vsub.s32 3, %v221
    %v223 = vrot.slane %v204, %v222
    %v224 = vlaneseq
    %v225 = vshrl.u32 %v224, 7
    %v226 = vsub.s32 4, %v225
    %v227 = vrot.slane %v204, %v226
    %v228 = vlaneseq
    %v229 = vshrl.u32 %v228, 7
    %v230 = vsub.s32 5, %v229
    %v231 = vrot.slane %v204, %v230
    %v232 = vlaneseq
    %v233 = vshrl.u32 %v232, 7
    %v234 = vsub.s32 6, %v233
    %v235 = vrot.slane %v204, %v234
    %v236 = vlaneseq
    %v237 = vshrl.u32 %v236, 7
    %v238 = vsub.s32 7, %v237
    %v239 = vrot.slane %v204, %v238
    %v240 = vlaneseq
    %v241 = vshrl.u32 %v240, 7
    %v242 = vsub.s32 0, %v241
    %v243 = vrot.slane %v205, %v242
    %v244 = vlaneseq
    %v245 = vshrl.u32 %v244, 7
    %v246 = vsub.s32 1, %v245
    %v247 = vrot.slane %v205, %v246
    %v248 = vlaneseq
    %v249 = vshrl.u32 %v248, 7
    %v250 = vsub.s32 2, %v249
    %v251 = vrot.slane %v205, %v250
    %v252 = vlaneseq
    %v253 = vshrl.u32 %v252, 7
    %v254 = vsub.s32 3, %v253
    %v255 = vrot.slane %v205, %v254
    %v256 = vlaneseq
    %v257 = vshrl.u32 %v256, 7
    %v258 = vsub.s32 4, %v257
    %v259 = vrot.slane %v205, %v258
    %v260 = vlaneseq
    %v261 = vshrl.u32 %v260, 7
    %v262 = vsub.s32 5, %v261
    %v263 = vrot.slane %v205, %v262
    %v264 = vlaneseq
    %v265 = vshrl.u32 %v264, 7
    %v266 = vsub.s32 6, %v265
    %v267 = vrot.slane %v205, %v266
    %v268 = vlaneseq
    %v269 = vshrl.u32 %v268, 7
    %v270 = vsub.s32 7, %v269
    %v271 = vrot.slane %v205, %v270
    %v320 = vunpack.c.l.b16 %v172
    %v321 = vunpack.c.h.b16 %v172
    %v322 = vunpack.c.l.b16 %v173
    %v323 = vunpack.c.h.b16 %v173
    %v324 = vunpack.c.l.b16 %v174
    %v325 = vunpack.c.h.b16 %v174
    %v326 = vunpack.c.l.b16 %v175
    %v327 = vunpack.c.h.b16 %v175
    %v328 = vunpack.c.l.b16 %v176
    %v329 = vunpack.c.h.b16 %v176
    %v330 = vunpack.c.l.b16 %v177
    %v331 = vunpack.c.h.b16 %v177
    %v332 = vunpack.c.l.b16 %v178
    %v333 = vunpack.c.h.b16 %v178
    %v334 = vunpack.c.l.b16 %v179
    %v335 = vunpack.c.h.b16 %v179
    %v336 = vunpack.c.l.b16 %v180
    %v337 = vunpack.c.h.b16 %v180
    %v338 = vunpack.c.l.b16 %v181
    %v339 = vunpack.c.h.b16 %v181
    %v340 = vunpack.c.l.b16 %v182
    %v341 = vunpack.c.h.b16 %v182
    %v342 = vunpack.c.l.b16 %v183
    %v343 = vunpack.c.h.b16 %v183
    %v344 = vunpack.c.l.b16 %v184
    %v345 = vunpack.c.h.b16 %v184
    %v346 = vunpack.c.l.b16 %v185
    %v347 = vunpack.c.h.b16 %v185
    %v348 = vunpack.c.l.b16 %v186
    %v349 = vunpack.c.h.b16 %v186
    %v350 = vunpack.c.l.b16 %v187
    %v351 = vunpack.c.h.b16 %v187
    %v352 = vunpack.c.l.b16 %v188
    %v353 = vunpack.c.h.b16 %v188
    %v354 = vunpack.c.l.b16 %v189
    %v355 = vunpack.c.h.b16 %v189
    %v356 = vunpack.c.l.b16 %v190
    %v357 = vunpack.c.h.b16 %v190
    %v358 = vunpack.c.l.b16 %v191
    %v359 = vunpack.c.h.b16 %v191
    %v360 = vunpack.c.l.b16 %v192
    %v361 = vunpack.c.h.b16 %v192
    %v362 = vunpack.c.l.b16 %v193
    %v363 = vunpack.c.h.b16 %v193
    %v364 = vunpack.c.l.b16 %v194
    %v365 = vunpack.c.h.b16 %v194
    %v366 = vunpack.c.l.b16 %v195
    %v367 = vunpack.c.h.b16 %v195
    %v368 = vunpack.c.l.b16 %v196
    %v369 = vunpack.c.h.b16 %v196
    %v370 = vunpack.c.l.b16 %v197
    %v371 = vunpack.c.h.b16 %v197
    %v372 = vunpack.c.l.b16 %v198
    %v373 = vunpack.c.h.b16 %v198
    %v374 = vunpack.c.l.b16 %v199
    %v375 = vunpack.c.h.b16 %v199
    %v376 = vunpack.c.l.b16 %v200
    %v377 = vunpack.c.h.b16 %v200
    %v378 = vunpack.c.l.b16 %v201
    %v379 = vunpack.c.h.b16 %v201
    %v380 = vunpack.c.l.b16 %v202
    %v381 = vunpack.c.h.b16 %v202
    %v382 = vunpack.c.l.b16 %v203
    %v383 = vunpack.c.h.b16 %v203
    %v384 = vpack.c.b16 %v336, %v320
    %v385 = vpack.c.b16 %v337, %v321
    %v386 = vpack.c.b16 %v338, %v322
    %v387 = vpack.c.b16 %v339, %v323
    %v388 = vpack.c.b16 %v340, %v324
    %v389 = vpack.c.b16 %v341, %v325
    %v390 = vpack.c.b16 %v342, %v326
    %v391 = vpack.c.b16 %v343, %v327
    %v392 = vpack.c.b16 %v344, %v328
    %v393 = vpack.c.b16 %v345, %v329
    %v394 = vpack.c.b16 %v346, %v330
    %v395 = vpack.c.b16 %v347, %v331
    %v396 = vpack.c.b16 %v348, %v332
    %v397 = vpack.c.b16 %v349, %v333
    %v398 = vpack.c.b16 %v350, %v334
    %v399 = vpack.c.b16 %v351, %v335
    %v400 = vpack.c.b16 %v368, %v352
    %v401 = vpack.c.b16 %v369, %v353
    %v402 = vpack.c.b16 %v370, %v354
    %v403 = vpack.c.b16 %v371, %v355
    %v404 = vpack.c.b16 %v372, %v356
    %v405 = vpack.c.b16 %v373, %v357
    %v406 = vpack.c.b16 %v374, %v358
    %v407 = vpack.c.b16 %v375, %v359
    %v408 = vpack.c.b16 %v376, %v360
    %v409 = vpack.c.b16 %v377, %v361
    %v410 = vpack.c.b16 %v378, %v362
    %v411 = vpack.c.b16 %v379, %v363
    %v412 = vpack.c.b16 %v380, %v364
    %v413 = vpack.c.b16 %v381, %v365
    %v414 = vpack.c.b16 %v382, %v366
    %v415 = vpack.c.b16 %v383, %v367
    %vm448 = vcmask 261120
    %v450 = vsel %vm448, %v171, 0
    %452 = vmatprep.subr.bf16.mxu0 0
    %453 = vmatpush1.bf16.msra.mxu0 0
    %454 = vmatprep.subr.bf16.mxu0 0
    %455 = vmatpush1.bf16.msra.mxu0 0
    %456 = vmatprep.subr.bf16.mxu0 0
    %457 = vmatpush1.bf16.msra.mxu0 0
    %458 = vmatprep.subr.bf16.mxu0 0
    %459 = vmatpush1.bf16.msra.mxu0 0
    %460 = vmatprep.subr.bf16.mxu0 0
    %461 = vmatpush1.bf16.msra.mxu0 0
    %462 = vmatprep.subr.bf16.mxu0 0
    %463 = vmatpush1.bf16.msra.mxu0 0
    %464 = vmatprep.subr.bf16.mxu0 %v401
    %465 = vmatpush1.bf16.msra.mxu0 %v400
    %466 = vmatprep.subr.bf16.mxu0 %v385
    %467 = vmatpush1.bf16.msra.mxu0 %v384
    %468 = vmatprep.subr.bf16.mxu0 0
    %469 = vmatpush2.bf16.msra.mxu0 0
    %470 = vmatprep.subr.bf16.mxu0 0
    %471 = vmatpush2.bf16.msra.mxu0 0
    %472 = vmatprep.subr.bf16.mxu0 0
    %473 = vmatpush2.bf16.msra.mxu0 0
    %474 = vmatprep.subr.bf16.mxu0 0
    %475 = vmatpush2.bf16.msra.mxu0 0
    %476 = vmatprep.subr.bf16.mxu0 0
    %477 = vmatpush2.bf16.msra.mxu0 0
    %478 = vmatprep.subr.bf16.mxu0 0
    %479 = vmatpush2.bf16.msra.mxu0 0
    %480 = vmatprep.subr.bf16.mxu0 0
    %481 = vmatpush2.bf16.msra.mxu0 0
    %482 = vmatprep.subr.bf16.mxu0 0
    %483 = vmatpush2.bf16.msra.mxu0 0
    %484 = vmatprep.mubr.bf16.mxu0 0
    %485 = vmatmul.mubr.bf16.gmra.mxu0 %v450
    %v486 = vpop.f32.mrf.mxu0
    %v487 = vadd.f32 %v211, %v486
    %v488 = vpop.f32.mrf.mxu0
    %v489 = vadd.f32 %v215, %v488
    %v490 = vpop.f32.mrf.mxu0
    %v491 = vpop.f32.mrf.mxu0
    %492 = vdwg.mxu0
    %493 = vmatprep.subr.bf16.mxu0 0
    %494 = vmatpush1.bf16.msra.mxu0 0
    %495 = vmatprep.subr.bf16.mxu0 0
    %496 = vmatpush1.bf16.msra.mxu0 0
    %497 = vmatprep.subr.bf16.mxu0 0
    %498 = vmatpush1.bf16.msra.mxu0 0
    %499 = vmatprep.subr.bf16.mxu0 0
    %500 = vmatpush1.bf16.msra.mxu0 0
    %501 = vmatprep.subr.bf16.mxu0 0
    %502 = vmatpush1.bf16.msra.mxu0 0
    %503 = vmatprep.subr.bf16.mxu0 0
    %504 = vmatpush1.bf16.msra.mxu0 0
    %505 = vmatprep.subr.bf16.mxu0 %v403
    %506 = vmatpush1.bf16.msra.mxu0 %v402
    %507 = vmatprep.subr.bf16.mxu0 %v387
    %508 = vmatpush1.bf16.msra.mxu0 %v386
    %509 = vmatprep.subr.bf16.mxu0 0
    %510 = vmatpush2.bf16.msra.mxu0 0
    %511 = vmatprep.subr.bf16.mxu0 0
    %512 = vmatpush2.bf16.msra.mxu0 0
    %513 = vmatprep.subr.bf16.mxu0 0
    %514 = vmatpush2.bf16.msra.mxu0 0
    %515 = vmatprep.subr.bf16.mxu0 0
    %516 = vmatpush2.bf16.msra.mxu0 0
    %517 = vmatprep.subr.bf16.mxu0 0
    %518 = vmatpush2.bf16.msra.mxu0 0
    %519 = vmatprep.subr.bf16.mxu0 0
    %520 = vmatpush2.bf16.msra.mxu0 0
    %521 = vmatprep.subr.bf16.mxu0 0
    %522 = vmatpush2.bf16.msra.mxu0 0
    %523 = vmatprep.subr.bf16.mxu0 0
    %524 = vmatpush2.bf16.msra.mxu0 0
    %525 = vmatprep.mubr.bf16.mxu0 0
    %526 = vmatmul.mubr.bf16.gmra.mxu0 %v450
    %v527 = vpop.f32.mrf.mxu0
    %v528 = vadd.f32 %v219, %v527
    %v529 = vpop.f32.mrf.mxu0
    %v530 = vadd.f32 %v223, %v529
    %v531 = vpop.f32.mrf.mxu0
    %v532 = vpop.f32.mrf.mxu0
    %533 = vdwg.mxu0
    %534 = vmatprep.subr.bf16.mxu0 0
    %535 = vmatpush1.bf16.msra.mxu0 0
    %536 = vmatprep.subr.bf16.mxu0 0
    %537 = vmatpush1.bf16.msra.mxu0 0
    %538 = vmatprep.subr.bf16.mxu0 0
    %539 = vmatpush1.bf16.msra.mxu0 0
    %540 = vmatprep.subr.bf16.mxu0 0
    %541 = vmatpush1.bf16.msra.mxu0 0
    %542 = vmatprep.subr.bf16.mxu0 0
    %543 = vmatpush1.bf16.msra.mxu0 0
    %544 = vmatprep.subr.bf16.mxu0 0
    %545 = vmatpush1.bf16.msra.mxu0 0
    %546 = vmatprep.subr.bf16.mxu0 %v405
    %547 = vmatpush1.bf16.msra.mxu0 %v404
    %548 = vmatprep.subr.bf16.mxu0 %v389
    %549 = vmatpush1.bf16.msra.mxu0 %v388
    %550 = vmatprep.subr.bf16.mxu0 0
    %551 = vmatpush2.bf16.msra.mxu0 0
    %552 = vmatprep.subr.bf16.mxu0 0
    %553 = vmatpush2.bf16.msra.mxu0 0
    %554 = vmatprep.subr.bf16.mxu0 0
    %555 = vmatpush2.bf16.msra.mxu0 0
    %556 = vmatprep.subr.bf16.mxu0 0
    %557 = vmatpush2.bf16.msra.mxu0 0
    %558 = vmatprep.subr.bf16.mxu0 0
    %559 = vmatpush2.bf16.msra.mxu0 0
    %560 = vmatprep.subr.bf16.mxu0 0
    %561 = vmatpush2.bf16.msra.mxu0 0
    %562 = vmatprep.subr.bf16.mxu0 0
    %563 = vmatpush2.bf16.msra.mxu0 0
    %564 = vmatprep.subr.bf16.mxu0 0
    %565 = vmatpush2.bf16.msra.mxu0 0
    %566 = vmatprep.mubr.bf16.mxu0 0
    %567 = vmatmul.mubr.bf16.gmra.mxu0 %v450
    %v568 = vpop.f32.mrf.mxu0
    %v569 = vadd.f32 %v227, %v568
    %v570 = vpop.f32.mrf.mxu0
    %v571 = vadd.f32 %v231, %v570
    %v572 = vpop.f32.mrf.mxu0
    %v573 = vpop.f32.mrf.mxu0
    %574 = vdwg.mxu0
    %575 = vmatprep.subr.bf16.mxu0 0
    %576 = vmatpush1.bf16.msra.mxu0 0
    %577 = vmatprep.subr.bf16.mxu0 0
    %578 = vmatpush1.bf16.msra.mxu0 0
    %579 = vmatprep.subr.bf16.mxu0 0
    %580 = vmatpush1.bf16.msra.mxu0 0
    %581 = vmatprep.subr.bf16.mxu0 0
    %582 = vmatpush1.bf16.msra.mxu0 0
    %583 = vmatprep.subr.bf16.mxu0 0
    %584 = vmatpush1.bf16.msra.mxu0 0
    %585 = vmatprep.subr.bf16.mxu0 0
    %586 = vmatpush1.bf16.msra.mxu0 0
    %587 = vmatprep.subr.bf16.mxu0 %v407
    %588 = vmatpush1.bf16.msra.mxu0 %v406
    %589 = vmatprep.subr.bf16.mxu0 %v391
    %590 = vmatpush1.bf16.msra.mxu0 %v390
    %591 = vmatprep.subr.bf16.mxu0 0
    %592 = vmatpush2.bf16.msra.mxu0 0
    %593 = vmatprep.subr.bf16.mxu0 0
    %594 = vmatpush2.bf16.msra.mxu0 0
    %595 = vmatprep.subr.bf16.mxu0 0
    %596 = vmatpush2.bf16.msra.mxu0 0
    %597 = vmatprep.subr.bf16.mxu0 0
    %598 = vmatpush2.bf16.msra.mxu0 0
    %599 = vmatprep.subr.bf16.mxu0 0
    %600 = vmatpush2.bf16.msra.mxu0 0
    %601 = vmatprep.subr.bf16.mxu0 0
    %602 = vmatpush2.bf16.msra.mxu0 0
    %603 = vmatprep.subr.bf16.mxu0 0
    %604 = vmatpush2.bf16.msra.mxu0 0
    %605 = vmatprep.subr.bf16.mxu0 0
    %606 = vmatpush2.bf16.msra.mxu0 0
    %607 = vmatprep.mubr.bf16.mxu0 0
    %608 = vmatmul.mubr.bf16.gmra.mxu0 %v450
    %v609 = vpop.f32.mrf.mxu0
    %v610 = vadd.f32 %v235, %v609
    %v611 = vpop.f32.mrf.mxu0
    %v612 = vadd.f32 %v239, %v611
    %v613 = vpop.f32.mrf.mxu0
    %v614 = vpop.f32.mrf.mxu0
    %615 = vdwg.mxu0
    %616 = vmatprep.subr.bf16.mxu0 0
    %617 = vmatpush1.bf16.msra.mxu0 0
    %618 = vmatprep.subr.bf16.mxu0 0
    %619 = vmatpush1.bf16.msra.mxu0 0
    %620 = vmatprep.subr.bf16.mxu0 0
    %621 = vmatpush1.bf16.msra.mxu0 0
    %622 = vmatprep.subr.bf16.mxu0 0
    %623 = vmatpush1.bf16.msra.mxu0 0
    %624 = vmatprep.subr.bf16.mxu0 0
    %625 = vmatpush1.bf16.msra.mxu0 0
    %626 = vmatprep.subr.bf16.mxu0 0
    %627 = vmatpush1.bf16.msra.mxu0 0
    %628 = vmatprep.subr.bf16.mxu0 %v409
    %629 = vmatpush1.bf16.msra.mxu0 %v408
    %630 = vmatprep.subr.bf16.mxu0 %v393
    %631 = vmatpush1.bf16.msra.mxu0 %v392
    %632 = vmatprep.subr.bf16.mxu0 0
    %633 = vmatpush2.bf16.msra.mxu0 0
    %634 = vmatprep.subr.bf16.mxu0 0
    %635 = vmatpush2.bf16.msra.mxu0 0
    %636 = vmatprep.subr.bf16.mxu0 0
    %637 = vmatpush2.bf16.msra.mxu0 0
    %638 = vmatprep.subr.bf16.mxu0 0
    %639 = vmatpush2.bf16.msra.mxu0 0
    %640 = vmatprep.subr.bf16.mxu0 0
    %641 = vmatpush2.bf16.msra.mxu0 0
    %642 = vmatprep.subr.bf16.mxu0 0
    %643 = vmatpush2.bf16.msra.mxu0 0
    %644 = vmatprep.subr.bf16.mxu0 0
    %645 = vmatpush2.bf16.msra.mxu0 0
    %646 = vmatprep.subr.bf16.mxu0 0
    %647 = vmatpush2.bf16.msra.mxu0 0
    %648 = vmatprep.mubr.bf16.mxu0 0
    %649 = vmatmul.mubr.bf16.gmra.mxu0 %v450
    %v650 = vpop.f32.mrf.mxu0
    %v651 = vadd.f32 %v243, %v650
    %v652 = vpop.f32.mrf.mxu0
    %v653 = vadd.f32 %v247, %v652
    %v654 = vpop.f32.mrf.mxu0
    %v655 = vpop.f32.mrf.mxu0
    %656 = vdwg.mxu0
    %657 = vmatprep.subr.bf16.mxu0 0
    %658 = vmatpush1.bf16.msra.mxu0 0
    %659 = vmatprep.subr.bf16.mxu0 0
    %660 = vmatpush1.bf16.msra.mxu0 0
    %661 = vmatprep.subr.bf16.mxu0 0
    %662 = vmatpush1.bf16.msra.mxu0 0
    %663 = vmatprep.subr.bf16.mxu0 0
    %664 = vmatpush1.bf16.msra.mxu0 0
    %665 = vmatprep.subr.bf16.mxu0 0
    %666 = vmatpush1.bf16.msra.mxu0 0
    %667 = vmatprep.subr.bf16.mxu0 0
    %668 = vmatpush1.bf16.msra.mxu0 0
    %669 = vmatprep.subr.bf16.mxu0 %v411
    %670 = vmatpush1.bf16.msra.mxu0 %v410
    %671 = vmatprep.subr.bf16.mxu0 %v395
    %672 = vmatpush1.bf16.msra.mxu0 %v394
    %673 = vmatprep.subr.bf16.mxu0 0
    %674 = vmatpush2.bf16.msra.mxu0 0
    %675 = vmatprep.subr.bf16.mxu0 0
    %676 = vmatpush2.bf16.msra.mxu0 0
    %677 = vmatprep.subr.bf16.mxu0 0
    %678 = vmatpush2.bf16.msra.mxu0 0
    %679 = vmatprep.subr.bf16.mxu0 0
    %680 = vmatpush2.bf16.msra.mxu0 0
    %681 = vmatprep.subr.bf16.mxu0 0
    %682 = vmatpush2.bf16.msra.mxu0 0
    %683 = vmatprep.subr.bf16.mxu0 0
    %684 = vmatpush2.bf16.msra.mxu0 0
    %685 = vmatprep.subr.bf16.mxu0 0
    %686 = vmatpush2.bf16.msra.mxu0 0
    %687 = vmatprep.subr.bf16.mxu0 0
    %688 = vmatpush2.bf16.msra.mxu0 0
    %689 = vmatprep.mubr.bf16.mxu0 0
    %690 = vmatmul.mubr.bf16.gmra.mxu0 %v450
    %v691 = vpop.f32.mrf.mxu0
    %v692 = vadd.f32 %v251, %v691
    %v693 = vpop.f32.mrf.mxu0
    %v694 = vadd.f32 %v255, %v693
    %v695 = vpop.f32.mrf.mxu0
    %v696 = vpop.f32.mrf.mxu0
    %697 = vdwg.mxu0
    %698 = vmatprep.subr.bf16.mxu0 0
    %699 = vmatpush1.bf16.msra.mxu0 0
    %700 = vmatprep.subr.bf16.mxu0 0
    %701 = vmatpush1.bf16.msra.mxu0 0
    %702 = vmatprep.subr.bf16.mxu0 0
    %703 = vmatpush1.bf16.msra.mxu0 0
    %704 = vmatprep.subr.bf16.mxu0 0
    %705 = vmatpush1.bf16.msra.mxu0 0
    %706 = vmatprep.subr.bf16.mxu0 0
    %707 = vmatpush1.bf16.msra.mxu0 0
    %708 = vmatprep.subr.bf16.mxu0 0
    %709 = vmatpush1.bf16.msra.mxu0 0
    %710 = vmatprep.subr.bf16.mxu0 %v413
    %711 = vmatpush1.bf16.msra.mxu0 %v412
    %712 = vmatprep.subr.bf16.mxu0 %v397
    %713 = vmatpush1.bf16.msra.mxu0 %v396
    %714 = vmatprep.subr.bf16.mxu0 0
    %715 = vmatpush2.bf16.msra.mxu0 0
    %716 = vmatprep.subr.bf16.mxu0 0
    %717 = vmatpush2.bf16.msra.mxu0 0
    %718 = vmatprep.subr.bf16.mxu0 0
    %719 = vmatpush2.bf16.msra.mxu0 0
    %720 = vmatprep.subr.bf16.mxu0 0
    %721 = vmatpush2.bf16.msra.mxu0 0
    %722 = vmatprep.subr.bf16.mxu0 0
    %723 = vmatpush2.bf16.msra.mxu0 0
    %724 = vmatprep.subr.bf16.mxu0 0
    %725 = vmatpush2.bf16.msra.mxu0 0
    %726 = vmatprep.subr.bf16.mxu0 0
    %727 = vmatpush2.bf16.msra.mxu0 0
    %728 = vmatprep.subr.bf16.mxu0 0
    %729 = vmatpush2.bf16.msra.mxu0 0
    %730 = vmatprep.mubr.bf16.mxu0 0
    %731 = vmatmul.mubr.bf16.gmra.mxu0 %v450
    %v732 = vpop.f32.mrf.mxu0
    %v733 = vadd.f32 %v259, %v732
    %v734 = vpop.f32.mrf.mxu0
    %v735 = vadd.f32 %v263, %v734
    %v736 = vpop.f32.mrf.mxu0
    %v737 = vpop.f32.mrf.mxu0
    %738 = vdwg.mxu0
    %739 = vmatprep.subr.bf16.mxu0 0
    %740 = vmatpush1.bf16.msra.mxu0 0
    %741 = vmatprep.subr.bf16.mxu0 0
    %742 = vmatpush1.bf16.msra.mxu0 0
    %743 = vmatprep.subr.bf16.mxu0 0
    %744 = vmatpush1.bf16.msra.mxu0 0
    %745 = vmatprep.subr.bf16.mxu0 0
    %746 = vmatpush1.bf16.msra.mxu0 0
    %747 = vmatprep.subr.bf16.mxu0 0
    %748 = vmatpush1.bf16.msra.mxu0 0
    %749 = vmatprep.subr.bf16.mxu0 0
    %750 = vmatpush1.bf16.msra.mxu0 0
    %751 = vmatprep.subr.bf16.mxu0 %v415
    %752 = vmatpush1.bf16.msra.mxu0 %v414
    %753 = vmatprep.subr.bf16.mxu0 %v399
    %754 = vmatpush1.bf16.msra.mxu0 %v398
    %755 = vmatprep.subr.bf16.mxu0 0
    %756 = vmatpush2.bf16.msra.mxu0 0
    %757 = vmatprep.subr.bf16.mxu0 0
    %758 = vmatpush2.bf16.msra.mxu0 0
    %759 = vmatprep.subr.bf16.mxu0 0
    %760 = vmatpush2.bf16.msra.mxu0 0
    %761 = vmatprep.subr.bf16.mxu0 0
    %762 = vmatpush2.bf16.msra.mxu0 0
    %763 = vmatprep.subr.bf16.mxu0 0
    %764 = vmatpush2.bf16.msra.mxu0 0
    %765 = vmatprep.subr.bf16.mxu0 0
    %766 = vmatpush2.bf16.msra.mxu0 0
    %767 = vmatprep.subr.bf16.mxu0 0
    %768 = vmatpush2.bf16.msra.mxu0 0
    %769 = vmatprep.subr.bf16.mxu0 0
    %770 = vmatpush2.bf16.msra.mxu0 0
    %771 = vmatprep.mubr.bf16.mxu0 0
    %772 = vmatmul.mubr.bf16.gmra.mxu0 %v450
    %v773 = vpop.f32.mrf.mxu0
    %v774 = vadd.f32 %v267, %v773
    %v775 = vpop.f32.mrf.mxu0
    %v776 = vadd.f32 %v271, %v775
    %v777 = vpop.f32.mrf.mxu0
    %v778 = vpop.f32.mrf.mxu0
    %779 = vdwg.mxu0
    %v780 = vmax.f32 %v487, 0.0
    %v781 = vmax.f32 %v489, 0.0
    %v782 = vmax.f32 %v528, 0.0
    %v783 = vmax.f32 %v530, 0.0
    %v784 = vmax.f32 %v569, 0.0
    %v785 = vmax.f32 %v571, 0.0
    %v786 = vmax.f32 %v610, 0.0
    %v787 = vmax.f32 %v612, 0.0
    %v788 = vmax.f32 %v651, 0.0
    %v789 = vmax.f32 %v653, 0.0
    %v790 = vmax.f32 %v692, 0.0
    %v791 = vmax.f32 %v694, 0.0
    %v792 = vmax.f32 %v733, 0.0
    %v793 = vmax.f32 %v735, 0.0
    %v794 = vmax.f32 %v774, 0.0
    %v795 = vmax.f32 %v776, 0.0
    %v796 = vpack.c.bf16 %v780, %v780
    %v797 = vpack.c.bf16 %v781, %v781
    %v798 = vpack.c.bf16 %v782, %v782
    %v799 = vpack.c.bf16 %v783, %v783
    %v800 = vpack.c.bf16 %v784, %v784
    %v801 = vpack.c.bf16 %v785, %v785
    %v802 = vpack.c.bf16 %v786, %v786
    %v803 = vpack.c.bf16 %v787, %v787
    %v804 = vpack.c.bf16 %v788, %v788
    %v805 = vpack.c.bf16 %v789, %v789
    %v806 = vpack.c.bf16 %v790, %v790
    %v807 = vpack.c.bf16 %v791, %v791
    %v808 = vpack.c.bf16 %v792, %v792
    %v809 = vpack.c.bf16 %v793, %v793
    %v810 = vpack.c.bf16 %v794, %v794
    %v811 = vpack.c.bf16 %v795, %v795
    %v812 = vld [vmem:[#allocation7] sm:$0xff]
    %v813 = vld [vmem:[#allocation7 + $0x8] sm:$0xff]
    %v814 = vld [vmem:[#allocation7 + $0x10] sm:$0xff]
    %v815 = vld [vmem:[#allocation7 + $0x18] sm:$0xff]
    %v816 = vld [vmem:[#allocation7 + $0x20] sm:$0xff]
    %v817 = vld [vmem:[#allocation7 + $0x28] sm:$0xff]
    %v818 = vld [vmem:[#allocation7 + $0x30] sm:$0xff]
    %v819 = vld [vmem:[#allocation7 + $0x38] sm:$0xff]
    %v820 = vld [vmem:[#allocation7 + $0x40] sm:$0xff]
    %v821 = vld [vmem:[#allocation7 + $0x48] sm:$0xff]
    %v822 = vld [vmem:[#allocation7 + $0x50] sm:$0xff]
    %v823 = vld [vmem:[#allocation7 + $0x58] sm:$0xff]
    %v824 = vld [vmem:[#allocation7 + $0x60] sm:$0xff]
    %v825 = vld [vmem:[#allocation7 + $0x68] sm:$0xff]
    %v826 = vld [vmem:[#allocation7 + $0x70] sm:$0xff]
    %v827 = vld [vmem:[#allocation7 + $0x78] sm:$0xff]
    %v828 = vld [vmem:[#allocation7 + $0x80] sm:$0xff]
    %v829 = vld [vmem:[#allocation7 + $0x88] sm:$0xff]
    %v830 = vld [vmem:[#allocation7 + $0x90] sm:$0xff]
    %v831 = vld [vmem:[#allocation7 + $0x98] sm:$0xff]
    %v832 = vld [vmem:[#allocation7 + $0xa0] sm:$0xff]
    %v833 = vld [vmem:[#allocation7 + $0xa8] sm:$0xff]
    %v834 = vld [vmem:[#allocation7 + $0xb0] sm:$0xff]
    %v835 = vld [vmem:[#allocation7 + $0xb8] sm:$0xff]
    %v836 = vld [vmem:[#allocation7 + $0xc0] sm:$0xff]
    %v837 = vld [vmem:[#allocation7 + $0xc8] sm:$0xff]
    %v838 = vld [vmem:[#allocation7 + $0xd0] sm:$0xff]
    %v839 = vld [vmem:[#allocation7 + $0xd8] sm:$0xff]
    %v840 = vld [vmem:[#allocation7 + $0xe0] sm:$0xff]
    %v841 = vld [vmem:[#allocation7 + $0xe8] sm:$0xff]
    %v842 = vld [vmem:[#allocation7 + $0xf0] sm:$0xff]
    %v843 = vld [vmem:[#allocation7 + $0xf8] sm:$0xff]
    %v844 = vld [vmem:[#allocation7 + $0x100] sm:$0xff]
    %v845 = vld [vmem:[#allocation7 + $0x108] sm:$0xff]
    %v846 = vld [vmem:[#allocation7 + $0x110] sm:$0xff]
    %v847 = vld [vmem:[#allocation7 + $0x118] sm:$0xff]
    %v848 = vld [vmem:[#allocation7 + $0x120] sm:$0xff]
    %v849 = vld [vmem:[#allocation7 + $0x128] sm:$0xff]
    %v850 = vld [vmem:[#allocation7 + $0x130] sm:$0xff]
    %v851 = vld [vmem:[#allocation7 + $0x138] sm:$0xff]
    %v852 = vld [vmem:[#allocation7 + $0x140] sm:$0xff]
    %v853 = vld [vmem:[#allocation7 + $0x148] sm:$0xff]
    %v854 = vld [vmem:[#allocation7 + $0x150] sm:$0xff]
    %v855 = vld [vmem:[#allocation7 + $0x158] sm:$0xff]
    %v856 = vld [vmem:[#allocation7 + $0x160] sm:$0xff]
    %v857 = vld [vmem:[#allocation7 + $0x168] sm:$0xff]
    %v858 = vld [vmem:[#allocation7 + $0x170] sm:$0xff]
    %v859 = vld [vmem:[#allocation7 + $0x178] sm:$0xff]
    %v860 = vld [vmem:[#allocation7 + $0x180] sm:$0xff]
    %v861 = vld [vmem:[#allocation7 + $0x188] sm:$0xff]
    %v862 = vld [vmem:[#allocation7 + $0x190] sm:$0xff]
    %v863 = vld [vmem:[#allocation7 + $0x198] sm:$0xff]
    %v864 = vld [vmem:[#allocation7 + $0x1a0] sm:$0xff]
    %v865 = vld [vmem:[#allocation7 + $0x1a8] sm:$0xff]
    %v866 = vld [vmem:[#allocation7 + $0x1b0] sm:$0xff]
    %v867 = vld [vmem:[#allocation7 + $0x1b8] sm:$0xff]
    %v868 = vld [vmem:[#allocation7 + $0x1c0] sm:$0xff]
    %v869 = vld [vmem:[#allocation7 + $0x1c8] sm:$0xff]
    %v870 = vld [vmem:[#allocation7 + $0x1d0] sm:$0xff]
    %v871 = vld [vmem:[#allocation7 + $0x1d8] sm:$0xff]
    %v872 = vld [vmem:[#allocation7 + $0x1e0] sm:$0xff]
    %v873 = vld [vmem:[#allocation7 + $0x1e8] sm:$0xff]
    %v874 = vld [vmem:[#allocation7 + $0x1f0] sm:$0xff]
    %v875 = vld [vmem:[#allocation7 + $0x1f8] sm:$0xff]
    %v876 = vld [vmem:[#allocation7 + $0x200] sm:$0xff]
    %v877 = vld [vmem:[#allocation7 + $0x208] sm:$0xff]
    %v878 = vld [vmem:[#allocation7 + $0x210] sm:$0xff]
    %v879 = vld [vmem:[#allocation7 + $0x218] sm:$0xff]
    %v880 = vld [vmem:[#allocation7 + $0x220] sm:$0xff]
    %v881 = vld [vmem:[#allocation7 + $0x228] sm:$0xff]
    %v882 = vld [vmem:[#allocation7 + $0x230] sm:$0xff]
    %v883 = vld [vmem:[#allocation7 + $0x238] sm:$0xff]
    %v884 = vld [vmem:[#allocation7 + $0x240] sm:$0xff]
    %v885 = vld [vmem:[#allocation7 + $0x248] sm:$0xff]
    %v886 = vld [vmem:[#allocation7 + $0x250] sm:$0xff]
    %v887 = vld [vmem:[#allocation7 + $0x258] sm:$0xff]
    %v888 = vld [vmem:[#allocation7 + $0x260] sm:$0xff]
    %v889 = vld [vmem:[#allocation7 + $0x268] sm:$0xff]
    %v890 = vld [vmem:[#allocation7 + $0x270] sm:$0xff]
    %v891 = vld [vmem:[#allocation7 + $0x278] sm:$0xff]
    %v892 = vld [vmem:[#allocation7 + $0x280] sm:$0xff]
    %v893 = vld [vmem:[#allocation7 + $0x288] sm:$0xff]
    %v894 = vld [vmem:[#allocation7 + $0x290] sm:$0xff]
    %v895 = vld [vmem:[#allocation7 + $0x298] sm:$0xff]
    %v896 = vld [vmem:[#allocation7 + $0x2a0] sm:$0xff]
    %v897 = vld [vmem:[#allocation7 + $0x2a8] sm:$0xff]
    %v898 = vld [vmem:[#allocation7 + $0x2b0] sm:$0xff]
    %v899 = vld [vmem:[#allocation7 + $0x2b8] sm:$0xff]
    %v900 = vld [vmem:[#allocation7 + $0x2c0] sm:$0xff]
    %v901 = vld [vmem:[#allocation7 + $0x2c8] sm:$0xff]
    %v902 = vld [vmem:[#allocation7 + $0x2d0] sm:$0xff]
    %v903 = vld [vmem:[#allocation7 + $0x2d8] sm:$0xff]
    %v904 = vld [vmem:[#allocation7 + $0x2e0] sm:$0xff]
    %v905 = vld [vmem:[#allocation7 + $0x2e8] sm:$0xff]
    %v906 = vld [vmem:[#allocation7 + $0x2f0] sm:$0xff]
    %v907 = vld [vmem:[#allocation7 + $0x2f8] sm:$0xff]
    %v908 = vld [vmem:[#allocation7 + $0x300] sm:$0xff]
    %v909 = vld [vmem:[#allocation7 + $0x308] sm:$0xff]
    %v910 = vld [vmem:[#allocation7 + $0x310] sm:$0xff]
    %v911 = vld [vmem:[#allocation7 + $0x318] sm:$0xff]
    %v912 = vld [vmem:[#allocation7 + $0x320] sm:$0xff]
    %v913 = vld [vmem:[#allocation7 + $0x328] sm:$0xff]
    %v914 = vld [vmem:[#allocation7 + $0x330] sm:$0xff]
    %v915 = vld [vmem:[#allocation7 + $0x338] sm:$0xff]
    %v916 = vld [vmem:[#allocation7 + $0x340] sm:$0xff]
    %v917 = vld [vmem:[#allocation7 + $0x348] sm:$0xff]
    %v918 = vld [vmem:[#allocation7 + $0x350] sm:$0xff]
    %v919 = vld [vmem:[#allocation7 + $0x358] sm:$0xff]
    %v920 = vld [vmem:[#allocation7 + $0x360] sm:$0xff]
    %v921 = vld [vmem:[#allocation7 + $0x368] sm:$0xff]
    %v922 = vld [vmem:[#allocation7 + $0x370] sm:$0xff]
    %v923 = vld [vmem:[#allocation7 + $0x378] sm:$0xff]
    %v924 = vld [vmem:[#allocation7 + $0x380] sm:$0xff]
    %v925 = vld [vmem:[#allocation7 + $0x388] sm:$0xff]
    %v926 = vld [vmem:[#allocation7 + $0x390] sm:$0xff]
    %v927 = vld [vmem:[#allocation7 + $0x398] sm:$0xff]
    %v928 = vld [vmem:[#allocation7 + $0x3a0] sm:$0xff]
    %v929 = vld [vmem:[#allocation7 + $0x3a8] sm:$0xff]
    %v930 = vld [vmem:[#allocation7 + $0x3b0] sm:$0xff]
    %v931 = vld [vmem:[#allocation7 + $0x3b8] sm:$0xff]
    %v932 = vld [vmem:[#allocation7 + $0x3c0] sm:$0xff]
    %v933 = vld [vmem:[#allocation7 + $0x3c8] sm:$0xff]
    %v934 = vld [vmem:[#allocation7 + $0x3d0] sm:$0xff]
    %v935 = vld [vmem:[#allocation7 + $0x3d8] sm:$0xff]
    %v936 = vld [vmem:[#allocation7 + $0x3e0] sm:$0xff]
    %v937 = vld [vmem:[#allocation7 + $0x3e8] sm:$0xff]
    %v938 = vld [vmem:[#allocation7 + $0x3f0] sm:$0xff]
    %v939 = vld [vmem:[#allocation7 + $0x3f8] sm:$0xff]
    %v940 = vld [vmem:[#allocation7 + $0x400] sm:$0xff]
    %v941 = vld [vmem:[#allocation7 + $0x408] sm:$0xff]
    %v942 = vld [vmem:[#allocation7 + $0x410] sm:$0xff]
    %v943 = vld [vmem:[#allocation7 + $0x418] sm:$0xff]
    %v944 = vld [vmem:[#allocation7 + $0x420] sm:$0xff]
    %v945 = vld [vmem:[#allocation7 + $0x428] sm:$0xff]
    %v946 = vld [vmem:[#allocation7 + $0x430] sm:$0xff]
    %v947 = vld [vmem:[#allocation7 + $0x438] sm:$0xff]
    %v948 = vld [vmem:[#allocation7 + $0x440] sm:$0xff]
    %v949 = vld [vmem:[#allocation7 + $0x448] sm:$0xff]
    %v950 = vld [vmem:[#allocation7 + $0x450] sm:$0xff]
    %v951 = vld [vmem:[#allocation7 + $0x458] sm:$0xff]
    %v952 = vld [vmem:[#allocation7 + $0x460] sm:$0xff]
    %v953 = vld [vmem:[#allocation7 + $0x468] sm:$0xff]
    %v954 = vld [vmem:[#allocation7 + $0x470] sm:$0xff]
    %v955 = vld [vmem:[#allocation7 + $0x478] sm:$0xff]
    %v956 = vld [vmem:[#allocation7 + $0x480] sm:$0xff]
    %v957 = vld [vmem:[#allocation7 + $0x488] sm:$0xff]
    %v958 = vld [vmem:[#allocation7 + $0x490] sm:$0xff]
    %v959 = vld [vmem:[#allocation7 + $0x498] sm:$0xff]
    %v960 = vld [vmem:[#allocation7 + $0x4a0] sm:$0xff]
    %v961 = vld [vmem:[#allocation7 + $0x4a8] sm:$0xff]
    %v962 = vld [vmem:[#allocation7 + $0x4b0] sm:$0xff]
    %v963 = vld [vmem:[#allocation7 + $0x4b8] sm:$0xff]
    %v964 = vld [vmem:[#allocation7 + $0x4c0] sm:$0xff]
    %v965 = vld [vmem:[#allocation7 + $0x4c8] sm:$0xff]
    %v966 = vld [vmem:[#allocation7 + $0x4d0] sm:$0xff]
    %v967 = vld [vmem:[#allocation7 + $0x4d8] sm:$0xff]
    %v968 = vld [vmem:[#allocation7 + $0x4e0] sm:$0xff]
    %v969 = vld [vmem:[#allocation7 + $0x4e8] sm:$0xff]
    %v970 = vld [vmem:[#allocation7 + $0x4f0] sm:$0xff]
    %v971 = vld [vmem:[#allocation7 + $0x4f8] sm:$0xff]
    %v972 = vld [vmem:[#allocation7 + $0x500] sm:$0xff]
    %v973 = vld [vmem:[#allocation7 + $0x508] sm:$0xff]
    %v974 = vld [vmem:[#allocation7 + $0x510] sm:$0xff]
    %v975 = vld [vmem:[#allocation7 + $0x518] sm:$0xff]
    %v976 = vld [vmem:[#allocation7 + $0x520] sm:$0xff]
    %v977 = vld [vmem:[#allocation7 + $0x528] sm:$0xff]
    %v978 = vld [vmem:[#allocation7 + $0x530] sm:$0xff]
    %v979 = vld [vmem:[#allocation7 + $0x538] sm:$0xff]
    %v980 = vld [vmem:[#allocation7 + $0x540] sm:$0xff]
    %v981 = vld [vmem:[#allocation7 + $0x548] sm:$0xff]
    %v982 = vld [vmem:[#allocation7 + $0x550] sm:$0xff]
    %v983 = vld [vmem:[#allocation7 + $0x558] sm:$0xff]
    %v984 = vld [vmem:[#allocation7 + $0x560] sm:$0xff]
    %v985 = vld [vmem:[#allocation7 + $0x568] sm:$0xff]
    %v986 = vld [vmem:[#allocation7 + $0x570] sm:$0xff]
    %v987 = vld [vmem:[#allocation7 + $0x578] sm:$0xff]
    %v988 = vld [vmem:[#allocation7 + $0x580] sm:$0xff]
    %v989 = vld [vmem:[#allocation7 + $0x588] sm:$0xff]
    %v990 = vld [vmem:[#allocation7 + $0x590] sm:$0xff]
    %v991 = vld [vmem:[#allocation7 + $0x598] sm:$0xff]
    %v992 = vld [vmem:[#allocation7 + $0x5a0] sm:$0xff]
    %v993 = vld [vmem:[#allocation7 + $0x5a8] sm:$0xff]
    %v994 = vld [vmem:[#allocation7 + $0x5b0] sm:$0xff]
    %v995 = vld [vmem:[#allocation7 + $0x5b8] sm:$0xff]
    %v996 = vld [vmem:[#allocation7 + $0x5c0] sm:$0xff]
    %v997 = vld [vmem:[#allocation7 + $0x5c8] sm:$0xff]
    %v998 = vld [vmem:[#allocation7 + $0x5d0] sm:$0xff]
    %v999 = vld [vmem:[#allocation7 + $0x5d8] sm:$0xff]
    %v1000 = vld [vmem:[#allocation7 + $0x5e0] sm:$0xff]
    %v1001 = vld [vmem:[#allocation7 + $0x5e8] sm:$0xff]
    %v1002 = vld [vmem:[#allocation7 + $0x5f0] sm:$0xff]
    %v1003 = vld [vmem:[#allocation7 + $0x5f8] sm:$0xff]
    %v1004 = vld [vmem:[#allocation7 + $0x600] sm:$0xff]
    %v1005 = vld [vmem:[#allocation7 + $0x608] sm:$0xff]
    %v1006 = vld [vmem:[#allocation7 + $0x610] sm:$0xff]
    %v1007 = vld [vmem:[#allocation7 + $0x618] sm:$0xff]
    %v1008 = vld [vmem:[#allocation7 + $0x620] sm:$0xff]
    %v1009 = vld [vmem:[#allocation7 + $0x628] sm:$0xff]
    %v1010 = vld [vmem:[#allocation7 + $0x630] sm:$0xff]
    %v1011 = vld [vmem:[#allocation7 + $0x638] sm:$0xff]
    %v1012 = vld [vmem:[#allocation7 + $0x640] sm:$0xff]
    %v1013 = vld [vmem:[#allocation7 + $0x648] sm:$0xff]
    %v1014 = vld [vmem:[#allocation7 + $0x650] sm:$0xff]
    %v1015 = vld [vmem:[#allocation7 + $0x658] sm:$0xff]
    %v1016 = vld [vmem:[#allocation7 + $0x660] sm:$0xff]
    %v1017 = vld [vmem:[#allocation7 + $0x668] sm:$0xff]
    %v1018 = vld [vmem:[#allocation7 + $0x670] sm:$0xff]
    %v1019 = vld [vmem:[#allocation7 + $0x678] sm:$0xff]
    %v1020 = vld [vmem:[#allocation7 + $0x680] sm:$0xff]
    %v1021 = vld [vmem:[#allocation7 + $0x688] sm:$0xff]
    %v1022 = vld [vmem:[#allocation7 + $0x690] sm:$0xff]
    %v1023 = vld [vmem:[#allocation7 + $0x698] sm:$0xff]
    %v1024 = vld [vmem:[#allocation7 + $0x6a0] sm:$0xff]
    %v1025 = vld [vmem:[#allocation7 + $0x6a8] sm:$0xff]
    %v1026 = vld [vmem:[#allocation7 + $0x6b0] sm:$0xff]
    %v1027 = vld [vmem:[#allocation7 + $0x6b8] sm:$0xff]
    %v1028 = vld [vmem:[#allocation7 + $0x6c0] sm:$0xff]
    %v1029 = vld [vmem:[#allocation7 + $0x6c8] sm:$0xff]
    %v1030 = vld [vmem:[#allocation7 + $0x6d0] sm:$0xff]
    %v1031 = vld [vmem:[#allocation7 + $0x6d8] sm:$0xff]
    %v1032 = vld [vmem:[#allocation7 + $0x6e0] sm:$0xff]
    %v1033 = vld [vmem:[#allocation7 + $0x6e8] sm:$0xff]
    %v1034 = vld [vmem:[#allocation7 + $0x6f0] sm:$0xff]
    %v1035 = vld [vmem:[#allocation7 + $0x6f8] sm:$0xff]
    %v1036 = vld [vmem:[#allocation7 + $0x700] sm:$0xff]
    %v1037 = vld [vmem:[#allocation7 + $0x708] sm:$0xff]
    %v1038 = vld [vmem:[#allocation7 + $0x710] sm:$0xff]
    %v1039 = vld [vmem:[#allocation7 + $0x718] sm:$0xff]
    %v1040 = vld [vmem:[#allocation7 + $0x720] sm:$0xff]
    %v1041 = vld [vmem:[#allocation7 + $0x728] sm:$0xff]
    %v1042 = vld [vmem:[#allocation7 + $0x730] sm:$0xff]
    %v1043 = vld [vmem:[#allocation7 + $0x738] sm:$0xff]
    %v1044 = vld [vmem:[#allocation7 + $0x740] sm:$0xff]
    %v1045 = vld [vmem:[#allocation7 + $0x748] sm:$0xff]
    %v1046 = vld [vmem:[#allocation7 + $0x750] sm:$0xff]
    %v1047 = vld [vmem:[#allocation7 + $0x758] sm:$0xff]
    %v1048 = vld [vmem:[#allocation7 + $0x760] sm:$0xff]
    %v1049 = vld [vmem:[#allocation7 + $0x768] sm:$0xff]
    %v1050 = vld [vmem:[#allocation7 + $0x770] sm:$0xff]
    %v1051 = vld [vmem:[#allocation7 + $0x778] sm:$0xff]
    %v1052 = vld [vmem:[#allocation7 + $0x780] sm:$0xff]
    %v1053 = vld [vmem:[#allocation7 + $0x788] sm:$0xff]
    %v1054 = vld [vmem:[#allocation7 + $0x790] sm:$0xff]
    %v1055 = vld [vmem:[#allocation7 + $0x798] sm:$0xff]
    %v1056 = vld [vmem:[#allocation7 + $0x7a0] sm:$0xff]
    %v1057 = vld [vmem:[#allocation7 + $0x7a8] sm:$0xff]
    %v1058 = vld [vmem:[#allocation7 + $0x7b0] sm:$0xff]
    %v1059 = vld [vmem:[#allocation7 + $0x7b8] sm:$0xff]
    %v1060 = vld [vmem:[#allocation7 + $0x7c0] sm:$0xff]
    %v1061 = vld [vmem:[#allocation7 + $0x7c8] sm:$0xff]
    %v1062 = vld [vmem:[#allocation7 + $0x7d0] sm:$0xff]
    %v1063 = vld [vmem:[#allocation7 + $0x7d8] sm:$0xff]
    %v1064 = vld [vmem:[#allocation7 + $0x7e0] sm:$0xff]
    %v1065 = vld [vmem:[#allocation7 + $0x7e8] sm:$0xff]
    %v1066 = vld [vmem:[#allocation7 + $0x7f0] sm:$0xff]
    %v1067 = vld [vmem:[#allocation7 + $0x7f8] sm:$0xff]
    %v1068 = vld [vmem:[#allocation7 + $0x800] sm:$0xff]
    %v1069 = vld [vmem:[#allocation7 + $0x808] sm:$0xff]
    %v1070 = vld [vmem:[#allocation7 + $0x810] sm:$0xff]
    %v1071 = vld [vmem:[#allocation7 + $0x818] sm:$0xff]
    %v1072 = vld [vmem:[#allocation7 + $0x820] sm:$0xff]
    %v1073 = vld [vmem:[#allocation7 + $0x828] sm:$0xff]
    %v1074 = vld [vmem:[#allocation7 + $0x830] sm:$0xff]
    %v1075 = vld [vmem:[#allocation7 + $0x838] sm:$0xff]
    %v1076 = vld [vmem:[#allocation7 + $0x840] sm:$0xff]
    %v1077 = vld [vmem:[#allocation7 + $0x848] sm:$0xff]
    %v1078 = vld [vmem:[#allocation7 + $0x850] sm:$0xff]
    %v1079 = vld [vmem:[#allocation7 + $0x858] sm:$0xff]
    %v1080 = vld [vmem:[#allocation7 + $0x860] sm:$0xff]
    %v1081 = vld [vmem:[#allocation7 + $0x868] sm:$0xff]
    %v1082 = vld [vmem:[#allocation7 + $0x870] sm:$0xff]
    %v1083 = vld [vmem:[#allocation7 + $0x878] sm:$0xff]
    %v1084 = vld [vmem:[#allocation7 + $0x880] sm:$0xff]
    %v1085 = vld [vmem:[#allocation7 + $0x888] sm:$0xff]
    %v1086 = vld [vmem:[#allocation7 + $0x890] sm:$0xff]
    %v1087 = vld [vmem:[#allocation7 + $0x898] sm:$0xff]
    %v1088 = vld [vmem:[#allocation7 + $0x8a0] sm:$0xff]
    %v1089 = vld [vmem:[#allocation7 + $0x8a8] sm:$0xff]
    %v1090 = vld [vmem:[#allocation7 + $0x8b0] sm:$0xff]
    %v1091 = vld [vmem:[#allocation7 + $0x8b8] sm:$0xff]
    %v1092 = vld [vmem:[#allocation7 + $0x8c0] sm:$0xff]
    %v1093 = vld [vmem:[#allocation7 + $0x8c8] sm:$0xff]
    %v1094 = vld [vmem:[#allocation7 + $0x8d0] sm:$0xff]
    %v1095 = vld [vmem:[#allocation7 + $0x8d8] sm:$0xff]
    %v1096 = vld [vmem:[#allocation7 + $0x8e0] sm:$0xff]
    %v1097 = vld [vmem:[#allocation7 + $0x8e8] sm:$0xff]
    %v1098 = vld [vmem:[#allocation7 + $0x8f0] sm:$0xff]
    %v1099 = vld [vmem:[#allocation7 + $0x8f8] sm:$0xff]
    %v1100 = vld [vmem:[#allocation7 + $0x900] sm:$0xff]
    %v1101 = vld [vmem:[#allocation7 + $0x908] sm:$0xff]
    %v1102 = vld [vmem:[#allocation7 + $0x910] sm:$0xff]
    %v1103 = vld [vmem:[#allocation7 + $0x918] sm:$0xff]
    %v1104 = vld [vmem:[#allocation7 + $0x920] sm:$0xff]
    %v1105 = vld [vmem:[#allocation7 + $0x928] sm:$0xff]
    %v1106 = vld [vmem:[#allocation7 + $0x930] sm:$0xff]
    %v1107 = vld [vmem:[#allocation7 + $0x938] sm:$0xff]
    %v1108 = vld [vmem:[#allocation7 + $0x940] sm:$0xff]
    %v1109 = vld [vmem:[#allocation7 + $0x948] sm:$0xff]
    %v1110 = vld [vmem:[#allocation7 + $0x950] sm:$0xff]
    %v1111 = vld [vmem:[#allocation7 + $0x958] sm:$0xff]
    %v1112 = vld [vmem:[#allocation7 + $0x960] sm:$0xff]
    %v1113 = vld [vmem:[#allocation7 + $0x968] sm:$0xff]
    %v1114 = vld [vmem:[#allocation7 + $0x970] sm:$0xff]
    %v1115 = vld [vmem:[#allocation7 + $0x978] sm:$0xff]
    %v1116 = vld [vmem:[#allocation7 + $0x980] sm:$0xff]
    %v1117 = vld [vmem:[#allocation7 + $0x988] sm:$0xff]
    %v1118 = vld [vmem:[#allocation7 + $0x990] sm:$0xff]
    %v1119 = vld [vmem:[#allocation7 + $0x998] sm:$0xff]
    %v1120 = vld [vmem:[#allocation7 + $0x9a0] sm:$0xff]
    %v1121 = vld [vmem:[#allocation7 + $0x9a8] sm:$0xff]
    %v1122 = vld [vmem:[#allocation7 + $0x9b0] sm:$0xff]
    %v1123 = vld [vmem:[#allocation7 + $0x9b8] sm:$0xff]
    %v1124 = vld [vmem:[#allocation7 + $0x9c0] sm:$0xff]
    %v1125 = vld [vmem:[#allocation7 + $0x9c8] sm:$0xff]
    %v1126 = vld [vmem:[#allocation7 + $0x9d0] sm:$0xff]
    %v1127 = vld [vmem:[#allocation7 + $0x9d8] sm:$0xff]
    %v1128 = vld [vmem:[#allocation7 + $0x9e0] sm:$0xff]
    %v1129 = vld [vmem:[#allocation7 + $0x9e8] sm:$0xff]
    %v1130 = vld [vmem:[#allocation7 + $0x9f0] sm:$0xff]
    %v1131 = vld [vmem:[#allocation7 + $0x9f8] sm:$0xff]
    %v1132 = vld [vmem:[#allocation7 + $0xa00] sm:$0xff]
    %v1133 = vld [vmem:[#allocation7 + $0xa08] sm:$0xff]
    %v1134 = vld [vmem:[#allocation7 + $0xa10] sm:$0xff]
    %v1135 = vld [vmem:[#allocation7 + $0xa18] sm:$0xff]
    %v1136 = vld [vmem:[#allocation7 + $0xa20] sm:$0xff]
    %v1137 = vld [vmem:[#allocation7 + $0xa28] sm:$0xff]
    %v1138 = vld [vmem:[#allocation7 + $0xa30] sm:$0xff]
    %v1139 = vld [vmem:[#allocation7 + $0xa38] sm:$0xff]
    %v1140 = vld [vmem:[#allocation7 + $0xa40] sm:$0xff]
    %v1141 = vld [vmem:[#allocation7 + $0xa48] sm:$0xff]
    %v1142 = vld [vmem:[#allocation7 + $0xa50] sm:$0xff]
    %v1143 = vld [vmem:[#allocation7 + $0xa58] sm:$0xff]
    %v1144 = vld [vmem:[#allocation7 + $0xa60] sm:$0xff]
    %v1145 = vld [vmem:[#allocation7 + $0xa68] sm:$0xff]
    %v1146 = vld [vmem:[#allocation7 + $0xa70] sm:$0xff]
    %v1147 = vld [vmem:[#allocation7 + $0xa78] sm:$0xff]
    %v1148 = vld [vmem:[#allocation7 + $0xa80] sm:$0xff]
    %v1149 = vld [vmem:[#allocation7 + $0xa88] sm:$0xff]
    %v1150 = vld [vmem:[#allocation7 + $0xa90] sm:$0xff]
    %v1151 = vld [vmem:[#allocation7 + $0xa98] sm:$0xff]
    %v1152 = vld [vmem:[#allocation7 + $0xaa0] sm:$0xff]
    %v1153 = vld [vmem:[#allocation7 + $0xaa8] sm:$0xff]
    %v1154 = vld [vmem:[#allocation7 + $0xab0] sm:$0xff]
    %v1155 = vld [vmem:[#allocation7 + $0xab8] sm:$0xff]
    %v1156 = vld [vmem:[#allocation7 + $0xac0] sm:$0xff]
    %v1157 = vld [vmem:[#allocation7 + $0xac8] sm:$0xff]
    %v1158 = vld [vmem:[#allocation7 + $0xad0] sm:$0xff]
    %v1159 = vld [vmem:[#allocation7 + $0xad8] sm:$0xff]
    %v1160 = vld [vmem:[#allocation7 + $0xae0] sm:$0xff]
    %v1161 = vld [vmem:[#allocation7 + $0xae8] sm:$0xff]
    %v1162 = vld [vmem:[#allocation7 + $0xaf0] sm:$0xff]
    %v1163 = vld [vmem:[#allocation7 + $0xaf8] sm:$0xff]
    %v1164 = vld [vmem:[#allocation7 + $0xb00] sm:$0xff]
    %v1165 = vld [vmem:[#allocation7 + $0xb08] sm:$0xff]
    %v1166 = vld [vmem:[#allocation7 + $0xb10] sm:$0xff]
    %v1167 = vld [vmem:[#allocation7 + $0xb18] sm:$0xff]
    %v1168 = vld [vmem:[#allocation7 + $0xb20] sm:$0xff]
    %v1169 = vld [vmem:[#allocation7 + $0xb28] sm:$0xff]
    %v1170 = vld [vmem:[#allocation7 + $0xb30] sm:$0xff]
    %v1171 = vld [vmem:[#allocation7 + $0xb38] sm:$0xff]
    %v1172 = vld [vmem:[#allocation7 + $0xb40] sm:$0xff]
    %v1173 = vld [vmem:[#allocation7 + $0xb48] sm:$0xff]
    %v1174 = vld [vmem:[#allocation7 + $0xb50] sm:$0xff]
    %v1175 = vld [vmem:[#allocation7 + $0xb58] sm:$0xff]
    %v1176 = vld [vmem:[#allocation7 + $0xb60] sm:$0xff]
    %v1177 = vld [vmem:[#allocation7 + $0xb68] sm:$0xff]
    %v1178 = vld [vmem:[#allocation7 + $0xb70] sm:$0xff]
    %v1179 = vld [vmem:[#allocation7 + $0xb78] sm:$0xff]
    %v1180 = vld [vmem:[#allocation7 + $0xb80] sm:$0xff]
    %v1181 = vld [vmem:[#allocation7 + $0xb88] sm:$0xff]
    %v1182 = vld [vmem:[#allocation7 + $0xb90] sm:$0xff]
    %v1183 = vld [vmem:[#allocation7 + $0xb98] sm:$0xff]
    %v1184 = vld [vmem:[#allocation7 + $0xba0] sm:$0xff]
    %v1185 = vld [vmem:[#allocation7 + $0xba8] sm:$0xff]
    %v1186 = vld [vmem:[#allocation7 + $0xbb0] sm:$0xff]
    %v1187 = vld [vmem:[#allocation7 + $0xbb8] sm:$0xff]
    %v1188 = vld [vmem:[#allocation7 + $0xbc0] sm:$0xff]
    %v1189 = vld [vmem:[#allocation7 + $0xbc8] sm:$0xff]
    %v1190 = vld [vmem:[#allocation7 + $0xbd0] sm:$0xff]
    %v1191 = vld [vmem:[#allocation7 + $0xbd8] sm:$0xff]
    %v1192 = vld [vmem:[#allocation7 + $0xbe0] sm:$0xff]
    %v1193 = vld [vmem:[#allocation7 + $0xbe8] sm:$0xff]
    %v1194 = vld [vmem:[#allocation7 + $0xbf0] sm:$0xff]
    %v1195 = vld [vmem:[#allocation7 + $0xbf8] sm:$0xff]
    %v1196 = vld [vmem:[#allocation7 + $0xc00] sm:$0xff]
    %v1197 = vld [vmem:[#allocation7 + $0xc08] sm:$0xff]
    %v1198 = vld [vmem:[#allocation7 + $0xc10] sm:$0xff]
    %v1199 = vld [vmem:[#allocation7 + $0xc18] sm:$0xff]
    %v1200 = vld [vmem:[#allocation7 + $0xc20] sm:$0xff]
    %v1201 = vld [vmem:[#allocation7 + $0xc28] sm:$0xff]
    %v1202 = vld [vmem:[#allocation7 + $0xc30] sm:$0xff]
    %v1203 = vld [vmem:[#allocation7 + $0xc38] sm:$0xff]
    %v1204 = vld [vmem:[#allocation7 + $0xc40] sm:$0xff]
    %v1205 = vld [vmem:[#allocation7 + $0xc48] sm:$0xff]
    %v1206 = vld [vmem:[#allocation7 + $0xc50] sm:$0xff]
    %v1207 = vld [vmem:[#allocation7 + $0xc58] sm:$0xff]
    %v1208 = vld [vmem:[#allocation7 + $0xc60] sm:$0xff]
    %v1209 = vld [vmem:[#allocation7 + $0xc68] sm:$0xff]
    %v1210 = vld [vmem:[#allocation7 + $0xc70] sm:$0xff]
    %v1211 = vld [vmem:[#allocation7 + $0xc78] sm:$0xff]
    %v1212 = vld [vmem:[#allocation7 + $0xc80] sm:$0xff]
    %v1213 = vld [vmem:[#allocation7 + $0xc88] sm:$0xff]
    %v1214 = vld [vmem:[#allocation7 + $0xc90] sm:$0xff]
    %v1215 = vld [vmem:[#allocation7 + $0xc98] sm:$0xff]
    %v1216 = vld [vmem:[#allocation7 + $0xca0] sm:$0xff]
    %v1217 = vld [vmem:[#allocation7 + $0xca8] sm:$0xff]
    %v1218 = vld [vmem:[#allocation7 + $0xcb0] sm:$0xff]
    %v1219 = vld [vmem:[#allocation7 + $0xcb8] sm:$0xff]
    %v1220 = vld [vmem:[#allocation7 + $0xcc0] sm:$0xff]
    %v1221 = vld [vmem:[#allocation7 + $0xcc8] sm:$0xff]
    %v1222 = vld [vmem:[#allocation7 + $0xcd0] sm:$0xff]
    %v1223 = vld [vmem:[#allocation7 + $0xcd8] sm:$0xff]
    %v1224 = vld [vmem:[#allocation7 + $0xce0] sm:$0xff]
    %v1225 = vld [vmem:[#allocation7 + $0xce8] sm:$0xff]
    %v1226 = vld [vmem:[#allocation7 + $0xcf0] sm:$0xff]
    %v1227 = vld [vmem:[#allocation7 + $0xcf8] sm:$0xff]
    %v1228 = vld [vmem:[#allocation7 + $0xd00] sm:$0xff]
    %v1229 = vld [vmem:[#allocation7 + $0xd08] sm:$0xff]
    %v1230 = vld [vmem:[#allocation7 + $0xd10] sm:$0xff]
    %v1231 = vld [vmem:[#allocation7 + $0xd18] sm:$0xff]
    %v1232 = vld [vmem:[#allocation7 + $0xd20] sm:$0xff]
    %v1233 = vld [vmem:[#allocation7 + $0xd28] sm:$0xff]
    %v1234 = vld [vmem:[#allocation7 + $0xd30] sm:$0xff]
    %v1235 = vld [vmem:[#allocation7 + $0xd38] sm:$0xff]
    %v1236 = vld [vmem:[#allocation7 + $0xd40] sm:$0xff]
    %v1237 = vld [vmem:[#allocation7 + $0xd48] sm:$0xff]
    %v1238 = vld [vmem:[#allocation7 + $0xd50] sm:$0xff]
    %v1239 = vld [vmem:[#allocation7 + $0xd58] sm:$0xff]
    %v1240 = vld [vmem:[#allocation7 + $0xd60] sm:$0xff]
    %v1241 = vld [vmem:[#allocation7 + $0xd68] sm:$0xff]
    %v1242 = vld [vmem:[#allocation7 + $0xd70] sm:$0xff]
    %v1243 = vld [vmem:[#allocation7 + $0xd78] sm:$0xff]
    %v1244 = vld [vmem:[#allocation7 + $0xd80] sm:$0xff]
    %v1245 = vld [vmem:[#allocation7 + $0xd88] sm:$0xff]
    %v1246 = vld [vmem:[#allocation7 + $0xd90] sm:$0xff]
    %v1247 = vld [vmem:[#allocation7 + $0xd98] sm:$0xff]
    %v1248 = vld [vmem:[#allocation7 + $0xda0] sm:$0xff]
    %v1249 = vld [vmem:[#allocation7 + $0xda8] sm:$0xff]
    %v1250 = vld [vmem:[#allocation7 + $0xdb0] sm:$0xff]
    %v1251 = vld [vmem:[#allocation7 + $0xdb8] sm:$0xff]
    %v1252 = vld [vmem:[#allocation7 + $0xdc0] sm:$0xff]
    %v1253 = vld [vmem:[#allocation7 + $0xdc8] sm:$0xff]
    %v1254 = vld [vmem:[#allocation7 + $0xdd0] sm:$0xff]
    %v1255 = vld [vmem:[#allocation7 + $0xdd8] sm:$0xff]
    %v1256 = vld [vmem:[#allocation7 + $0xde0] sm:$0xff]
    %v1257 = vld [vmem:[#allocation7 + $0xde8] sm:$0xff]
    %v1258 = vld [vmem:[#allocation7 + $0xdf0] sm:$0xff]
    %v1259 = vld [vmem:[#allocation7 + $0xdf8] sm:$0xff]
    %v1260 = vld [vmem:[#allocation7 + $0xe00] sm:$0xff]
    %v1261 = vld [vmem:[#allocation7 + $0xe08] sm:$0xff]
    %v1262 = vld [vmem:[#allocation7 + $0xe10] sm:$0xff]
    %v1263 = vld [vmem:[#allocation7 + $0xe18] sm:$0xff]
    %v1264 = vld [vmem:[#allocation7 + $0xe20] sm:$0xff]
    %v1265 = vld [vmem:[#allocation7 + $0xe28] sm:$0xff]
    %v1266 = vld [vmem:[#allocation7 + $0xe30] sm:$0xff]
    %v1267 = vld [vmem:[#allocation7 + $0xe38] sm:$0xff]
    %v1268 = vld [vmem:[#allocation7 + $0xe40] sm:$0xff]
    %v1269 = vld [vmem:[#allocation7 + $0xe48] sm:$0xff]
    %v1270 = vld [vmem:[#allocation7 + $0xe50] sm:$0xff]
    %v1271 = vld [vmem:[#allocation7 + $0xe58] sm:$0xff]
    %v1272 = vld [vmem:[#allocation7 + $0xe60] sm:$0xff]
    %v1273 = vld [vmem:[#allocation7 + $0xe68] sm:$0xff]
    %v1274 = vld [vmem:[#allocation7 + $0xe70] sm:$0xff]
    %v1275 = vld [vmem:[#allocation7 + $0xe78] sm:$0xff]
    %v1276 = vld [vmem:[#allocation7 + $0xe80] sm:$0xff]
    %v1277 = vld [vmem:[#allocation7 + $0xe88] sm:$0xff]
    %v1278 = vld [vmem:[#allocation7 + $0xe90] sm:$0xff]
    %v1279 = vld [vmem:[#allocation7 + $0xe98] sm:$0xff]
    %v1280 = vld [vmem:[#allocation7 + $0xea0] sm:$0xff]
    %v1281 = vld [vmem:[#allocation7 + $0xea8] sm:$0xff]
    %v1282 = vld [vmem:[#allocation7 + $0xeb0] sm:$0xff]
    %v1283 = vld [vmem:[#allocation7 + $0xeb8] sm:$0xff]
    %v1284 = vld [vmem:[#allocation7 + $0xec0] sm:$0xff]
    %v1285 = vld [vmem:[#allocation7 + $0xec8] sm:$0xff]
    %v1286 = vld [vmem:[#allocation7 + $0xed0] sm:$0xff]
    %v1287 = vld [vmem:[#allocation7 + $0xed8] sm:$0xff]
    %v1288 = vld [vmem:[#allocation7 + $0xee0] sm:$0xff]
    %v1289 = vld [vmem:[#allocation7 + $0xee8] sm:$0xff]
    %v1290 = vld [vmem:[#allocation7 + $0xef0] sm:$0xff]
    %v1291 = vld [vmem:[#allocation7 + $0xef8] sm:$0xff]
    %v1292 = vld [vmem:[#allocation7 + $0xf00] sm:$0xff]
    %v1293 = vld [vmem:[#allocation7 + $0xf08] sm:$0xff]
    %v1294 = vld [vmem:[#allocation7 + $0xf10] sm:$0xff]
    %v1295 = vld [vmem:[#allocation7 + $0xf18] sm:$0xff]
    %v1296 = vld [vmem:[#allocation7 + $0xf20] sm:$0xff]
    %v1297 = vld [vmem:[#allocation7 + $0xf28] sm:$0xff]
    %v1298 = vld [vmem:[#allocation7 + $0xf30] sm:$0xff]
    %v1299 = vld [vmem:[#allocation7 + $0xf38] sm:$0xff]
    %v1300 = vld [vmem:[#allocation7 + $0xf40] sm:$0xff]
    %v1301 = vld [vmem:[#allocation7 + $0xf48] sm:$0xff]
    %v1302 = vld [vmem:[#allocation7 + $0xf50] sm:$0xff]
    %v1303 = vld [vmem:[#allocation7 + $0xf58] sm:$0xff]
    %v1304 = vld [vmem:[#allocation7 + $0xf60] sm:$0xff]
    %v1305 = vld [vmem:[#allocation7 + $0xf68] sm:$0xff]
    %v1306 = vld [vmem:[#allocation7 + $0xf70] sm:$0xff]
    %v1307 = vld [vmem:[#allocation7 + $0xf78] sm:$0xff]
    %v1308 = vld [vmem:[#allocation7 + $0xf80] sm:$0xff]
    %v1309 = vld [vmem:[#allocation7 + $0xf88] sm:$0xff]
    %v1310 = vld [vmem:[#allocation7 + $0xf90] sm:$0xff]
    %v1311 = vld [vmem:[#allocation7 + $0xf98] sm:$0xff]
    %v1312 = vld [vmem:[#allocation7 + $0xfa0] sm:$0xff]
    %v1313 = vld [vmem:[#allocation7 + $0xfa8] sm:$0xff]
    %v1314 = vld [vmem:[#allocation7 + $0xfb0] sm:$0xff]
    %v1315 = vld [vmem:[#allocation7 + $0xfb8] sm:$0xff]
    %v1316 = vld [vmem:[#allocation7 + $0xfc0] sm:$0xff]
    %v1317 = vld [vmem:[#allocation7 + $0xfc8] sm:$0xff]
    %v1318 = vld [vmem:[#allocation7 + $0xfd0] sm:$0xff]
    %v1319 = vld [vmem:[#allocation7 + $0xfd8] sm:$0xff]
    %v1320 = vld [vmem:[#allocation7 + $0xfe0] sm:$0xff]
    %v1321 = vld [vmem:[#allocation7 + $0xfe8] sm:$0xff]
    %v1322 = vld [vmem:[#allocation7 + $0xff0] sm:$0xff]
    %v1323 = vld [vmem:[#allocation7 + $0xff8] sm:$0xff]
    %v1324 = vld [vmem:[#allocation7 + $0x1000] sm:$0xff]
    %v1325 = vld [vmem:[#allocation7 + $0x1008] sm:$0xff]
    %v1326 = vld [vmem:[#allocation7 + $0x1010] sm:$0xff]
    %v1327 = vld [vmem:[#allocation7 + $0x1018] sm:$0xff]
    %v1328 = vld [vmem:[#allocation7 + $0x1020] sm:$0xff]
    %v1329 = vld [vmem:[#allocation7 + $0x1028] sm:$0xff]
    %v1330 = vld [vmem:[#allocation7 + $0x1030] sm:$0xff]
    %v1331 = vld [vmem:[#allocation7 + $0x1038] sm:$0xff]
    %v1332 = vld [vmem:[#allocation7 + $0x1040] sm:$0xff]
    %v1333 = vld [vmem:[#allocation7 + $0x1048] sm:$0xff]
    %v1334 = vld [vmem:[#allocation7 + $0x1050] sm:$0xff]
    %v1335 = vld [vmem:[#allocation7 + $0x1058] sm:$0xff]
    %v1336 = vld [vmem:[#allocation7 + $0x1060] sm:$0xff]
    %v1337 = vld [vmem:[#allocation7 + $0x1068] sm:$0xff]
    %v1338 = vld [vmem:[#allocation7 + $0x1070] sm:$0xff]
    %v1339 = vld [vmem:[#allocation7 + $0x1078] sm:$0xff]
    %v1340 = vld [vmem:[#allocation7 + $0x1080] sm:$0xff]
    %v1341 = vld [vmem:[#allocation7 + $0x1088] sm:$0xff]
    %v1342 = vld [vmem:[#allocation7 + $0x1090] sm:$0xff]
    %v1343 = vld [vmem:[#allocation7 + $0x1098] sm:$0xff]
    %v1344 = vld [vmem:[#allocation7 + $0x10a0] sm:$0xff]
    %v1345 = vld [vmem:[#allocation7 + $0x10a8] sm:$0xff]
    %v1346 = vld [vmem:[#allocation7 + $0x10b0] sm:$0xff]
    %v1347 = vld [vmem:[#allocation7 + $0x10b8] sm:$0xff]
    %v1348 = vld [vmem:[#allocation7 + $0x10c0] sm:$0xff]
    %v1349 = vld [vmem:[#allocation7 + $0x10c8] sm:$0xff]
    %v1350 = vld [vmem:[#allocation7 + $0x10d0] sm:$0xff]
    %v1351 = vld [vmem:[#allocation7 + $0x10d8] sm:$0xff]
    %v1352 = vld [vmem:[#allocation7 + $0x10e0] sm:$0xff]
    %v1353 = vld [vmem:[#allocation7 + $0x10e8] sm:$0xff]
    %v1354 = vld [vmem:[#allocation7 + $0x10f0] sm:$0xff]
    %v1355 = vld [vmem:[#allocation7 + $0x10f8] sm:$0xff]
    %v1356 = vld [vmem:[#allocation7 + $0x1100] sm:$0xff]
    %v1357 = vld [vmem:[#allocation7 + $0x1108] sm:$0xff]
    %v1358 = vld [vmem:[#allocation7 + $0x1110] sm:$0xff]
    %v1359 = vld [vmem:[#allocation7 + $0x1118] sm:$0xff]
    %v1360 = vld [vmem:[#allocation7 + $0x1120] sm:$0xff]
    %v1361 = vld [vmem:[#allocation7 + $0x1128] sm:$0xff]
    %v1362 = vld [vmem:[#allocation7 + $0x1130] sm:$0xff]
    %v1363 = vld [vmem:[#allocation7 + $0x1138] sm:$0xff]
    %v1364 = vld [vmem:[#allocation7 + $0x1140] sm:$0xff]
    %v1365 = vld [vmem:[#allocation7 + $0x1148] sm:$0xff]
    %v1366 = vld [vmem:[#allocation7 + $0x1150] sm:$0xff]
    %v1367 = vld [vmem:[#allocation7 + $0x1158] sm:$0xff]
    %v1368 = vld [vmem:[#allocation7 + $0x1160] sm:$0xff]
    %v1369 = vld [vmem:[#allocation7 + $0x1168] sm:$0xff]
    %v1370 = vld [vmem:[#allocation7 + $0x1170] sm:$0xff]
    %v1371 = vld [vmem:[#allocation7 + $0x1178] sm:$0xff]
    %v1372 = vld [vmem:[#allocation7 + $0x1180] sm:$0xff]
    %v1373 = vld [vmem:[#allocation7 + $0x1188] sm:$0xff]
    %v1374 = vld [vmem:[#allocation7 + $0x1190] sm:$0xff]
    %v1375 = vld [vmem:[#allocation7 + $0x1198] sm:$0xff]
    %v1376 = vld [vmem:[#allocation7 + $0x11a0] sm:$0xff]
    %v1377 = vld [vmem:[#allocation7 + $0x11a8] sm:$0xff]
    %v1378 = vld [vmem:[#allocation7 + $0x11b0] sm:$0xff]
    %v1379 = vld [vmem:[#allocation7 + $0x11b8] sm:$0xff]
    %v1380 = vld [vmem:[#allocation7 + $0x11c0] sm:$0xff]
    %v1381 = vld [vmem:[#allocation7 + $0x11c8] sm:$0xff]
    %v1382 = vld [vmem:[#allocation7 + $0x11d0] sm:$0xff]
    %v1383 = vld [vmem:[#allocation7 + $0x11d8] sm:$0xff]
    %v1384 = vld [vmem:[#allocation7 + $0x11e0] sm:$0xff]
    %v1385 = vld [vmem:[#allocation7 + $0x11e8] sm:$0xff]
    %v1386 = vld [vmem:[#allocation7 + $0x11f0] sm:$0xff]
    %v1387 = vld [vmem:[#allocation7 + $0x11f8] sm:$0xff]
    %v1388 = vld [vmem:[#allocation7 + $0x1200] sm:$0xff]
    %v1389 = vld [vmem:[#allocation7 + $0x1208] sm:$0xff]
    %v1390 = vld [vmem:[#allocation7 + $0x1210] sm:$0xff]
    %v1391 = vld [vmem:[#allocation7 + $0x1218] sm:$0xff]
    %v1392 = vld [vmem:[#allocation7 + $0x1220] sm:$0xff]
    %v1393 = vld [vmem:[#allocation7 + $0x1228] sm:$0xff]
    %v1394 = vld [vmem:[#allocation7 + $0x1230] sm:$0xff]
    %v1395 = vld [vmem:[#allocation7 + $0x1238] sm:$0xff]
    %v1396 = vld [vmem:[#allocation7 + $0x1240] sm:$0xff]
    %v1397 = vld [vmem:[#allocation7 + $0x1248] sm:$0xff]
    %v1398 = vld [vmem:[#allocation7 + $0x1250] sm:$0xff]
    %v1399 = vld [vmem:[#allocation7 + $0x1258] sm:$0xff]
    %v1400 = vld [vmem:[#allocation7 + $0x1260] sm:$0xff]
    %v1401 = vld [vmem:[#allocation7 + $0x1268] sm:$0xff]
    %v1402 = vld [vmem:[#allocation7 + $0x1270] sm:$0xff]
    %v1403 = vld [vmem:[#allocation7 + $0x1278] sm:$0xff]
    %v1404 = vld [vmem:[#allocation7 + $0x1280] sm:$0xff]
    %v1405 = vld [vmem:[#allocation7 + $0x1288] sm:$0xff]
    %v1406 = vld [vmem:[#allocation7 + $0x1290] sm:$0xff]
    %v1407 = vld [vmem:[#allocation7 + $0x1298] sm:$0xff]
    %v1408 = vld [vmem:[#allocation7 + $0x12a0] sm:$0xff]
    %v1409 = vld [vmem:[#allocation7 + $0x12a8] sm:$0xff]
    %v1410 = vld [vmem:[#allocation7 + $0x12b0] sm:$0xff]
    %v1411 = vld [vmem:[#allocation7 + $0x12b8] sm:$0xff]
    %v1412 = vld [vmem:[#allocation7 + $0x12c0] sm:$0xff]
    %v1413 = vld [vmem:[#allocation7 + $0x12c8] sm:$0xff]
    %v1414 = vld [vmem:[#allocation7 + $0x12d0] sm:$0xff]
    %v1415 = vld [vmem:[#allocation7 + $0x12d8] sm:$0xff]
    %v1416 = vld [vmem:[#allocation7 + $0x12e0] sm:$0xff]
    %v1417 = vld [vmem:[#allocation7 + $0x12e8] sm:$0xff]
    %v1418 = vld [vmem:[#allocation7 + $0x12f0] sm:$0xff]
    %v1419 = vld [vmem:[#allocation7 + $0x12f8] sm:$0xff]
    %v1420 = vld [vmem:[#allocation7 + $0x1300] sm:$0xff]
    %v1421 = vld [vmem:[#allocation7 + $0x1308] sm:$0xff]
    %v1422 = vld [vmem:[#allocation7 + $0x1310] sm:$0xff]
    %v1423 = vld [vmem:[#allocation7 + $0x1318] sm:$0xff]
    %v1424 = vld [vmem:[#allocation7 + $0x1320] sm:$0xff]
    %v1425 = vld [vmem:[#allocation7 + $0x1328] sm:$0xff]
    %v1426 = vld [vmem:[#allocation7 + $0x1330] sm:$0xff]
    %v1427 = vld [vmem:[#allocation7 + $0x1338] sm:$0xff]
    %v1428 = vld [vmem:[#allocation7 + $0x1340] sm:$0xff]
    %v1429 = vld [vmem:[#allocation7 + $0x1348] sm:$0xff]
    %v1430 = vld [vmem:[#allocation7 + $0x1350] sm:$0xff]
    %v1431 = vld [vmem:[#allocation7 + $0x1358] sm:$0xff]
    %v1432 = vld [vmem:[#allocation7 + $0x1360] sm:$0xff]
    %v1433 = vld [vmem:[#allocation7 + $0x1368] sm:$0xff]
    %v1434 = vld [vmem:[#allocation7 + $0x1370] sm:$0xff]
    %v1435 = vld [vmem:[#allocation7 + $0x1378] sm:$0xff]
    %v1436 = vld [vmem:[#allocation7 + $0x1380] sm:$0xff]
    %v1437 = vld [vmem:[#allocation7 + $0x1388] sm:$0xff]
    %v1438 = vld [vmem:[#allocation7 + $0x1390] sm:$0xff]
    %v1439 = vld [vmem:[#allocation7 + $0x1398] sm:$0xff]
    %v1440 = vld [vmem:[#allocation7 + $0x13a0] sm:$0xff]
    %v1441 = vld [vmem:[#allocation7 + $0x13a8] sm:$0xff]
    %v1442 = vld [vmem:[#allocation7 + $0x13b0] sm:$0xff]
    %v1443 = vld [vmem:[#allocation7 + $0x13b8] sm:$0xff]
    %v1444 = vld [vmem:[#allocation7 + $0x13c0] sm:$0xff]
    %v1445 = vld [vmem:[#allocation7 + $0x13c8] sm:$0xff]
    %v1446 = vld [vmem:[#allocation7 + $0x13d0] sm:$0xff]
    %v1447 = vld [vmem:[#allocation7 + $0x13d8] sm:$0xff]
    %v1448 = vld [vmem:[#allocation7 + $0x13e0] sm:$0xff]
    %v1449 = vld [vmem:[#allocation7 + $0x13e8] sm:$0xff]
    %v1450 = vld [vmem:[#allocation7 + $0x13f0] sm:$0xff]
    %v1451 = vld [vmem:[#allocation7 + $0x13f8] sm:$0xff]
    %v1452 = vld [vmem:[#allocation7 + $0x1400] sm:$0xff]
    %v1453 = vld [vmem:[#allocation7 + $0x1408] sm:$0xff]
    %v1454 = vld [vmem:[#allocation7 + $0x1410] sm:$0xff]
    %v1455 = vld [vmem:[#allocation7 + $0x1418] sm:$0xff]
    %v1456 = vld [vmem:[#allocation7 + $0x1420] sm:$0xff]
    %v1457 = vld [vmem:[#allocation7 + $0x1428] sm:$0xff]
    %v1458 = vld [vmem:[#allocation7 + $0x1430] sm:$0xff]
    %v1459 = vld [vmem:[#allocation7 + $0x1438] sm:$0xff]
    %v1460 = vld [vmem:[#allocation7 + $0x1440] sm:$0xff]
    %v1461 = vld [vmem:[#allocation7 + $0x1448] sm:$0xff]
    %v1462 = vld [vmem:[#allocation7 + $0x1450] sm:$0xff]
    %v1463 = vld [vmem:[#allocation7 + $0x1458] sm:$0xff]
    %v1464 = vld [vmem:[#allocation7 + $0x1460] sm:$0xff]
    %v1465 = vld [vmem:[#allocation7 + $0x1468] sm:$0xff]
    %v1466 = vld [vmem:[#allocation7 + $0x1470] sm:$0xff]
    %v1467 = vld [vmem:[#allocation7 + $0x1478] sm:$0xff]
    %v1468 = vld [vmem:[#allocation7 + $0x1480] sm:$0xff]
    %v1469 = vld [vmem:[#allocation7 + $0x1488] sm:$0xff]
    %v1470 = vld [vmem:[#allocation7 + $0x1490] sm:$0xff]
    %v1471 = vld [vmem:[#allocation7 + $0x1498] sm:$0xff]
    %v1472 = vld [vmem:[#allocation7 + $0x14a0] sm:$0xff]
    %v1473 = vld [vmem:[#allocation7 + $0x14a8] sm:$0xff]
    %v1474 = vld [vmem:[#allocation7 + $0x14b0] sm:$0xff]
    %v1475 = vld [vmem:[#allocation7 + $0x14b8] sm:$0xff]
    %v1476 = vld [vmem:[#allocation7 + $0x14c0] sm:$0xff]
    %v1477 = vld [vmem:[#allocation7 + $0x14c8] sm:$0xff]
    %v1478 = vld [vmem:[#allocation7 + $0x14d0] sm:$0xff]
    %v1479 = vld [vmem:[#allocation7 + $0x14d8] sm:$0xff]
    %v1480 = vld [vmem:[#allocation7 + $0x14e0] sm:$0xff]
    %v1481 = vld [vmem:[#allocation7 + $0x14e8] sm:$0xff]
    %v1482 = vld [vmem:[#allocation7 + $0x14f0] sm:$0xff]
    %v1483 = vld [vmem:[#allocation7 + $0x14f8] sm:$0xff]
    %v1484 = vld [vmem:[#allocation7 + $0x1500] sm:$0xff]
    %v1485 = vld [vmem:[#allocation7 + $0x1508] sm:$0xff]
    %v1486 = vld [vmem:[#allocation7 + $0x1510] sm:$0xff]
    %v1487 = vld [vmem:[#allocation7 + $0x1518] sm:$0xff]
    %v1488 = vld [vmem:[#allocation7 + $0x1520] sm:$0xff]
    %v1489 = vld [vmem:[#allocation7 + $0x1528] sm:$0xff]
    %v1490 = vld [vmem:[#allocation7 + $0x1530] sm:$0xff]
    %v1491 = vld [vmem:[#allocation7 + $0x1538] sm:$0xff]
    %v1492 = vld [vmem:[#allocation7 + $0x1540] sm:$0xff]
    %v1493 = vld [vmem:[#allocation7 + $0x1548] sm:$0xff]
    %v1494 = vld [vmem:[#allocation7 + $0x1550] sm:$0xff]
    %v1495 = vld [vmem:[#allocation7 + $0x1558] sm:$0xff]
    %v1496 = vld [vmem:[#allocation7 + $0x1560] sm:$0xff]
    %v1497 = vld [vmem:[#allocation7 + $0x1568] sm:$0xff]
    %v1498 = vld [vmem:[#allocation7 + $0x1570] sm:$0xff]
    %v1499 = vld [vmem:[#allocation7 + $0x1578] sm:$0xff]
    %v1500 = vld [vmem:[#allocation7 + $0x1580] sm:$0xff]
    %v1501 = vld [vmem:[#allocation7 + $0x1588] sm:$0xff]
    %v1502 = vld [vmem:[#allocation7 + $0x1590] sm:$0xff]
    %v1503 = vld [vmem:[#allocation7 + $0x1598] sm:$0xff]
    %v1504 = vld [vmem:[#allocation7 + $0x15a0] sm:$0xff]
    %v1505 = vld [vmem:[#allocation7 + $0x15a8] sm:$0xff]
    %v1506 = vld [vmem:[#allocation7 + $0x15b0] sm:$0xff]
    %v1507 = vld [vmem:[#allocation7 + $0x15b8] sm:$0xff]
    %v1508 = vld [vmem:[#allocation7 + $0x15c0] sm:$0xff]
    %v1509 = vld [vmem:[#allocation7 + $0x15c8] sm:$0xff]
    %v1510 = vld [vmem:[#allocation7 + $0x15d0] sm:$0xff]
    %v1511 = vld [vmem:[#allocation7 + $0x15d8] sm:$0xff]
    %v1512 = vld [vmem:[#allocation7 + $0x15e0] sm:$0xff]
    %v1513 = vld [vmem:[#allocation7 + $0x15e8] sm:$0xff]
    %v1514 = vld [vmem:[#allocation7 + $0x15f0] sm:$0xff]
    %v1515 = vld [vmem:[#allocation7 + $0x15f8] sm:$0xff]
    %v1516 = vld [vmem:[#allocation7 + $0x1600] sm:$0xff]
    %v1517 = vld [vmem:[#allocation7 + $0x1608] sm:$0xff]
    %v1518 = vld [vmem:[#allocation7 + $0x1610] sm:$0xff]
    %v1519 = vld [vmem:[#allocation7 + $0x1618] sm:$0xff]
    %v1520 = vld [vmem:[#allocation7 + $0x1620] sm:$0xff]
    %v1521 = vld [vmem:[#allocation7 + $0x1628] sm:$0xff]
    %v1522 = vld [vmem:[#allocation7 + $0x1630] sm:$0xff]
    %v1523 = vld [vmem:[#allocation7 + $0x1638] sm:$0xff]
    %v1524 = vld [vmem:[#allocation7 + $0x1640] sm:$0xff]
    %v1525 = vld [vmem:[#allocation7 + $0x1648] sm:$0xff]
    %v1526 = vld [vmem:[#allocation7 + $0x1650] sm:$0xff]
    %v1527 = vld [vmem:[#allocation7 + $0x1658] sm:$0xff]
    %v1528 = vld [vmem:[#allocation7 + $0x1660] sm:$0xff]
    %v1529 = vld [vmem:[#allocation7 + $0x1668] sm:$0xff]
    %v1530 = vld [vmem:[#allocation7 + $0x1670] sm:$0xff]
    %v1531 = vld [vmem:[#allocation7 + $0x1678] sm:$0xff]
    %v1532 = vld [vmem:[#allocation7 + $0x1680] sm:$0xff]
    %v1533 = vld [vmem:[#allocation7 + $0x1688] sm:$0xff]
    %v1534 = vld [vmem:[#allocation7 + $0x1690] sm:$0xff]
    %v1535 = vld [vmem:[#allocation7 + $0x1698] sm:$0xff]
    %v1536 = vld [vmem:[#allocation7 + $0x16a0] sm:$0xff]
    %v1537 = vld [vmem:[#allocation7 + $0x16a8] sm:$0xff]
    %v1538 = vld [vmem:[#allocation7 + $0x16b0] sm:$0xff]
    %v1539 = vld [vmem:[#allocation7 + $0x16b8] sm:$0xff]
    %v1540 = vld [vmem:[#allocation7 + $0x16c0] sm:$0xff]
    %v1541 = vld [vmem:[#allocation7 + $0x16c8] sm:$0xff]
    %v1542 = vld [vmem:[#allocation7 + $0x16d0] sm:$0xff]
    %v1543 = vld [vmem:[#allocation7 + $0x16d8] sm:$0xff]
    %v1544 = vld [vmem:[#allocation7 + $0x16e0] sm:$0xff]
    %v1545 = vld [vmem:[#allocation7 + $0x16e8] sm:$0xff]
    %v1546 = vld [vmem:[#allocation7 + $0x16f0] sm:$0xff]
    %v1547 = vld [vmem:[#allocation7 + $0x16f8] sm:$0xff]
    %v1548 = vld [vmem:[#allocation7 + $0x1700] sm:$0xff]
    %v1549 = vld [vmem:[#allocation7 + $0x1708] sm:$0xff]
    %v1550 = vld [vmem:[#allocation7 + $0x1710] sm:$0xff]
    %v1551 = vld [vmem:[#allocation7 + $0x1718] sm:$0xff]
    %v1552 = vld [vmem:[#allocation7 + $0x1720] sm:$0xff]
    %v1553 = vld [vmem:[#allocation7 + $0x1728] sm:$0xff]
    %v1554 = vld [vmem:[#allocation7 + $0x1730] sm:$0xff]
    %v1555 = vld [vmem:[#allocation7 + $0x1738] sm:$0xff]
    %v1556 = vld [vmem:[#allocation7 + $0x1740] sm:$0xff]
    %v1557 = vld [vmem:[#allocation7 + $0x1748] sm:$0xff]
    %v1558 = vld [vmem:[#allocation7 + $0x1750] sm:$0xff]
    %v1559 = vld [vmem:[#allocation7 + $0x1758] sm:$0xff]
    %v1560 = vld [vmem:[#allocation7 + $0x1760] sm:$0xff]
    %v1561 = vld [vmem:[#allocation7 + $0x1768] sm:$0xff]
    %v1562 = vld [vmem:[#allocation7 + $0x1770] sm:$0xff]
    %v1563 = vld [vmem:[#allocation7 + $0x1778] sm:$0xff]
    %v1564 = vld [vmem:[#allocation7 + $0x1780] sm:$0xff]
    %v1565 = vld [vmem:[#allocation7 + $0x1788] sm:$0xff]
    %v1566 = vld [vmem:[#allocation7 + $0x1790] sm:$0xff]
    %v1567 = vld [vmem:[#allocation7 + $0x1798] sm:$0xff]
    %v1568 = vld [vmem:[#allocation7 + $0x17a0] sm:$0xff]
    %v1569 = vld [vmem:[#allocation7 + $0x17a8] sm:$0xff]
    %v1570 = vld [vmem:[#allocation7 + $0x17b0] sm:$0xff]
    %v1571 = vld [vmem:[#allocation7 + $0x17b8] sm:$0xff]
    %v1572 = vld [vmem:[#allocation7 + $0x17c0] sm:$0xff]
    %v1573 = vld [vmem:[#allocation7 + $0x17c8] sm:$0xff]
    %v1574 = vld [vmem:[#allocation7 + $0x17d0] sm:$0xff]
    %v1575 = vld [vmem:[#allocation7 + $0x17d8] sm:$0xff]
    %v1576 = vld [vmem:[#allocation7 + $0x17e0] sm:$0xff]
    %v1577 = vld [vmem:[#allocation7 + $0x17e8] sm:$0xff]
    %v1578 = vld [vmem:[#allocation7 + $0x17f0] sm:$0xff]
    %v1579 = vld [vmem:[#allocation7 + $0x17f8] sm:$0xff]
    %v1580 = vld [vmem:[#allocation7 + $0x1800] sm:$0xff]
    %v1581 = vld [vmem:[#allocation7 + $0x1808] sm:$0xff]
    %v1582 = vld [vmem:[#allocation7 + $0x1810] sm:$0xff]
    %v1583 = vld [vmem:[#allocation7 + $0x1818] sm:$0xff]
    %v1584 = vld [vmem:[#allocation7 + $0x1820] sm:$0xff]
    %v1585 = vld [vmem:[#allocation7 + $0x1828] sm:$0xff]
    %v1586 = vld [vmem:[#allocation7 + $0x1830] sm:$0xff]
    %v1587 = vld [vmem:[#allocation7 + $0x1838] sm:$0xff]
    %v1588 = vld [vmem:[#allocation7 + $0x1840] sm:$0xff]
    %v1589 = vld [vmem:[#allocation7 + $0x1848] sm:$0xff]
    %v1590 = vld [vmem:[#allocation7 + $0x1850] sm:$0xff]
    %v1591 = vld [vmem:[#allocation7 + $0x1858] sm:$0xff]
    %v1592 = vld [vmem:[#allocation7 + $0x1860] sm:$0xff]
    %v1593 = vld [vmem:[#allocation7 + $0x1868] sm:$0xff]
    %v1594 = vld [vmem:[#allocation7 + $0x1870] sm:$0xff]
    %v1595 = vld [vmem:[#allocation7 + $0x1878] sm:$0xff]
    %v1596 = vld [vmem:[#allocation7 + $0x1880] sm:$0xff]
    %v1597 = vld [vmem:[#allocation7 + $0x1888] sm:$0xff]
    %v1598 = vld [vmem:[#allocation7 + $0x1890] sm:$0xff]
    %v1599 = vld [vmem:[#allocation7 + $0x1898] sm:$0xff]
    %v1600 = vld [vmem:[#allocation7 + $0x18a0] sm:$0xff]
    %v1601 = vld [vmem:[#allocation7 + $0x18a8] sm:$0xff]
    %v1602 = vld [vmem:[#allocation7 + $0x18b0] sm:$0xff]
    %v1603 = vld [vmem:[#allocation7 + $0x18b8] sm:$0xff]
    %v1604 = vld [vmem:[#allocation7 + $0x18c0] sm:$0xff]
    %v1605 = vld [vmem:[#allocation7 + $0x18c8] sm:$0xff]
    %v1606 = vld [vmem:[#allocation7 + $0x18d0] sm:$0xff]
    %v1607 = vld [vmem:[#allocation7 + $0x18d8] sm:$0xff]
    %v1608 = vld [vmem:[#allocation7 + $0x18e0] sm:$0xff]
    %v1609 = vld [vmem:[#allocation7 + $0x18e8] sm:$0xff]
    %v1610 = vld [vmem:[#allocation7 + $0x18f0] sm:$0xff]
    %v1611 = vld [vmem:[#allocation7 + $0x18f8] sm:$0xff]
    %v1612 = vld [vmem:[#allocation7 + $0x1900] sm:$0xff]
    %v1613 = vld [vmem:[#allocation7 + $0x1908] sm:$0xff]
    %v1614 = vld [vmem:[#allocation7 + $0x1910] sm:$0xff]
    %v1615 = vld [vmem:[#allocation7 + $0x1918] sm:$0xff]
    %v1616 = vld [vmem:[#allocation7 + $0x1920] sm:$0xff]
    %v1617 = vld [vmem:[#allocation7 + $0x1928] sm:$0xff]
    %v1618 = vld [vmem:[#allocation7 + $0x1930] sm:$0xff]
    %v1619 = vld [vmem:[#allocation7 + $0x1938] sm:$0xff]
    %v1620 = vld [vmem:[#allocation7 + $0x1940] sm:$0xff]
    %v1621 = vld [vmem:[#allocation7 + $0x1948] sm:$0xff]
    %v1622 = vld [vmem:[#allocation7 + $0x1950] sm:$0xff]
    %v1623 = vld [vmem:[#allocation7 + $0x1958] sm:$0xff]
    %v1624 = vld [vmem:[#allocation7 + $0x1960] sm:$0xff]
    %v1625 = vld [vmem:[#allocation7 + $0x1968] sm:$0xff]
    %v1626 = vld [vmem:[#allocation7 + $0x1970] sm:$0xff]
    %v1627 = vld [vmem:[#allocation7 + $0x1978] sm:$0xff]
    %v1628 = vld [vmem:[#allocation7 + $0x1980] sm:$0xff]
    %v1629 = vld [vmem:[#allocation7 + $0x1988] sm:$0xff]
    %v1630 = vld [vmem:[#allocation7 + $0x1990] sm:$0xff]
    %v1631 = vld [vmem:[#allocation7 + $0x1998] sm:$0xff]
    %v1632 = vld [vmem:[#allocation7 + $0x19a0] sm:$0xff]
    %v1633 = vld [vmem:[#allocation7 + $0x19a8] sm:$0xff]
    %v1634 = vld [vmem:[#allocation7 + $0x19b0] sm:$0xff]
    %v1635 = vld [vmem:[#allocation7 + $0x19b8] sm:$0xff]
    %v1636 = vld [vmem:[#allocation7 + $0x19c0] sm:$0xff]
    %v1637 = vld [vmem:[#allocation7 + $0x19c8] sm:$0xff]
    %v1638 = vld [vmem:[#allocation7 + $0x19d0] sm:$0xff]
    %v1639 = vld [vmem:[#allocation7 + $0x19d8] sm:$0xff]
    %v1640 = vld [vmem:[#allocation7 + $0x19e0] sm:$0xff]
    %v1641 = vld [vmem:[#allocation7 + $0x19e8] sm:$0xff]
    %v1642 = vld [vmem:[#allocation7 + $0x19f0] sm:$0xff]
    %v1643 = vld [vmem:[#allocation7 + $0x19f8] sm:$0xff]
    %v1644 = vld [vmem:[#allocation7 + $0x1a00] sm:$0xff]
    %v1645 = vld [vmem:[#allocation7 + $0x1a08] sm:$0xff]
    %v1646 = vld [vmem:[#allocation7 + $0x1a10] sm:$0xff]
    %v1647 = vld [vmem:[#allocation7 + $0x1a18] sm:$0xff]
    %v1648 = vld [vmem:[#allocation7 + $0x1a20] sm:$0xff]
    %v1649 = vld [vmem:[#allocation7 + $0x1a28] sm:$0xff]
    %v1650 = vld [vmem:[#allocation7 + $0x1a30] sm:$0xff]
    %v1651 = vld [vmem:[#allocation7 + $0x1a38] sm:$0xff]
    %v1652 = vld [vmem:[#allocation7 + $0x1a40] sm:$0xff]
    %v1653 = vld [vmem:[#allocation7 + $0x1a48] sm:$0xff]
    %v1654 = vld [vmem:[#allocation7 + $0x1a50] sm:$0xff]
    %v1655 = vld [vmem:[#allocation7 + $0x1a58] sm:$0xff]
    %v1656 = vld [vmem:[#allocation7 + $0x1a60] sm:$0xff]
    %v1657 = vld [vmem:[#allocation7 + $0x1a68] sm:$0xff]
    %v1658 = vld [vmem:[#allocation7 + $0x1a70] sm:$0xff]
    %v1659 = vld [vmem:[#allocation7 + $0x1a78] sm:$0xff]
    %v1660 = vld [vmem:[#allocation7 + $0x1a80] sm:$0xff]
    %v1661 = vld [vmem:[#allocation7 + $0x1a88] sm:$0xff]
    %v1662 = vld [vmem:[#allocation7 + $0x1a90] sm:$0xff]
    %v1663 = vld [vmem:[#allocation7 + $0x1a98] sm:$0xff]
    %v1664 = vld [vmem:[#allocation7 + $0x1aa0] sm:$0xff]
    %v1665 = vld [vmem:[#allocation7 + $0x1aa8] sm:$0xff]
    %v1666 = vld [vmem:[#allocation7 + $0x1ab0] sm:$0xff]
    %v1667 = vld [vmem:[#allocation7 + $0x1ab8] sm:$0xff]
    %v1668 = vld [vmem:[#allocation7 + $0x1ac0] sm:$0xff]
    %v1669 = vld [vmem:[#allocation7 + $0x1ac8] sm:$0xff]
    %v1670 = vld [vmem:[#allocation7 + $0x1ad0] sm:$0xff]
    %v1671 = vld [vmem:[#allocation7 + $0x1ad8] sm:$0xff]
    %v1672 = vld [vmem:[#allocation7 + $0x1ae0] sm:$0xff]
    %v1673 = vld [vmem:[#allocation7 + $0x1ae8] sm:$0xff]
    %v1674 = vld [vmem:[#allocation7 + $0x1af0] sm:$0xff]
    %v1675 = vld [vmem:[#allocation7 + $0x1af8] sm:$0xff]
    %v1676 = vld [vmem:[#allocation7 + $0x1b00] sm:$0xff]
    %v1677 = vld [vmem:[#allocation7 + $0x1b08] sm:$0xff]
    %v1678 = vld [vmem:[#allocation7 + $0x1b10] sm:$0xff]
    %v1679 = vld [vmem:[#allocation7 + $0x1b18] sm:$0xff]
    %v1680 = vld [vmem:[#allocation7 + $0x1b20] sm:$0xff]
    %v1681 = vld [vmem:[#allocation7 + $0x1b28] sm:$0xff]
    %v1682 = vld [vmem:[#allocation7 + $0x1b30] sm:$0xff]
    %v1683 = vld [vmem:[#allocation7 + $0x1b38] sm:$0xff]
    %v1684 = vld [vmem:[#allocation7 + $0x1b40] sm:$0xff]
    %v1685 = vld [vmem:[#allocation7 + $0x1b48] sm:$0xff]
    %v1686 = vld [vmem:[#allocation7 + $0x1b50] sm:$0xff]
    %v1687 = vld [vmem:[#allocation7 + $0x1b58] sm:$0xff]
    %v1688 = vld [vmem:[#allocation7 + $0x1b60] sm:$0xff]
    %v1689 = vld [vmem:[#allocation7 + $0x1b68] sm:$0xff]
    %v1690 = vld [vmem:[#allocation7 + $0x1b70] sm:$0xff]
    %v1691 = vld [vmem:[#allocation7 + $0x1b78] sm:$0xff]
    %v1692 = vld [vmem:[#allocation7 + $0x1b80] sm:$0xff]
    %v1693 = vld [vmem:[#allocation7 + $0x1b88] sm:$0xff]
    %v1694 = vld [vmem:[#allocation7 + $0x1b90] sm:$0xff]
    %v1695 = vld [vmem:[#allocation7 + $0x1b98] sm:$0xff]
    %v1696 = vld [vmem:[#allocation7 + $0x1ba0] sm:$0xff]
    %v1697 = vld [vmem:[#allocation7 + $0x1ba8] sm:$0xff]
    %v1698 = vld [vmem:[#allocation7 + $0x1bb0] sm:$0xff]
    %v1699 = vld [vmem:[#allocation7 + $0x1bb8] sm:$0xff]
    %v1700 = vld [vmem:[#allocation7 + $0x1bc0] sm:$0xff]
    %v1701 = vld [vmem:[#allocation7 + $0x1bc8] sm:$0xff]
    %v1702 = vld [vmem:[#allocation7 + $0x1bd0] sm:$0xff]
    %v1703 = vld [vmem:[#allocation7 + $0x1bd8] sm:$0xff]
    %v1704 = vld [vmem:[#allocation7 + $0x1be0] sm:$0xff]
    %v1705 = vld [vmem:[#allocation7 + $0x1be8] sm:$0xff]
    %v1706 = vld [vmem:[#allocation7 + $0x1bf0] sm:$0xff]
    %v1707 = vld [vmem:[#allocation7 + $0x1bf8] sm:$0xff]
    %v1708 = vld [vmem:[#allocation7 + $0x1c00] sm:$0xff]
    %v1709 = vld [vmem:[#allocation7 + $0x1c08] sm:$0xff]
    %v1710 = vld [vmem:[#allocation7 + $0x1c10] sm:$0xff]
    %v1711 = vld [vmem:[#allocation7 + $0x1c18] sm:$0xff]
    %v1712 = vld [vmem:[#allocation7 + $0x1c20] sm:$0xff]
    %v1713 = vld [vmem:[#allocation7 + $0x1c28] sm:$0xff]
    %v1714 = vld [vmem:[#allocation7 + $0x1c30] sm:$0xff]
    %v1715 = vld [vmem:[#allocation7 + $0x1c38] sm:$0xff]
    %v1716 = vld [vmem:[#allocation7 + $0x1c40] sm:$0xff]
    %v1717 = vld [vmem:[#allocation7 + $0x1c48] sm:$0xff]
    %v1718 = vld [vmem:[#allocation7 + $0x1c50] sm:$0xff]
    %v1719 = vld [vmem:[#allocation7 + $0x1c58] sm:$0xff]
    %v1720 = vld [vmem:[#allocation7 + $0x1c60] sm:$0xff]
    %v1721 = vld [vmem:[#allocation7 + $0x1c68] sm:$0xff]
    %v1722 = vld [vmem:[#allocation7 + $0x1c70] sm:$0xff]
    %v1723 = vld [vmem:[#allocation7 + $0x1c78] sm:$0xff]
    %v1724 = vld [vmem:[#allocation7 + $0x1c80] sm:$0xff]
    %v1725 = vld [vmem:[#allocation7 + $0x1c88] sm:$0xff]
    %v1726 = vld [vmem:[#allocation7 + $0x1c90] sm:$0xff]
    %v1727 = vld [vmem:[#allocation7 + $0x1c98] sm:$0xff]
    %v1728 = vld [vmem:[#allocation7 + $0x1ca0] sm:$0xff]
    %v1729 = vld [vmem:[#allocation7 + $0x1ca8] sm:$0xff]
    %v1730 = vld [vmem:[#allocation7 + $0x1cb0] sm:$0xff]
    %v1731 = vld [vmem:[#allocation7 + $0x1cb8] sm:$0xff]
    %v1732 = vld [vmem:[#allocation7 + $0x1cc0] sm:$0xff]
    %v1733 = vld [vmem:[#allocation7 + $0x1cc8] sm:$0xff]
    %v1734 = vld [vmem:[#allocation7 + $0x1cd0] sm:$0xff]
    %v1735 = vld [vmem:[#allocation7 + $0x1cd8] sm:$0xff]
    %v1736 = vld [vmem:[#allocation7 + $0x1ce0] sm:$0xff]
    %v1737 = vld [vmem:[#allocation7 + $0x1ce8] sm:$0xff]
    %v1738 = vld [vmem:[#allocation7 + $0x1cf0] sm:$0xff]
    %v1739 = vld [vmem:[#allocation7 + $0x1cf8] sm:$0xff]
    %v1740 = vld [vmem:[#allocation7 + $0x1d00] sm:$0xff]
    %v1741 = vld [vmem:[#allocation7 + $0x1d08] sm:$0xff]
    %v1742 = vld [vmem:[#allocation7 + $0x1d10] sm:$0xff]
    %v1743 = vld [vmem:[#allocation7 + $0x1d18] sm:$0xff]
    %v1744 = vld [vmem:[#allocation7 + $0x1d20] sm:$0xff]
    %v1745 = vld [vmem:[#allocation7 + $0x1d28] sm:$0xff]
    %v1746 = vld [vmem:[#allocation7 + $0x1d30] sm:$0xff]
    %v1747 = vld [vmem:[#allocation7 + $0x1d38] sm:$0xff]
    %v1748 = vld [vmem:[#allocation7 + $0x1d40] sm:$0xff]
    %v1749 = vld [vmem:[#allocation7 + $0x1d48] sm:$0xff]
    %v1750 = vld [vmem:[#allocation7 + $0x1d50] sm:$0xff]
    %v1751 = vld [vmem:[#allocation7 + $0x1d58] sm:$0xff]
    %v1752 = vld [vmem:[#allocation7 + $0x1d60] sm:$0xff]
    %v1753 = vld [vmem:[#allocation7 + $0x1d68] sm:$0xff]
    %v1754 = vld [vmem:[#allocation7 + $0x1d70] sm:$0xff]
    %v1755 = vld [vmem:[#allocation7 + $0x1d78] sm:$0xff]
    %v1756 = vld [vmem:[#allocation7 + $0x1d80] sm:$0xff]
    %v1757 = vld [vmem:[#allocation7 + $0x1d88] sm:$0xff]
    %v1758 = vld [vmem:[#allocation7 + $0x1d90] sm:$0xff]
    %v1759 = vld [vmem:[#allocation7 + $0x1d98] sm:$0xff]
    %v1760 = vld [vmem:[#allocation7 + $0x1da0] sm:$0xff]
    %v1761 = vld [vmem:[#allocation7 + $0x1da8] sm:$0xff]
    %v1762 = vld [vmem:[#allocation7 + $0x1db0] sm:$0xff]
    %v1763 = vld [vmem:[#allocation7 + $0x1db8] sm:$0xff]
    %v1764 = vld [vmem:[#allocation7 + $0x1dc0] sm:$0xff]
    %v1765 = vld [vmem:[#allocation7 + $0x1dc8] sm:$0xff]
    %v1766 = vld [vmem:[#allocation7 + $0x1dd0] sm:$0xff]
    %v1767 = vld [vmem:[#allocation7 + $0x1dd8] sm:$0xff]
    %v1768 = vld [vmem:[#allocation7 + $0x1de0] sm:$0xff]
    %v1769 = vld [vmem:[#allocation7 + $0x1de8] sm:$0xff]
    %v1770 = vld [vmem:[#allocation7 + $0x1df0] sm:$0xff]
    %v1771 = vld [vmem:[#allocation7 + $0x1df8] sm:$0xff]
    %v1772 = vld [vmem:[#allocation7 + $0x1e00] sm:$0xff]
    %v1773 = vld [vmem:[#allocation7 + $0x1e08] sm:$0xff]
    %v1774 = vld [vmem:[#allocation7 + $0x1e10] sm:$0xff]
    %v1775 = vld [vmem:[#allocation7 + $0x1e18] sm:$0xff]
    %v1776 = vld [vmem:[#allocation7 + $0x1e20] sm:$0xff]
    %v1777 = vld [vmem:[#allocation7 + $0x1e28] sm:$0xff]
    %v1778 = vld [vmem:[#allocation7 + $0x1e30] sm:$0xff]
    %v1779 = vld [vmem:[#allocation7 + $0x1e38] sm:$0xff]
    %v1780 = vld [vmem:[#allocation7 + $0x1e40] sm:$0xff]
    %v1781 = vld [vmem:[#allocation7 + $0x1e48] sm:$0xff]
    %v1782 = vld [vmem:[#allocation7 + $0x1e50] sm:$0xff]
    %v1783 = vld [vmem:[#allocation7 + $0x1e58] sm:$0xff]
    %v1784 = vld [vmem:[#allocation7 + $0x1e60] sm:$0xff]
    %v1785 = vld [vmem:[#allocation7 + $0x1e68] sm:$0xff]
    %v1786 = vld [vmem:[#allocation7 + $0x1e70] sm:$0xff]
    %v1787 = vld [vmem:[#allocation7 + $0x1e78] sm:$0xff]
    %v1788 = vld [vmem:[#allocation7 + $0x1e80] sm:$0xff]
    %v1789 = vld [vmem:[#allocation7 + $0x1e88] sm:$0xff]
    %v1790 = vld [vmem:[#allocation7 + $0x1e90] sm:$0xff]
    %v1791 = vld [vmem:[#allocation7 + $0x1e98] sm:$0xff]
    %v1792 = vld [vmem:[#allocation7 + $0x1ea0] sm:$0xff]
    %v1793 = vld [vmem:[#allocation7 + $0x1ea8] sm:$0xff]
    %v1794 = vld [vmem:[#allocation7 + $0x1eb0] sm:$0xff]
    %v1795 = vld [vmem:[#allocation7 + $0x1eb8] sm:$0xff]
    %v1796 = vld [vmem:[#allocation7 + $0x1ec0] sm:$0xff]
    %v1797 = vld [vmem:[#allocation7 + $0x1ec8] sm:$0xff]
    %v1798 = vld [vmem:[#allocation7 + $0x1ed0] sm:$0xff]
    %v1799 = vld [vmem:[#allocation7 + $0x1ed8] sm:$0xff]
    %v1800 = vld [vmem:[#allocation7 + $0x1ee0] sm:$0xff]
    %v1801 = vld [vmem:[#allocation7 + $0x1ee8] sm:$0xff]
    %v1802 = vld [vmem:[#allocation7 + $0x1ef0] sm:$0xff]
    %v1803 = vld [vmem:[#allocation7 + $0x1ef8] sm:$0xff]
    %v1804 = vld [vmem:[#allocation7 + $0x1f00] sm:$0xff]
    %v1805 = vld [vmem:[#allocation7 + $0x1f08] sm:$0xff]
    %v1806 = vld [vmem:[#allocation7 + $0x1f10] sm:$0xff]
    %v1807 = vld [vmem:[#allocation7 + $0x1f18] sm:$0xff]
    %v1808 = vld [vmem:[#allocation7 + $0x1f20] sm:$0xff]
    %v1809 = vld [vmem:[#allocation7 + $0x1f28] sm:$0xff]
    %v1810 = vld [vmem:[#allocation7 + $0x1f30] sm:$0xff]
    %v1811 = vld [vmem:[#allocation7 + $0x1f38] sm:$0xff]
    %v1812 = vld [vmem:[#allocation7 + $0x1f40] sm:$0xff]
    %v1813 = vld [vmem:[#allocation7 + $0x1f48] sm:$0xff]
    %v1814 = vld [vmem:[#allocation7 + $0x1f50] sm:$0xff]
    %v1815 = vld [vmem:[#allocation7 + $0x1f58] sm:$0xff]
    %v1816 = vld [vmem:[#allocation7 + $0x1f60] sm:$0xff]
    %v1817 = vld [vmem:[#allocation7 + $0x1f68] sm:$0xff]
    %v1818 = vld [vmem:[#allocation7 + $0x1f70] sm:$0xff]
    %v1819 = vld [vmem:[#allocation7 + $0x1f78] sm:$0xff]
    %v1820 = vld [vmem:[#allocation7 + $0x1f80] sm:$0xff]
    %v1821 = vld [vmem:[#allocation7 + $0x1f88] sm:$0xff]
    %v1822 = vld [vmem:[#allocation7 + $0x1f90] sm:$0xff]
    %v1823 = vld [vmem:[#allocation7 + $0x1f98] sm:$0xff]
    %v1824 = vld [vmem:[#allocation7 + $0x1fa0] sm:$0xff]
    %v1825 = vld [vmem:[#allocation7 + $0x1fa8] sm:$0xff]
    %v1826 = vld [vmem:[#allocation7 + $0x1fb0] sm:$0xff]
    %v1827 = vld [vmem:[#allocation7 + $0x1fb8] sm:$0xff]
    %v1828 = vld [vmem:[#allocation7 + $0x1fc0] sm:$0xff]
    %v1829 = vld [vmem:[#allocation7 + $0x1fc8] sm:$0xff]
    %v1830 = vld [vmem:[#allocation7 + $0x1fd0] sm:$0xff]
    %v1831 = vld [vmem:[#allocation7 + $0x1fd8] sm:$0xff]
    %v1832 = vld [vmem:[#allocation7 + $0x1fe0] sm:$0xff]
    %v1833 = vld [vmem:[#allocation7 + $0x1fe8] sm:$0xff]
    %v1834 = vld [vmem:[#allocation7 + $0x1ff0] sm:$0xff]
    %v1835 = vld [vmem:[#allocation7 + $0x1ff8] sm:$0xff]
    %v1836 = vld [vmem:[#allocation8] sm:$0xff]
    %v1838 = vlaneseq
    %v1839 = vshrl.u32 %v1838, 7
    %v1840 = vsub.s32 0, %v1839
    %v1841 = vrot.slane %v1836, %v1840
    %v1842 = vlaneseq
    %v1843 = vshrl.u32 %v1842, 7
    %v1844 = vsub.s32 1, %v1843
    %v1845 = vrot.slane %v1836, %v1844
    %v1846 = vlaneseq
    %v1847 = vshrl.u32 %v1846, 7
    %v1848 = vsub.s32 2, %v1847
    %v1849 = vrot.slane %v1836, %v1848
    %v1850 = vlaneseq
    %v1851 = vshrl.u32 %v1850, 7
    %v1852 = vsub.s32 3, %v1851
    %v1853 = vrot.slane %v1836, %v1852
    %v1854 = vlaneseq
    %v1855 = vshrl.u32 %v1854, 7
    %v1856 = vsub.s32 4, %v1855
    %v1857 = vrot.slane %v1836, %v1856
    %v1858 = vlaneseq
    %v1859 = vshrl.u32 %v1858, 7
    %v1860 = vsub.s32 5, %v1859
    %v1861 = vrot.slane %v1836, %v1860
    %v1862 = vlaneseq
    %v1863 = vshrl.u32 %v1862, 7
    %v1864 = vsub.s32 6, %v1863
    %v1865 = vrot.slane %v1836, %v1864
    %v1866 = vlaneseq
    %v1867 = vshrl.u32 %v1866, 7
    %v1868 = vsub.s32 7, %v1867
    %v1869 = vrot.slane %v1836, %v1868
    %v2902 = vunpack.c.l.b16 %v812
    %v2903 = vunpack.c.h.b16 %v812
    %v2904 = vunpack.c.l.b16 %v813
    %v2905 = vunpack.c.h.b16 %v813
    %v2906 = vunpack.c.l.b16 %v814
    %v2907 = vunpack.c.h.b16 %v814
    %v2908 = vunpack.c.l.b16 %v815
    %v2909 = vunpack.c.h.b16 %v815
    %v2910 = vunpack.c.l.b16 %v816
    %v2911 = vunpack.c.h.b16 %v816
    %v2912 = vunpack.c.l.b16 %v817
    %v2913 = vunpack.c.h.b16 %v817
    %v2914 = vunpack.c.l.b16 %v818
    %v2915 = vunpack.c.h.b16 %v818
    %v2916 = vunpack.c.l.b16 %v819
    %v2917 = vunpack.c.h.b16 %v819
    %v2918 = vunpack.c.l.b16 %v820
    %v2919 = vunpack.c.h.b16 %v820
    %v2920 = vunpack.c.l.b16 %v821
    %v2921 = vunpack.c.h.b16 %v821
    %v2922 = vunpack.c.l.b16 %v822
    %v2923 = vunpack.c.h.b16 %v822
    %v2924 = vunpack.c.l.b16 %v823
    %v2925 = vunpack.c.h.b16 %v823
    %v2926 = vunpack.c.l.b16 %v824
    %v2927 = vunpack.c.h.b16 %v824
    %v2928 = vunpack.c.l.b16 %v825
    %v2929 = vunpack.c.h.b16 %v825
    %v2930 = vunpack.c.l.b16 %v826
    %v2931 = vunpack.c.h.b16 %v826
    %v2932 = vunpack.c.l.b16 %v827
    %v2933 = vunpack.c.h.b16 %v827
    %v2934 = vunpack.c.l.b16 %v828
    %v2935 = vunpack.c.h.b16 %v828
    %v2936 = vunpack.c.l.b16 %v829
    %v2937 = vunpack.c.h.b16 %v829
    %v2938 = vunpack.c.l.b16 %v830
    %v2939 = vunpack.c.h.b16 %v830
    %v2940 = vunpack.c.l.b16 %v831
    %v2941 = vunpack.c.h.b16 %v831
    %v2942 = vunpack.c.l.b16 %v832
    %v2943 = vunpack.c.h.b16 %v832
    %v2944 = vunpack.c.l.b16 %v833
    %v2945 = vunpack.c.h.b16 %v833
    %v2946 = vunpack.c.l.b16 %v834
    %v2947 = vunpack.c.h.b16 %v834
    %v2948 = vunpack.c.l.b16 %v835
    %v2949 = vunpack.c.h.b16 %v835
    %v2950 = vunpack.c.l.b16 %v836
    %v2951 = vunpack.c.h.b16 %v836
    %v2952 = vunpack.c.l.b16 %v837
    %v2953 = vunpack.c.h.b16 %v837
    %v2954 = vunpack.c.l.b16 %v838
    %v2955 = vunpack.c.h.b16 %v838
    %v2956 = vunpack.c.l.b16 %v839
    %v2957 = vunpack.c.h.b16 %v839
    %v2958 = vunpack.c.l.b16 %v840
    %v2959 = vunpack.c.h.b16 %v840
    %v2960 = vunpack.c.l.b16 %v841
    %v2961 = vunpack.c.h.b16 %v841
    %v2962 = vunpack.c.l.b16 %v842
    %v2963 = vunpack.c.h.b16 %v842
    %v2964 = vunpack.c.l.b16 %v843
    %v2965 = vunpack.c.h.b16 %v843
    %v2966 = vunpack.c.l.b16 %v844
    %v2967 = vunpack.c.h.b16 %v844
    %v2968 = vunpack.c.l.b16 %v845
    %v2969 = vunpack.c.h.b16 %v845
    %v2970 = vunpack.c.l.b16 %v846
    %v2971 = vunpack.c.h.b16 %v846
    %v2972 = vunpack.c.l.b16 %v847
    %v2973 = vunpack.c.h.b16 %v847
    %v2974 = vunpack.c.l.b16 %v848
    %v2975 = vunpack.c.h.b16 %v848
    %v2976 = vunpack.c.l.b16 %v849
    %v2977 = vunpack.c.h.b16 %v849
    %v2978 = vunpack.c.l.b16 %v850
    %v2979 = vunpack.c.h.b16 %v850
    %v2980 = vunpack.c.l.b16 %v851
    %v2981 = vunpack.c.h.b16 %v851
    %v2982 = vunpack.c.l.b16 %v852
    %v2983 = vunpack.c.h.b16 %v852
    %v2984 = vunpack.c.l.b16 %v853
    %v2985 = vunpack.c.h.b16 %v853
    %v2986 = vunpack.c.l.b16 %v854
    %v2987 = vunpack.c.h.b16 %v854
    %v2988 = vunpack.c.l.b16 %v855
    %v2989 = vunpack.c.h.b16 %v855
    %v2990 = vunpack.c.l.b16 %v856
    %v2991 = vunpack.c.h.b16 %v856
    %v2992 = vunpack.c.l.b16 %v857
    %v2993 = vunpack.c.h.b16 %v857
    %v2994 = vunpack.c.l.b16 %v858
    %v2995 = vunpack.c.h.b16 %v858
    %v2996 = vunpack.c.l.b16 %v859
    %v2997 = vunpack.c.h.b16 %v859
    %v2998 = vunpack.c.l.b16 %v860
    %v2999 = vunpack.c.h.b16 %v860
    %v3000 = vunpack.c.l.b16 %v861
    %v3001 = vunpack.c.h.b16 %v861
    %v3002 = vunpack.c.l.b16 %v862
    %v3003 = vunpack.c.h.b16 %v862
    %v3004 = vunpack.c.l.b16 %v863
    %v3005 = vunpack.c.h.b16 %v863
    %v3006 = vunpack.c.l.b16 %v864
    %v3007 = vunpack.c.h.b16 %v864
    %v3008 = vunpack.c.l.b16 %v865
    %v3009 = vunpack.c.h.b16 %v865
    %v3010 = vunpack.c.l.b16 %v866
    %v3011 = vunpack.c.h.b16 %v866
    %v3012 = vunpack.c.l.b16 %v867
    %v3013 = vunpack.c.h.b16 %v867
    %v3014 = vunpack.c.l.b16 %v868
    %v3015 = vunpack.c.h.b16 %v868
    %v3016 = vunpack.c.l.b16 %v869
    %v3017 = vunpack.c.h.b16 %v869
    %v3018 = vunpack.c.l.b16 %v870
    %v3019 = vunpack.c.h.b16 %v870
    %v3020 = vunpack.c.l.b16 %v871
    %v3021 = vunpack.c.h.b16 %v871
    %v3022 = vunpack.c.l.b16 %v872
    %v3023 = vunpack.c.h.b16 %v872
    %v3024 = vunpack.c.l.b16 %v873
    %v3025 = vunpack.c.h.b16 %v873
    %v3026 = vunpack.c.l.b16 %v874
    %v3027 = vunpack.c.h.b16 %v874
    %v3028 = vunpack.c.l.b16 %v875
    %v3029 = vunpack.c.h.b16 %v875
    %v3030 = vunpack.c.l.b16 %v876
    %v3031 = vunpack.c.h.b16 %v876
    %v3032 = vunpack.c.l.b16 %v877
    %v3033 = vunpack.c.h.b16 %v877
    %v3034 = vunpack.c.l.b16 %v878
    %v3035 = vunpack.c.h.b16 %v878
    %v3036 = vunpack.c.l.b16 %v879
    %v3037 = vunpack.c.h.b16 %v879
    %v3038 = vunpack.c.l.b16 %v880
    %v3039 = vunpack.c.h.b16 %v880
    %v3040 = vunpack.c.l.b16 %v881
    %v3041 = vunpack.c.h.b16 %v881
    %v3042 = vunpack.c.l.b16 %v882
    %v3043 = vunpack.c.h.b16 %v882
    %v3044 = vunpack.c.l.b16 %v883
    %v3045 = vunpack.c.h.b16 %v883
    %v3046 = vunpack.c.l.b16 %v884
    %v3047 = vunpack.c.h.b16 %v884
    %v3048 = vunpack.c.l.b16 %v885
    %v3049 = vunpack.c.h.b16 %v885
    %v3050 = vunpack.c.l.b16 %v886
    %v3051 = vunpack.c.h.b16 %v886
    %v3052 = vunpack.c.l.b16 %v887
    %v3053 = vunpack.c.h.b16 %v887
    %v3054 = vunpack.c.l.b16 %v888
    %v3055 = vunpack.c.h.b16 %v888
    %v3056 = vunpack.c.l.b16 %v889
    %v3057 = vunpack.c.h.b16 %v889
    %v3058 = vunpack.c.l.b16 %v890
    %v3059 = vunpack.c.h.b16 %v890
    %v3060 = vunpack.c.l.b16 %v891
    %v3061 = vunpack.c.h.b16 %v891
    %v3062 = vunpack.c.l.b16 %v892
    %v3063 = vunpack.c.h.b16 %v892
    %v3064 = vunpack.c.l.b16 %v893
    %v3065 = vunpack.c.h.b16 %v893
    %v3066 = vunpack.c.l.b16 %v894
    %v3067 = vunpack.c.h.b16 %v894
    %v3068 = vunpack.c.l.b16 %v895
    %v3069 = vunpack.c.h.b16 %v895
    %v3070 = vunpack.c.l.b16 %v896
    %v3071 = vunpack.c.h.b16 %v896
    %v3072 = vunpack.c.l.b16 %v897
    %v3073 = vunpack.c.h.b16 %v897
    %v3074 = vunpack.c.l.b16 %v898
    %v3075 = vunpack.c.h.b16 %v898
    %v3076 = vunpack.c.l.b16 %v899
    %v3077 = vunpack.c.h.b16 %v899
    %v3078 = vunpack.c.l.b16 %v900
    %v3079 = vunpack.c.h.b16 %v900
    %v3080 = vunpack.c.l.b16 %v901
    %v3081 = vunpack.c.h.b16 %v901
    %v3082 = vunpack.c.l.b16 %v902
    %v3083 = vunpack.c.h.b16 %v902
    %v3084 = vunpack.c.l.b16 %v903
    %v3085 = vunpack.c.h.b16 %v903
    %v3086 = vunpack.c.l.b16 %v904
    %v3087 = vunpack.c.h.b16 %v904
    %v3088 = vunpack.c.l.b16 %v905
    %v3089 = vunpack.c.h.b16 %v905
    %v3090 = vunpack.c.l.b16 %v906
    %v3091 = vunpack.c.h.b16 %v906
    %v3092 = vunpack.c.l.b16 %v907
    %v3093 = vunpack.c.h.b16 %v907
    %v3094 = vunpack.c.l.b16 %v908
    %v3095 = vunpack.c.h.b16 %v908
    %v3096 = vunpack.c.l.b16 %v909
    %v3097 = vunpack.c.h.b16 %v909
    %v3098 = vunpack.c.l.b16 %v910
    %v3099 = vunpack.c.h.b16 %v910
    %v3100 = vunpack.c.l.b16 %v911
    %v3101 = vunpack.c.h.b16 %v911
    %v3102 = vunpack.c.l.b16 %v912
    %v3103 = vunpack.c.h.b16 %v912
    %v3104 = vunpack.c.l.b16 %v913
    %v3105 = vunpack.c.h.b16 %v913
    %v3106 = vunpack.c.l.b16 %v914
    %v3107 = vunpack.c.h.b16 %v914
    %v3108 = vunpack.c.l.b16 %v915
    %v3109 = vunpack.c.h.b16 %v915
    %v3110 = vunpack.c.l.b16 %v916
    %v3111 = vunpack.c.h.b16 %v916
    %v3112 = vunpack.c.l.b16 %v917
    %v3113 = vunpack.c.h.b16 %v917
    %v3114 = vunpack.c.l.b16 %v918
    %v3115 = vunpack.c.h.b16 %v918
    %v3116 = vunpack.c.l.b16 %v919
    %v3117 = vunpack.c.h.b16 %v919
    %v3118 = vunpack.c.l.b16 %v920
    %v3119 = vunpack.c.h.b16 %v920
    %v3120 = vunpack.c.l.b16 %v921
    %v3121 = vunpack.c.h.b16 %v921
    %v3122 = vunpack.c.l.b16 %v922
    %v3123 = vunpack.c.h.b16 %v922
    %v3124 = vunpack.c.l.b16 %v923
    %v3125 = vunpack.c.h.b16 %v923
    %v3126 = vunpack.c.l.b16 %v924
    %v3127 = vunpack.c.h.b16 %v924
    %v3128 = vunpack.c.l.b16 %v925
    %v3129 = vunpack.c.h.b16 %v925
    %v3130 = vunpack.c.l.b16 %v926
    %v3131 = vunpack.c.h.b16 %v926
    %v3132 = vunpack.c.l.b16 %v927
    %v3133 = vunpack.c.h.b16 %v927
    %v3134 = vunpack.c.l.b16 %v928
    %v3135 = vunpack.c.h.b16 %v928
    %v3136 = vunpack.c.l.b16 %v929
    %v3137 = vunpack.c.h.b16 %v929
    %v3138 = vunpack.c.l.b16 %v930
    %v3139 = vunpack.c.h.b16 %v930
    %v3140 = vunpack.c.l.b16 %v931
    %v3141 = vunpack.c.h.b16 %v931
    %v3142 = vunpack.c.l.b16 %v932
    %v3143 = vunpack.c.h.b16 %v932
    %v3144 = vunpack.c.l.b16 %v933
    %v3145 = vunpack.c.h.b16 %v933
    %v3146 = vunpack.c.l.b16 %v934
    %v3147 = vunpack.c.h.b16 %v934
    %v3148 = vunpack.c.l.b16 %v935
    %v3149 = vunpack.c.h.b16 %v935
    %v3150 = vunpack.c.l.b16 %v936
    %v3151 = vunpack.c.h.b16 %v936
    %v3152 = vunpack.c.l.b16 %v937
    %v3153 = vunpack.c.h.b16 %v937
    %v3154 = vunpack.c.l.b16 %v938
    %v3155 = vunpack.c.h.b16 %v938
    %v3156 = vunpack.c.l.b16 %v939
    %v3157 = vunpack.c.h.b16 %v939
    %v3158 = vunpack.c.l.b16 %v940
    %v3159 = vunpack.c.h.b16 %v940
    %v3160 = vunpack.c.l.b16 %v941
    %v3161 = vunpack.c.h.b16 %v941
    %v3162 = vunpack.c.l.b16 %v942
    %v3163 = vunpack.c.h.b16 %v942
    %v3164 = vunpack.c.l.b16 %v943
    %v3165 = vunpack.c.h.b16 %v943
    %v3166 = vunpack.c.l.b16 %v944
    %v3167 = vunpack.c.h.b16 %v944
    %v3168 = vunpack.c.l.b16 %v945
    %v3169 = vunpack.c.h.b16 %v945
    %v3170 = vunpack.c.l.b16 %v946
    %v3171 = vunpack.c.h.b16 %v946
    %v3172 = vunpack.c.l.b16 %v947
    %v3173 = vunpack.c.h.b16 %v947
    %v3174 = vunpack.c.l.b16 %v948
    %v3175 = vunpack.c.h.b16 %v948
    %v3176 = vunpack.c.l.b16 %v949
    %v3177 = vunpack.c.h.b16 %v949
    %v3178 = vunpack.c.l.b16 %v950
    %v3179 = vunpack.c.h.b16 %v950
    %v3180 = vunpack.c.l.b16 %v951
    %v3181 = vunpack.c.h.b16 %v951
    %v3182 = vunpack.c.l.b16 %v952
    %v3183 = vunpack.c.h.b16 %v952
    %v3184 = vunpack.c.l.b16 %v953
    %v3185 = vunpack.c.h.b16 %v953
    %v3186 = vunpack.c.l.b16 %v954
    %v3187 = vunpack.c.h.b16 %v954
    %v3188 = vunpack.c.l.b16 %v955
    %v3189 = vunpack.c.h.b16 %v955
    %v3190 = vunpack.c.l.b16 %v956
    %v3191 = vunpack.c.h.b16 %v956
    %v3192 = vunpack.c.l.b16 %v957
    %v3193 = vunpack.c.h.b16 %v957
    %v3194 = vunpack.c.l.b16 %v958
    %v3195 = vunpack.c.h.b16 %v958
    %v3196 = vunpack.c.l.b16 %v959
    %v3197 = vunpack.c.h.b16 %v959
    %v3198 = vunpack.c.l.b16 %v960
    %v3199 = vunpack.c.h.b16 %v960
    %v3200 = vunpack.c.l.b16 %v961
    %v3201 = vunpack.c.h.b16 %v961
    %v3202 = vunpack.c.l.b16 %v962
    %v3203 = vunpack.c.h.b16 %v962
    %v3204 = vunpack.c.l.b16 %v963
    %v3205 = vunpack.c.h.b16 %v963
    %v3206 = vunpack.c.l.b16 %v964
    %v3207 = vunpack.c.h.b16 %v964
    %v3208 = vunpack.c.l.b16 %v965
    %v3209 = vunpack.c.h.b16 %v965
    %v3210 = vunpack.c.l.b16 %v966
    %v3211 = vunpack.c.h.b16 %v966
    %v3212 = vunpack.c.l.b16 %v967
    %v3213 = vunpack.c.h.b16 %v967
    %v3214 = vunpack.c.l.b16 %v968
    %v3215 = vunpack.c.h.b16 %v968
    %v3216 = vunpack.c.l.b16 %v969
    %v3217 = vunpack.c.h.b16 %v969
    %v3218 = vunpack.c.l.b16 %v970
    %v3219 = vunpack.c.h.b16 %v970
    %v3220 = vunpack.c.l.b16 %v971
    %v3221 = vunpack.c.h.b16 %v971
    %v3222 = vunpack.c.l.b16 %v972
    %v3223 = vunpack.c.h.b16 %v972
    %v3224 = vunpack.c.l.b16 %v973
    %v3225 = vunpack.c.h.b16 %v973
    %v3226 = vunpack.c.l.b16 %v974
    %v3227 = vunpack.c.h.b16 %v974
    %v3228 = vunpack.c.l.b16 %v975
    %v3229 = vunpack.c.h.b16 %v975
    %v3230 = vunpack.c.l.b16 %v976
    %v3231 = vunpack.c.h.b16 %v976
    %v3232 = vunpack.c.l.b16 %v977
    %v3233 = vunpack.c.h.b16 %v977
    %v3234 = vunpack.c.l.b16 %v978
    %v3235 = vunpack.c.h.b16 %v978
    %v3236 = vunpack.c.l.b16 %v979
    %v3237 = vunpack.c.h.b16 %v979
    %v3238 = vunpack.c.l.b16 %v980
    %v3239 = vunpack.c.h.b16 %v980
    %v3240 = vunpack.c.l.b16 %v981
    %v3241 = vunpack.c.h.b16 %v981
    %v3242 = vunpack.c.l.b16 %v982
    %v3243 = vunpack.c.h.b16 %v982
    %v3244 = vunpack.c.l.b16 %v983
    %v3245 = vunpack.c.h.b16 %v983
    %v3246 = vunpack.c.l.b16 %v984
    %v3247 = vunpack.c.h.b16 %v984
    %v3248 = vunpack.c.l.b16 %v985
    %v3249 = vunpack.c.h.b16 %v985
    %v3250 = vunpack.c.l.b16 %v986
    %v3251 = vunpack.c.h.b16 %v986
    %v3252 = vunpack.c.l.b16 %v987
    %v3253 = vunpack.c.h.b16 %v987
    %v3254 = vunpack.c.l.b16 %v988
    %v3255 = vunpack.c.h.b16 %v988
    %v3256 = vunpack.c.l.b16 %v989
    %v3257 = vunpack.c.h.b16 %v989
    %v3258 = vunpack.c.l.b16 %v990
    %v3259 = vunpack.c.h.b16 %v990
    %v3260 = vunpack.c.l.b16 %v991
    %v3261 = vunpack.c.h.b16 %v991
    %v3262 = vunpack.c.l.b16 %v992
    %v3263 = vunpack.c.h.b16 %v992
    %v3264 = vunpack.c.l.b16 %v993
    %v3265 = vunpack.c.h.b16 %v993
    %v3266 = vunpack.c.l.b16 %v994
    %v3267 = vunpack.c.h.b16 %v994
    %v3268 = vunpack.c.l.b16 %v995
    %v3269 = vunpack.c.h.b16 %v995
    %v3270 = vunpack.c.l.b16 %v996
    %v3271 = vunpack.c.h.b16 %v996
    %v3272 = vunpack.c.l.b16 %v997
    %v3273 = vunpack.c.h.b16 %v997
    %v3274 = vunpack.c.l.b16 %v998
    %v3275 = vunpack.c.h.b16 %v998
    %v3276 = vunpack.c.l.b16 %v999
    %v3277 = vunpack.c.h.b16 %v999
    %v3278 = vunpack.c.l.b16 %v1000
    %v3279 = vunpack.c.h.b16 %v1000
    %v3280 = vunpack.c.l.b16 %v1001
    %v3281 = vunpack.c.h.b16 %v1001
    %v3282 = vunpack.c.l.b16 %v1002
    %v3283 = vunpack.c.h.b16 %v1002
    %v3284 = vunpack.c.l.b16 %v1003
    %v3285 = vunpack.c.h.b16 %v1003
    %v3286 = vunpack.c.l.b16 %v1004
    %v3287 = vunpack.c.h.b16 %v1004
    %v3288 = vunpack.c.l.b16 %v1005
    %v3289 = vunpack.c.h.b16 %v1005
    %v3290 = vunpack.c.l.b16 %v1006
    %v3291 = vunpack.c.h.b16 %v1006
    %v3292 = vunpack.c.l.b16 %v1007
    %v3293 = vunpack.c.h.b16 %v1007
    %v3294 = vunpack.c.l.b16 %v1008
    %v3295 = vunpack.c.h.b16 %v1008
    %v3296 = vunpack.c.l.b16 %v1009
    %v3297 = vunpack.c.h.b16 %v1009
    %v3298 = vunpack.c.l.b16 %v1010
    %v3299 = vunpack.c.h.b16 %v1010
    %v3300 = vunpack.c.l.b16 %v1011
    %v3301 = vunpack.c.h.b16 %v1011
    %v3302 = vunpack.c.l.b16 %v1012
    %v3303 = vunpack.c.h.b16 %v1012
    %v3304 = vunpack.c.l.b16 %v1013
    %v3305 = vunpack.c.h.b16 %v1013
    %v3306 = vunpack.c.l.b16 %v1014
    %v3307 = vunpack.c.h.b16 %v1014
    %v3308 = vunpack.c.l.b16 %v1015
    %v3309 = vunpack.c.h.b16 %v1015
    %v3310 = vunpack.c.l.b16 %v1016
    %v3311 = vunpack.c.h.b16 %v1016
    %v3312 = vunpack.c.l.b16 %v1017
    %v3313 = vunpack.c.h.b16 %v1017
    %v3314 = vunpack.c.l.b16 %v1018
    %v3315 = vunpack.c.h.b16 %v1018
    %v3316 = vunpack.c.l.b16 %v1019
    %v3317 = vunpack.c.h.b16 %v1019
    %v3318 = vunpack.c.l.b16 %v1020
    %v3319 = vunpack.c.h.b16 %v1020
    %v3320 = vunpack.c.l.b16 %v1021
    %v3321 = vunpack.c.h.b16 %v1021
    %v3322 = vunpack.c.l.b16 %v1022
    %v3323 = vunpack.c.h.b16 %v1022
    %v3324 = vunpack.c.l.b16 %v1023
    %v3325 = vunpack.c.h.b16 %v1023
    %v3326 = vunpack.c.l.b16 %v1024
    %v3327 = vunpack.c.h.b16 %v1024
    %v3328 = vunpack.c.l.b16 %v1025
    %v3329 = vunpack.c.h.b16 %v1025
    %v3330 = vunpack.c.l.b16 %v1026
    %v3331 = vunpack.c.h.b16 %v1026
    %v3332 = vunpack.c.l.b16 %v1027
    %v3333 = vunpack.c.h.b16 %v1027
    %v3334 = vunpack.c.l.b16 %v1028
    %v3335 = vunpack.c.h.b16 %v1028
    %v3336 = vunpack.c.l.b16 %v1029
    %v3337 = vunpack.c.h.b16 %v1029
    %v3338 = vunpack.c.l.b16 %v1030
    %v3339 = vunpack.c.h.b16 %v1030
    %v3340 = vunpack.c.l.b16 %v1031
    %v3341 = vunpack.c.h.b16 %v1031
    %v3342 = vunpack.c.l.b16 %v1032
    %v3343 = vunpack.c.h.b16 %v1032
    %v3344 = vunpack.c.l.b16 %v1033
    %v3345 = vunpack.c.h.b16 %v1033
    %v3346 = vunpack.c.l.b16 %v1034
    %v3347 = vunpack.c.h.b16 %v1034
    %v3348 = vunpack.c.l.b16 %v1035
    %v3349 = vunpack.c.h.b16 %v1035
    %v3350 = vunpack.c.l.b16 %v1036
    %v3351 = vunpack.c.h.b16 %v1036
    %v3352 = vunpack.c.l.b16 %v1037
    %v3353 = vunpack.c.h.b16 %v1037
    %v3354 = vunpack.c.l.b16 %v1038
    %v3355 = vunpack.c.h.b16 %v1038
    %v3356 = vunpack.c.l.b16 %v1039
    %v3357 = vunpack.c.h.b16 %v1039
    %v3358 = vunpack.c.l.b16 %v1040
    %v3359 = vunpack.c.h.b16 %v1040
    %v3360 = vunpack.c.l.b16 %v1041
    %v3361 = vunpack.c.h.b16 %v1041
    %v3362 = vunpack.c.l.b16 %v1042
    %v3363 = vunpack.c.h.b16 %v1042
    %v3364 = vunpack.c.l.b16 %v1043
    %v3365 = vunpack.c.h.b16 %v1043
    %v3366 = vunpack.c.l.b16 %v1044
    %v3367 = vunpack.c.h.b16 %v1044
    %v3368 = vunpack.c.l.b16 %v1045
    %v3369 = vunpack.c.h.b16 %v1045
    %v3370 = vunpack.c.l.b16 %v1046
    %v3371 = vunpack.c.h.b16 %v1046
    %v3372 = vunpack.c.l.b16 %v1047
    %v3373 = vunpack.c.h.b16 %v1047
    %v3374 = vunpack.c.l.b16 %v1048
    %v3375 = vunpack.c.h.b16 %v1048
    %v3376 = vunpack.c.l.b16 %v1049
    %v3377 = vunpack.c.h.b16 %v1049
    %v3378 = vunpack.c.l.b16 %v1050
    %v3379 = vunpack.c.h.b16 %v1050
    %v3380 = vunpack.c.l.b16 %v1051
    %v3381 = vunpack.c.h.b16 %v1051
    %v3382 = vunpack.c.l.b16 %v1052
    %v3383 = vunpack.c.h.b16 %v1052
    %v3384 = vunpack.c.l.b16 %v1053
    %v3385 = vunpack.c.h.b16 %v1053
    %v3386 = vunpack.c.l.b16 %v1054
    %v3387 = vunpack.c.h.b16 %v1054
    %v3388 = vunpack.c.l.b16 %v1055
    %v3389 = vunpack.c.h.b16 %v1055
    %v3390 = vunpack.c.l.b16 %v1056
    %v3391 = vunpack.c.h.b16 %v1056
    %v3392 = vunpack.c.l.b16 %v1057
    %v3393 = vunpack.c.h.b16 %v1057
    %v3394 = vunpack.c.l.b16 %v1058
    %v3395 = vunpack.c.h.b16 %v1058
    %v3396 = vunpack.c.l.b16 %v1059
    %v3397 = vunpack.c.h.b16 %v1059
    %v3398 = vunpack.c.l.b16 %v1060
    %v3399 = vunpack.c.h.b16 %v1060
    %v3400 = vunpack.c.l.b16 %v1061
    %v3401 = vunpack.c.h.b16 %v1061
    %v3402 = vunpack.c.l.b16 %v1062
    %v3403 = vunpack.c.h.b16 %v1062
    %v3404 = vunpack.c.l.b16 %v1063
    %v3405 = vunpack.c.h.b16 %v1063
    %v3406 = vunpack.c.l.b16 %v1064
    %v3407 = vunpack.c.h.b16 %v1064
    %v3408 = vunpack.c.l.b16 %v1065
    %v3409 = vunpack.c.h.b16 %v1065
    %v3410 = vunpack.c.l.b16 %v1066
    %v3411 = vunpack.c.h.b16 %v1066
    %v3412 = vunpack.c.l.b16 %v1067
    %v3413 = vunpack.c.h.b16 %v1067
    %v3414 = vunpack.c.l.b16 %v1068
    %v3415 = vunpack.c.h.b16 %v1068
    %v3416 = vunpack.c.l.b16 %v1069
    %v3417 = vunpack.c.h.b16 %v1069
    %v3418 = vunpack.c.l.b16 %v1070
    %v3419 = vunpack.c.h.b16 %v1070
    %v3420 = vunpack.c.l.b16 %v1071
    %v3421 = vunpack.c.h.b16 %v1071
    %v3422 = vunpack.c.l.b16 %v1072
    %v3423 = vunpack.c.h.b16 %v1072
    %v3424 = vunpack.c.l.b16 %v1073
    %v3425 = vunpack.c.h.b16 %v1073
    %v3426 = vunpack.c.l.b16 %v1074
    %v3427 = vunpack.c.h.b16 %v1074
    %v3428 = vunpack.c.l.b16 %v1075
    %v3429 = vunpack.c.h.b16 %v1075
    %v3430 = vunpack.c.l.b16 %v1076
    %v3431 = vunpack.c.h.b16 %v1076
    %v3432 = vunpack.c.l.b16 %v1077
    %v3433 = vunpack.c.h.b16 %v1077
    %v3434 = vunpack.c.l.b16 %v1078
    %v3435 = vunpack.c.h.b16 %v1078
    %v3436 = vunpack.c.l.b16 %v1079
    %v3437 = vunpack.c.h.b16 %v1079
    %v3438 = vunpack.c.l.b16 %v1080
    %v3439 = vunpack.c.h.b16 %v1080
    %v3440 = vunpack.c.l.b16 %v1081
    %v3441 = vunpack.c.h.b16 %v1081
    %v3442 = vunpack.c.l.b16 %v1082
    %v3443 = vunpack.c.h.b16 %v1082
    %v3444 = vunpack.c.l.b16 %v1083
    %v3445 = vunpack.c.h.b16 %v1083
    %v3446 = vunpack.c.l.b16 %v1084
    %v3447 = vunpack.c.h.b16 %v1084
    %v3448 = vunpack.c.l.b16 %v1085
    %v3449 = vunpack.c.h.b16 %v1085
    %v3450 = vunpack.c.l.b16 %v1086
    %v3451 = vunpack.c.h.b16 %v1086
    %v3452 = vunpack.c.l.b16 %v1087
    %v3453 = vunpack.c.h.b16 %v1087
    %v3454 = vunpack.c.l.b16 %v1088
    %v3455 = vunpack.c.h.b16 %v1088
    %v3456 = vunpack.c.l.b16 %v1089
    %v3457 = vunpack.c.h.b16 %v1089
    %v3458 = vunpack.c.l.b16 %v1090
    %v3459 = vunpack.c.h.b16 %v1090
    %v3460 = vunpack.c.l.b16 %v1091
    %v3461 = vunpack.c.h.b16 %v1091
    %v3462 = vunpack.c.l.b16 %v1092
    %v3463 = vunpack.c.h.b16 %v1092
    %v3464 = vunpack.c.l.b16 %v1093
    %v3465 = vunpack.c.h.b16 %v1093
    %v3466 = vunpack.c.l.b16 %v1094
    %v3467 = vunpack.c.h.b16 %v1094
    %v3468 = vunpack.c.l.b16 %v1095
    %v3469 = vunpack.c.h.b16 %v1095
    %v3470 = vunpack.c.l.b16 %v1096
    %v3471 = vunpack.c.h.b16 %v1096
    %v3472 = vunpack.c.l.b16 %v1097
    %v3473 = vunpack.c.h.b16 %v1097
    %v3474 = vunpack.c.l.b16 %v1098
    %v3475 = vunpack.c.h.b16 %v1098
    %v3476 = vunpack.c.l.b16 %v1099
    %v3477 = vunpack.c.h.b16 %v1099
    %v3478 = vunpack.c.l.b16 %v1100
    %v3479 = vunpack.c.h.b16 %v1100
    %v3480 = vunpack.c.l.b16 %v1101
    %v3481 = vunpack.c.h.b16 %v1101
    %v3482 = vunpack.c.l.b16 %v1102
    %v3483 = vunpack.c.h.b16 %v1102
    %v3484 = vunpack.c.l.b16 %v1103
    %v3485 = vunpack.c.h.b16 %v1103
    %v3486 = vunpack.c.l.b16 %v1104
    %v3487 = vunpack.c.h.b16 %v1104
    %v3488 = vunpack.c.l.b16 %v1105
    %v3489 = vunpack.c.h.b16 %v1105
    %v3490 = vunpack.c.l.b16 %v1106
    %v3491 = vunpack.c.h.b16 %v1106
    %v3492 = vunpack.c.l.b16 %v1107
    %v3493 = vunpack.c.h.b16 %v1107
    %v3494 = vunpack.c.l.b16 %v1108
    %v3495 = vunpack.c.h.b16 %v1108
    %v3496 = vunpack.c.l.b16 %v1109
    %v3497 = vunpack.c.h.b16 %v1109
    %v3498 = vunpack.c.l.b16 %v1110
    %v3499 = vunpack.c.h.b16 %v1110
    %v3500 = vunpack.c.l.b16 %v1111
    %v3501 = vunpack.c.h.b16 %v1111
    %v3502 = vunpack.c.l.b16 %v1112
    %v3503 = vunpack.c.h.b16 %v1112
    %v3504 = vunpack.c.l.b16 %v1113
    %v3505 = vunpack.c.h.b16 %v1113
    %v3506 = vunpack.c.l.b16 %v1114
    %v3507 = vunpack.c.h.b16 %v1114
    %v3508 = vunpack.c.l.b16 %v1115
    %v3509 = vunpack.c.h.b16 %v1115
    %v3510 = vunpack.c.l.b16 %v1116
    %v3511 = vunpack.c.h.b16 %v1116
    %v3512 = vunpack.c.l.b16 %v1117
    %v3513 = vunpack.c.h.b16 %v1117
    %v3514 = vunpack.c.l.b16 %v1118
    %v3515 = vunpack.c.h.b16 %v1118
    %v3516 = vunpack.c.l.b16 %v1119
    %v3517 = vunpack.c.h.b16 %v1119
    %v3518 = vunpack.c.l.b16 %v1120
    %v3519 = vunpack.c.h.b16 %v1120
    %v3520 = vunpack.c.l.b16 %v1121
    %v3521 = vunpack.c.h.b16 %v1121
    %v3522 = vunpack.c.l.b16 %v1122
    %v3523 = vunpack.c.h.b16 %v1122
    %v3524 = vunpack.c.l.b16 %v1123
    %v3525 = vunpack.c.h.b16 %v1123
    %v3526 = vunpack.c.l.b16 %v1124
    %v3527 = vunpack.c.h.b16 %v1124
    %v3528 = vunpack.c.l.b16 %v1125
    %v3529 = vunpack.c.h.b16 %v1125
    %v3530 = vunpack.c.l.b16 %v1126
    %v3531 = vunpack.c.h.b16 %v1126
    %v3532 = vunpack.c.l.b16 %v1127
    %v3533 = vunpack.c.h.b16 %v1127
    %v3534 = vunpack.c.l.b16 %v1128
    %v3535 = vunpack.c.h.b16 %v1128
    %v3536 = vunpack.c.l.b16 %v1129
    %v3537 = vunpack.c.h.b16 %v1129
    %v3538 = vunpack.c.l.b16 %v1130
    %v3539 = vunpack.c.h.b16 %v1130
    %v3540 = vunpack.c.l.b16 %v1131
    %v3541 = vunpack.c.h.b16 %v1131
    %v3542 = vunpack.c.l.b16 %v1132
    %v3543 = vunpack.c.h.b16 %v1132
    %v3544 = vunpack.c.l.b16 %v1133
    %v3545 = vunpack.c.h.b16 %v1133
    %v3546 = vunpack.c.l.b16 %v1134
    %v3547 = vunpack.c.h.b16 %v1134
    %v3548 = vunpack.c.l.b16 %v1135
    %v3549 = vunpack.c.h.b16 %v1135
    %v3550 = vunpack.c.l.b16 %v1136
    %v3551 = vunpack.c.h.b16 %v1136
    %v3552 = vunpack.c.l.b16 %v1137
    %v3553 = vunpack.c.h.b16 %v1137
    %v3554 = vunpack.c.l.b16 %v1138
    %v3555 = vunpack.c.h.b16 %v1138
    %v3556 = vunpack.c.l.b16 %v1139
    %v3557 = vunpack.c.h.b16 %v1139
    %v3558 = vunpack.c.l.b16 %v1140
    %v3559 = vunpack.c.h.b16 %v1140
    %v3560 = vunpack.c.l.b16 %v1141
    %v3561 = vunpack.c.h.b16 %v1141
    %v3562 = vunpack.c.l.b16 %v1142
    %v3563 = vunpack.c.h.b16 %v1142
    %v3564 = vunpack.c.l.b16 %v1143
    %v3565 = vunpack.c.h.b16 %v1143
    %v3566 = vunpack.c.l.b16 %v1144
    %v3567 = vunpack.c.h.b16 %v1144
    %v3568 = vunpack.c.l.b16 %v1145
    %v3569 = vunpack.c.h.b16 %v1145
    %v3570 = vunpack.c.l.b16 %v1146
    %v3571 = vunpack.c.h.b16 %v1146
    %v3572 = vunpack.c.l.b16 %v1147
    %v3573 = vunpack.c.h.b16 %v1147
    %v3574 = vunpack.c.l.b16 %v1148
    %v3575 = vunpack.c.h.b16 %v1148
    %v3576 = vunpack.c.l.b16 %v1149
    %v3577 = vunpack.c.h.b16 %v1149
    %v3578 = vunpack.c.l.b16 %v1150
    %v3579 = vunpack.c.h.b16 %v1150
    %v3580 = vunpack.c.l.b16 %v1151
    %v3581 = vunpack.c.h.b16 %v1151
    %v3582 = vunpack.c.l.b16 %v1152
    %v3583 = vunpack.c.h.b16 %v1152
    %v3584 = vunpack.c.l.b16 %v1153
    %v3585 = vunpack.c.h.b16 %v1153
    %v3586 = vunpack.c.l.b16 %v1154
    %v3587 = vunpack.c.h.b16 %v1154
    %v3588 = vunpack.c.l.b16 %v1155
    %v3589 = vunpack.c.h.b16 %v1155
    %v3590 = vunpack.c.l.b16 %v1156
    %v3591 = vunpack.c.h.b16 %v1156
    %v3592 = vunpack.c.l.b16 %v1157
    %v3593 = vunpack.c.h.b16 %v1157
    %v3594 = vunpack.c.l.b16 %v1158
    %v3595 = vunpack.c.h.b16 %v1158
    %v3596 = vunpack.c.l.b16 %v1159
    %v3597 = vunpack.c.h.b16 %v1159
    %v3598 = vunpack.c.l.b16 %v1160
    %v3599 = vunpack.c.h.b16 %v1160
    %v3600 = vunpack.c.l.b16 %v1161
    %v3601 = vunpack.c.h.b16 %v1161
    %v3602 = vunpack.c.l.b16 %v1162
    %v3603 = vunpack.c.h.b16 %v1162
    %v3604 = vunpack.c.l.b16 %v1163
    %v3605 = vunpack.c.h.b16 %v1163
    %v3606 = vunpack.c.l.b16 %v1164
    %v3607 = vunpack.c.h.b16 %v1164
    %v3608 = vunpack.c.l.b16 %v1165
    %v3609 = vunpack.c.h.b16 %v1165
    %v3610 = vunpack.c.l.b16 %v1166
    %v3611 = vunpack.c.h.b16 %v1166
    %v3612 = vunpack.c.l.b16 %v1167
    %v3613 = vunpack.c.h.b16 %v1167
    %v3614 = vunpack.c.l.b16 %v1168
    %v3615 = vunpack.c.h.b16 %v1168
    %v3616 = vunpack.c.l.b16 %v1169
    %v3617 = vunpack.c.h.b16 %v1169
    %v3618 = vunpack.c.l.b16 %v1170
    %v3619 = vunpack.c.h.b16 %v1170
    %v3620 = vunpack.c.l.b16 %v1171
    %v3621 = vunpack.c.h.b16 %v1171
    %v3622 = vunpack.c.l.b16 %v1172
    %v3623 = vunpack.c.h.b16 %v1172
    %v3624 = vunpack.c.l.b16 %v1173
    %v3625 = vunpack.c.h.b16 %v1173
    %v3626 = vunpack.c.l.b16 %v1174
    %v3627 = vunpack.c.h.b16 %v1174
    %v3628 = vunpack.c.l.b16 %v1175
    %v3629 = vunpack.c.h.b16 %v1175
    %v3630 = vunpack.c.l.b16 %v1176
    %v3631 = vunpack.c.h.b16 %v1176
    %v3632 = vunpack.c.l.b16 %v1177
    %v3633 = vunpack.c.h.b16 %v1177
    %v3634 = vunpack.c.l.b16 %v1178
    %v3635 = vunpack.c.h.b16 %v1178
    %v3636 = vunpack.c.l.b16 %v1179
    %v3637 = vunpack.c.h.b16 %v1179
    %v3638 = vunpack.c.l.b16 %v1180
    %v3639 = vunpack.c.h.b16 %v1180
    %v3640 = vunpack.c.l.b16 %v1181
    %v3641 = vunpack.c.h.b16 %v1181
    %v3642 = vunpack.c.l.b16 %v1182
    %v3643 = vunpack.c.h.b16 %v1182
    %v3644 = vunpack.c.l.b16 %v1183
    %v3645 = vunpack.c.h.b16 %v1183
    %v3646 = vunpack.c.l.b16 %v1184
    %v3647 = vunpack.c.h.b16 %v1184
    %v3648 = vunpack.c.l.b16 %v1185
    %v3649 = vunpack.c.h.b16 %v1185
    %v3650 = vunpack.c.l.b16 %v1186
    %v3651 = vunpack.c.h.b16 %v1186
    %v3652 = vunpack.c.l.b16 %v1187
    %v3653 = vunpack.c.h.b16 %v1187
    %v3654 = vunpack.c.l.b16 %v1188
    %v3655 = vunpack.c.h.b16 %v1188
    %v3656 = vunpack.c.l.b16 %v1189
    %v3657 = vunpack.c.h.b16 %v1189
    %v3658 = vunpack.c.l.b16 %v1190
    %v3659 = vunpack.c.h.b16 %v1190
    %v3660 = vunpack.c.l.b16 %v1191
    %v3661 = vunpack.c.h.b16 %v1191
    %v3662 = vunpack.c.l.b16 %v1192
    %v3663 = vunpack.c.h.b16 %v1192
    %v3664 = vunpack.c.l.b16 %v1193
    %v3665 = vunpack.c.h.b16 %v1193
    %v3666 = vunpack.c.l.b16 %v1194
    %v3667 = vunpack.c.h.b16 %v1194
    %v3668 = vunpack.c.l.b16 %v1195
    %v3669 = vunpack.c.h.b16 %v1195
    %v3670 = vunpack.c.l.b16 %v1196
    %v3671 = vunpack.c.h.b16 %v1196
    %v3672 = vunpack.c.l.b16 %v1197
    %v3673 = vunpack.c.h.b16 %v1197
    %v3674 = vunpack.c.l.b16 %v1198
    %v3675 = vunpack.c.h.b16 %v1198
    %v3676 = vunpack.c.l.b16 %v1199
    %v3677 = vunpack.c.h.b16 %v1199
    %v3678 = vunpack.c.l.b16 %v1200
    %v3679 = vunpack.c.h.b16 %v1200
    %v3680 = vunpack.c.l.b16 %v1201
    %v3681 = vunpack.c.h.b16 %v1201
    %v3682 = vunpack.c.l.b16 %v1202
    %v3683 = vunpack.c.h.b16 %v1202
    %v3684 = vunpack.c.l.b16 %v1203
    %v3685 = vunpack.c.h.b16 %v1203
    %v3686 = vunpack.c.l.b16 %v1204
    %v3687 = vunpack.c.h.b16 %v1204
    %v3688 = vunpack.c.l.b16 %v1205
    %v3689 = vunpack.c.h.b16 %v1205
    %v3690 = vunpack.c.l.b16 %v1206
    %v3691 = vunpack.c.h.b16 %v1206
    %v3692 = vunpack.c.l.b16 %v1207
    %v3693 = vunpack.c.h.b16 %v1207
    %v3694 = vunpack.c.l.b16 %v1208
    %v3695 = vunpack.c.h.b16 %v1208
    %v3696 = vunpack.c.l.b16 %v1209
    %v3697 = vunpack.c.h.b16 %v1209
    %v3698 = vunpack.c.l.b16 %v1210
    %v3699 = vunpack.c.h.b16 %v1210
    %v3700 = vunpack.c.l.b16 %v1211
    %v3701 = vunpack.c.h.b16 %v1211
    %v3702 = vunpack.c.l.b16 %v1212
    %v3703 = vunpack.c.h.b16 %v1212
    %v3704 = vunpack.c.l.b16 %v1213
    %v3705 = vunpack.c.h.b16 %v1213
    %v3706 = vunpack.c.l.b16 %v1214
    %v3707 = vunpack.c.h.b16 %v1214
    %v3708 = vunpack.c.l.b16 %v1215
    %v3709 = vunpack.c.h.b16 %v1215
    %v3710 = vunpack.c.l.b16 %v1216
    %v3711 = vunpack.c.h.b16 %v1216
    %v3712 = vunpack.c.l.b16 %v1217
    %v3713 = vunpack.c.h.b16 %v1217
    %v3714 = vunpack.c.l.b16 %v1218
    %v3715 = vunpack.c.h.b16 %v1218
    %v3716 = vunpack.c.l.b16 %v1219
    %v3717 = vunpack.c.h.b16 %v1219
    %v3718 = vunpack.c.l.b16 %v1220
    %v3719 = vunpack.c.h.b16 %v1220
    %v3720 = vunpack.c.l.b16 %v1221
    %v3721 = vunpack.c.h.b16 %v1221
    %v3722 = vunpack.c.l.b16 %v1222
    %v3723 = vunpack.c.h.b16 %v1222
    %v3724 = vunpack.c.l.b16 %v1223
    %v3725 = vunpack.c.h.b16 %v1223
    %v3726 = vunpack.c.l.b16 %v1224
    %v3727 = vunpack.c.h.b16 %v1224
    %v3728 = vunpack.c.l.b16 %v1225
    %v3729 = vunpack.c.h.b16 %v1225
    %v3730 = vunpack.c.l.b16 %v1226
    %v3731 = vunpack.c.h.b16 %v1226
    %v3732 = vunpack.c.l.b16 %v1227
    %v3733 = vunpack.c.h.b16 %v1227
    %v3734 = vunpack.c.l.b16 %v1228
    %v3735 = vunpack.c.h.b16 %v1228
    %v3736 = vunpack.c.l.b16 %v1229
    %v3737 = vunpack.c.h.b16 %v1229
    %v3738 = vunpack.c.l.b16 %v1230
    %v3739 = vunpack.c.h.b16 %v1230
    %v3740 = vunpack.c.l.b16 %v1231
    %v3741 = vunpack.c.h.b16 %v1231
    %v3742 = vunpack.c.l.b16 %v1232
    %v3743 = vunpack.c.h.b16 %v1232
    %v3744 = vunpack.c.l.b16 %v1233
    %v3745 = vunpack.c.h.b16 %v1233
    %v3746 = vunpack.c.l.b16 %v1234
    %v3747 = vunpack.c.h.b16 %v1234
    %v3748 = vunpack.c.l.b16 %v1235
    %v3749 = vunpack.c.h.b16 %v1235
    %v3750 = vunpack.c.l.b16 %v1236
    %v3751 = vunpack.c.h.b16 %v1236
    %v3752 = vunpack.c.l.b16 %v1237
    %v3753 = vunpack.c.h.b16 %v1237
    %v3754 = vunpack.c.l.b16 %v1238
    %v3755 = vunpack.c.h.b16 %v1238
    %v3756 = vunpack.c.l.b16 %v1239
    %v3757 = vunpack.c.h.b16 %v1239
    %v3758 = vunpack.c.l.b16 %v1240
    %v3759 = vunpack.c.h.b16 %v1240
    %v3760 = vunpack.c.l.b16 %v1241
    %v3761 = vunpack.c.h.b16 %v1241
    %v3762 = vunpack.c.l.b16 %v1242
    %v3763 = vunpack.c.h.b16 %v1242
    %v3764 = vunpack.c.l.b16 %v1243
    %v3765 = vunpack.c.h.b16 %v1243
    %v3766 = vunpack.c.l.b16 %v1244
    %v3767 = vunpack.c.h.b16 %v1244
    %v3768 = vunpack.c.l.b16 %v1245
    %v3769 = vunpack.c.h.b16 %v1245
    %v3770 = vunpack.c.l.b16 %v1246
    %v3771 = vunpack.c.h.b16 %v1246
    %v3772 = vunpack.c.l.b16 %v1247
    %v3773 = vunpack.c.h.b16 %v1247
    %v3774 = vunpack.c.l.b16 %v1248
    %v3775 = vunpack.c.h.b16 %v1248
    %v3776 = vunpack.c.l.b16 %v1249
    %v3777 = vunpack.c.h.b16 %v1249
    %v3778 = vunpack.c.l.b16 %v1250
    %v3779 = vunpack.c.h.b16 %v1250
    %v3780 = vunpack.c.l.b16 %v1251
    %v3781 = vunpack.c.h.b16 %v1251
    %v3782 = vunpack.c.l.b16 %v1252
    %v3783 = vunpack.c.h.b16 %v1252
    %v3784 = vunpack.c.l.b16 %v1253
    %v3785 = vunpack.c.h.b16 %v1253
    %v3786 = vunpack.c.l.b16 %v1254
    %v3787 = vunpack.c.h.b16 %v1254
    %v3788 = vunpack.c.l.b16 %v1255
    %v3789 = vunpack.c.h.b16 %v1255
    %v3790 = vunpack.c.l.b16 %v1256
    %v3791 = vunpack.c.h.b16 %v1256
    %v3792 = vunpack.c.l.b16 %v1257
    %v3793 = vunpack.c.h.b16 %v1257
    %v3794 = vunpack.c.l.b16 %v1258
    %v3795 = vunpack.c.h.b16 %v1258
    %v3796 = vunpack.c.l.b16 %v1259
    %v3797 = vunpack.c.h.b16 %v1259
    %v3798 = vunpack.c.l.b16 %v1260
    %v3799 = vunpack.c.h.b16 %v1260
    %v3800 = vunpack.c.l.b16 %v1261
    %v3801 = vunpack.c.h.b16 %v1261
    %v3802 = vunpack.c.l.b16 %v1262
    %v3803 = vunpack.c.h.b16 %v1262
    %v3804 = vunpack.c.l.b16 %v1263
    %v3805 = vunpack.c.h.b16 %v1263
    %v3806 = vunpack.c.l.b16 %v1264
    %v3807 = vunpack.c.h.b16 %v1264
    %v3808 = vunpack.c.l.b16 %v1265
    %v3809 = vunpack.c.h.b16 %v1265
    %v3810 = vunpack.c.l.b16 %v1266
    %v3811 = vunpack.c.h.b16 %v1266
    %v3812 = vunpack.c.l.b16 %v1267
    %v3813 = vunpack.c.h.b16 %v1267
    %v3814 = vunpack.c.l.b16 %v1268
    %v3815 = vunpack.c.h.b16 %v1268
    %v3816 = vunpack.c.l.b16 %v1269
    %v3817 = vunpack.c.h.b16 %v1269
    %v3818 = vunpack.c.l.b16 %v1270
    %v3819 = vunpack.c.h.b16 %v1270
    %v3820 = vunpack.c.l.b16 %v1271
    %v3821 = vunpack.c.h.b16 %v1271
    %v3822 = vunpack.c.l.b16 %v1272
    %v3823 = vunpack.c.h.b16 %v1272
    %v3824 = vunpack.c.l.b16 %v1273
    %v3825 = vunpack.c.h.b16 %v1273
    %v3826 = vunpack.c.l.b16 %v1274
    %v3827 = vunpack.c.h.b16 %v1274
    %v3828 = vunpack.c.l.b16 %v1275
    %v3829 = vunpack.c.h.b16 %v1275
    %v3830 = vunpack.c.l.b16 %v1276
    %v3831 = vunpack.c.h.b16 %v1276
    %v3832 = vunpack.c.l.b16 %v1277
    %v3833 = vunpack.c.h.b16 %v1277
    %v3834 = vunpack.c.l.b16 %v1278
    %v3835 = vunpack.c.h.b16 %v1278
    %v3836 = vunpack.c.l.b16 %v1279
    %v3837 = vunpack.c.h.b16 %v1279
    %v3838 = vunpack.c.l.b16 %v1280
    %v3839 = vunpack.c.h.b16 %v1280
    %v3840 = vunpack.c.l.b16 %v1281
    %v3841 = vunpack.c.h.b16 %v1281
    %v3842 = vunpack.c.l.b16 %v1282
    %v3843 = vunpack.c.h.b16 %v1282
    %v3844 = vunpack.c.l.b16 %v1283
    %v3845 = vunpack.c.h.b16 %v1283
    %v3846 = vunpack.c.l.b16 %v1284
    %v3847 = vunpack.c.h.b16 %v1284
    %v3848 = vunpack.c.l.b16 %v1285
    %v3849 = vunpack.c.h.b16 %v1285
    %v3850 = vunpack.c.l.b16 %v1286
    %v3851 = vunpack.c.h.b16 %v1286
    %v3852 = vunpack.c.l.b16 %v1287
    %v3853 = vunpack.c.h.b16 %v1287
    %v3854 = vunpack.c.l.b16 %v1288
    %v3855 = vunpack.c.h.b16 %v1288
    %v3856 = vunpack.c.l.b16 %v1289
    %v3857 = vunpack.c.h.b16 %v1289
    %v3858 = vunpack.c.l.b16 %v1290
    %v3859 = vunpack.c.h.b16 %v1290
    %v3860 = vunpack.c.l.b16 %v1291
    %v3861 = vunpack.c.h.b16 %v1291
    %v3862 = vunpack.c.l.b16 %v1292
    %v3863 = vunpack.c.h.b16 %v1292
    %v3864 = vunpack.c.l.b16 %v1293
    %v3865 = vunpack.c.h.b16 %v1293
    %v3866 = vunpack.c.l.b16 %v1294
    %v3867 = vunpack.c.h.b16 %v1294
    %v3868 = vunpack.c.l.b16 %v1295
    %v3869 = vunpack.c.h.b16 %v1295
    %v3870 = vunpack.c.l.b16 %v1296
    %v3871 = vunpack.c.h.b16 %v1296
    %v3872 = vunpack.c.l.b16 %v1297
    %v3873 = vunpack.c.h.b16 %v1297
    %v3874 = vunpack.c.l.b16 %v1298
    %v3875 = vunpack.c.h.b16 %v1298
    %v3876 = vunpack.c.l.b16 %v1299
    %v3877 = vunpack.c.h.b16 %v1299
    %v3878 = vunpack.c.l.b16 %v1300
    %v3879 = vunpack.c.h.b16 %v1300
    %v3880 = vunpack.c.l.b16 %v1301
    %v3881 = vunpack.c.h.b16 %v1301
    %v3882 = vunpack.c.l.b16 %v1302
    %v3883 = vunpack.c.h.b16 %v1302
    %v3884 = vunpack.c.l.b16 %v1303
    %v3885 = vunpack.c.h.b16 %v1303
    %v3886 = vunpack.c.l.b16 %v1304
    %v3887 = vunpack.c.h.b16 %v1304
    %v3888 = vunpack.c.l.b16 %v1305
    %v3889 = vunpack.c.h.b16 %v1305
    %v3890 = vunpack.c.l.b16 %v1306
    %v3891 = vunpack.c.h.b16 %v1306
    %v3892 = vunpack.c.l.b16 %v1307
    %v3893 = vunpack.c.h.b16 %v1307
    %v3894 = vunpack.c.l.b16 %v1308
    %v3895 = vunpack.c.h.b16 %v1308
    %v3896 = vunpack.c.l.b16 %v1309
    %v3897 = vunpack.c.h.b16 %v1309
    %v3898 = vunpack.c.l.b16 %v1310
    %v3899 = vunpack.c.h.b16 %v1310
    %v3900 = vunpack.c.l.b16 %v1311
    %v3901 = vunpack.c.h.b16 %v1311
    %v3902 = vunpack.c.l.b16 %v1312
    %v3903 = vunpack.c.h.b16 %v1312
    %v3904 = vunpack.c.l.b16 %v1313
    %v3905 = vunpack.c.h.b16 %v1313
    %v3906 = vunpack.c.l.b16 %v1314
    %v3907 = vunpack.c.h.b16 %v1314
    %v3908 = vunpack.c.l.b16 %v1315
    %v3909 = vunpack.c.h.b16 %v1315
    %v3910 = vunpack.c.l.b16 %v1316
    %v3911 = vunpack.c.h.b16 %v1316
    %v3912 = vunpack.c.l.b16 %v1317
    %v3913 = vunpack.c.h.b16 %v1317
    %v3914 = vunpack.c.l.b16 %v1318
    %v3915 = vunpack.c.h.b16 %v1318
    %v3916 = vunpack.c.l.b16 %v1319
    %v3917 = vunpack.c.h.b16 %v1319
    %v3918 = vunpack.c.l.b16 %v1320
    %v3919 = vunpack.c.h.b16 %v1320
    %v3920 = vunpack.c.l.b16 %v1321
    %v3921 = vunpack.c.h.b16 %v1321
    %v3922 = vunpack.c.l.b16 %v1322
    %v3923 = vunpack.c.h.b16 %v1322
    %v3924 = vunpack.c.l.b16 %v1323
    %v3925 = vunpack.c.h.b16 %v1323
    %v3926 = vunpack.c.l.b16 %v1324
    %v3927 = vunpack.c.h.b16 %v1324
    %v3928 = vunpack.c.l.b16 %v1325
    %v3929 = vunpack.c.h.b16 %v1325
    %v3930 = vunpack.c.l.b16 %v1326
    %v3931 = vunpack.c.h.b16 %v1326
    %v3932 = vunpack.c.l.b16 %v1327
    %v3933 = vunpack.c.h.b16 %v1327
    %v3934 = vunpack.c.l.b16 %v1328
    %v3935 = vunpack.c.h.b16 %v1328
    %v3936 = vunpack.c.l.b16 %v1329
    %v3937 = vunpack.c.h.b16 %v1329
    %v3938 = vunpack.c.l.b16 %v1330
    %v3939 = vunpack.c.h.b16 %v1330
    %v3940 = vunpack.c.l.b16 %v1331
    %v3941 = vunpack.c.h.b16 %v1331
    %v3942 = vunpack.c.l.b16 %v1332
    %v3943 = vunpack.c.h.b16 %v1332
    %v3944 = vunpack.c.l.b16 %v1333
    %v3945 = vunpack.c.h.b16 %v1333
    %v3946 = vunpack.c.l.b16 %v1334
    %v3947 = vunpack.c.h.b16 %v1334
    %v3948 = vunpack.c.l.b16 %v1335
    %v3949 = vunpack.c.h.b16 %v1335
    %v3950 = vunpack.c.l.b16 %v1336
    %v3951 = vunpack.c.h.b16 %v1336
    %v3952 = vunpack.c.l.b16 %v1337
    %v3953 = vunpack.c.h.b16 %v1337
    %v3954 = vunpack.c.l.b16 %v1338
    %v3955 = vunpack.c.h.b16 %v1338
    %v3956 = vunpack.c.l.b16 %v1339
    %v3957 = vunpack.c.h.b16 %v1339
    %v3958 = vunpack.c.l.b16 %v1340
    %v3959 = vunpack.c.h.b16 %v1340
    %v3960 = vunpack.c.l.b16 %v1341
    %v3961 = vunpack.c.h.b16 %v1341
    %v3962 = vunpack.c.l.b16 %v1342
    %v3963 = vunpack.c.h.b16 %v1342
    %v3964 = vunpack.c.l.b16 %v1343
    %v3965 = vunpack.c.h.b16 %v1343
    %v3966 = vunpack.c.l.b16 %v1344
    %v3967 = vunpack.c.h.b16 %v1344
    %v3968 = vunpack.c.l.b16 %v1345
    %v3969 = vunpack.c.h.b16 %v1345
    %v3970 = vunpack.c.l.b16 %v1346
    %v3971 = vunpack.c.h.b16 %v1346
    %v3972 = vunpack.c.l.b16 %v1347
    %v3973 = vunpack.c.h.b16 %v1347
    %v3974 = vunpack.c.l.b16 %v1348
    %v3975 = vunpack.c.h.b16 %v1348
    %v3976 = vunpack.c.l.b16 %v1349
    %v3977 = vunpack.c.h.b16 %v1349
    %v3978 = vunpack.c.l.b16 %v1350
    %v3979 = vunpack.c.h.b16 %v1350
    %v3980 = vunpack.c.l.b16 %v1351
    %v3981 = vunpack.c.h.b16 %v1351
    %v3982 = vunpack.c.l.b16 %v1352
    %v3983 = vunpack.c.h.b16 %v1352
    %v3984 = vunpack.c.l.b16 %v1353
    %v3985 = vunpack.c.h.b16 %v1353
    %v3986 = vunpack.c.l.b16 %v1354
    %v3987 = vunpack.c.h.b16 %v1354
    %v3988 = vunpack.c.l.b16 %v1355
    %v3989 = vunpack.c.h.b16 %v1355
    %v3990 = vunpack.c.l.b16 %v1356
    %v3991 = vunpack.c.h.b16 %v1356
    %v3992 = vunpack.c.l.b16 %v1357
    %v3993 = vunpack.c.h.b16 %v1357
    %v3994 = vunpack.c.l.b16 %v1358
    %v3995 = vunpack.c.h.b16 %v1358
    %v3996 = vunpack.c.l.b16 %v1359
    %v3997 = vunpack.c.h.b16 %v1359
    %v3998 = vunpack.c.l.b16 %v1360
    %v3999 = vunpack.c.h.b16 %v1360
    %v4000 = vunpack.c.l.b16 %v1361
    %v4001 = vunpack.c.h.b16 %v1361
    %v4002 = vunpack.c.l.b16 %v1362
    %v4003 = vunpack.c.h.b16 %v1362
    %v4004 = vunpack.c.l.b16 %v1363
    %v4005 = vunpack.c.h.b16 %v1363
    %v4006 = vunpack.c.l.b16 %v1364
    %v4007 = vunpack.c.h.b16 %v1364
    %v4008 = vunpack.c.l.b16 %v1365
    %v4009 = vunpack.c.h.b16 %v1365
    %v4010 = vunpack.c.l.b16 %v1366
    %v4011 = vunpack.c.h.b16 %v1366
    %v4012 = vunpack.c.l.b16 %v1367
    %v4013 = vunpack.c.h.b16 %v1367
    %v4014 = vunpack.c.l.b16 %v1368
    %v4015 = vunpack.c.h.b16 %v1368
    %v4016 = vunpack.c.l.b16 %v1369
    %v4017 = vunpack.c.h.b16 %v1369
    %v4018 = vunpack.c.l.b16 %v1370
    %v4019 = vunpack.c.h.b16 %v1370
    %v4020 = vunpack.c.l.b16 %v1371
    %v4021 = vunpack.c.h.b16 %v1371
    %v4022 = vunpack.c.l.b16 %v1372
    %v4023 = vunpack.c.h.b16 %v1372
    %v4024 = vunpack.c.l.b16 %v1373
    %v4025 = vunpack.c.h.b16 %v1373
    %v4026 = vunpack.c.l.b16 %v1374
    %v4027 = vunpack.c.h.b16 %v1374
    %v4028 = vunpack.c.l.b16 %v1375
    %v4029 = vunpack.c.h.b16 %v1375
    %v4030 = vunpack.c.l.b16 %v1376
    %v4031 = vunpack.c.h.b16 %v1376
    %v4032 = vunpack.c.l.b16 %v1377
    %v4033 = vunpack.c.h.b16 %v1377
    %v4034 = vunpack.c.l.b16 %v1378
    %v4035 = vunpack.c.h.b16 %v1378
    %v4036 = vunpack.c.l.b16 %v1379
    %v4037 = vunpack.c.h.b16 %v1379
    %v4038 = vunpack.c.l.b16 %v1380
    %v4039 = vunpack.c.h.b16 %v1380
    %v4040 = vunpack.c.l.b16 %v1381
    %v4041 = vunpack.c.h.b16 %v1381
    %v4042 = vunpack.c.l.b16 %v1382
    %v4043 = vunpack.c.h.b16 %v1382
    %v4044 = vunpack.c.l.b16 %v1383
    %v4045 = vunpack.c.h.b16 %v1383
    %v4046 = vunpack.c.l.b16 %v1384
    %v4047 = vunpack.c.h.b16 %v1384
    %v4048 = vunpack.c.l.b16 %v1385
    %v4049 = vunpack.c.h.b16 %v1385
    %v4050 = vunpack.c.l.b16 %v1386
    %v4051 = vunpack.c.h.b16 %v1386
    %v4052 = vunpack.c.l.b16 %v1387
    %v4053 = vunpack.c.h.b16 %v1387
    %v4054 = vunpack.c.l.b16 %v1388
    %v4055 = vunpack.c.h.b16 %v1388
    %v4056 = vunpack.c.l.b16 %v1389
    %v4057 = vunpack.c.h.b16 %v1389
    %v4058 = vunpack.c.l.b16 %v1390
    %v4059 = vunpack.c.h.b16 %v1390
    %v4060 = vunpack.c.l.b16 %v1391
    %v4061 = vunpack.c.h.b16 %v1391
    %v4062 = vunpack.c.l.b16 %v1392
    %v4063 = vunpack.c.h.b16 %v1392
    %v4064 = vunpack.c.l.b16 %v1393
    %v4065 = vunpack.c.h.b16 %v1393
    %v4066 = vunpack.c.l.b16 %v1394
    %v4067 = vunpack.c.h.b16 %v1394
    %v4068 = vunpack.c.l.b16 %v1395
    %v4069 = vunpack.c.h.b16 %v1395
    %v4070 = vunpack.c.l.b16 %v1396
    %v4071 = vunpack.c.h.b16 %v1396
    %v4072 = vunpack.c.l.b16 %v1397
    %v4073 = vunpack.c.h.b16 %v1397
    %v4074 = vunpack.c.l.b16 %v1398
    %v4075 = vunpack.c.h.b16 %v1398
    %v4076 = vunpack.c.l.b16 %v1399
    %v4077 = vunpack.c.h.b16 %v1399
    %v4078 = vunpack.c.l.b16 %v1400
    %v4079 = vunpack.c.h.b16 %v1400
    %v4080 = vunpack.c.l.b16 %v1401
    %v4081 = vunpack.c.h.b16 %v1401
    %v4082 = vunpack.c.l.b16 %v1402
    %v4083 = vunpack.c.h.b16 %v1402
    %v4084 = vunpack.c.l.b16 %v1403
    %v4085 = vunpack.c.h.b16 %v1403
    %v4086 = vunpack.c.l.b16 %v1404
    %v4087 = vunpack.c.h.b16 %v1404
    %v4088 = vunpack.c.l.b16 %v1405
    %v4089 = vunpack.c.h.b16 %v1405
    %v4090 = vunpack.c.l.b16 %v1406
    %v4091 = vunpack.c.h.b16 %v1406
    %v4092 = vunpack.c.l.b16 %v1407
    %v4093 = vunpack.c.h.b16 %v1407
    %v4094 = vunpack.c.l.b16 %v1408
    %v4095 = vunpack.c.h.b16 %v1408
    %v4096 = vunpack.c.l.b16 %v1409
    %v4097 = vunpack.c.h.b16 %v1409
    %v4098 = vunpack.c.l.b16 %v1410
    %v4099 = vunpack.c.h.b16 %v1410
    %v4100 = vunpack.c.l.b16 %v1411
    %v4101 = vunpack.c.h.b16 %v1411
    %v4102 = vunpack.c.l.b16 %v1412
    %v4103 = vunpack.c.h.b16 %v1412
    %v4104 = vunpack.c.l.b16 %v1413
    %v4105 = vunpack.c.h.b16 %v1413
    %v4106 = vunpack.c.l.b16 %v1414
    %v4107 = vunpack.c.h.b16 %v1414
    %v4108 = vunpack.c.l.b16 %v1415
    %v4109 = vunpack.c.h.b16 %v1415
    %v4110 = vunpack.c.l.b16 %v1416
    %v4111 = vunpack.c.h.b16 %v1416
    %v4112 = vunpack.c.l.b16 %v1417
    %v4113 = vunpack.c.h.b16 %v1417
    %v4114 = vunpack.c.l.b16 %v1418
    %v4115 = vunpack.c.h.b16 %v1418
    %v4116 = vunpack.c.l.b16 %v1419
    %v4117 = vunpack.c.h.b16 %v1419
    %v4118 = vunpack.c.l.b16 %v1420
    %v4119 = vunpack.c.h.b16 %v1420
    %v4120 = vunpack.c.l.b16 %v1421
    %v4121 = vunpack.c.h.b16 %v1421
    %v4122 = vunpack.c.l.b16 %v1422
    %v4123 = vunpack.c.h.b16 %v1422
    %v4124 = vunpack.c.l.b16 %v1423
    %v4125 = vunpack.c.h.b16 %v1423
    %v4126 = vunpack.c.l.b16 %v1424
    %v4127 = vunpack.c.h.b16 %v1424
    %v4128 = vunpack.c.l.b16 %v1425
    %v4129 = vunpack.c.h.b16 %v1425
    %v4130 = vunpack.c.l.b16 %v1426
    %v4131 = vunpack.c.h.b16 %v1426
    %v4132 = vunpack.c.l.b16 %v1427
    %v4133 = vunpack.c.h.b16 %v1427
    %v4134 = vunpack.c.l.b16 %v1428
    %v4135 = vunpack.c.h.b16 %v1428
    %v4136 = vunpack.c.l.b16 %v1429
    %v4137 = vunpack.c.h.b16 %v1429
    %v4138 = vunpack.c.l.b16 %v1430
    %v4139 = vunpack.c.h.b16 %v1430
    %v4140 = vunpack.c.l.b16 %v1431
    %v4141 = vunpack.c.h.b16 %v1431
    %v4142 = vunpack.c.l.b16 %v1432
    %v4143 = vunpack.c.h.b16 %v1432
    %v4144 = vunpack.c.l.b16 %v1433
    %v4145 = vunpack.c.h.b16 %v1433
    %v4146 = vunpack.c.l.b16 %v1434
    %v4147 = vunpack.c.h.b16 %v1434
    %v4148 = vunpack.c.l.b16 %v1435
    %v4149 = vunpack.c.h.b16 %v1435
    %v4150 = vunpack.c.l.b16 %v1436
    %v4151 = vunpack.c.h.b16 %v1436
    %v4152 = vunpack.c.l.b16 %v1437
    %v4153 = vunpack.c.h.b16 %v1437
    %v4154 = vunpack.c.l.b16 %v1438
    %v4155 = vunpack.c.h.b16 %v1438
    %v4156 = vunpack.c.l.b16 %v1439
    %v4157 = vunpack.c.h.b16 %v1439
    %v4158 = vunpack.c.l.b16 %v1440
    %v4159 = vunpack.c.h.b16 %v1440
    %v4160 = vunpack.c.l.b16 %v1441
    %v4161 = vunpack.c.h.b16 %v1441
    %v4162 = vunpack.c.l.b16 %v1442
    %v4163 = vunpack.c.h.b16 %v1442
    %v4164 = vunpack.c.l.b16 %v1443
    %v4165 = vunpack.c.h.b16 %v1443
    %v4166 = vunpack.c.l.b16 %v1444
    %v4167 = vunpack.c.h.b16 %v1444
    %v4168 = vunpack.c.l.b16 %v1445
    %v4169 = vunpack.c.h.b16 %v1445
    %v4170 = vunpack.c.l.b16 %v1446
    %v4171 = vunpack.c.h.b16 %v1446
    %v4172 = vunpack.c.l.b16 %v1447
    %v4173 = vunpack.c.h.b16 %v1447
    %v4174 = vunpack.c.l.b16 %v1448
    %v4175 = vunpack.c.h.b16 %v1448
    %v4176 = vunpack.c.l.b16 %v1449
    %v4177 = vunpack.c.h.b16 %v1449
    %v4178 = vunpack.c.l.b16 %v1450
    %v4179 = vunpack.c.h.b16 %v1450
    %v4180 = vunpack.c.l.b16 %v1451
    %v4181 = vunpack.c.h.b16 %v1451
    %v4182 = vunpack.c.l.b16 %v1452
    %v4183 = vunpack.c.h.b16 %v1452
    %v4184 = vunpack.c.l.b16 %v1453
    %v4185 = vunpack.c.h.b16 %v1453
    %v4186 = vunpack.c.l.b16 %v1454
    %v4187 = vunpack.c.h.b16 %v1454
    %v4188 = vunpack.c.l.b16 %v1455
    %v4189 = vunpack.c.h.b16 %v1455
    %v4190 = vunpack.c.l.b16 %v1456
    %v4191 = vunpack.c.h.b16 %v1456
    %v4192 = vunpack.c.l.b16 %v1457
    %v4193 = vunpack.c.h.b16 %v1457
    %v4194 = vunpack.c.l.b16 %v1458
    %v4195 = vunpack.c.h.b16 %v1458
    %v4196 = vunpack.c.l.b16 %v1459
    %v4197 = vunpack.c.h.b16 %v1459
    %v4198 = vunpack.c.l.b16 %v1460
    %v4199 = vunpack.c.h.b16 %v1460
    %v4200 = vunpack.c.l.b16 %v1461
    %v4201 = vunpack.c.h.b16 %v1461
    %v4202 = vunpack.c.l.b16 %v1462
    %v4203 = vunpack.c.h.b16 %v1462
    %v4204 = vunpack.c.l.b16 %v1463
    %v4205 = vunpack.c.h.b16 %v1463
    %v4206 = vunpack.c.l.b16 %v1464
    %v4207 = vunpack.c.h.b16 %v1464
    %v4208 = vunpack.c.l.b16 %v1465
    %v4209 = vunpack.c.h.b16 %v1465
    %v4210 = vunpack.c.l.b16 %v1466
    %v4211 = vunpack.c.h.b16 %v1466
    %v4212 = vunpack.c.l.b16 %v1467
    %v4213 = vunpack.c.h.b16 %v1467
    %v4214 = vunpack.c.l.b16 %v1468
    %v4215 = vunpack.c.h.b16 %v1468
    %v4216 = vunpack.c.l.b16 %v1469
    %v4217 = vunpack.c.h.b16 %v1469
    %v4218 = vunpack.c.l.b16 %v1470
    %v4219 = vunpack.c.h.b16 %v1470
    %v4220 = vunpack.c.l.b16 %v1471
    %v4221 = vunpack.c.h.b16 %v1471
    %v4222 = vunpack.c.l.b16 %v1472
    %v4223 = vunpack.c.h.b16 %v1472
    %v4224 = vunpack.c.l.b16 %v1473
    %v4225 = vunpack.c.h.b16 %v1473
    %v4226 = vunpack.c.l.b16 %v1474
    %v4227 = vunpack.c.h.b16 %v1474
    %v4228 = vunpack.c.l.b16 %v1475
    %v4229 = vunpack.c.h.b16 %v1475
    %v4230 = vunpack.c.l.b16 %v1476
    %v4231 = vunpack.c.h.b16 %v1476
    %v4232 = vunpack.c.l.b16 %v1477
    %v4233 = vunpack.c.h.b16 %v1477
    %v4234 = vunpack.c.l.b16 %v1478
    %v4235 = vunpack.c.h.b16 %v1478
    %v4236 = vunpack.c.l.b16 %v1479
    %v4237 = vunpack.c.h.b16 %v1479
    %v4238 = vunpack.c.l.b16 %v1480
    %v4239 = vunpack.c.h.b16 %v1480
    %v4240 = vunpack.c.l.b16 %v1481
    %v4241 = vunpack.c.h.b16 %v1481
    %v4242 = vunpack.c.l.b16 %v1482
    %v4243 = vunpack.c.h.b16 %v1482
    %v4244 = vunpack.c.l.b16 %v1483
    %v4245 = vunpack.c.h.b16 %v1483
    %v4246 = vunpack.c.l.b16 %v1484
    %v4247 = vunpack.c.h.b16 %v1484
    %v4248 = vunpack.c.l.b16 %v1485
    %v4249 = vunpack.c.h.b16 %v1485
    %v4250 = vunpack.c.l.b16 %v1486
    %v4251 = vunpack.c.h.b16 %v1486
    %v4252 = vunpack.c.l.b16 %v1487
    %v4253 = vunpack.c.h.b16 %v1487
    %v4254 = vunpack.c.l.b16 %v1488
    %v4255 = vunpack.c.h.b16 %v1488
    %v4256 = vunpack.c.l.b16 %v1489
    %v4257 = vunpack.c.h.b16 %v1489
    %v4258 = vunpack.c.l.b16 %v1490
    %v4259 = vunpack.c.h.b16 %v1490
    %v4260 = vunpack.c.l.b16 %v1491
    %v4261 = vunpack.c.h.b16 %v1491
    %v4262 = vunpack.c.l.b16 %v1492
    %v4263 = vunpack.c.h.b16 %v1492
    %v4264 = vunpack.c.l.b16 %v1493
    %v4265 = vunpack.c.h.b16 %v1493
    %v4266 = vunpack.c.l.b16 %v1494
    %v4267 = vunpack.c.h.b16 %v1494
    %v4268 = vunpack.c.l.b16 %v1495
    %v4269 = vunpack.c.h.b16 %v1495
    %v4270 = vunpack.c.l.b16 %v1496
    %v4271 = vunpack.c.h.b16 %v1496
    %v4272 = vunpack.c.l.b16 %v1497
    %v4273 = vunpack.c.h.b16 %v1497
    %v4274 = vunpack.c.l.b16 %v1498
    %v4275 = vunpack.c.h.b16 %v1498
    %v4276 = vunpack.c.l.b16 %v1499
    %v4277 = vunpack.c.h.b16 %v1499
    %v4278 = vunpack.c.l.b16 %v1500
    %v4279 = vunpack.c.h.b16 %v1500
    %v4280 = vunpack.c.l.b16 %v1501
    %v4281 = vunpack.c.h.b16 %v1501
    %v4282 = vunpack.c.l.b16 %v1502
    %v4283 = vunpack.c.h.b16 %v1502
    %v4284 = vunpack.c.l.b16 %v1503
    %v4285 = vunpack.c.h.b16 %v1503
    %v4286 = vunpack.c.l.b16 %v1504
    %v4287 = vunpack.c.h.b16 %v1504
    %v4288 = vunpack.c.l.b16 %v1505
    %v4289 = vunpack.c.h.b16 %v1505
    %v4290 = vunpack.c.l.b16 %v1506
    %v4291 = vunpack.c.h.b16 %v1506
    %v4292 = vunpack.c.l.b16 %v1507
    %v4293 = vunpack.c.h.b16 %v1507
    %v4294 = vunpack.c.l.b16 %v1508
    %v4295 = vunpack.c.h.b16 %v1508
    %v4296 = vunpack.c.l.b16 %v1509
    %v4297 = vunpack.c.h.b16 %v1509
    %v4298 = vunpack.c.l.b16 %v1510
    %v4299 = vunpack.c.h.b16 %v1510
    %v4300 = vunpack.c.l.b16 %v1511
    %v4301 = vunpack.c.h.b16 %v1511
    %v4302 = vunpack.c.l.b16 %v1512
    %v4303 = vunpack.c.h.b16 %v1512
    %v4304 = vunpack.c.l.b16 %v1513
    %v4305 = vunpack.c.h.b16 %v1513
    %v4306 = vunpack.c.l.b16 %v1514
    %v4307 = vunpack.c.h.b16 %v1514
    %v4308 = vunpack.c.l.b16 %v1515
    %v4309 = vunpack.c.h.b16 %v1515
    %v4310 = vunpack.c.l.b16 %v1516
    %v4311 = vunpack.c.h.b16 %v1516
    %v4312 = vunpack.c.l.b16 %v1517
    %v4313 = vunpack.c.h.b16 %v1517
    %v4314 = vunpack.c.l.b16 %v1518
    %v4315 = vunpack.c.h.b16 %v1518
    %v4316 = vunpack.c.l.b16 %v1519
    %v4317 = vunpack.c.h.b16 %v1519
    %v4318 = vunpack.c.l.b16 %v1520
    %v4319 = vunpack.c.h.b16 %v1520
    %v4320 = vunpack.c.l.b16 %v1521
    %v4321 = vunpack.c.h.b16 %v1521
    %v4322 = vunpack.c.l.b16 %v1522
    %v4323 = vunpack.c.h.b16 %v1522
    %v4324 = vunpack.c.l.b16 %v1523
    %v4325 = vunpack.c.h.b16 %v1523
    %v4326 = vunpack.c.l.b16 %v1524
    %v4327 = vunpack.c.h.b16 %v1524
    %v4328 = vunpack.c.l.b16 %v1525
    %v4329 = vunpack.c.h.b16 %v1525
    %v4330 = vunpack.c.l.b16 %v1526
    %v4331 = vunpack.c.h.b16 %v1526
    %v4332 = vunpack.c.l.b16 %v1527
    %v4333 = vunpack.c.h.b16 %v1527
    %v4334 = vunpack.c.l.b16 %v1528
    %v4335 = vunpack.c.h.b16 %v1528
    %v4336 = vunpack.c.l.b16 %v1529
    %v4337 = vunpack.c.h.b16 %v1529
    %v4338 = vunpack.c.l.b16 %v1530
    %v4339 = vunpack.c.h.b16 %v1530
    %v4340 = vunpack.c.l.b16 %v1531
    %v4341 = vunpack.c.h.b16 %v1531
    %v4342 = vunpack.c.l.b16 %v1532
    %v4343 = vunpack.c.h.b16 %v1532
    %v4344 = vunpack.c.l.b16 %v1533
    %v4345 = vunpack.c.h.b16 %v1533
    %v4346 = vunpack.c.l.b16 %v1534
    %v4347 = vunpack.c.h.b16 %v1534
    %v4348 = vunpack.c.l.b16 %v1535
    %v4349 = vunpack.c.h.b16 %v1535
    %v4350 = vunpack.c.l.b16 %v1536
    %v4351 = vunpack.c.h.b16 %v1536
    %v4352 = vunpack.c.l.b16 %v1537
    %v4353 = vunpack.c.h.b16 %v1537
    %v4354 = vunpack.c.l.b16 %v1538
    %v4355 = vunpack.c.h.b16 %v1538
    %v4356 = vunpack.c.l.b16 %v1539
    %v4357 = vunpack.c.h.b16 %v1539
    %v4358 = vunpack.c.l.b16 %v1540
    %v4359 = vunpack.c.h.b16 %v1540
    %v4360 = vunpack.c.l.b16 %v1541
    %v4361 = vunpack.c.h.b16 %v1541
    %v4362 = vunpack.c.l.b16 %v1542
    %v4363 = vunpack.c.h.b16 %v1542
    %v4364 = vunpack.c.l.b16 %v1543
    %v4365 = vunpack.c.h.b16 %v1543
    %v4366 = vunpack.c.l.b16 %v1544
    %v4367 = vunpack.c.h.b16 %v1544
    %v4368 = vunpack.c.l.b16 %v1545
    %v4369 = vunpack.c.h.b16 %v1545
    %v4370 = vunpack.c.l.b16 %v1546
    %v4371 = vunpack.c.h.b16 %v1546
    %v4372 = vunpack.c.l.b16 %v1547
    %v4373 = vunpack.c.h.b16 %v1547
    %v4374 = vunpack.c.l.b16 %v1548
    %v4375 = vunpack.c.h.b16 %v1548
    %v4376 = vunpack.c.l.b16 %v1549
    %v4377 = vunpack.c.h.b16 %v1549
    %v4378 = vunpack.c.l.b16 %v1550
    %v4379 = vunpack.c.h.b16 %v1550
    %v4380 = vunpack.c.l.b16 %v1551
    %v4381 = vunpack.c.h.b16 %v1551
    %v4382 = vunpack.c.l.b16 %v1552
    %v4383 = vunpack.c.h.b16 %v1552
    %v4384 = vunpack.c.l.b16 %v1553
    %v4385 = vunpack.c.h.b16 %v1553
    %v4386 = vunpack.c.l.b16 %v1554
    %v4387 = vunpack.c.h.b16 %v1554
    %v4388 = vunpack.c.l.b16 %v1555
    %v4389 = vunpack.c.h.b16 %v1555
    %v4390 = vunpack.c.l.b16 %v1556
    %v4391 = vunpack.c.h.b16 %v1556
    %v4392 = vunpack.c.l.b16 %v1557
    %v4393 = vunpack.c.h.b16 %v1557
    %v4394 = vunpack.c.l.b16 %v1558
    %v4395 = vunpack.c.h.b16 %v1558
    %v4396 = vunpack.c.l.b16 %v1559
    %v4397 = vunpack.c.h.b16 %v1559
    %v4398 = vunpack.c.l.b16 %v1560
    %v4399 = vunpack.c.h.b16 %v1560
    %v4400 = vunpack.c.l.b16 %v1561
    %v4401 = vunpack.c.h.b16 %v1561
    %v4402 = vunpack.c.l.b16 %v1562
    %v4403 = vunpack.c.h.b16 %v1562
    %v4404 = vunpack.c.l.b16 %v1563
    %v4405 = vunpack.c.h.b16 %v1563
    %v4406 = vunpack.c.l.b16 %v1564
    %v4407 = vunpack.c.h.b16 %v1564
    %v4408 = vunpack.c.l.b16 %v1565
    %v4409 = vunpack.c.h.b16 %v1565
    %v4410 = vunpack.c.l.b16 %v1566
    %v4411 = vunpack.c.h.b16 %v1566
    %v4412 = vunpack.c.l.b16 %v1567
    %v4413 = vunpack.c.h.b16 %v1567
    %v4414 = vunpack.c.l.b16 %v1568
    %v4415 = vunpack.c.h.b16 %v1568
    %v4416 = vunpack.c.l.b16 %v1569
    %v4417 = vunpack.c.h.b16 %v1569
    %v4418 = vunpack.c.l.b16 %v1570
    %v4419 = vunpack.c.h.b16 %v1570
    %v4420 = vunpack.c.l.b16 %v1571
    %v4421 = vunpack.c.h.b16 %v1571
    %v4422 = vunpack.c.l.b16 %v1572
    %v4423 = vunpack.c.h.b16 %v1572
    %v4424 = vunpack.c.l.b16 %v1573
    %v4425 = vunpack.c.h.b16 %v1573
    %v4426 = vunpack.c.l.b16 %v1574
    %v4427 = vunpack.c.h.b16 %v1574
    %v4428 = vunpack.c.l.b16 %v1575
    %v4429 = vunpack.c.h.b16 %v1575
    %v4430 = vunpack.c.l.b16 %v1576
    %v4431 = vunpack.c.h.b16 %v1576
    %v4432 = vunpack.c.l.b16 %v1577
    %v4433 = vunpack.c.h.b16 %v1577
    %v4434 = vunpack.c.l.b16 %v1578
    %v4435 = vunpack.c.h.b16 %v1578
    %v4436 = vunpack.c.l.b16 %v1579
    %v4437 = vunpack.c.h.b16 %v1579
    %v4438 = vunpack.c.l.b16 %v1580
    %v4439 = vunpack.c.h.b16 %v1580
    %v4440 = vunpack.c.l.b16 %v1581
    %v4441 = vunpack.c.h.b16 %v1581
    %v4442 = vunpack.c.l.b16 %v1582
    %v4443 = vunpack.c.h.b16 %v1582
    %v4444 = vunpack.c.l.b16 %v1583
    %v4445 = vunpack.c.h.b16 %v1583
    %v4446 = vunpack.c.l.b16 %v1584
    %v4447 = vunpack.c.h.b16 %v1584
    %v4448 = vunpack.c.l.b16 %v1585
    %v4449 = vunpack.c.h.b16 %v1585
    %v4450 = vunpack.c.l.b16 %v1586
    %v4451 = vunpack.c.h.b16 %v1586
    %v4452 = vunpack.c.l.b16 %v1587
    %v4453 = vunpack.c.h.b16 %v1587
    %v4454 = vunpack.c.l.b16 %v1588
    %v4455 = vunpack.c.h.b16 %v1588
    %v4456 = vunpack.c.l.b16 %v1589
    %v4457 = vunpack.c.h.b16 %v1589
    %v4458 = vunpack.c.l.b16 %v1590
    %v4459 = vunpack.c.h.b16 %v1590
    %v4460 = vunpack.c.l.b16 %v1591
    %v4461 = vunpack.c.h.b16 %v1591
    %v4462 = vunpack.c.l.b16 %v1592
    %v4463 = vunpack.c.h.b16 %v1592
    %v4464 = vunpack.c.l.b16 %v1593
    %v4465 = vunpack.c.h.b16 %v1593
    %v4466 = vunpack.c.l.b16 %v1594
    %v4467 = vunpack.c.h.b16 %v1594
    %v4468 = vunpack.c.l.b16 %v1595
    %v4469 = vunpack.c.h.b16 %v1595
    %v4470 = vunpack.c.l.b16 %v1596
    %v4471 = vunpack.c.h.b16 %v1596
    %v4472 = vunpack.c.l.b16 %v1597
    %v4473 = vunpack.c.h.b16 %v1597
    %v4474 = vunpack.c.l.b16 %v1598
    %v4475 = vunpack.c.h.b16 %v1598
    %v4476 = vunpack.c.l.b16 %v1599
    %v4477 = vunpack.c.h.b16 %v1599
    %v4478 = vunpack.c.l.b16 %v1600
    %v4479 = vunpack.c.h.b16 %v1600
    %v4480 = vunpack.c.l.b16 %v1601
    %v4481 = vunpack.c.h.b16 %v1601
    %v4482 = vunpack.c.l.b16 %v1602
    %v4483 = vunpack.c.h.b16 %v1602
    %v4484 = vunpack.c.l.b16 %v1603
    %v4485 = vunpack.c.h.b16 %v1603
    %v4486 = vunpack.c.l.b16 %v1604
    %v4487 = vunpack.c.h.b16 %v1604
    %v4488 = vunpack.c.l.b16 %v1605
    %v4489 = vunpack.c.h.b16 %v1605
    %v4490 = vunpack.c.l.b16 %v1606
    %v4491 = vunpack.c.h.b16 %v1606
    %v4492 = vunpack.c.l.b16 %v1607
    %v4493 = vunpack.c.h.b16 %v1607
    %v4494 = vunpack.c.l.b16 %v1608
    %v4495 = vunpack.c.h.b16 %v1608
    %v4496 = vunpack.c.l.b16 %v1609
    %v4497 = vunpack.c.h.b16 %v1609
    %v4498 = vunpack.c.l.b16 %v1610
    %v4499 = vunpack.c.h.b16 %v1610
    %v4500 = vunpack.c.l.b16 %v1611
    %v4501 = vunpack.c.h.b16 %v1611
    %v4502 = vunpack.c.l.b16 %v1612
    %v4503 = vunpack.c.h.b16 %v1612
    %v4504 = vunpack.c.l.b16 %v1613
    %v4505 = vunpack.c.h.b16 %v1613
    %v4506 = vunpack.c.l.b16 %v1614
    %v4507 = vunpack.c.h.b16 %v1614
    %v4508 = vunpack.c.l.b16 %v1615
    %v4509 = vunpack.c.h.b16 %v1615
    %v4510 = vunpack.c.l.b16 %v1616
    %v4511 = vunpack.c.h.b16 %v1616
    %v4512 = vunpack.c.l.b16 %v1617
    %v4513 = vunpack.c.h.b16 %v1617
    %v4514 = vunpack.c.l.b16 %v1618
    %v4515 = vunpack.c.h.b16 %v1618
    %v4516 = vunpack.c.l.b16 %v1619
    %v4517 = vunpack.c.h.b16 %v1619
    %v4518 = vunpack.c.l.b16 %v1620
    %v4519 = vunpack.c.h.b16 %v1620
    %v4520 = vunpack.c.l.b16 %v1621
    %v4521 = vunpack.c.h.b16 %v1621
    %v4522 = vunpack.c.l.b16 %v1622
    %v4523 = vunpack.c.h.b16 %v1622
    %v4524 = vunpack.c.l.b16 %v1623
    %v4525 = vunpack.c.h.b16 %v1623
    %v4526 = vunpack.c.l.b16 %v1624
    %v4527 = vunpack.c.h.b16 %v1624
    %v4528 = vunpack.c.l.b16 %v1625
    %v4529 = vunpack.c.h.b16 %v1625
    %v4530 = vunpack.c.l.b16 %v1626
    %v4531 = vunpack.c.h.b16 %v1626
    %v4532 = vunpack.c.l.b16 %v1627
    %v4533 = vunpack.c.h.b16 %v1627
    %v4534 = vunpack.c.l.b16 %v1628
    %v4535 = vunpack.c.h.b16 %v1628
    %v4536 = vunpack.c.l.b16 %v1629
    %v4537 = vunpack.c.h.b16 %v1629
    %v4538 = vunpack.c.l.b16 %v1630
    %v4539 = vunpack.c.h.b16 %v1630
    %v4540 = vunpack.c.l.b16 %v1631
    %v4541 = vunpack.c.h.b16 %v1631
    %v4542 = vunpack.c.l.b16 %v1632
    %v4543 = vunpack.c.h.b16 %v1632
    %v4544 = vunpack.c.l.b16 %v1633
    %v4545 = vunpack.c.h.b16 %v1633
    %v4546 = vunpack.c.l.b16 %v1634
    %v4547 = vunpack.c.h.b16 %v1634
    %v4548 = vunpack.c.l.b16 %v1635
    %v4549 = vunpack.c.h.b16 %v1635
    %v4550 = vunpack.c.l.b16 %v1636
    %v4551 = vunpack.c.h.b16 %v1636
    %v4552 = vunpack.c.l.b16 %v1637
    %v4553 = vunpack.c.h.b16 %v1637
    %v4554 = vunpack.c.l.b16 %v1638
    %v4555 = vunpack.c.h.b16 %v1638
    %v4556 = vunpack.c.l.b16 %v1639
    %v4557 = vunpack.c.h.b16 %v1639
    %v4558 = vunpack.c.l.b16 %v1640
    %v4559 = vunpack.c.h.b16 %v1640
    %v4560 = vunpack.c.l.b16 %v1641
    %v4561 = vunpack.c.h.b16 %v1641
    %v4562 = vunpack.c.l.b16 %v1642
    %v4563 = vunpack.c.h.b16 %v1642
    %v4564 = vunpack.c.l.b16 %v1643
    %v4565 = vunpack.c.h.b16 %v1643
    %v4566 = vunpack.c.l.b16 %v1644
    %v4567 = vunpack.c.h.b16 %v1644
    %v4568 = vunpack.c.l.b16 %v1645
    %v4569 = vunpack.c.h.b16 %v1645
    %v4570 = vunpack.c.l.b16 %v1646
    %v4571 = vunpack.c.h.b16 %v1646
    %v4572 = vunpack.c.l.b16 %v1647
    %v4573 = vunpack.c.h.b16 %v1647
    %v4574 = vunpack.c.l.b16 %v1648
    %v4575 = vunpack.c.h.b16 %v1648
    %v4576 = vunpack.c.l.b16 %v1649
    %v4577 = vunpack.c.h.b16 %v1649
    %v4578 = vunpack.c.l.b16 %v1650
    %v4579 = vunpack.c.h.b16 %v1650
    %v4580 = vunpack.c.l.b16 %v1651
    %v4581 = vunpack.c.h.b16 %v1651
    %v4582 = vunpack.c.l.b16 %v1652
    %v4583 = vunpack.c.h.b16 %v1652
    %v4584 = vunpack.c.l.b16 %v1653
    %v4585 = vunpack.c.h.b16 %v1653
    %v4586 = vunpack.c.l.b16 %v1654
    %v4587 = vunpack.c.h.b16 %v1654
    %v4588 = vunpack.c.l.b16 %v1655
    %v4589 = vunpack.c.h.b16 %v1655
    %v4590 = vunpack.c.l.b16 %v1656
    %v4591 = vunpack.c.h.b16 %v1656
    %v4592 = vunpack.c.l.b16 %v1657
    %v4593 = vunpack.c.h.b16 %v1657
    %v4594 = vunpack.c.l.b16 %v1658
    %v4595 = vunpack.c.h.b16 %v1658
    %v4596 = vunpack.c.l.b16 %v1659
    %v4597 = vunpack.c.h.b16 %v1659
    %v4598 = vunpack.c.l.b16 %v1660
    %v4599 = vunpack.c.h.b16 %v1660
    %v4600 = vunpack.c.l.b16 %v1661
    %v4601 = vunpack.c.h.b16 %v1661
    %v4602 = vunpack.c.l.b16 %v1662
    %v4603 = vunpack.c.h.b16 %v1662
    %v4604 = vunpack.c.l.b16 %v1663
    %v4605 = vunpack.c.h.b16 %v1663
    %v4606 = vunpack.c.l.b16 %v1664
    %v4607 = vunpack.c.h.b16 %v1664
    %v4608 = vunpack.c.l.b16 %v1665
    %v4609 = vunpack.c.h.b16 %v1665
    %v4610 = vunpack.c.l.b16 %v1666
    %v4611 = vunpack.c.h.b16 %v1666
    %v4612 = vunpack.c.l.b16 %v1667
    %v4613 = vunpack.c.h.b16 %v1667
    %v4614 = vunpack.c.l.b16 %v1668
    %v4615 = vunpack.c.h.b16 %v1668
    %v4616 = vunpack.c.l.b16 %v1669
    %v4617 = vunpack.c.h.b16 %v1669
    %v4618 = vunpack.c.l.b16 %v1670
    %v4619 = vunpack.c.h.b16 %v1670
    %v4620 = vunpack.c.l.b16 %v1671
    %v4621 = vunpack.c.h.b16 %v1671
    %v4622 = vunpack.c.l.b16 %v1672
    %v4623 = vunpack.c.h.b16 %v1672
    %v4624 = vunpack.c.l.b16 %v1673
    %v4625 = vunpack.c.h.b16 %v1673
    %v4626 = vunpack.c.l.b16 %v1674
    %v4627 = vunpack.c.h.b16 %v1674
    %v4628 = vunpack.c.l.b16 %v1675
    %v4629 = vunpack.c.h.b16 %v1675
    %v4630 = vunpack.c.l.b16 %v1676
    %v4631 = vunpack.c.h.b16 %v1676
    %v4632 = vunpack.c.l.b16 %v1677
    %v4633 = vunpack.c.h.b16 %v1677
    %v4634 = vunpack.c.l.b16 %v1678
    %v4635 = vunpack.c.h.b16 %v1678
    %v4636 = vunpack.c.l.b16 %v1679
    %v4637 = vunpack.c.h.b16 %v1679
    %v4638 = vunpack.c.l.b16 %v1680
    %v4639 = vunpack.c.h.b16 %v1680
    %v4640 = vunpack.c.l.b16 %v1681
    %v4641 = vunpack.c.h.b16 %v1681
    %v4642 = vunpack.c.l.b16 %v1682
    %v4643 = vunpack.c.h.b16 %v1682
    %v4644 = vunpack.c.l.b16 %v1683
    %v4645 = vunpack.c.h.b16 %v1683
    %v4646 = vunpack.c.l.b16 %v1684
    %v4647 = vunpack.c.h.b16 %v1684
    %v4648 = vunpack.c.l.b16 %v1685
    %v4649 = vunpack.c.h.b16 %v1685
    %v4650 = vunpack.c.l.b16 %v1686
    %v4651 = vunpack.c.h.b16 %v1686
    %v4652 = vunpack.c.l.b16 %v1687
    %v4653 = vunpack.c.h.b16 %v1687
    %v4654 = vunpack.c.l.b16 %v1688
    %v4655 = vunpack.c.h.b16 %v1688
    %v4656 = vunpack.c.l.b16 %v1689
    %v4657 = vunpack.c.h.b16 %v1689
    %v4658 = vunpack.c.l.b16 %v1690
    %v4659 = vunpack.c.h.b16 %v1690
    %v4660 = vunpack.c.l.b16 %v1691
    %v4661 = vunpack.c.h.b16 %v1691
    %v4662 = vunpack.c.l.b16 %v1692
    %v4663 = vunpack.c.h.b16 %v1692
    %v4664 = vunpack.c.l.b16 %v1693
    %v4665 = vunpack.c.h.b16 %v1693
    %v4666 = vunpack.c.l.b16 %v1694
    %v4667 = vunpack.c.h.b16 %v1694
    %v4668 = vunpack.c.l.b16 %v1695
    %v4669 = vunpack.c.h.b16 %v1695
    %v4670 = vunpack.c.l.b16 %v1696
    %v4671 = vunpack.c.h.b16 %v1696
    %v4672 = vunpack.c.l.b16 %v1697
    %v4673 = vunpack.c.h.b16 %v1697
    %v4674 = vunpack.c.l.b16 %v1698
    %v4675 = vunpack.c.h.b16 %v1698
    %v4676 = vunpack.c.l.b16 %v1699
    %v4677 = vunpack.c.h.b16 %v1699
    %v4678 = vunpack.c.l.b16 %v1700
    %v4679 = vunpack.c.h.b16 %v1700
    %v4680 = vunpack.c.l.b16 %v1701
    %v4681 = vunpack.c.h.b16 %v1701
    %v4682 = vunpack.c.l.b16 %v1702
    %v4683 = vunpack.c.h.b16 %v1702
    %v4684 = vunpack.c.l.b16 %v1703
    %v4685 = vunpack.c.h.b16 %v1703
    %v4686 = vunpack.c.l.b16 %v1704
    %v4687 = vunpack.c.h.b16 %v1704
    %v4688 = vunpack.c.l.b16 %v1705
    %v4689 = vunpack.c.h.b16 %v1705
    %v4690 = vunpack.c.l.b16 %v1706
    %v4691 = vunpack.c.h.b16 %v1706
    %v4692 = vunpack.c.l.b16 %v1707
    %v4693 = vunpack.c.h.b16 %v1707
    %v4694 = vunpack.c.l.b16 %v1708
    %v4695 = vunpack.c.h.b16 %v1708
    %v4696 = vunpack.c.l.b16 %v1709
    %v4697 = vunpack.c.h.b16 %v1709
    %v4698 = vunpack.c.l.b16 %v1710
    %v4699 = vunpack.c.h.b16 %v1710
    %v4700 = vunpack.c.l.b16 %v1711
    %v4701 = vunpack.c.h.b16 %v1711
    %v4702 = vunpack.c.l.b16 %v1712
    %v4703 = vunpack.c.h.b16 %v1712
    %v4704 = vunpack.c.l.b16 %v1713
    %v4705 = vunpack.c.h.b16 %v1713
    %v4706 = vunpack.c.l.b16 %v1714
    %v4707 = vunpack.c.h.b16 %v1714
    %v4708 = vunpack.c.l.b16 %v1715
    %v4709 = vunpack.c.h.b16 %v1715
    %v4710 = vunpack.c.l.b16 %v1716
    %v4711 = vunpack.c.h.b16 %v1716
    %v4712 = vunpack.c.l.b16 %v1717
    %v4713 = vunpack.c.h.b16 %v1717
    %v4714 = vunpack.c.l.b16 %v1718
    %v4715 = vunpack.c.h.b16 %v1718
    %v4716 = vunpack.c.l.b16 %v1719
    %v4717 = vunpack.c.h.b16 %v1719
    %v4718 = vunpack.c.l.b16 %v1720
    %v4719 = vunpack.c.h.b16 %v1720
    %v4720 = vunpack.c.l.b16 %v1721
    %v4721 = vunpack.c.h.b16 %v1721
    %v4722 = vunpack.c.l.b16 %v1722
    %v4723 = vunpack.c.h.b16 %v1722
    %v4724 = vunpack.c.l.b16 %v1723
    %v4725 = vunpack.c.h.b16 %v1723
    %v4726 = vunpack.c.l.b16 %v1724
    %v4727 = vunpack.c.h.b16 %v1724
    %v4728 = vunpack.c.l.b16 %v1725
    %v4729 = vunpack.c.h.b16 %v1725
    %v4730 = vunpack.c.l.b16 %v1726
    %v4731 = vunpack.c.h.b16 %v1726
    %v4732 = vunpack.c.l.b16 %v1727
    %v4733 = vunpack.c.h.b16 %v1727
    %v4734 = vunpack.c.l.b16 %v1728
    %v4735 = vunpack.c.h.b16 %v1728
    %v4736 = vunpack.c.l.b16 %v1729
    %v4737 = vunpack.c.h.b16 %v1729
    %v4738 = vunpack.c.l.b16 %v1730
    %v4739 = vunpack.c.h.b16 %v1730
    %v4740 = vunpack.c.l.b16 %v1731
    %v4741 = vunpack.c.h.b16 %v1731
    %v4742 = vunpack.c.l.b16 %v1732
    %v4743 = vunpack.c.h.b16 %v1732
    %v4744 = vunpack.c.l.b16 %v1733
    %v4745 = vunpack.c.h.b16 %v1733
    %v4746 = vunpack.c.l.b16 %v1734
    %v4747 = vunpack.c.h.b16 %v1734
    %v4748 = vunpack.c.l.b16 %v1735
    %v4749 = vunpack.c.h.b16 %v1735
    %v4750 = vunpack.c.l.b16 %v1736
    %v4751 = vunpack.c.h.b16 %v1736
    %v4752 = vunpack.c.l.b16 %v1737
    %v4753 = vunpack.c.h.b16 %v1737
    %v4754 = vunpack.c.l.b16 %v1738
    %v4755 = vunpack.c.h.b16 %v1738
    %v4756 = vunpack.c.l.b16 %v1739
    %v4757 = vunpack.c.h.b16 %v1739
    %v4758 = vunpack.c.l.b16 %v1740
    %v4759 = vunpack.c.h.b16 %v1740
    %v4760 = vunpack.c.l.b16 %v1741
    %v4761 = vunpack.c.h.b16 %v1741
    %v4762 = vunpack.c.l.b16 %v1742
    %v4763 = vunpack.c.h.b16 %v1742
    %v4764 = vunpack.c.l.b16 %v1743
    %v4765 = vunpack.c.h.b16 %v1743
    %v4766 = vunpack.c.l.b16 %v1744
    %v4767 = vunpack.c.h.b16 %v1744
    %v4768 = vunpack.c.l.b16 %v1745
    %v4769 = vunpack.c.h.b16 %v1745
    %v4770 = vunpack.c.l.b16 %v1746
    %v4771 = vunpack.c.h.b16 %v1746
    %v4772 = vunpack.c.l.b16 %v1747
    %v4773 = vunpack.c.h.b16 %v1747
    %v4774 = vunpack.c.l.b16 %v1748
    %v4775 = vunpack.c.h.b16 %v1748
    %v4776 = vunpack.c.l.b16 %v1749
    %v4777 = vunpack.c.h.b16 %v1749
    %v4778 = vunpack.c.l.b16 %v1750
    %v4779 = vunpack.c.h.b16 %v1750
    %v4780 = vunpack.c.l.b16 %v1751
    %v4781 = vunpack.c.h.b16 %v1751
    %v4782 = vunpack.c.l.b16 %v1752
    %v4783 = vunpack.c.h.b16 %v1752
    %v4784 = vunpack.c.l.b16 %v1753
    %v4785 = vunpack.c.h.b16 %v1753
    %v4786 = vunpack.c.l.b16 %v1754
    %v4787 = vunpack.c.h.b16 %v1754
    %v4788 = vunpack.c.l.b16 %v1755
    %v4789 = vunpack.c.h.b16 %v1755
    %v4790 = vunpack.c.l.b16 %v1756
    %v4791 = vunpack.c.h.b16 %v1756
    %v4792 = vunpack.c.l.b16 %v1757
    %v4793 = vunpack.c.h.b16 %v1757
    %v4794 = vunpack.c.l.b16 %v1758
    %v4795 = vunpack.c.h.b16 %v1758
    %v4796 = vunpack.c.l.b16 %v1759
    %v4797 = vunpack.c.h.b16 %v1759
    %v4798 = vunpack.c.l.b16 %v1760
    %v4799 = vunpack.c.h.b16 %v1760
    %v4800 = vunpack.c.l.b16 %v1761
    %v4801 = vunpack.c.h.b16 %v1761
    %v4802 = vunpack.c.l.b16 %v1762
    %v4803 = vunpack.c.h.b16 %v1762
    %v4804 = vunpack.c.l.b16 %v1763
    %v4805 = vunpack.c.h.b16 %v1763
    %v4806 = vunpack.c.l.b16 %v1764
    %v4807 = vunpack.c.h.b16 %v1764
    %v4808 = vunpack.c.l.b16 %v1765
    %v4809 = vunpack.c.h.b16 %v1765
    %v4810 = vunpack.c.l.b16 %v1766
    %v4811 = vunpack.c.h.b16 %v1766
    %v4812 = vunpack.c.l.b16 %v1767
    %v4813 = vunpack.c.h.b16 %v1767
    %v4814 = vunpack.c.l.b16 %v1768
    %v4815 = vunpack.c.h.b16 %v1768
    %v4816 = vunpack.c.l.b16 %v1769
    %v4817 = vunpack.c.h.b16 %v1769
    %v4818 = vunpack.c.l.b16 %v1770
    %v4819 = vunpack.c.h.b16 %v1770
    %v4820 = vunpack.c.l.b16 %v1771
    %v4821 = vunpack.c.h.b16 %v1771
    %v4822 = vunpack.c.l.b16 %v1772
    %v4823 = vunpack.c.h.b16 %v1772
    %v4824 = vunpack.c.l.b16 %v1773
    %v4825 = vunpack.c.h.b16 %v1773
    %v4826 = vunpack.c.l.b16 %v1774
    %v4827 = vunpack.c.h.b16 %v1774
    %v4828 = vunpack.c.l.b16 %v1775
    %v4829 = vunpack.c.h.b16 %v1775
    %v4830 = vunpack.c.l.b16 %v1776
    %v4831 = vunpack.c.h.b16 %v1776
    %v4832 = vunpack.c.l.b16 %v1777
    %v4833 = vunpack.c.h.b16 %v1777
    %v4834 = vunpack.c.l.b16 %v1778
    %v4835 = vunpack.c.h.b16 %v1778
    %v4836 = vunpack.c.l.b16 %v1779
    %v4837 = vunpack.c.h.b16 %v1779
    %v4838 = vunpack.c.l.b16 %v1780
    %v4839 = vunpack.c.h.b16 %v1780
    %v4840 = vunpack.c.l.b16 %v1781
    %v4841 = vunpack.c.h.b16 %v1781
    %v4842 = vunpack.c.l.b16 %v1782
    %v4843 = vunpack.c.h.b16 %v1782
    %v4844 = vunpack.c.l.b16 %v1783
    %v4845 = vunpack.c.h.b16 %v1783
    %v4846 = vunpack.c.l.b16 %v1784
    %v4847 = vunpack.c.h.b16 %v1784
    %v4848 = vunpack.c.l.b16 %v1785
    %v4849 = vunpack.c.h.b16 %v1785
    %v4850 = vunpack.c.l.b16 %v1786
    %v4851 = vunpack.c.h.b16 %v1786
    %v4852 = vunpack.c.l.b16 %v1787
    %v4853 = vunpack.c.h.b16 %v1787
    %v4854 = vunpack.c.l.b16 %v1788
    %v4855 = vunpack.c.h.b16 %v1788
    %v4856 = vunpack.c.l.b16 %v1789
    %v4857 = vunpack.c.h.b16 %v1789
    %v4858 = vunpack.c.l.b16 %v1790
    %v4859 = vunpack.c.h.b16 %v1790
    %v4860 = vunpack.c.l.b16 %v1791
    %v4861 = vunpack.c.h.b16 %v1791
    %v4862 = vunpack.c.l.b16 %v1792
    %v4863 = vunpack.c.h.b16 %v1792
    %v4864 = vunpack.c.l.b16 %v1793
    %v4865 = vunpack.c.h.b16 %v1793
    %v4866 = vunpack.c.l.b16 %v1794
    %v4867 = vunpack.c.h.b16 %v1794
    %v4868 = vunpack.c.l.b16 %v1795
    %v4869 = vunpack.c.h.b16 %v1795
    %v4870 = vunpack.c.l.b16 %v1796
    %v4871 = vunpack.c.h.b16 %v1796
    %v4872 = vunpack.c.l.b16 %v1797
    %v4873 = vunpack.c.h.b16 %v1797
    %v4874 = vunpack.c.l.b16 %v1798
    %v4875 = vunpack.c.h.b16 %v1798
    %v4876 = vunpack.c.l.b16 %v1799
    %v4877 = vunpack.c.h.b16 %v1799
    %v4878 = vunpack.c.l.b16 %v1800
    %v4879 = vunpack.c.h.b16 %v1800
    %v4880 = vunpack.c.l.b16 %v1801
    %v4881 = vunpack.c.h.b16 %v1801
    %v4882 = vunpack.c.l.b16 %v1802
    %v4883 = vunpack.c.h.b16 %v1802
    %v4884 = vunpack.c.l.b16 %v1803
    %v4885 = vunpack.c.h.b16 %v1803
    %v4886 = vunpack.c.l.b16 %v1804
    %v4887 = vunpack.c.h.b16 %v1804
    %v4888 = vunpack.c.l.b16 %v1805
    %v4889 = vunpack.c.h.b16 %v1805
    %v4890 = vunpack.c.l.b16 %v1806
    %v4891 = vunpack.c.h.b16 %v1806
    %v4892 = vunpack.c.l.b16 %v1807
    %v4893 = vunpack.c.h.b16 %v1807
    %v4894 = vunpack.c.l.b16 %v1808
    %v4895 = vunpack.c.h.b16 %v1808
    %v4896 = vunpack.c.l.b16 %v1809
    %v4897 = vunpack.c.h.b16 %v1809
    %v4898 = vunpack.c.l.b16 %v1810
    %v4899 = vunpack.c.h.b16 %v1810
    %v4900 = vunpack.c.l.b16 %v1811
    %v4901 = vunpack.c.h.b16 %v1811
    %v4902 = vunpack.c.l.b16 %v1812
    %v4903 = vunpack.c.h.b16 %v1812
    %v4904 = vunpack.c.l.b16 %v1813
    %v4905 = vunpack.c.h.b16 %v1813
    %v4906 = vunpack.c.l.b16 %v1814
    %v4907 = vunpack.c.h.b16 %v1814
    %v4908 = vunpack.c.l.b16 %v1815
    %v4909 = vunpack.c.h.b16 %v1815
    %v4910 = vunpack.c.l.b16 %v1816
    %v4911 = vunpack.c.h.b16 %v1816
    %v4912 = vunpack.c.l.b16 %v1817
    %v4913 = vunpack.c.h.b16 %v1817
    %v4914 = vunpack.c.l.b16 %v1818
    %v4915 = vunpack.c.h.b16 %v1818
    %v4916 = vunpack.c.l.b16 %v1819
    %v4917 = vunpack.c.h.b16 %v1819
    %v4918 = vunpack.c.l.b16 %v1820
    %v4919 = vunpack.c.h.b16 %v1820
    %v4920 = vunpack.c.l.b16 %v1821
    %v4921 = vunpack.c.h.b16 %v1821
    %v4922 = vunpack.c.l.b16 %v1822
    %v4923 = vunpack.c.h.b16 %v1822
    %v4924 = vunpack.c.l.b16 %v1823
    %v4925 = vunpack.c.h.b16 %v1823
    %v4926 = vunpack.c.l.b16 %v1824
    %v4927 = vunpack.c.h.b16 %v1824
    %v4928 = vunpack.c.l.b16 %v1825
    %v4929 = vunpack.c.h.b16 %v1825
    %v4930 = vunpack.c.l.b16 %v1826
    %v4931 = vunpack.c.h.b16 %v1826
    %v4932 = vunpack.c.l.b16 %v1827
    %v4933 = vunpack.c.h.b16 %v1827
    %v4934 = vunpack.c.l.b16 %v1828
    %v4935 = vunpack.c.h.b16 %v1828
    %v4936 = vunpack.c.l.b16 %v1829
    %v4937 = vunpack.c.h.b16 %v1829
    %v4938 = vunpack.c.l.b16 %v1830
    %v4939 = vunpack.c.h.b16 %v1830
    %v4940 = vunpack.c.l.b16 %v1831
    %v4941 = vunpack.c.h.b16 %v1831
    %v4942 = vunpack.c.l.b16 %v1832
    %v4943 = vunpack.c.h.b16 %v1832
    %v4944 = vunpack.c.l.b16 %v1833
    %v4945 = vunpack.c.h.b16 %v1833
    %v4946 = vunpack.c.l.b16 %v1834
    %v4947 = vunpack.c.h.b16 %v1834
    %v4948 = vunpack.c.l.b16 %v1835
    %v4949 = vunpack.c.h.b16 %v1835
    %v4950 = vpack.c.b16 %v2910, %v2902
    %v4951 = vpack.c.b16 %v2911, %v2903
    %v4952 = vpack.c.b16 %v2912, %v2904
    %v4953 = vpack.c.b16 %v2913, %v2905
    %v4954 = vpack.c.b16 %v2914, %v2906
    %v4955 = vpack.c.b16 %v2915, %v2907
    %v4956 = vpack.c.b16 %v2916, %v2908
    %v4957 = vpack.c.b16 %v2917, %v2909
    %v4958 = vpack.c.b16 %v2926, %v2918
    %v4959 = vpack.c.b16 %v2927, %v2919
    %v4960 = vpack.c.b16 %v2928, %v2920
    %v4961 = vpack.c.b16 %v2929, %v2921
    %v4962 = vpack.c.b16 %v2930, %v2922
    %v4963 = vpack.c.b16 %v2931, %v2923
    %v4964 = vpack.c.b16 %v2932, %v2924
    %v4965 = vpack.c.b16 %v2933, %v2925
    %v4966 = vpack.c.b16 %v2942, %v2934
    %v4967 = vpack.c.b16 %v2943, %v2935
    %v4968 = vpack.c.b16 %v2944, %v2936
    %v4969 = vpack.c.b16 %v2945, %v2937
    %v4970 = vpack.c.b16 %v2946, %v2938
    %v4971 = vpack.c.b16 %v2947, %v2939
    %v4972 = vpack.c.b16 %v2948, %v2940
    %v4973 = vpack.c.b16 %v2949, %v2941
    %v4974 = vpack.c.b16 %v2958, %v2950
    %v4975 = vpack.c.b16 %v2959, %v2951
    %v4976 = vpack.c.b16 %v2960, %v2952
    %v4977 = vpack.c.b16 %v2961, %v2953
    %v4978 = vpack.c.b16 %v2962, %v2954
    %v4979 = vpack.c.b16 %v2963, %v2955
    %v4980 = vpack.c.b16 %v2964, %v2956
    %v4981 = vpack.c.b16 %v2965, %v2957
    %v4982 = vpack.c.b16 %v2974, %v2966
    %v4983 = vpack.c.b16 %v2975, %v2967
    %v4984 = vpack.c.b16 %v2976, %v2968
    %v4985 = vpack.c.b16 %v2977, %v2969
    %v4986 = vpack.c.b16 %v2978, %v2970
    %v4987 = vpack.c.b16 %v2979, %v2971
    %v4988 = vpack.c.b16 %v2980, %v2972
    %v4989 = vpack.c.b16 %v2981, %v2973
    %v4990 = vpack.c.b16 %v2990, %v2982
    %v4991 = vpack.c.b16 %v2991, %v2983
    %v4992 = vpack.c.b16 %v2992, %v2984
    %v4993 = vpack.c.b16 %v2993, %v2985
    %v4994 = vpack.c.b16 %v2994, %v2986
    %v4995 = vpack.c.b16 %v2995, %v2987
    %v4996 = vpack.c.b16 %v2996, %v2988
    %v4997 = vpack.c.b16 %v2997, %v2989
    %v4998 = vpack.c.b16 %v3006, %v2998
    %v4999 = vpack.c.b16 %v3007, %v2999
    %v5000 = vpack.c.b16 %v3008, %v3000
    %v5001 = vpack.c.b16 %v3009, %v3001
    %v5002 = vpack.c.b16 %v3010, %v3002
    %v5003 = vpack.c.b16 %v3011, %v3003
    %v5004 = vpack.c.b16 %v3012, %v3004
    %v5005 = vpack.c.b16 %v3013, %v3005
    %v5006 = vpack.c.b16 %v3022, %v3014
    %v5007 = vpack.c.b16 %v3023, %v3015
    %v5008 = vpack.c.b16 %v3024, %v3016
    %v5009 = vpack.c.b16 %v3025, %v3017
    %v5010 = vpack.c.b16 %v3026, %v3018
    %v5011 = vpack.c.b16 %v3027, %v3019
    %v5012 = vpack.c.b16 %v3028, %v3020
    %v5013 = vpack.c.b16 %v3029, %v3021
    %v5014 = vpack.c.b16 %v3038, %v3030
    %v5015 = vpack.c.b16 %v3039, %v3031
    %v5016 = vpack.c.b16 %v3040, %v3032
    %v5017 = vpack.c.b16 %v3041, %v3033
    %v5018 = vpack.c.b16 %v3042, %v3034
    %v5019 = vpack.c.b16 %v3043, %v3035
    %v5020 = vpack.c.b16 %v3044, %v3036
    %v5021 = vpack.c.b16 %v3045, %v3037
    %v5022 = vpack.c.b16 %v3054, %v3046
    %v5023 = vpack.c.b16 %v3055, %v3047
    %v5024 = vpack.c.b16 %v3056, %v3048
    %v5025 = vpack.c.b16 %v3057, %v3049
    %v5026 = vpack.c.b16 %v3058, %v3050
    %v5027 = vpack.c.b16 %v3059, %v3051
    %v5028 = vpack.c.b16 %v3060, %v3052
    %v5029 = vpack.c.b16 %v3061, %v3053
    %v5030 = vpack.c.b16 %v3070, %v3062
    %v5031 = vpack.c.b16 %v3071, %v3063
    %v5032 = vpack.c.b16 %v3072, %v3064
    %v5033 = vpack.c.b16 %v3073, %v3065
    %v5034 = vpack.c.b16 %v3074, %v3066
    %v5035 = vpack.c.b16 %v3075, %v3067
    %v5036 = vpack.c.b16 %v3076, %v3068
    %v5037 = vpack.c.b16 %v3077, %v3069
    %v5038 = vpack.c.b16 %v3086, %v3078
    %v5039 = vpack.c.b16 %v3087, %v3079
    %v5040 = vpack.c.b16 %v3088, %v3080
    %v5041 = vpack.c.b16 %v3089, %v3081
    %v5042 = vpack.c.b16 %v3090, %v3082
    %v5043 = vpack.c.b16 %v3091, %v3083
    %v5044 = vpack.c.b16 %v3092, %v3084
    %v5045 = vpack.c.b16 %v3093, %v3085
    %v5046 = vpack.c.b16 %v3102, %v3094
    %v5047 = vpack.c.b16 %v3103, %v3095
    %v5048 = vpack.c.b16 %v3104, %v3096
    %v5049 = vpack.c.b16 %v3105, %v3097
    %v5050 = vpack.c.b16 %v3106, %v3098
    %v5051 = vpack.c.b16 %v3107, %v3099
    %v5052 = vpack.c.b16 %v3108, %v3100
    %v5053 = vpack.c.b16 %v3109, %v3101
    %v5054 = vpack.c.b16 %v3118, %v3110
    %v5055 = vpack.c.b16 %v3119, %v3111
    %v5056 = vpack.c.b16 %v3120, %v3112
    %v5057 = vpack.c.b16 %v3121, %v3113
    %v5058 = vpack.c.b16 %v3122, %v3114
    %v5059 = vpack.c.b16 %v3123, %v3115
    %v5060 = vpack.c.b16 %v3124, %v3116
    %v5061 = vpack.c.b16 %v3125, %v3117
    %v5062 = vpack.c.b16 %v3134, %v3126
    %v5063 = vpack.c.b16 %v3135, %v3127
    %v5064 = vpack.c.b16 %v3136, %v3128
    %v5065 = vpack.c.b16 %v3137, %v3129
    %v5066 = vpack.c.b16 %v3138, %v3130
    %v5067 = vpack.c.b16 %v3139, %v3131
    %v5068 = vpack.c.b16 %v3140, %v3132
    %v5069 = vpack.c.b16 %v3141, %v3133
    %v5070 = vpack.c.b16 %v3150, %v3142
    %v5071 = vpack.c.b16 %v3151, %v3143
    %v5072 = vpack.c.b16 %v3152, %v3144
    %v5073 = vpack.c.b16 %v3153, %v3145
    %v5074 = vpack.c.b16 %v3154, %v3146
    %v5075 = vpack.c.b16 %v3155, %v3147
    %v5076 = vpack.c.b16 %v3156, %v3148
    %v5077 = vpack.c.b16 %v3157, %v3149
    %v5078 = vpack.c.b16 %v3166, %v3158
    %v5079 = vpack.c.b16 %v3167, %v3159
    %v5080 = vpack.c.b16 %v3168, %v3160
    %v5081 = vpack.c.b16 %v3169, %v3161
    %v5082 = vpack.c.b16 %v3170, %v3162
    %v5083 = vpack.c.b16 %v3171, %v3163
    %v5084 = vpack.c.b16 %v3172, %v3164
    %v5085 = vpack.c.b16 %v3173, %v3165
    %v5086 = vpack.c.b16 %v3182, %v3174
    %v5087 = vpack.c.b16 %v3183, %v3175
    %v5088 = vpack.c.b16 %v3184, %v3176
    %v5089 = vpack.c.b16 %v3185, %v3177
    %v5090 = vpack.c.b16 %v3186, %v3178
    %v5091 = vpack.c.b16 %v3187, %v3179
    %v5092 = vpack.c.b16 %v3188, %v3180
    %v5093 = vpack.c.b16 %v3189, %v3181
    %v5094 = vpack.c.b16 %v3198, %v3190
    %v5095 = vpack.c.b16 %v3199, %v3191
    %v5096 = vpack.c.b16 %v3200, %v3192
    %v5097 = vpack.c.b16 %v3201, %v3193
    %v5098 = vpack.c.b16 %v3202, %v3194
    %v5099 = vpack.c.b16 %v3203, %v3195
    %v5100 = vpack.c.b16 %v3204, %v3196
    %v5101 = vpack.c.b16 %v3205, %v3197
    %v5102 = vpack.c.b16 %v3214, %v3206
    %v5103 = vpack.c.b16 %v3215, %v3207
    %v5104 = vpack.c.b16 %v3216, %v3208
    %v5105 = vpack.c.b16 %v3217, %v3209
    %v5106 = vpack.c.b16 %v3218, %v3210
    %v5107 = vpack.c.b16 %v3219, %v3211
    %v5108 = vpack.c.b16 %v3220, %v3212
    %v5109 = vpack.c.b16 %v3221, %v3213
    %v5110 = vpack.c.b16 %v3230, %v3222
    %v5111 = vpack.c.b16 %v3231, %v3223
    %v5112 = vpack.c.b16 %v3232, %v3224
    %v5113 = vpack.c.b16 %v3233, %v3225
    %v5114 = vpack.c.b16 %v3234, %v3226
    %v5115 = vpack.c.b16 %v3235, %v3227
    %v5116 = vpack.c.b16 %v3236, %v3228
    %v5117 = vpack.c.b16 %v3237, %v3229
    %v5118 = vpack.c.b16 %v3246, %v3238
    %v5119 = vpack.c.b16 %v3247, %v3239
    %v5120 = vpack.c.b16 %v3248, %v3240
    %v5121 = vpack.c.b16 %v3249, %v3241
    %v5122 = vpack.c.b16 %v3250, %v3242
    %v5123 = vpack.c.b16 %v3251, %v3243
    %v5124 = vpack.c.b16 %v3252, %v3244
    %v5125 = vpack.c.b16 %v3253, %v3245
    %v5126 = vpack.c.b16 %v3262, %v3254
    %v5127 = vpack.c.b16 %v3263, %v3255
    %v5128 = vpack.c.b16 %v3264, %v3256
    %v5129 = vpack.c.b16 %v3265, %v3257
    %v5130 = vpack.c.b16 %v3266, %v3258
    %v5131 = vpack.c.b16 %v3267, %v3259
    %v5132 = vpack.c.b16 %v3268, %v3260
    %v5133 = vpack.c.b16 %v3269, %v3261
    %v5134 = vpack.c.b16 %v3278, %v3270
    %v5135 = vpack.c.b16 %v3279, %v3271
    %v5136 = vpack.c.b16 %v3280, %v3272
    %v5137 = vpack.c.b16 %v3281, %v3273
    %v5138 = vpack.c.b16 %v3282, %v3274
    %v5139 = vpack.c.b16 %v3283, %v3275
    %v5140 = vpack.c.b16 %v3284, %v3276
    %v5141 = vpack.c.b16 %v3285, %v3277
    %v5142 = vpack.c.b16 %v3294, %v3286
    %v5143 = vpack.c.b16 %v3295, %v3287
    %v5144 = vpack.c.b16 %v3296, %v3288
    %v5145 = vpack.c.b16 %v3297, %v3289
    %v5146 = vpack.c.b16 %v3298, %v3290
    %v5147 = vpack.c.b16 %v3299, %v3291
    %v5148 = vpack.c.b16 %v3300, %v3292
    %v5149 = vpack.c.b16 %v3301, %v3293
    %v5150 = vpack.c.b16 %v3310, %v3302
    %v5151 = vpack.c.b16 %v3311, %v3303
    %v5152 = vpack.c.b16 %v3312, %v3304
    %v5153 = vpack.c.b16 %v3313, %v3305
    %v5154 = vpack.c.b16 %v3314, %v3306
    %v5155 = vpack.c.b16 %v3315, %v3307
    %v5156 = vpack.c.b16 %v3316, %v3308
    %v5157 = vpack.c.b16 %v3317, %v3309
    %v5158 = vpack.c.b16 %v3326, %v3318
    %v5159 = vpack.c.b16 %v3327, %v3319
    %v5160 = vpack.c.b16 %v3328, %v3320
    %v5161 = vpack.c.b16 %v3329, %v3321
    %v5162 = vpack.c.b16 %v3330, %v3322
    %v5163 = vpack.c.b16 %v3331, %v3323
    %v5164 = vpack.c.b16 %v3332, %v3324
    %v5165 = vpack.c.b16 %v3333, %v3325
    %v5166 = vpack.c.b16 %v3342, %v3334
    %v5167 = vpack.c.b16 %v3343, %v3335
    %v5168 = vpack.c.b16 %v3344, %v3336
    %v5169 = vpack.c.b16 %v3345, %v3337
    %v5170 = vpack.c.b16 %v3346, %v3338
    %v5171 = vpack.c.b16 %v3347, %v3339
    %v5172 = vpack.c.b16 %v3348, %v3340
    %v5173 = vpack.c.b16 %v3349, %v3341
    %v5174 = vpack.c.b16 %v3358, %v3350
    %v5175 = vpack.c.b16 %v3359, %v3351
    %v5176 = vpack.c.b16 %v3360, %v3352
    %v5177 = vpack.c.b16 %v3361, %v3353
    %v5178 = vpack.c.b16 %v3362, %v3354
    %v5179 = vpack.c.b16 %v3363, %v3355
    %v5180 = vpack.c.b16 %v3364, %v3356
    %v5181 = vpack.c.b16 %v3365, %v3357
    %v5182 = vpack.c.b16 %v3374, %v3366
    %v5183 = vpack.c.b16 %v3375, %v3367
    %v5184 = vpack.c.b16 %v3376, %v3368
    %v5185 = vpack.c.b16 %v3377, %v3369
    %v5186 = vpack.c.b16 %v3378, %v3370
    %v5187 = vpack.c.b16 %v3379, %v3371
    %v5188 = vpack.c.b16 %v3380, %v3372
    %v5189 = vpack.c.b16 %v3381, %v3373
    %v5190 = vpack.c.b16 %v3390, %v3382
    %v5191 = vpack.c.b16 %v3391, %v3383
    %v5192 = vpack.c.b16 %v3392, %v3384
    %v5193 = vpack.c.b16 %v3393, %v3385
    %v5194 = vpack.c.b16 %v3394, %v3386
    %v5195 = vpack.c.b16 %v3395, %v3387
    %v5196 = vpack.c.b16 %v3396, %v3388
    %v5197 = vpack.c.b16 %v3397, %v3389
    %v5198 = vpack.c.b16 %v3406, %v3398
    %v5199 = vpack.c.b16 %v3407, %v3399
    %v5200 = vpack.c.b16 %v3408, %v3400
    %v5201 = vpack.c.b16 %v3409, %v3401
    %v5202 = vpack.c.b16 %v3410, %v3402
    %v5203 = vpack.c.b16 %v3411, %v3403
    %v5204 = vpack.c.b16 %v3412, %v3404
    %v5205 = vpack.c.b16 %v3413, %v3405
    %v5206 = vpack.c.b16 %v3422, %v3414
    %v5207 = vpack.c.b16 %v3423, %v3415
    %v5208 = vpack.c.b16 %v3424, %v3416
    %v5209 = vpack.c.b16 %v3425, %v3417
    %v5210 = vpack.c.b16 %v3426, %v3418
    %v5211 = vpack.c.b16 %v3427, %v3419
    %v5212 = vpack.c.b16 %v3428, %v3420
    %v5213 = vpack.c.b16 %v3429, %v3421
    %v5214 = vpack.c.b16 %v3438, %v3430
    %v5215 = vpack.c.b16 %v3439, %v3431
    %v5216 = vpack.c.b16 %v3440, %v3432
    %v5217 = vpack.c.b16 %v3441, %v3433
    %v5218 = vpack.c.b16 %v3442, %v3434
    %v5219 = vpack.c.b16 %v3443, %v3435
    %v5220 = vpack.c.b16 %v3444, %v3436
    %v5221 = vpack.c.b16 %v3445, %v3437
    %v5222 = vpack.c.b16 %v3454, %v3446
    %v5223 = vpack.c.b16 %v3455, %v3447
    %v5224 = vpack.c.b16 %v3456, %v3448
    %v5225 = vpack.c.b16 %v3457, %v3449
    %v5226 = vpack.c.b16 %v3458, %v3450
    %v5227 = vpack.c.b16 %v3459, %v3451
    %v5228 = vpack.c.b16 %v3460, %v3452
    %v5229 = vpack.c.b16 %v3461, %v3453
    %v5230 = vpack.c.b16 %v3470, %v3462
    %v5231 = vpack.c.b16 %v3471, %v3463
    %v5232 = vpack.c.b16 %v3472, %v3464
    %v5233 = vpack.c.b16 %v3473, %v3465
    %v5234 = vpack.c.b16 %v3474, %v3466
    %v5235 = vpack.c.b16 %v3475, %v3467
    %v5236 = vpack.c.b16 %v3476, %v3468
    %v5237 = vpack.c.b16 %v3477, %v3469
    %v5238 = vpack.c.b16 %v3486, %v3478
    %v5239 = vpack.c.b16 %v3487, %v3479
    %v5240 = vpack.c.b16 %v3488, %v3480
    %v5241 = vpack.c.b16 %v3489, %v3481
    %v5242 = vpack.c.b16 %v3490, %v3482
    %v5243 = vpack.c.b16 %v3491, %v3483
    %v5244 = vpack.c.b16 %v3492, %v3484
    %v5245 = vpack.c.b16 %v3493, %v3485
    %v5246 = vpack.c.b16 %v3502, %v3494
    %v5247 = vpack.c.b16 %v3503, %v3495
    %v5248 = vpack.c.b16 %v3504, %v3496
    %v5249 = vpack.c.b16 %v3505, %v3497
    %v5250 = vpack.c.b16 %v3506, %v3498
    %v5251 = vpack.c.b16 %v3507, %v3499
    %v5252 = vpack.c.b16 %v3508, %v3500
    %v5253 = vpack.c.b16 %v3509, %v3501
    %v5254 = vpack.c.b16 %v3518, %v3510
    %v5255 = vpack.c.b16 %v3519, %v3511
    %v5256 = vpack.c.b16 %v3520, %v3512
    %v5257 = vpack.c.b16 %v3521, %v3513
    %v5258 = vpack.c.b16 %v3522, %v3514
    %v5259 = vpack.c.b16 %v3523, %v3515
    %v5260 = vpack.c.b16 %v3524, %v3516
    %v5261 = vpack.c.b16 %v3525, %v3517
    %v5262 = vpack.c.b16 %v3534, %v3526
    %v5263 = vpack.c.b16 %v3535, %v3527
    %v5264 = vpack.c.b16 %v3536, %v3528
    %v5265 = vpack.c.b16 %v3537, %v3529
    %v5266 = vpack.c.b16 %v3538, %v3530
    %v5267 = vpack.c.b16 %v3539, %v3531
    %v5268 = vpack.c.b16 %v3540, %v3532
    %v5269 = vpack.c.b16 %v3541, %v3533
    %v5270 = vpack.c.b16 %v3550, %v3542
    %v5271 = vpack.c.b16 %v3551, %v3543
    %v5272 = vpack.c.b16 %v3552, %v3544
    %v5273 = vpack.c.b16 %v3553, %v3545
    %v5274 = vpack.c.b16 %v3554, %v3546
    %v5275 = vpack.c.b16 %v3555, %v3547
    %v5276 = vpack.c.b16 %v3556, %v3548
    %v5277 = vpack.c.b16 %v3557, %v3549
    %v5278 = vpack.c.b16 %v3566, %v3558
    %v5279 = vpack.c.b16 %v3567, %v3559
    %v5280 = vpack.c.b16 %v3568, %v3560
    %v5281 = vpack.c.b16 %v3569, %v3561
    %v5282 = vpack.c.b16 %v3570, %v3562
    %v5283 = vpack.c.b16 %v3571, %v3563
    %v5284 = vpack.c.b16 %v3572, %v3564
    %v5285 = vpack.c.b16 %v3573, %v3565
    %v5286 = vpack.c.b16 %v3582, %v3574
    %v5287 = vpack.c.b16 %v3583, %v3575
    %v5288 = vpack.c.b16 %v3584, %v3576
    %v5289 = vpack.c.b16 %v3585, %v3577
    %v5290 = vpack.c.b16 %v3586, %v3578
    %v5291 = vpack.c.b16 %v3587, %v3579
    %v5292 = vpack.c.b16 %v3588, %v3580
    %v5293 = vpack.c.b16 %v3589, %v3581
    %v5294 = vpack.c.b16 %v3598, %v3590
    %v5295 = vpack.c.b16 %v3599, %v3591
    %v5296 = vpack.c.b16 %v3600, %v3592
    %v5297 = vpack.c.b16 %v3601, %v3593
    %v5298 = vpack.c.b16 %v3602, %v3594
    %v5299 = vpack.c.b16 %v3603, %v3595
    %v5300 = vpack.c.b16 %v3604, %v3596
    %v5301 = vpack.c.b16 %v3605, %v3597
    %v5302 = vpack.c.b16 %v3614, %v3606
    %v5303 = vpack.c.b16 %v3615, %v3607
    %v5304 = vpack.c.b16 %v3616, %v3608
    %v5305 = vpack.c.b16 %v3617, %v3609
    %v5306 = vpack.c.b16 %v3618, %v3610
    %v5307 = vpack.c.b16 %v3619, %v3611
    %v5308 = vpack.c.b16 %v3620, %v3612
    %v5309 = vpack.c.b16 %v3621, %v3613
    %v5310 = vpack.c.b16 %v3630, %v3622
    %v5311 = vpack.c.b16 %v3631, %v3623
    %v5312 = vpack.c.b16 %v3632, %v3624
    %v5313 = vpack.c.b16 %v3633, %v3625
    %v5314 = vpack.c.b16 %v3634, %v3626
    %v5315 = vpack.c.b16 %v3635, %v3627
    %v5316 = vpack.c.b16 %v3636, %v3628
    %v5317 = vpack.c.b16 %v3637, %v3629
    %v5318 = vpack.c.b16 %v3646, %v3638
    %v5319 = vpack.c.b16 %v3647, %v3639
    %v5320 = vpack.c.b16 %v3648, %v3640
    %v5321 = vpack.c.b16 %v3649, %v3641
    %v5322 = vpack.c.b16 %v3650, %v3642
    %v5323 = vpack.c.b16 %v3651, %v3643
    %v5324 = vpack.c.b16 %v3652, %v3644
    %v5325 = vpack.c.b16 %v3653, %v3645
    %v5326 = vpack.c.b16 %v3662, %v3654
    %v5327 = vpack.c.b16 %v3663, %v3655
    %v5328 = vpack.c.b16 %v3664, %v3656
    %v5329 = vpack.c.b16 %v3665, %v3657
    %v5330 = vpack.c.b16 %v3666, %v3658
    %v5331 = vpack.c.b16 %v3667, %v3659
    %v5332 = vpack.c.b16 %v3668, %v3660
    %v5333 = vpack.c.b16 %v3669, %v3661
    %v5334 = vpack.c.b16 %v3678, %v3670
    %v5335 = vpack.c.b16 %v3679, %v3671
    %v5336 = vpack.c.b16 %v3680, %v3672
    %v5337 = vpack.c.b16 %v3681, %v3673
    %v5338 = vpack.c.b16 %v3682, %v3674
    %v5339 = vpack.c.b16 %v3683, %v3675
    %v5340 = vpack.c.b16 %v3684, %v3676
    %v5341 = vpack.c.b16 %v3685, %v3677
    %v5342 = vpack.c.b16 %v3694, %v3686
    %v5343 = vpack.c.b16 %v3695, %v3687
    %v5344 = vpack.c.b16 %v3696, %v3688
    %v5345 = vpack.c.b16 %v3697, %v3689
    %v5346 = vpack.c.b16 %v3698, %v3690
    %v5347 = vpack.c.b16 %v3699, %v3691
    %v5348 = vpack.c.b16 %v3700, %v3692
    %v5349 = vpack.c.b16 %v3701, %v3693
    %v5350 = vpack.c.b16 %v3710, %v3702
    %v5351 = vpack.c.b16 %v3711, %v3703
    %v5352 = vpack.c.b16 %v3712, %v3704
    %v5353 = vpack.c.b16 %v3713, %v3705
    %v5354 = vpack.c.b16 %v3714, %v3706
    %v5355 = vpack.c.b16 %v3715, %v3707
    %v5356 = vpack.c.b16 %v3716, %v3708
    %v5357 = vpack.c.b16 %v3717, %v3709
    %v5358 = vpack.c.b16 %v3726, %v3718
    %v5359 = vpack.c.b16 %v3727, %v3719
    %v5360 = vpack.c.b16 %v3728, %v3720
    %v5361 = vpack.c.b16 %v3729, %v3721
    %v5362 = vpack.c.b16 %v3730, %v3722
    %v5363 = vpack.c.b16 %v3731, %v3723
    %v5364 = vpack.c.b16 %v3732, %v3724
    %v5365 = vpack.c.b16 %v3733, %v3725
    %v5366 = vpack.c.b16 %v3742, %v3734
    %v5367 = vpack.c.b16 %v3743, %v3735
    %v5368 = vpack.c.b16 %v3744, %v3736
    %v5369 = vpack.c.b16 %v3745, %v3737
    %v5370 = vpack.c.b16 %v3746, %v3738
    %v5371 = vpack.c.b16 %v3747, %v3739
    %v5372 = vpack.c.b16 %v3748, %v3740
    %v5373 = vpack.c.b16 %v3749, %v3741
    %v5374 = vpack.c.b16 %v3758, %v3750
    %v5375 = vpack.c.b16 %v3759, %v3751
    %v5376 = vpack.c.b16 %v3760, %v3752
    %v5377 = vpack.c.b16 %v3761, %v3753
    %v5378 = vpack.c.b16 %v3762, %v3754
    %v5379 = vpack.c.b16 %v3763, %v3755
    %v5380 = vpack.c.b16 %v3764, %v3756
    %v5381 = vpack.c.b16 %v3765, %v3757
    %v5382 = vpack.c.b16 %v3774, %v3766
    %v5383 = vpack.c.b16 %v3775, %v3767
    %v5384 = vpack.c.b16 %v3776, %v3768
    %v5385 = vpack.c.b16 %v3777, %v3769
    %v5386 = vpack.c.b16 %v3778, %v3770
    %v5387 = vpack.c.b16 %v3779, %v3771
    %v5388 = vpack.c.b16 %v3780, %v3772
    %v5389 = vpack.c.b16 %v3781, %v3773
    %v5390 = vpack.c.b16 %v3790, %v3782
    %v5391 = vpack.c.b16 %v3791, %v3783
    %v5392 = vpack.c.b16 %v3792, %v3784
    %v5393 = vpack.c.b16 %v3793, %v3785
    %v5394 = vpack.c.b16 %v3794, %v3786
    %v5395 = vpack.c.b16 %v3795, %v3787
    %v5396 = vpack.c.b16 %v3796, %v3788
    %v5397 = vpack.c.b16 %v3797, %v3789
    %v5398 = vpack.c.b16 %v3806, %v3798
    %v5399 = vpack.c.b16 %v3807, %v3799
    %v5400 = vpack.c.b16 %v3808, %v3800
    %v5401 = vpack.c.b16 %v3809, %v3801
    %v5402 = vpack.c.b16 %v3810, %v3802
    %v5403 = vpack.c.b16 %v3811, %v3803
    %v5404 = vpack.c.b16 %v3812, %v3804
    %v5405 = vpack.c.b16 %v3813, %v3805
    %v5406 = vpack.c.b16 %v3822, %v3814
    %v5407 = vpack.c.b16 %v3823, %v3815
    %v5408 = vpack.c.b16 %v3824, %v3816
    %v5409 = vpack.c.b16 %v3825, %v3817
    %v5410 = vpack.c.b16 %v3826, %v3818
    %v5411 = vpack.c.b16 %v3827, %v3819
    %v5412 = vpack.c.b16 %v3828, %v3820
    %v5413 = vpack.c.b16 %v3829, %v3821
    %v5414 = vpack.c.b16 %v3838, %v3830
    %v5415 = vpack.c.b16 %v3839, %v3831
    %v5416 = vpack.c.b16 %v3840, %v3832
    %v5417 = vpack.c.b16 %v3841, %v3833
    %v5418 = vpack.c.b16 %v3842, %v3834
    %v5419 = vpack.c.b16 %v3843, %v3835
    %v5420 = vpack.c.b16 %v3844, %v3836
    %v5421 = vpack.c.b16 %v3845, %v3837
    %v5422 = vpack.c.b16 %v3854, %v3846
    %v5423 = vpack.c.b16 %v3855, %v3847
    %v5424 = vpack.c.b16 %v3856, %v3848
    %v5425 = vpack.c.b16 %v3857, %v3849
    %v5426 = vpack.c.b16 %v3858, %v3850
    %v5427 = vpack.c.b16 %v3859, %v3851
    %v5428 = vpack.c.b16 %v3860, %v3852
    %v5429 = vpack.c.b16 %v3861, %v3853
    %v5430 = vpack.c.b16 %v3870, %v3862
    %v5431 = vpack.c.b16 %v3871, %v3863
    %v5432 = vpack.c.b16 %v3872, %v3864
    %v5433 = vpack.c.b16 %v3873, %v3865
    %v5434 = vpack.c.b16 %v3874, %v3866
    %v5435 = vpack.c.b16 %v3875, %v3867
    %v5436 = vpack.c.b16 %v3876, %v3868
    %v5437 = vpack.c.b16 %v3877, %v3869
    %v5438 = vpack.c.b16 %v3886, %v3878
    %v5439 = vpack.c.b16 %v3887, %v3879
    %v5440 = vpack.c.b16 %v3888, %v3880
    %v5441 = vpack.c.b16 %v3889, %v3881
    %v5442 = vpack.c.b16 %v3890, %v3882
    %v5443 = vpack.c.b16 %v3891, %v3883
    %v5444 = vpack.c.b16 %v3892, %v3884
    %v5445 = vpack.c.b16 %v3893, %v3885
    %v5446 = vpack.c.b16 %v3902, %v3894
    %v5447 = vpack.c.b16 %v3903, %v3895
    %v5448 = vpack.c.b16 %v3904, %v3896
    %v5449 = vpack.c.b16 %v3905, %v3897
    %v5450 = vpack.c.b16 %v3906, %v3898
    %v5451 = vpack.c.b16 %v3907, %v3899
    %v5452 = vpack.c.b16 %v3908, %v3900
    %v5453 = vpack.c.b16 %v3909, %v3901
    %v5454 = vpack.c.b16 %v3918, %v3910
    %v5455 = vpack.c.b16 %v3919, %v3911
    %v5456 = vpack.c.b16 %v3920, %v3912
    %v5457 = vpack.c.b16 %v3921, %v3913
    %v5458 = vpack.c.b16 %v3922, %v3914
    %v5459 = vpack.c.b16 %v3923, %v3915
    %v5460 = vpack.c.b16 %v3924, %v3916
    %v5461 = vpack.c.b16 %v3925, %v3917
    %v5462 = vpack.c.b16 %v3934, %v3926
    %v5463 = vpack.c.b16 %v3935, %v3927
    %v5464 = vpack.c.b16 %v3936, %v3928
    %v5465 = vpack.c.b16 %v3937, %v3929
    %v5466 = vpack.c.b16 %v3938, %v3930
    %v5467 = vpack.c.b16 %v3939, %v3931
    %v5468 = vpack.c.b16 %v3940, %v3932
    %v5469 = vpack.c.b16 %v3941, %v3933
    %v5470 = vpack.c.b16 %v3950, %v3942
    %v5471 = vpack.c.b16 %v3951, %v3943
    %v5472 = vpack.c.b16 %v3952, %v3944
    %v5473 = vpack.c.b16 %v3953, %v3945
    %v5474 = vpack.c.b16 %v3954, %v3946
    %v5475 = vpack.c.b16 %v3955, %v3947
    %v5476 = vpack.c.b16 %v3956, %v3948
    %v5477 = vpack.c.b16 %v3957, %v3949
    %v5478 = vpack.c.b16 %v3966, %v3958
    %v5479 = vpack.c.b16 %v3967, %v3959
    %v5480 = vpack.c.b16 %v3968, %v3960
    %v5481 = vpack.c.b16 %v3969, %v3961
    %v5482 = vpack.c.b16 %v3970, %v3962
    %v5483 = vpack.c.b16 %v3971, %v3963
    %v5484 = vpack.c.b16 %v3972, %v3964
    %v5485 = vpack.c.b16 %v3973, %v3965
    %v5486 = vpack.c.b16 %v3982, %v3974
    %v5487 = vpack.c.b16 %v3983, %v3975
    %v5488 = vpack.c.b16 %v3984, %v3976
    %v5489 = vpack.c.b16 %v3985, %v3977
    %v5490 = vpack.c.b16 %v3986, %v3978
    %v5491 = vpack.c.b16 %v3987, %v3979
    %v5492 = vpack.c.b16 %v3988, %v3980
    %v5493 = vpack.c.b16 %v3989, %v3981
    %v5494 = vpack.c.b16 %v3998, %v3990
    %v5495 = vpack.c.b16 %v3999, %v3991
    %v5496 = vpack.c.b16 %v4000, %v3992
    %v5497 = vpack.c.b16 %v4001, %v3993
    %v5498 = vpack.c.b16 %v4002, %v3994
    %v5499 = vpack.c.b16 %v4003, %v3995
    %v5500 = vpack.c.b16 %v4004, %v3996
    %v5501 = vpack.c.b16 %v4005, %v3997
    %v5502 = vpack.c.b16 %v4014, %v4006
    %v5503 = vpack.c.b16 %v4015, %v4007
    %v5504 = vpack.c.b16 %v4016, %v4008
    %v5505 = vpack.c.b16 %v4017, %v4009
    %v5506 = vpack.c.b16 %v4018, %v4010
    %v5507 = vpack.c.b16 %v4019, %v4011
    %v5508 = vpack.c.b16 %v4020, %v4012
    %v5509 = vpack.c.b16 %v4021, %v4013
    %v5510 = vpack.c.b16 %v4030, %v4022
    %v5511 = vpack.c.b16 %v4031, %v4023
    %v5512 = vpack.c.b16 %v4032, %v4024
    %v5513 = vpack.c.b16 %v4033, %v4025
    %v5514 = vpack.c.b16 %v4034, %v4026
    %v5515 = vpack.c.b16 %v4035, %v4027
    %v5516 = vpack.c.b16 %v4036, %v4028
    %v5517 = vpack.c.b16 %v4037, %v4029
    %v5518 = vpack.c.b16 %v4046, %v4038
    %v5519 = vpack.c.b16 %v4047, %v4039
    %v5520 = vpack.c.b16 %v4048, %v4040
    %v5521 = vpack.c.b16 %v4049, %v4041
    %v5522 = vpack.c.b16 %v4050, %v4042
    %v5523 = vpack.c.b16 %v4051, %v4043
    %v5524 = vpack.c.b16 %v4052, %v4044
    %v5525 = vpack.c.b16 %v4053, %v4045
    %v5526 = vpack.c.b16 %v4062, %v4054
    %v5527 = vpack.c.b16 %v4063, %v4055
    %v5528 = vpack.c.b16 %v4064, %v4056
    %v5529 = vpack.c.b16 %v4065, %v4057
    %v5530 = vpack.c.b16 %v4066, %v4058
    %v5531 = vpack.c.b16 %v4067, %v4059
    %v5532 = vpack.c.b16 %v4068, %v4060
    %v5533 = vpack.c.b16 %v4069, %v4061
    %v5534 = vpack.c.b16 %v4078, %v4070
    %v5535 = vpack.c.b16 %v4079, %v4071
    %v5536 = vpack.c.b16 %v4080, %v4072
    %v5537 = vpack.c.b16 %v4081, %v4073
    %v5538 = vpack.c.b16 %v4082, %v4074
    %v5539 = vpack.c.b16 %v4083, %v4075
    %v5540 = vpack.c.b16 %v4084, %v4076
    %v5541 = vpack.c.b16 %v4085, %v4077
    %v5542 = vpack.c.b16 %v4094, %v4086
    %v5543 = vpack.c.b16 %v4095, %v4087
    %v5544 = vpack.c.b16 %v4096, %v4088
    %v5545 = vpack.c.b16 %v4097, %v4089
    %v5546 = vpack.c.b16 %v4098, %v4090
    %v5547 = vpack.c.b16 %v4099, %v4091
    %v5548 = vpack.c.b16 %v4100, %v4092
    %v5549 = vpack.c.b16 %v4101, %v4093
    %v5550 = vpack.c.b16 %v4110, %v4102
    %v5551 = vpack.c.b16 %v4111, %v4103
    %v5552 = vpack.c.b16 %v4112, %v4104
    %v5553 = vpack.c.b16 %v4113, %v4105
    %v5554 = vpack.c.b16 %v4114, %v4106
    %v5555 = vpack.c.b16 %v4115, %v4107
    %v5556 = vpack.c.b16 %v4116, %v4108
    %v5557 = vpack.c.b16 %v4117, %v4109
    %v5558 = vpack.c.b16 %v4126, %v4118
    %v5559 = vpack.c.b16 %v4127, %v4119
    %v5560 = vpack.c.b16 %v4128, %v4120
    %v5561 = vpack.c.b16 %v4129, %v4121
    %v5562 = vpack.c.b16 %v4130, %v4122
    %v5563 = vpack.c.b16 %v4131, %v4123
    %v5564 = vpack.c.b16 %v4132, %v4124
    %v5565 = vpack.c.b16 %v4133, %v4125
    %v5566 = vpack.c.b16 %v4142, %v4134
    %v5567 = vpack.c.b16 %v4143, %v4135
    %v5568 = vpack.c.b16 %v4144, %v4136
    %v5569 = vpack.c.b16 %v4145, %v4137
    %v5570 = vpack.c.b16 %v4146, %v4138
    %v5571 = vpack.c.b16 %v4147, %v4139
    %v5572 = vpack.c.b16 %v4148, %v4140
    %v5573 = vpack.c.b16 %v4149, %v4141
    %v5574 = vpack.c.b16 %v4158, %v4150
    %v5575 = vpack.c.b16 %v4159, %v4151
    %v5576 = vpack.c.b16 %v4160, %v4152
    %v5577 = vpack.c.b16 %v4161, %v4153
    %v5578 = vpack.c.b16 %v4162, %v4154
    %v5579 = vpack.c.b16 %v4163, %v4155
    %v5580 = vpack.c.b16 %v4164, %v4156
    %v5581 = vpack.c.b16 %v4165, %v4157
    %v5582 = vpack.c.b16 %v4174, %v4166
    %v5583 = vpack.c.b16 %v4175, %v4167
    %v5584 = vpack.c.b16 %v4176, %v4168
    %v5585 = vpack.c.b16 %v4177, %v4169
    %v5586 = vpack.c.b16 %v4178, %v4170
    %v5587 = vpack.c.b16 %v4179, %v4171
    %v5588 = vpack.c.b16 %v4180, %v4172
    %v5589 = vpack.c.b16 %v4181, %v4173
    %v5590 = vpack.c.b16 %v4190, %v4182
    %v5591 = vpack.c.b16 %v4191, %v4183
    %v5592 = vpack.c.b16 %v4192, %v4184
    %v5593 = vpack.c.b16 %v4193, %v4185
    %v5594 = vpack.c.b16 %v4194, %v4186
    %v5595 = vpack.c.b16 %v4195, %v4187
    %v5596 = vpack.c.b16 %v4196, %v4188
    %v5597 = vpack.c.b16 %v4197, %v4189
    %v5598 = vpack.c.b16 %v4206, %v4198
    %v5599 = vpack.c.b16 %v4207, %v4199
    %v5600 = vpack.c.b16 %v4208, %v4200
    %v5601 = vpack.c.b16 %v4209, %v4201
    %v5602 = vpack.c.b16 %v4210, %v4202
    %v5603 = vpack.c.b16 %v4211, %v4203
    %v5604 = vpack.c.b16 %v4212, %v4204
    %v5605 = vpack.c.b16 %v4213, %v4205
    %v5606 = vpack.c.b16 %v4222, %v4214
    %v5607 = vpack.c.b16 %v4223, %v4215
    %v5608 = vpack.c.b16 %v4224, %v4216
    %v5609 = vpack.c.b16 %v4225, %v4217
    %v5610 = vpack.c.b16 %v4226, %v4218
    %v5611 = vpack.c.b16 %v4227, %v4219
    %v5612 = vpack.c.b16 %v4228, %v4220
    %v5613 = vpack.c.b16 %v4229, %v4221
    %v5614 = vpack.c.b16 %v4238, %v4230
    %v5615 = vpack.c.b16 %v4239, %v4231
    %v5616 = vpack.c.b16 %v4240, %v4232
    %v5617 = vpack.c.b16 %v4241, %v4233
    %v5618 = vpack.c.b16 %v4242, %v4234
    %v5619 = vpack.c.b16 %v4243, %v4235
    %v5620 = vpack.c.b16 %v4244, %v4236
    %v5621 = vpack.c.b16 %v4245, %v4237
    %v5622 = vpack.c.b16 %v4254, %v4246
    %v5623 = vpack.c.b16 %v4255, %v4247
    %v5624 = vpack.c.b16 %v4256, %v4248
    %v5625 = vpack.c.b16 %v4257, %v4249
    %v5626 = vpack.c.b16 %v4258, %v4250
    %v5627 = vpack.c.b16 %v4259, %v4251
    %v5628 = vpack.c.b16 %v4260, %v4252
    %v5629 = vpack.c.b16 %v4261, %v4253
    %v5630 = vpack.c.b16 %v4270, %v4262
    %v5631 = vpack.c.b16 %v4271, %v4263
    %v5632 = vpack.c.b16 %v4272, %v4264
    %v5633 = vpack.c.b16 %v4273, %v4265
    %v5634 = vpack.c.b16 %v4274, %v4266
    %v5635 = vpack.c.b16 %v4275, %v4267
    %v5636 = vpack.c.b16 %v4276, %v4268
    %v5637 = vpack.c.b16 %v4277, %v4269
    %v5638 = vpack.c.b16 %v4286, %v4278
    %v5639 = vpack.c.b16 %v4287, %v4279
    %v5640 = vpack.c.b16 %v4288, %v4280
    %v5641 = vpack.c.b16 %v4289, %v4281
    %v5642 = vpack.c.b16 %v4290, %v4282
    %v5643 = vpack.c.b16 %v4291, %v4283
    %v5644 = vpack.c.b16 %v4292, %v4284
    %v5645 = vpack.c.b16 %v4293, %v4285
    %v5646 = vpack.c.b16 %v4302, %v4294
    %v5647 = vpack.c.b16 %v4303, %v4295
    %v5648 = vpack.c.b16 %v4304, %v4296
    %v5649 = vpack.c.b16 %v4305, %v4297
    %v5650 = vpack.c.b16 %v4306, %v4298
    %v5651 = vpack.c.b16 %v4307, %v4299
    %v5652 = vpack.c.b16 %v4308, %v4300
    %v5653 = vpack.c.b16 %v4309, %v4301
    %v5654 = vpack.c.b16 %v4318, %v4310
    %v5655 = vpack.c.b16 %v4319, %v4311
    %v5656 = vpack.c.b16 %v4320, %v4312
    %v5657 = vpack.c.b16 %v4321, %v4313
    %v5658 = vpack.c.b16 %v4322, %v4314
    %v5659 = vpack.c.b16 %v4323, %v4315
    %v5660 = vpack.c.b16 %v4324, %v4316
    %v5661 = vpack.c.b16 %v4325, %v4317
    %v5662 = vpack.c.b16 %v4334, %v4326
    %v5663 = vpack.c.b16 %v4335, %v4327
    %v5664 = vpack.c.b16 %v4336, %v4328
    %v5665 = vpack.c.b16 %v4337, %v4329
    %v5666 = vpack.c.b16 %v4338, %v4330
    %v5667 = vpack.c.b16 %v4339, %v4331
    %v5668 = vpack.c.b16 %v4340, %v4332
    %v5669 = vpack.c.b16 %v4341, %v4333
    %v5670 = vpack.c.b16 %v4350, %v4342
    %v5671 = vpack.c.b16 %v4351, %v4343
    %v5672 = vpack.c.b16 %v4352, %v4344
    %v5673 = vpack.c.b16 %v4353, %v4345
    %v5674 = vpack.c.b16 %v4354, %v4346
    %v5675 = vpack.c.b16 %v4355, %v4347
    %v5676 = vpack.c.b16 %v4356, %v4348
    %v5677 = vpack.c.b16 %v4357, %v4349
    %v5678 = vpack.c.b16 %v4366, %v4358
    %v5679 = vpack.c.b16 %v4367, %v4359
    %v5680 = vpack.c.b16 %v4368, %v4360
    %v5681 = vpack.c.b16 %v4369, %v4361
    %v5682 = vpack.c.b16 %v4370, %v4362
    %v5683 = vpack.c.b16 %v4371, %v4363
    %v5684 = vpack.c.b16 %v4372, %v4364
    %v5685 = vpack.c.b16 %v4373, %v4365
    %v5686 = vpack.c.b16 %v4382, %v4374
    %v5687 = vpack.c.b16 %v4383, %v4375
    %v5688 = vpack.c.b16 %v4384, %v4376
    %v5689 = vpack.c.b16 %v4385, %v4377
    %v5690 = vpack.c.b16 %v4386, %v4378
    %v5691 = vpack.c.b16 %v4387, %v4379
    %v5692 = vpack.c.b16 %v4388, %v4380
    %v5693 = vpack.c.b16 %v4389, %v4381
    %v5694 = vpack.c.b16 %v4398, %v4390
    %v5695 = vpack.c.b16 %v4399, %v4391
    %v5696 = vpack.c.b16 %v4400, %v4392
    %v5697 = vpack.c.b16 %v4401, %v4393
    %v5698 = vpack.c.b16 %v4402, %v4394
    %v5699 = vpack.c.b16 %v4403, %v4395
    %v5700 = vpack.c.b16 %v4404, %v4396
    %v5701 = vpack.c.b16 %v4405, %v4397
    %v5702 = vpack.c.b16 %v4414, %v4406
    %v5703 = vpack.c.b16 %v4415, %v4407
    %v5704 = vpack.c.b16 %v4416, %v4408
    %v5705 = vpack.c.b16 %v4417, %v4409
    %v5706 = vpack.c.b16 %v4418, %v4410
    %v5707 = vpack.c.b16 %v4419, %v4411
    %v5708 = vpack.c.b16 %v4420, %v4412
    %v5709 = vpack.c.b16 %v4421, %v4413
    %v5710 = vpack.c.b16 %v4430, %v4422
    %v5711 = vpack.c.b16 %v4431, %v4423
    %v5712 = vpack.c.b16 %v4432, %v4424
    %v5713 = vpack.c.b16 %v4433, %v4425
    %v5714 = vpack.c.b16 %v4434, %v4426
    %v5715 = vpack.c.b16 %v4435, %v4427
    %v5716 = vpack.c.b16 %v4436, %v4428
    %v5717 = vpack.c.b16 %v4437, %v4429
    %v5718 = vpack.c.b16 %v4446, %v4438
    %v5719 = vpack.c.b16 %v4447, %v4439
    %v5720 = vpack.c.b16 %v4448, %v4440
    %v5721 = vpack.c.b16 %v4449, %v4441
    %v5722 = vpack.c.b16 %v4450, %v4442
    %v5723 = vpack.c.b16 %v4451, %v4443
    %v5724 = vpack.c.b16 %v4452, %v4444
    %v5725 = vpack.c.b16 %v4453, %v4445
    %v5726 = vpack.c.b16 %v4462, %v4454
    %v5727 = vpack.c.b16 %v4463, %v4455
    %v5728 = vpack.c.b16 %v4464, %v4456
    %v5729 = vpack.c.b16 %v4465, %v4457
    %v5730 = vpack.c.b16 %v4466, %v4458
    %v5731 = vpack.c.b16 %v4467, %v4459
    %v5732 = vpack.c.b16 %v4468, %v4460
    %v5733 = vpack.c.b16 %v4469, %v4461
    %v5734 = vpack.c.b16 %v4478, %v4470
    %v5735 = vpack.c.b16 %v4479, %v4471
    %v5736 = vpack.c.b16 %v4480, %v4472
    %v5737 = vpack.c.b16 %v4481, %v4473
    %v5738 = vpack.c.b16 %v4482, %v4474
    %v5739 = vpack.c.b16 %v4483, %v4475
    %v5740 = vpack.c.b16 %v4484, %v4476
    %v5741 = vpack.c.b16 %v4485, %v4477
    %v5742 = vpack.c.b16 %v4494, %v4486
    %v5743 = vpack.c.b16 %v4495, %v4487
    %v5744 = vpack.c.b16 %v4496, %v4488
    %v5745 = vpack.c.b16 %v4497, %v4489
    %v5746 = vpack.c.b16 %v4498, %v4490
    %v5747 = vpack.c.b16 %v4499, %v4491
    %v5748 = vpack.c.b16 %v4500, %v4492
    %v5749 = vpack.c.b16 %v4501, %v4493
    %v5750 = vpack.c.b16 %v4510, %v4502
    %v5751 = vpack.c.b16 %v4511, %v4503
    %v5752 = vpack.c.b16 %v4512, %v4504
    %v5753 = vpack.c.b16 %v4513, %v4505
    %v5754 = vpack.c.b16 %v4514, %v4506
    %v5755 = vpack.c.b16 %v4515, %v4507
    %v5756 = vpack.c.b16 %v4516, %v4508
    %v5757 = vpack.c.b16 %v4517, %v4509
    %v5758 = vpack.c.b16 %v4526, %v4518
    %v5759 = vpack.c.b16 %v4527, %v4519
    %v5760 = vpack.c.b16 %v4528, %v4520
    %v5761 = vpack.c.b16 %v4529, %v4521
    %v5762 = vpack.c.b16 %v4530, %v4522
    %v5763 = vpack.c.b16 %v4531, %v4523
    %v5764 = vpack.c.b16 %v4532, %v4524
    %v5765 = vpack.c.b16 %v4533, %v4525
    %v5766 = vpack.c.b16 %v4542, %v4534
    %v5767 = vpack.c.b16 %v4543, %v4535
    %v5768 = vpack.c.b16 %v4544, %v4536
    %v5769 = vpack.c.b16 %v4545, %v4537
    %v5770 = vpack.c.b16 %v4546, %v4538
    %v5771 = vpack.c.b16 %v4547, %v4539
    %v5772 = vpack.c.b16 %v4548, %v4540
    %v5773 = vpack.c.b16 %v4549, %v4541
    %v5774 = vpack.c.b16 %v4558, %v4550
    %v5775 = vpack.c.b16 %v4559, %v4551
    %v5776 = vpack.c.b16 %v4560, %v4552
    %v5777 = vpack.c.b16 %v4561, %v4553
    %v5778 = vpack.c.b16 %v4562, %v4554
    %v5779 = vpack.c.b16 %v4563, %v4555
    %v5780 = vpack.c.b16 %v4564, %v4556
    %v5781 = vpack.c.b16 %v4565, %v4557
    %v5782 = vpack.c.b16 %v4574, %v4566
    %v5783 = vpack.c.b16 %v4575, %v4567
    %v5784 = vpack.c.b16 %v4576, %v4568
    %v5785 = vpack.c.b16 %v4577, %v4569
    %v5786 = vpack.c.b16 %v4578, %v4570
    %v5787 = vpack.c.b16 %v4579, %v4571
    %v5788 = vpack.c.b16 %v4580, %v4572
    %v5789 = vpack.c.b16 %v4581, %v4573
    %v5790 = vpack.c.b16 %v4590, %v4582
    %v5791 = vpack.c.b16 %v4591, %v4583
    %v5792 = vpack.c.b16 %v4592, %v4584
    %v5793 = vpack.c.b16 %v4593, %v4585
    %v5794 = vpack.c.b16 %v4594, %v4586
    %v5795 = vpack.c.b16 %v4595, %v4587
    %v5796 = vpack.c.b16 %v4596, %v4588
    %v5797 = vpack.c.b16 %v4597, %v4589
    %v5798 = vpack.c.b16 %v4606, %v4598
    %v5799 = vpack.c.b16 %v4607, %v4599
    %v5800 = vpack.c.b16 %v4608, %v4600
    %v5801 = vpack.c.b16 %v4609, %v4601
    %v5802 = vpack.c.b16 %v4610, %v4602
    %v5803 = vpack.c.b16 %v4611, %v4603
    %v5804 = vpack.c.b16 %v4612, %v4604
    %v5805 = vpack.c.b16 %v4613, %v4605
    %v5806 = vpack.c.b16 %v4622, %v4614
    %v5807 = vpack.c.b16 %v4623, %v4615
    %v5808 = vpack.c.b16 %v4624, %v4616
    %v5809 = vpack.c.b16 %v4625, %v4617
    %v5810 = vpack.c.b16 %v4626, %v4618
    %v5811 = vpack.c.b16 %v4627, %v4619
    %v5812 = vpack.c.b16 %v4628, %v4620
    %v5813 = vpack.c.b16 %v4629, %v4621
    %v5814 = vpack.c.b16 %v4638, %v4630
    %v5815 = vpack.c.b16 %v4639, %v4631
    %v5816 = vpack.c.b16 %v4640, %v4632
    %v5817 = vpack.c.b16 %v4641, %v4633
    %v5818 = vpack.c.b16 %v4642, %v4634
    %v5819 = vpack.c.b16 %v4643, %v4635
    %v5820 = vpack.c.b16 %v4644, %v4636
    %v5821 = vpack.c.b16 %v4645, %v4637
    %v5822 = vpack.c.b16 %v4654, %v4646
    %v5823 = vpack.c.b16 %v4655, %v4647
    %v5824 = vpack.c.b16 %v4656, %v4648
    %v5825 = vpack.c.b16 %v4657, %v4649
    %v5826 = vpack.c.b16 %v4658, %v4650
    %v5827 = vpack.c.b16 %v4659, %v4651
    %v5828 = vpack.c.b16 %v4660, %v4652
    %v5829 = vpack.c.b16 %v4661, %v4653
    %v5830 = vpack.c.b16 %v4670, %v4662
    %v5831 = vpack.c.b16 %v4671, %v4663
    %v5832 = vpack.c.b16 %v4672, %v4664
    %v5833 = vpack.c.b16 %v4673, %v4665
    %v5834 = vpack.c.b16 %v4674, %v4666
    %v5835 = vpack.c.b16 %v4675, %v4667
    %v5836 = vpack.c.b16 %v4676, %v4668
    %v5837 = vpack.c.b16 %v4677, %v4669
    %v5838 = vpack.c.b16 %v4686, %v4678
    %v5839 = vpack.c.b16 %v4687, %v4679
    %v5840 = vpack.c.b16 %v4688, %v4680
    %v5841 = vpack.c.b16 %v4689, %v4681
    %v5842 = vpack.c.b16 %v4690, %v4682
    %v5843 = vpack.c.b16 %v4691, %v4683
    %v5844 = vpack.c.b16 %v4692, %v4684
    %v5845 = vpack.c.b16 %v4693, %v4685
    %v5846 = vpack.c.b16 %v4702, %v4694
    %v5847 = vpack.c.b16 %v4703, %v4695
    %v5848 = vpack.c.b16 %v4704, %v4696
    %v5849 = vpack.c.b16 %v4705, %v4697
    %v5850 = vpack.c.b16 %v4706, %v4698
    %v5851 = vpack.c.b16 %v4707, %v4699
    %v5852 = vpack.c.b16 %v4708, %v4700
    %v5853 = vpack.c.b16 %v4709, %v4701
    %v5854 = vpack.c.b16 %v4718, %v4710
    %v5855 = vpack.c.b16 %v4719, %v4711
    %v5856 = vpack.c.b16 %v4720, %v4712
    %v5857 = vpack.c.b16 %v4721, %v4713
    %v5858 = vpack.c.b16 %v4722, %v4714
    %v5859 = vpack.c.b16 %v4723, %v4715
    %v5860 = vpack.c.b16 %v4724, %v4716
    %v5861 = vpack.c.b16 %v4725, %v4717
    %v5862 = vpack.c.b16 %v4734, %v4726
    %v5863 = vpack.c.b16 %v4735, %v4727
    %v5864 = vpack.c.b16 %v4736, %v4728
    %v5865 = vpack.c.b16 %v4737, %v4729
    %v5866 = vpack.c.b16 %v4738, %v4730
    %v5867 = vpack.c.b16 %v4739, %v4731
    %v5868 = vpack.c.b16 %v4740, %v4732
    %v5869 = vpack.c.b16 %v4741, %v4733
    %v5870 = vpack.c.b16 %v4750, %v4742
    %v5871 = vpack.c.b16 %v4751, %v4743
    %v5872 = vpack.c.b16 %v4752, %v4744
    %v5873 = vpack.c.b16 %v4753, %v4745
    %v5874 = vpack.c.b16 %v4754, %v4746
    %v5875 = vpack.c.b16 %v4755, %v4747
    %v5876 = vpack.c.b16 %v4756, %v4748
    %v5877 = vpack.c.b16 %v4757, %v4749
    %v5878 = vpack.c.b16 %v4766, %v4758
    %v5879 = vpack.c.b16 %v4767, %v4759
    %v5880 = vpack.c.b16 %v4768, %v4760
    %v5881 = vpack.c.b16 %v4769, %v4761
    %v5882 = vpack.c.b16 %v4770, %v4762
    %v5883 = vpack.c.b16 %v4771, %v4763
    %v5884 = vpack.c.b16 %v4772, %v4764
    %v5885 = vpack.c.b16 %v4773, %v4765
    %v5886 = vpack.c.b16 %v4782, %v4774
    %v5887 = vpack.c.b16 %v4783, %v4775
    %v5888 = vpack.c.b16 %v4784, %v4776
    %v5889 = vpack.c.b16 %v4785, %v4777
    %v5890 = vpack.c.b16 %v4786, %v4778
    %v5891 = vpack.c.b16 %v4787, %v4779
    %v5892 = vpack.c.b16 %v4788, %v4780
    %v5893 = vpack.c.b16 %v4789, %v4781
    %v5894 = vpack.c.b16 %v4798, %v4790
    %v5895 = vpack.c.b16 %v4799, %v4791
    %v5896 = vpack.c.b16 %v4800, %v4792
    %v5897 = vpack.c.b16 %v4801, %v4793
    %v5898 = vpack.c.b16 %v4802, %v4794
    %v5899 = vpack.c.b16 %v4803, %v4795
    %v5900 = vpack.c.b16 %v4804, %v4796
    %v5901 = vpack.c.b16 %v4805, %v4797
    %v5902 = vpack.c.b16 %v4814, %v4806
    %v5903 = vpack.c.b16 %v4815, %v4807
    %v5904 = vpack.c.b16 %v4816, %v4808
    %v5905 = vpack.c.b16 %v4817, %v4809
    %v5906 = vpack.c.b16 %v4818, %v4810
    %v5907 = vpack.c.b16 %v4819, %v4811
    %v5908 = vpack.c.b16 %v4820, %v4812
    %v5909 = vpack.c.b16 %v4821, %v4813
    %v5910 = vpack.c.b16 %v4830, %v4822
    %v5911 = vpack.c.b16 %v4831, %v4823
    %v5912 = vpack.c.b16 %v4832, %v4824
    %v5913 = vpack.c.b16 %v4833, %v4825
    %v5914 = vpack.c.b16 %v4834, %v4826
    %v5915 = vpack.c.b16 %v4835, %v4827
    %v5916 = vpack.c.b16 %v4836, %v4828
    %v5917 = vpack.c.b16 %v4837, %v4829
    %v5918 = vpack.c.b16 %v4846, %v4838
    %v5919 = vpack.c.b16 %v4847, %v4839
    %v5920 = vpack.c.b16 %v4848, %v4840
    %v5921 = vpack.c.b16 %v4849, %v4841
    %v5922 = vpack.c.b16 %v4850, %v4842
    %v5923 = vpack.c.b16 %v4851, %v4843
    %v5924 = vpack.c.b16 %v4852, %v4844
    %v5925 = vpack.c.b16 %v4853, %v4845
    %v5926 = vpack.c.b16 %v4862, %v4854
    %v5927 = vpack.c.b16 %v4863, %v4855
    %v5928 = vpack.c.b16 %v4864, %v4856
    %v5929 = vpack.c.b16 %v4865, %v4857
    %v5930 = vpack.c.b16 %v4866, %v4858
    %v5931 = vpack.c.b16 %v4867, %v4859
    %v5932 = vpack.c.b16 %v4868, %v4860
    %v5933 = vpack.c.b16 %v4869, %v4861
    %v5934 = vpack.c.b16 %v4878, %v4870
    %v5935 = vpack.c.b16 %v4879, %v4871
    %v5936 = vpack.c.b16 %v4880, %v4872
    %v5937 = vpack.c.b16 %v4881, %v4873
    %v5938 = vpack.c.b16 %v4882, %v4874
    %v5939 = vpack.c.b16 %v4883, %v4875
    %v5940 = vpack.c.b16 %v4884, %v4876
    %v5941 = vpack.c.b16 %v4885, %v4877
    %v5942 = vpack.c.b16 %v4894, %v4886
    %v5943 = vpack.c.b16 %v4895, %v4887
    %v5944 = vpack.c.b16 %v4896, %v4888
    %v5945 = vpack.c.b16 %v4897, %v4889
    %v5946 = vpack.c.b16 %v4898, %v4890
    %v5947 = vpack.c.b16 %v4899, %v4891
    %v5948 = vpack.c.b16 %v4900, %v4892
    %v5949 = vpack.c.b16 %v4901, %v4893
    %v5950 = vpack.c.b16 %v4910, %v4902
    %v5951 = vpack.c.b16 %v4911, %v4903
    %v5952 = vpack.c.b16 %v4912, %v4904
    %v5953 = vpack.c.b16 %v4913, %v4905
    %v5954 = vpack.c.b16 %v4914, %v4906
    %v5955 = vpack.c.b16 %v4915, %v4907
    %v5956 = vpack.c.b16 %v4916, %v4908
    %v5957 = vpack.c.b16 %v4917, %v4909
    %v5958 = vpack.c.b16 %v4926, %v4918
    %v5959 = vpack.c.b16 %v4927, %v4919
    %v5960 = vpack.c.b16 %v4928, %v4920
    %v5961 = vpack.c.b16 %v4929, %v4921
    %v5962 = vpack.c.b16 %v4930, %v4922
    %v5963 = vpack.c.b16 %v4931, %v4923
    %v5964 = vpack.c.b16 %v4932, %v4924
    %v5965 = vpack.c.b16 %v4933, %v4925
    %v5966 = vpack.c.b16 %v4942, %v4934
    %v5967 = vpack.c.b16 %v4943, %v4935
    %v5968 = vpack.c.b16 %v4944, %v4936
    %v5969 = vpack.c.b16 %v4945, %v4937
    %v5970 = vpack.c.b16 %v4946, %v4938
    %v5971 = vpack.c.b16 %v4947, %v4939
    %v5972 = vpack.c.b16 %v4948, %v4940
    %v5973 = vpack.c.b16 %v4949, %v4941
    %6998 = vmatprep.subr.bf16.mxu0 %v5007
    %6999 = vmatpush1.bf16.msra.mxu0 %v5006
    %7000 = vmatprep.subr.bf16.mxu0 %v4999
    %7001 = vmatpush1.bf16.msra.mxu0 %v4998
    %7002 = vmatprep.subr.bf16.mxu0 %v4991
    %7003 = vmatpush1.bf16.msra.mxu0 %v4990
    %7004 = vmatprep.subr.bf16.mxu0 %v4983
    %7005 = vmatpush1.bf16.msra.mxu0 %v4982
    %7006 = vmatprep.subr.bf16.mxu0 %v4975
    %7007 = vmatpush1.bf16.msra.mxu0 %v4974
    %7008 = vmatprep.subr.bf16.mxu0 %v4967
    %7009 = vmatpush1.bf16.msra.mxu0 %v4966
    %7010 = vmatprep.subr.bf16.mxu0 %v4959
    %7011 = vmatpush1.bf16.msra.mxu0 %v4958
    %7012 = vmatprep.subr.bf16.mxu0 %v4951
    %7013 = vmatpush1.bf16.msra.mxu0 %v4950
    %7014 = vmatprep.subr.bf16.mxu0 %v5071
    %7015 = vmatpush2.bf16.msra.mxu0 %v5070
    %7016 = vmatprep.subr.bf16.mxu0 %v5063
    %7017 = vmatpush2.bf16.msra.mxu0 %v5062
    %7018 = vmatprep.subr.bf16.mxu0 %v5055
    %7019 = vmatpush2.bf16.msra.mxu0 %v5054
    %7020 = vmatprep.subr.bf16.mxu0 %v5047
    %7021 = vmatpush2.bf16.msra.mxu0 %v5046
    %7022 = vmatprep.subr.bf16.mxu0 %v5039
    %7023 = vmatpush2.bf16.msra.mxu0 %v5038
    %7024 = vmatprep.subr.bf16.mxu0 %v5031
    %7025 = vmatpush2.bf16.msra.mxu0 %v5030
    %7026 = vmatprep.subr.bf16.mxu0 %v5023
    %7027 = vmatpush2.bf16.msra.mxu0 %v5022
    %7028 = vmatprep.subr.bf16.mxu0 %v5015
    %7029 = vmatpush2.bf16.msra.mxu0 %v5014
    %7030 = vmatprep.mubr.bf16.mxu0 %v797
    %7031 = vmatmul.mubr.bf16.gmra.mxu0 %v796
    %v7032 = vpop.f32.mrf.mxu0
    %v7033 = vadd.f32 %v1841, %v7032
    %v7034 = vpop.f32.mrf.mxu0
    %v7035 = vadd.f32 %v1845, %v7034
    %v7036 = vpop.f32.mrf.mxu0
    %v7037 = vpop.f32.mrf.mxu0
    %7038 = vdwg.mxu0
    %7039 = vmatprep.subr.bf16.mxu0 %v5135
    %7040 = vmatpush1.bf16.msra.mxu0 %v5134
    %7041 = vmatprep.subr.bf16.mxu0 %v5127
    %7042 = vmatpush1.bf16.msra.mxu0 %v5126
    %7043 = vmatprep.subr.bf16.mxu0 %v5119
    %7044 = vmatpush1.bf16.msra.mxu0 %v5118
    %7045 = vmatprep.subr.bf16.mxu0 %v5111
    %7046 = vmatpush1.bf16.msra.mxu0 %v5110
    %7047 = vmatprep.subr.bf16.mxu0 %v5103
    %7048 = vmatpush1.bf16.msra.mxu0 %v5102
    %7049 = vmatprep.subr.bf16.mxu0 %v5095
    %7050 = vmatpush1.bf16.msra.mxu0 %v5094
    %7051 = vmatprep.subr.bf16.mxu0 %v5087
    %7052 = vmatpush1.bf16.msra.mxu0 %v5086
    %7053 = vmatprep.subr.bf16.mxu0 %v5079
    %7054 = vmatpush1.bf16.msra.mxu0 %v5078
    %7055 = vmatprep.subr.bf16.mxu0 %v5199
    %7056 = vmatpush2.bf16.msra.mxu0 %v5198
    %7057 = vmatprep.subr.bf16.mxu0 %v5191
    %7058 = vmatpush2.bf16.msra.mxu0 %v5190
    %7059 = vmatprep.subr.bf16.mxu0 %v5183
    %7060 = vmatpush2.bf16.msra.mxu0 %v5182
    %7061 = vmatprep.subr.bf16.mxu0 %v5175
    %7062 = vmatpush2.bf16.msra.mxu0 %v5174
    %7063 = vmatprep.subr.bf16.mxu0 %v5167
    %7064 = vmatpush2.bf16.msra.mxu0 %v5166
    %7065 = vmatprep.subr.bf16.mxu0 %v5159
    %7066 = vmatpush2.bf16.msra.mxu0 %v5158
    %7067 = vmatprep.subr.bf16.mxu0 %v5151
    %7068 = vmatpush2.bf16.msra.mxu0 %v5150
    %7069 = vmatprep.subr.bf16.mxu0 %v5143
    %7070 = vmatpush2.bf16.msra.mxu0 %v5142
    %7071 = vmatprep.mubr.bf16.mxu0 %v799
    %7072 = vmatmul.mubr.bf16.gmra.mxu0 %v798
    %v7073 = vpop.f32.mrf.mxu0
    %v7074 = vadd.f32 %v7033, %v7073
    %v7075 = vpop.f32.mrf.mxu0
    %v7076 = vadd.f32 %v7035, %v7075
    %v7077 = vpop.f32.mrf.mxu0
    %v7078 = vpop.f32.mrf.mxu0
    %7079 = vdwg.mxu0
    %7080 = vmatprep.subr.bf16.mxu0 %v5263
    %7081 = vmatpush1.bf16.msra.mxu0 %v5262
    %7082 = vmatprep.subr.bf16.mxu0 %v5255
    %7083 = vmatpush1.bf16.msra.mxu0 %v5254
    %7084 = vmatprep.subr.bf16.mxu0 %v5247
    %7085 = vmatpush1.bf16.msra.mxu0 %v5246
    %7086 = vmatprep.subr.bf16.mxu0 %v5239
    %7087 = vmatpush1.bf16.msra.mxu0 %v5238
    %7088 = vmatprep.subr.bf16.mxu0 %v5231
    %7089 = vmatpush1.bf16.msra.mxu0 %v5230
    %7090 = vmatprep.subr.bf16.mxu0 %v5223
    %7091 = vmatpush1.bf16.msra.mxu0 %v5222
    %7092 = vmatprep.subr.bf16.mxu0 %v5215
    %7093 = vmatpush1.bf16.msra.mxu0 %v5214
    %7094 = vmatprep.subr.bf16.mxu0 %v5207
    %7095 = vmatpush1.bf16.msra.mxu0 %v5206
    %7096 = vmatprep.subr.bf16.mxu0 %v5327
    %7097 = vmatpush2.bf16.msra.mxu0 %v5326
    %7098 = vmatprep.subr.bf16.mxu0 %v5319
    %7099 = vmatpush2.bf16.msra.mxu0 %v5318
    %7100 = vmatprep.subr.bf16.mxu0 %v5311
    %7101 = vmatpush2.bf16.msra.mxu0 %v5310
    %7102 = vmatprep.subr.bf16.mxu0 %v5303
    %7103 = vmatpush2.bf16.msra.mxu0 %v5302
    %7104 = vmatprep.subr.bf16.mxu0 %v5295
    %7105 = vmatpush2.bf16.msra.mxu0 %v5294
    %7106 = vmatprep.subr.bf16.mxu0 %v5287
    %7107 = vmatpush2.bf16.msra.mxu0 %v5286
    %7108 = vmatprep.subr.bf16.mxu0 %v5279
    %7109 = vmatpush2.bf16.msra.mxu0 %v5278
    %7110 = vmatprep.subr.bf16.mxu0 %v5271
    %7111 = vmatpush2.bf16.msra.mxu0 %v5270
    %7112 = vmatprep.mubr.bf16.mxu0 %v801
    %7113 = vmatmul.mubr.bf16.gmra.mxu0 %v800
    %v7114 = vpop.f32.mrf.mxu0
    %v7115 = vadd.f32 %v7074, %v7114
    %v7116 = vpop.f32.mrf.mxu0
    %v7117 = vadd.f32 %v7076, %v7116
    %v7118 = vpop.f32.mrf.mxu0
    %v7119 = vpop.f32.mrf.mxu0
    %7120 = vdwg.mxu0
    %7121 = vmatprep.subr.bf16.mxu0 %v5391
    %7122 = vmatpush1.bf16.msra.mxu0 %v5390
    %7123 = vmatprep.subr.bf16.mxu0 %v5383
    %7124 = vmatpush1.bf16.msra.mxu0 %v5382
    %7125 = vmatprep.subr.bf16.mxu0 %v5375
    %7126 = vmatpush1.bf16.msra.mxu0 %v5374
    %7127 = vmatprep.subr.bf16.mxu0 %v5367
    %7128 = vmatpush1.bf16.msra.mxu0 %v5366
    %7129 = vmatprep.subr.bf16.mxu0 %v5359
    %7130 = vmatpush1.bf16.msra.mxu0 %v5358
    %7131 = vmatprep.subr.bf16.mxu0 %v5351
    %7132 = vmatpush1.bf16.msra.mxu0 %v5350
    %7133 = vmatprep.subr.bf16.mxu0 %v5343
    %7134 = vmatpush1.bf16.msra.mxu0 %v5342
    %7135 = vmatprep.subr.bf16.mxu0 %v5335
    %7136 = vmatpush1.bf16.msra.mxu0 %v5334
    %7137 = vmatprep.subr.bf16.mxu0 %v5455
    %7138 = vmatpush2.bf16.msra.mxu0 %v5454
    %7139 = vmatprep.subr.bf16.mxu0 %v5447
    %7140 = vmatpush2.bf16.msra.mxu0 %v5446
    %7141 = vmatprep.subr.bf16.mxu0 %v5439
    %7142 = vmatpush2.bf16.msra.mxu0 %v5438
    %7143 = vmatprep.subr.bf16.mxu0 %v5431
    %7144 = vmatpush2.bf16.msra.mxu0 %v5430
    %7145 = vmatprep.subr.bf16.mxu0 %v5423
    %7146 = vmatpush2.bf16.msra.mxu0 %v5422
    %7147 = vmatprep.subr.bf16.mxu0 %v5415
    %7148 = vmatpush2.bf16.msra.mxu0 %v5414
    %7149 = vmatprep.subr.bf16.mxu0 %v5407
    %7150 = vmatpush2.bf16.msra.mxu0 %v5406
    %7151 = vmatprep.subr.bf16.mxu0 %v5399
    %7152 = vmatpush2.bf16.msra.mxu0 %v5398
    %7153 = vmatprep.mubr.bf16.mxu0 %v803
    %7154 = vmatmul.mubr.bf16.gmra.mxu0 %v802
    %v7155 = vpop.f32.mrf.mxu0
    %v7156 = vadd.f32 %v7115, %v7155
    %v7157 = vpop.f32.mrf.mxu0
    %v7158 = vadd.f32 %v7117, %v7157
    %v7159 = vpop.f32.mrf.mxu0
    %v7160 = vpop.f32.mrf.mxu0
    %7161 = vdwg.mxu0
    %7162 = vmatprep.subr.bf16.mxu0 %v5519
    %7163 = vmatpush1.bf16.msra.mxu0 %v5518
    %7164 = vmatprep.subr.bf16.mxu0 %v5511
    %7165 = vmatpush1.bf16.msra.mxu0 %v5510
    %7166 = vmatprep.subr.bf16.mxu0 %v5503
    %7167 = vmatpush1.bf16.msra.mxu0 %v5502
    %7168 = vmatprep.subr.bf16.mxu0 %v5495
    %7169 = vmatpush1.bf16.msra.mxu0 %v5494
    %7170 = vmatprep.subr.bf16.mxu0 %v5487
    %7171 = vmatpush1.bf16.msra.mxu0 %v5486
    %7172 = vmatprep.subr.bf16.mxu0 %v5479
    %7173 = vmatpush1.bf16.msra.mxu0 %v5478
    %7174 = vmatprep.subr.bf16.mxu0 %v5471
    %7175 = vmatpush1.bf16.msra.mxu0 %v5470
    %7176 = vmatprep.subr.bf16.mxu0 %v5463
    %7177 = vmatpush1.bf16.msra.mxu0 %v5462
    %7178 = vmatprep.subr.bf16.mxu0 %v5583
    %7179 = vmatpush2.bf16.msra.mxu0 %v5582
    %7180 = vmatprep.subr.bf16.mxu0 %v5575
    %7181 = vmatpush2.bf16.msra.mxu0 %v5574
    %7182 = vmatprep.subr.bf16.mxu0 %v5567
    %7183 = vmatpush2.bf16.msra.mxu0 %v5566
    %7184 = vmatprep.subr.bf16.mxu0 %v5559
    %7185 = vmatpush2.bf16.msra.mxu0 %v5558
    %7186 = vmatprep.subr.bf16.mxu0 %v5551
    %7187 = vmatpush2.bf16.msra.mxu0 %v5550
    %7188 = vmatprep.subr.bf16.mxu0 %v5543
    %7189 = vmatpush2.bf16.msra.mxu0 %v5542
    %7190 = vmatprep.subr.bf16.mxu0 %v5535
    %7191 = vmatpush2.bf16.msra.mxu0 %v5534
    %7192 = vmatprep.subr.bf16.mxu0 %v5527
    %7193 = vmatpush2.bf16.msra.mxu0 %v5526
    %7194 = vmatprep.mubr.bf16.mxu0 %v805
    %7195 = vmatmul.mubr.bf16.gmra.mxu0 %v804
    %v7196 = vpop.f32.mrf.mxu0
    %v7197 = vadd.f32 %v7156, %v7196
    %v7198 = vpop.f32.mrf.mxu0
    %v7199 = vadd.f32 %v7158, %v7198
    %v7200 = vpop.f32.mrf.mxu0
    %v7201 = vpop.f32.mrf.mxu0
    %7202 = vdwg.mxu0
    %7203 = vmatprep.subr.bf16.mxu0 %v5647
    %7204 = vmatpush1.bf16.msra.mxu0 %v5646
    %7205 = vmatprep.subr.bf16.mxu0 %v5639
    %7206 = vmatpush1.bf16.msra.mxu0 %v5638
    %7207 = vmatprep.subr.bf16.mxu0 %v5631
    %7208 = vmatpush1.bf16.msra.mxu0 %v5630
    %7209 = vmatprep.subr.bf16.mxu0 %v5623
    %7210 = vmatpush1.bf16.msra.mxu0 %v5622
    %7211 = vmatprep.subr.bf16.mxu0 %v5615
    %7212 = vmatpush1.bf16.msra.mxu0 %v5614
    %7213 = vmatprep.subr.bf16.mxu0 %v5607
    %7214 = vmatpush1.bf16.msra.mxu0 %v5606
    %7215 = vmatprep.subr.bf16.mxu0 %v5599
    %7216 = vmatpush1.bf16.msra.mxu0 %v5598
    %7217 = vmatprep.subr.bf16.mxu0 %v5591
    %7218 = vmatpush1.bf16.msra.mxu0 %v5590
    %7219 = vmatprep.subr.bf16.mxu0 %v5711
    %7220 = vmatpush2.bf16.msra.mxu0 %v5710
    %7221 = vmatprep.subr.bf16.mxu0 %v5703
    %7222 = vmatpush2.bf16.msra.mxu0 %v5702
    %7223 = vmatprep.subr.bf16.mxu0 %v5695
    %7224 = vmatpush2.bf16.msra.mxu0 %v5694
    %7225 = vmatprep.subr.bf16.mxu0 %v5687
    %7226 = vmatpush2.bf16.msra.mxu0 %v5686
    %7227 = vmatprep.subr.bf16.mxu0 %v5679
    %7228 = vmatpush2.bf16.msra.mxu0 %v5678
    %7229 = vmatprep.subr.bf16.mxu0 %v5671
    %7230 = vmatpush2.bf16.msra.mxu0 %v5670
    %7231 = vmatprep.subr.bf16.mxu0 %v5663
    %7232 = vmatpush2.bf16.msra.mxu0 %v5662
    %7233 = vmatprep.subr.bf16.mxu0 %v5655
    %7234 = vmatpush2.bf16.msra.mxu0 %v5654
    %7235 = vmatprep.mubr.bf16.mxu0 %v807
    %7236 = vmatmul.mubr.bf16.gmra.mxu0 %v806
    %v7237 = vpop.f32.mrf.mxu0
    %v7238 = vadd.f32 %v7197, %v7237
    %v7239 = vpop.f32.mrf.mxu0
    %v7240 = vadd.f32 %v7199, %v7239
    %v7241 = vpop.f32.mrf.mxu0
    %v7242 = vpop.f32.mrf.mxu0
    %7243 = vdwg.mxu0
    %7244 = vmatprep.subr.bf16.mxu0 %v5775
    %7245 = vmatpush1.bf16.msra.mxu0 %v5774
    %7246 = vmatprep.subr.bf16.mxu0 %v5767
    %7247 = vmatpush1.bf16.msra.mxu0 %v5766
    %7248 = vmatprep.subr.bf16.mxu0 %v5759
    %7249 = vmatpush1.bf16.msra.mxu0 %v5758
    %7250 = vmatprep.subr.bf16.mxu0 %v5751
    %7251 = vmatpush1.bf16.msra.mxu0 %v5750
    %7252 = vmatprep.subr.bf16.mxu0 %v5743
    %7253 = vmatpush1.bf16.msra.mxu0 %v5742
    %7254 = vmatprep.subr.bf16.mxu0 %v5735
    %7255 = vmatpush1.bf16.msra.mxu0 %v5734
    %7256 = vmatprep.subr.bf16.mxu0 %v5727
    %7257 = vmatpush1.bf16.msra.mxu0 %v5726
    %7258 = vmatprep.subr.bf16.mxu0 %v5719
    %7259 = vmatpush1.bf16.msra.mxu0 %v5718
    %7260 = vmatprep.subr.bf16.mxu0 %v5839
    %7261 = vmatpush2.bf16.msra.mxu0 %v5838
    %7262 = vmatprep.subr.bf16.mxu0 %v5831
    %7263 = vmatpush2.bf16.msra.mxu0 %v5830
    %7264 = vmatprep.subr.bf16.mxu0 %v5823
    %7265 = vmatpush2.bf16.msra.mxu0 %v5822
    %7266 = vmatprep.subr.bf16.mxu0 %v5815
    %7267 = vmatpush2.bf16.msra.mxu0 %v5814
    %7268 = vmatprep.subr.bf16.mxu0 %v5807
    %7269 = vmatpush2.bf16.msra.mxu0 %v5806
    %7270 = vmatprep.subr.bf16.mxu0 %v5799
    %7271 = vmatpush2.bf16.msra.mxu0 %v5798
    %7272 = vmatprep.subr.bf16.mxu0 %v5791
    %7273 = vmatpush2.bf16.msra.mxu0 %v5790
    %7274 = vmatprep.subr.bf16.mxu0 %v5783
    %7275 = vmatpush2.bf16.msra.mxu0 %v5782
    %7276 = vmatprep.mubr.bf16.mxu0 %v809
    %7277 = vmatmul.mubr.bf16.gmra.mxu0 %v808
    %v7278 = vpop.f32.mrf.mxu0
    %v7279 = vadd.f32 %v7238, %v7278
    %v7280 = vpop.f32.mrf.mxu0
    %v7281 = vadd.f32 %v7240, %v7280
    %v7282 = vpop.f32.mrf.mxu0
    %v7283 = vpop.f32.mrf.mxu0
    %7284 = vdwg.mxu0
    %7285 = vmatprep.subr.bf16.mxu0 %v5903
    %7286 = vmatpush1.bf16.msra.mxu0 %v5902
    %7287 = vmatprep.subr.bf16.mxu0 %v5895
    %7288 = vmatpush1.bf16.msra.mxu0 %v5894
    %7289 = vmatprep.subr.bf16.mxu0 %v5887
    %7290 = vmatpush1.bf16.msra.mxu0 %v5886
    %7291 = vmatprep.subr.bf16.mxu0 %v5879
    %7292 = vmatpush1.bf16.msra.mxu0 %v5878
    %7293 = vmatprep.subr.bf16.mxu0 %v5871
    %7294 = vmatpush1.bf16.msra.mxu0 %v5870
    %7295 = vmatprep.subr.bf16.mxu0 %v5863
    %7296 = vmatpush1.bf16.msra.mxu0 %v5862
    %7297 = vmatprep.subr.bf16.mxu0 %v5855
    %7298 = vmatpush1.bf16.msra.mxu0 %v5854
    %7299 = vmatprep.subr.bf16.mxu0 %v5847
    %7300 = vmatpush1.bf16.msra.mxu0 %v5846
    %7301 = vmatprep.subr.bf16.mxu0 %v5967
    %7302 = vmatpush2.bf16.msra.mxu0 %v5966
    %7303 = vmatprep.subr.bf16.mxu0 %v5959
    %7304 = vmatpush2.bf16.msra.mxu0 %v5958
    %7305 = vmatprep.subr.bf16.mxu0 %v5951
    %7306 = vmatpush2.bf16.msra.mxu0 %v5950
    %7307 = vmatprep.subr.bf16.mxu0 %v5943
    %7308 = vmatpush2.bf16.msra.mxu0 %v5942
    %7309 = vmatprep.subr.bf16.mxu0 %v5935
    %7310 = vmatpush2.bf16.msra.mxu0 %v5934
    %7311 = vmatprep.subr.bf16.mxu0 %v5927
    %7312 = vmatpush2.bf16.msra.mxu0 %v5926
    %7313 = vmatprep.subr.bf16.mxu0 %v5919
    %7314 = vmatpush2.bf16.msra.mxu0 %v5918
    %7315 = vmatprep.subr.bf16.mxu0 %v5911
    %7316 = vmatpush2.bf16.msra.mxu0 %v5910
    %7317 = vmatprep.mubr.bf16.mxu0 %v811
    %7318 = vmatmul.mubr.bf16.gmra.mxu0 %v810
    %v7319 = vpop.f32.mrf.mxu0
    %v7320 = vadd.f32 %v7279, %v7319
    %v7321 = vpop.f32.mrf.mxu0
    %v7322 = vadd.f32 %v7281, %v7321
    %v7323 = vpop.f32.mrf.mxu0
    %v7324 = vpop.f32.mrf.mxu0
    %7325 = vdwg.mxu0
    %7326 = vmatprep.subr.bf16.mxu0 %v5009
    %7327 = vmatpush1.bf16.msra.mxu0 %v5008
    %7328 = vmatprep.subr.bf16.mxu0 %v5001
    %7329 = vmatpush1.bf16.msra.mxu0 %v5000
    %7330 = vmatprep.subr.bf16.mxu0 %v4993
    %7331 = vmatpush1.bf16.msra.mxu0 %v4992
    %7332 = vmatprep.subr.bf16.mxu0 %v4985
    %7333 = vmatpush1.bf16.msra.mxu0 %v4984
    %7334 = vmatprep.subr.bf16.mxu0 %v4977
    %7335 = vmatpush1.bf16.msra.mxu0 %v4976
    %7336 = vmatprep.subr.bf16.mxu0 %v4969
    %7337 = vmatpush1.bf16.msra.mxu0 %v4968
    %7338 = vmatprep.subr.bf16.mxu0 %v4961
    %7339 = vmatpush1.bf16.msra.mxu0 %v4960
    %7340 = vmatprep.subr.bf16.mxu0 %v4953
    %7341 = vmatpush1.bf16.msra.mxu0 %v4952
    %7342 = vmatprep.subr.bf16.mxu0 %v5073
    %7343 = vmatpush2.bf16.msra.mxu0 %v5072
    %7344 = vmatprep.subr.bf16.mxu0 %v5065
    %7345 = vmatpush2.bf16.msra.mxu0 %v5064
    %7346 = vmatprep.subr.bf16.mxu0 %v5057
    %7347 = vmatpush2.bf16.msra.mxu0 %v5056
    %7348 = vmatprep.subr.bf16.mxu0 %v5049
    %7349 = vmatpush2.bf16.msra.mxu0 %v5048
    %7350 = vmatprep.subr.bf16.mxu0 %v5041
    %7351 = vmatpush2.bf16.msra.mxu0 %v5040
    %7352 = vmatprep.subr.bf16.mxu0 %v5033
    %7353 = vmatpush2.bf16.msra.mxu0 %v5032
    %7354 = vmatprep.subr.bf16.mxu0 %v5025
    %7355 = vmatpush2.bf16.msra.mxu0 %v5024
    %7356 = vmatprep.subr.bf16.mxu0 %v5017
    %7357 = vmatpush2.bf16.msra.mxu0 %v5016
    %7358 = vmatprep.mubr.bf16.mxu0 %v797
    %7359 = vmatmul.mubr.bf16.gmra.mxu0 %v796
    %v7360 = vpop.f32.mrf.mxu0
    %v7361 = vadd.f32 %v1849, %v7360
    %v7362 = vpop.f32.mrf.mxu0
    %v7363 = vadd.f32 %v1853, %v7362
    %v7364 = vpop.f32.mrf.mxu0
    %v7365 = vpop.f32.mrf.mxu0
    %7366 = vdwg.mxu0
    %7367 = vmatprep.subr.bf16.mxu0 %v5137
    %7368 = vmatpush1.bf16.msra.mxu0 %v5136
    %7369 = vmatprep.subr.bf16.mxu0 %v5129
    %7370 = vmatpush1.bf16.msra.mxu0 %v5128
    %7371 = vmatprep.subr.bf16.mxu0 %v5121
    %7372 = vmatpush1.bf16.msra.mxu0 %v5120
    %7373 = vmatprep.subr.bf16.mxu0 %v5113
    %7374 = vmatpush1.bf16.msra.mxu0 %v5112
    %7375 = vmatprep.subr.bf16.mxu0 %v5105
    %7376 = vmatpush1.bf16.msra.mxu0 %v5104
    %7377 = vmatprep.subr.bf16.mxu0 %v5097
    %7378 = vmatpush1.bf16.msra.mxu0 %v5096
    %7379 = vmatprep.subr.bf16.mxu0 %v5089
    %7380 = vmatpush1.bf16.msra.mxu0 %v5088
    %7381 = vmatprep.subr.bf16.mxu0 %v5081
    %7382 = vmatpush1.bf16.msra.mxu0 %v5080
    %7383 = vmatprep.subr.bf16.mxu0 %v5201
    %7384 = vmatpush2.bf16.msra.mxu0 %v5200
    %7385 = vmatprep.subr.bf16.mxu0 %v5193
    %7386 = vmatpush2.bf16.msra.mxu0 %v5192
    %7387 = vmatprep.subr.bf16.mxu0 %v5185
    %7388 = vmatpush2.bf16.msra.mxu0 %v5184
    %7389 = vmatprep.subr.bf16.mxu0 %v5177
    %7390 = vmatpush2.bf16.msra.mxu0 %v5176
    %7391 = vmatprep.subr.bf16.mxu0 %v5169
    %7392 = vmatpush2.bf16.msra.mxu0 %v5168
    %7393 = vmatprep.subr.bf16.mxu0 %v5161
    %7394 = vmatpush2.bf16.msra.mxu0 %v5160
    %7395 = vmatprep.subr.bf16.mxu0 %v5153
    %7396 = vmatpush2.bf16.msra.mxu0 %v5152
    %7397 = vmatprep.subr.bf16.mxu0 %v5145
    %7398 = vmatpush2.bf16.msra.mxu0 %v5144
    %7399 = vmatprep.mubr.bf16.mxu0 %v799
    %7400 = vmatmul.mubr.bf16.gmra.mxu0 %v798
    %v7401 = vpop.f32.mrf.mxu0
    %v7402 = vadd.f32 %v7361, %v7401
    %v7403 = vpop.f32.mrf.mxu0
    %v7404 = vadd.f32 %v7363, %v7403
    %v7405 = vpop.f32.mrf.mxu0
    %v7406 = vpop.f32.mrf.mxu0
    %7407 = vdwg.mxu0
    %7408 = vmatprep.subr.bf16.mxu0 %v5265
    %7409 = vmatpush1.bf16.msra.mxu0 %v5264
    %7410 = vmatprep.subr.bf16.mxu0 %v5257
    %7411 = vmatpush1.bf16.msra.mxu0 %v5256
    %7412 = vmatprep.subr.bf16.mxu0 %v5249
    %7413 = vmatpush1.bf16.msra.mxu0 %v5248
    %7414 = vmatprep.subr.bf16.mxu0 %v5241
    %7415 = vmatpush1.bf16.msra.mxu0 %v5240
    %7416 = vmatprep.subr.bf16.mxu0 %v5233
    %7417 = vmatpush1.bf16.msra.mxu0 %v5232
    %7418 = vmatprep.subr.bf16.mxu0 %v5225
    %7419 = vmatpush1.bf16.msra.mxu0 %v5224
    %7420 = vmatprep.subr.bf16.mxu0 %v5217
    %7421 = vmatpush1.bf16.msra.mxu0 %v5216
    %7422 = vmatprep.subr.bf16.mxu0 %v5209
    %7423 = vmatpush1.bf16.msra.mxu0 %v5208
    %7424 = vmatprep.subr.bf16.mxu0 %v5329
    %7425 = vmatpush2.bf16.msra.mxu0 %v5328
    %7426 = vmatprep.subr.bf16.mxu0 %v5321
    %7427 = vmatpush2.bf16.msra.mxu0 %v5320
    %7428 = vmatprep.subr.bf16.mxu0 %v5313
    %7429 = vmatpush2.bf16.msra.mxu0 %v5312
    %7430 = vmatprep.subr.bf16.mxu0 %v5305
    %7431 = vmatpush2.bf16.msra.mxu0 %v5304
    %7432 = vmatprep.subr.bf16.mxu0 %v5297
    %7433 = vmatpush2.bf16.msra.mxu0 %v5296
    %7434 = vmatprep.subr.bf16.mxu0 %v5289
    %7435 = vmatpush2.bf16.msra.mxu0 %v5288
    %7436 = vmatprep.subr.bf16.mxu0 %v5281
    %7437 = vmatpush2.bf16.msra.mxu0 %v5280
    %7438 = vmatprep.subr.bf16.mxu0 %v5273
    %7439 = vmatpush2.bf16.msra.mxu0 %v5272
    %7440 = vmatprep.mubr.bf16.mxu0 %v801
    %7441 = vmatmul.mubr.bf16.gmra.mxu0 %v800
    %v7442 = vpop.f32.mrf.mxu0
    %v7443 = vadd.f32 %v7402, %v7442
    %v7444 = vpop.f32.mrf.mxu0
    %v7445 = vadd.f32 %v7404, %v7444
    %v7446 = vpop.f32.mrf.mxu0
    %v7447 = vpop.f32.mrf.mxu0
    %7448 = vdwg.mxu0
    %7449 = vmatprep.subr.bf16.mxu0 %v5393
    %7450 = vmatpush1.bf16.msra.mxu0 %v5392
    %7451 = vmatprep.subr.bf16.mxu0 %v5385
    %7452 = vmatpush1.bf16.msra.mxu0 %v5384
    %7453 = vmatprep.subr.bf16.mxu0 %v5377
    %7454 = vmatpush1.bf16.msra.mxu0 %v5376
    %7455 = vmatprep.subr.bf16.mxu0 %v5369
    %7456 = vmatpush1.bf16.msra.mxu0 %v5368
    %7457 = vmatprep.subr.bf16.mxu0 %v5361
    %7458 = vmatpush1.bf16.msra.mxu0 %v5360
    %7459 = vmatprep.subr.bf16.mxu0 %v5353
    %7460 = vmatpush1.bf16.msra.mxu0 %v5352
    %7461 = vmatprep.subr.bf16.mxu0 %v5345
    %7462 = vmatpush1.bf16.msra.mxu0 %v5344
    %7463 = vmatprep.subr.bf16.mxu0 %v5337
    %7464 = vmatpush1.bf16.msra.mxu0 %v5336
    %7465 = vmatprep.subr.bf16.mxu0 %v5457
    %7466 = vmatpush2.bf16.msra.mxu0 %v5456
    %7467 = vmatprep.subr.bf16.mxu0 %v5449
    %7468 = vmatpush2.bf16.msra.mxu0 %v5448
    %7469 = vmatprep.subr.bf16.mxu0 %v5441
    %7470 = vmatpush2.bf16.msra.mxu0 %v5440
    %7471 = vmatprep.subr.bf16.mxu0 %v5433
    %7472 = vmatpush2.bf16.msra.mxu0 %v5432
    %7473 = vmatprep.subr.bf16.mxu0 %v5425
    %7474 = vmatpush2.bf16.msra.mxu0 %v5424
    %7475 = vmatprep.subr.bf16.mxu0 %v5417
    %7476 = vmatpush2.bf16.msra.mxu0 %v5416
    %7477 = vmatprep.subr.bf16.mxu0 %v5409
    %7478 = vmatpush2.bf16.msra.mxu0 %v5408
    %7479 = vmatprep.subr.bf16.mxu0 %v5401
    %7480 = vmatpush2.bf16.msra.mxu0 %v5400
    %7481 = vmatprep.mubr.bf16.mxu0 %v803
    %7482 = vmatmul.mubr.bf16.gmra.mxu0 %v802
    %v7483 = vpop.f32.mrf.mxu0
    %v7484 = vadd.f32 %v7443, %v7483
    %v7485 = vpop.f32.mrf.mxu0
    %v7486 = vadd.f32 %v7445, %v7485
    %v7487 = vpop.f32.mrf.mxu0
    %v7488 = vpop.f32.mrf.mxu0
    %7489 = vdwg.mxu0
    %7490 = vmatprep.subr.bf16.mxu0 %v5521
    %7491 = vmatpush1.bf16.msra.mxu0 %v5520
    %7492 = vmatprep.subr.bf16.mxu0 %v5513
    %7493 = vmatpush1.bf16.msra.mxu0 %v5512
    %7494 = vmatprep.subr.bf16.mxu0 %v5505
    %7495 = vmatpush1.bf16.msra.mxu0 %v5504
    %7496 = vmatprep.subr.bf16.mxu0 %v5497
    %7497 = vmatpush1.bf16.msra.mxu0 %v5496
    %7498 = vmatprep.subr.bf16.mxu0 %v5489
    %7499 = vmatpush1.bf16.msra.mxu0 %v5488
    %7500 = vmatprep.subr.bf16.mxu0 %v5481
    %7501 = vmatpush1.bf16.msra.mxu0 %v5480
    %7502 = vmatprep.subr.bf16.mxu0 %v5473
    %7503 = vmatpush1.bf16.msra.mxu0 %v5472
    %7504 = vmatprep.subr.bf16.mxu0 %v5465
    %7505 = vmatpush1.bf16.msra.mxu0 %v5464
    %7506 = vmatprep.subr.bf16.mxu0 %v5585
    %7507 = vmatpush2.bf16.msra.mxu0 %v5584
    %7508 = vmatprep.subr.bf16.mxu0 %v5577
    %7509 = vmatpush2.bf16.msra.mxu0 %v5576
    %7510 = vmatprep.subr.bf16.mxu0 %v5569
    %7511 = vmatpush2.bf16.msra.mxu0 %v5568
    %7512 = vmatprep.subr.bf16.mxu0 %v5561
    %7513 = vmatpush2.bf16.msra.mxu0 %v5560
    %7514 = vmatprep.subr.bf16.mxu0 %v5553
    %7515 = vmatpush2.bf16.msra.mxu0 %v5552
    %7516 = vmatprep.subr.bf16.mxu0 %v5545
    %7517 = vmatpush2.bf16.msra.mxu0 %v5544
    %7518 = vmatprep.subr.bf16.mxu0 %v5537
    %7519 = vmatpush2.bf16.msra.mxu0 %v5536
    %7520 = vmatprep.subr.bf16.mxu0 %v5529
    %7521 = vmatpush2.bf16.msra.mxu0 %v5528
    %7522 = vmatprep.mubr.bf16.mxu0 %v805
    %7523 = vmatmul.mubr.bf16.gmra.mxu0 %v804
    %v7524 = vpop.f32.mrf.mxu0
    %v7525 = vadd.f32 %v7484, %v7524
    %v7526 = vpop.f32.mrf.mxu0
    %v7527 = vadd.f32 %v7486, %v7526
    %v7528 = vpop.f32.mrf.mxu0
    %v7529 = vpop.f32.mrf.mxu0
    %7530 = vdwg.mxu0
    %7531 = vmatprep.subr.bf16.mxu0 %v5649
    %7532 = vmatpush1.bf16.msra.mxu0 %v5648
    %7533 = vmatprep.subr.bf16.mxu0 %v5641
    %7534 = vmatpush1.bf16.msra.mxu0 %v5640
    %7535 = vmatprep.subr.bf16.mxu0 %v5633
    %7536 = vmatpush1.bf16.msra.mxu0 %v5632
    %7537 = vmatprep.subr.bf16.mxu0 %v5625
    %7538 = vmatpush1.bf16.msra.mxu0 %v5624
    %7539 = vmatprep.subr.bf16.mxu0 %v5617
    %7540 = vmatpush1.bf16.msra.mxu0 %v5616
    %7541 = vmatprep.subr.bf16.mxu0 %v5609
    %7542 = vmatpush1.bf16.msra.mxu0 %v5608
    %7543 = vmatprep.subr.bf16.mxu0 %v5601
    %7544 = vmatpush1.bf16.msra.mxu0 %v5600
    %7545 = vmatprep.subr.bf16.mxu0 %v5593
    %7546 = vmatpush1.bf16.msra.mxu0 %v5592
    %7547 = vmatprep.subr.bf16.mxu0 %v5713
    %7548 = vmatpush2.bf16.msra.mxu0 %v5712
    %7549 = vmatprep.subr.bf16.mxu0 %v5705
    %7550 = vmatpush2.bf16.msra.mxu0 %v5704
    %7551 = vmatprep.subr.bf16.mxu0 %v5697
    %7552 = vmatpush2.bf16.msra.mxu0 %v5696
    %7553 = vmatprep.subr.bf16.mxu0 %v5689
    %7554 = vmatpush2.bf16.msra.mxu0 %v5688
    %7555 = vmatprep.subr.bf16.mxu0 %v5681
    %7556 = vmatpush2.bf16.msra.mxu0 %v5680
    %7557 = vmatprep.subr.bf16.mxu0 %v5673
    %7558 = vmatpush2.bf16.msra.mxu0 %v5672
    %7559 = vmatprep.subr.bf16.mxu0 %v5665
    %7560 = vmatpush2.bf16.msra.mxu0 %v5664
    %7561 = vmatprep.subr.bf16.mxu0 %v5657
    %7562 = vmatpush2.bf16.msra.mxu0 %v5656
    %7563 = vmatprep.mubr.bf16.mxu0 %v807
    %7564 = vmatmul.mubr.bf16.gmra.mxu0 %v806
    %v7565 = vpop.f32.mrf.mxu0
    %v7566 = vadd.f32 %v7525, %v7565
    %v7567 = vpop.f32.mrf.mxu0
    %v7568 = vadd.f32 %v7527, %v7567
    %v7569 = vpop.f32.mrf.mxu0
    %v7570 = vpop.f32.mrf.mxu0
    %7571 = vdwg.mxu0
    %7572 = vmatprep.subr.bf16.mxu0 %v5777
    %7573 = vmatpush1.bf16.msra.mxu0 %v5776
    %7574 = vmatprep.subr.bf16.mxu0 %v5769
    %7575 = vmatpush1.bf16.msra.mxu0 %v5768
    %7576 = vmatprep.subr.bf16.mxu0 %v5761
    %7577 = vmatpush1.bf16.msra.mxu0 %v5760
    %7578 = vmatprep.subr.bf16.mxu0 %v5753
    %7579 = vmatpush1.bf16.msra.mxu0 %v5752
    %7580 = vmatprep.subr.bf16.mxu0 %v5745
    %7581 = vmatpush1.bf16.msra.mxu0 %v5744
    %7582 = vmatprep.subr.bf16.mxu0 %v5737
    %7583 = vmatpush1.bf16.msra.mxu0 %v5736
    %7584 = vmatprep.subr.bf16.mxu0 %v5729
    %7585 = vmatpush1.bf16.msra.mxu0 %v5728
    %7586 = vmatprep.subr.bf16.mxu0 %v5721
    %7587 = vmatpush1.bf16.msra.mxu0 %v5720
    %7588 = vmatprep.subr.bf16.mxu0 %v5841
    %7589 = vmatpush2.bf16.msra.mxu0 %v5840
    %7590 = vmatprep.subr.bf16.mxu0 %v5833
    %7591 = vmatpush2.bf16.msra.mxu0 %v5832
    %7592 = vmatprep.subr.bf16.mxu0 %v5825
    %7593 = vmatpush2.bf16.msra.mxu0 %v5824
    %7594 = vmatprep.subr.bf16.mxu0 %v5817
    %7595 = vmatpush2.bf16.msra.mxu0 %v5816
    %7596 = vmatprep.subr.bf16.mxu0 %v5809
    %7597 = vmatpush2.bf16.msra.mxu0 %v5808
    %7598 = vmatprep.subr.bf16.mxu0 %v5801
    %7599 = vmatpush2.bf16.msra.mxu0 %v5800
    %7600 = vmatprep.subr.bf16.mxu0 %v5793
    %7601 = vmatpush2.bf16.msra.mxu0 %v5792
    %7602 = vmatprep.subr.bf16.mxu0 %v5785
    %7603 = vmatpush2.bf16.msra.mxu0 %v5784
    %7604 = vmatprep.mubr.bf16.mxu0 %v809
    %7605 = vmatmul.mubr.bf16.gmra.mxu0 %v808
    %v7606 = vpop.f32.mrf.mxu0
    %v7607 = vadd.f32 %v7566, %v7606
    %v7608 = vpop.f32.mrf.mxu0
    %v7609 = vadd.f32 %v7568, %v7608
    %v7610 = vpop.f32.mrf.mxu0
    %v7611 = vpop.f32.mrf.mxu0
    %7612 = vdwg.mxu0
    %7613 = vmatprep.subr.bf16.mxu0 %v5905
    %7614 = vmatpush1.bf16.msra.mxu0 %v5904
    %7615 = vmatprep.subr.bf16.mxu0 %v5897
    %7616 = vmatpush1.bf16.msra.mxu0 %v5896
    %7617 = vmatprep.subr.bf16.mxu0 %v5889
    %7618 = vmatpush1.bf16.msra.mxu0 %v5888
    %7619 = vmatprep.subr.bf16.mxu0 %v5881
    %7620 = vmatpush1.bf16.msra.mxu0 %v5880
    %7621 = vmatprep.subr.bf16.mxu0 %v5873
    %7622 = vmatpush1.bf16.msra.mxu0 %v5872
    %7623 = vmatprep.subr.bf16.mxu0 %v5865
    %7624 = vmatpush1.bf16.msra.mxu0 %v5864
    %7625 = vmatprep.subr.bf16.mxu0 %v5857
    %7626 = vmatpush1.bf16.msra.mxu0 %v5856
    %7627 = vmatprep.subr.bf16.mxu0 %v5849
    %7628 = vmatpush1.bf16.msra.mxu0 %v5848
    %7629 = vmatprep.subr.bf16.mxu0 %v5969
    %7630 = vmatpush2.bf16.msra.mxu0 %v5968
    %7631 = vmatprep.subr.bf16.mxu0 %v5961
    %7632 = vmatpush2.bf16.msra.mxu0 %v5960
    %7633 = vmatprep.subr.bf16.mxu0 %v5953
    %7634 = vmatpush2.bf16.msra.mxu0 %v5952
    %7635 = vmatprep.subr.bf16.mxu0 %v5945
    %7636 = vmatpush2.bf16.msra.mxu0 %v5944
    %7637 = vmatprep.subr.bf16.mxu0 %v5937
    %7638 = vmatpush2.bf16.msra.mxu0 %v5936
    %7639 = vmatprep.subr.bf16.mxu0 %v5929
    %7640 = vmatpush2.bf16.msra.mxu0 %v5928
    %7641 = vmatprep.subr.bf16.mxu0 %v5921
    %7642 = vmatpush2.bf16.msra.mxu0 %v5920
    %7643 = vmatprep.subr.bf16.mxu0 %v5913
    %7644 = vmatpush2.bf16.msra.mxu0 %v5912
    %7645 = vmatprep.mubr.bf16.mxu0 %v811
    %7646 = vmatmul.mubr.bf16.gmra.mxu0 %v810
    %v7647 = vpop.f32.mrf.mxu0
    %v7648 = vadd.f32 %v7607, %v7647
    %v7649 = vpop.f32.mrf.mxu0
    %v7650 = vadd.f32 %v7609, %v7649
    %v7651 = vpop.f32.mrf.mxu0
    %v7652 = vpop.f32.mrf.mxu0
    %7653 = vdwg.mxu0
    %7654 = vmatprep.subr.bf16.mxu0 %v5011
    %7655 = vmatpush1.bf16.msra.mxu0 %v5010
    %7656 = vmatprep.subr.bf16.mxu0 %v5003
    %7657 = vmatpush1.bf16.msra.mxu0 %v5002
    %7658 = vmatprep.subr.bf16.mxu0 %v4995
    %7659 = vmatpush1.bf16.msra.mxu0 %v4994
    %7660 = vmatprep.subr.bf16.mxu0 %v4987
    %7661 = vmatpush1.bf16.msra.mxu0 %v4986
    %7662 = vmatprep.subr.bf16.mxu0 %v4979
    %7663 = vmatpush1.bf16.msra.mxu0 %v4978
    %7664 = vmatprep.subr.bf16.mxu0 %v4971
    %7665 = vmatpush1.bf16.msra.mxu0 %v4970
    %7666 = vmatprep.subr.bf16.mxu0 %v4963
    %7667 = vmatpush1.bf16.msra.mxu0 %v4962
    %7668 = vmatprep.subr.bf16.mxu0 %v4955
    %7669 = vmatpush1.bf16.msra.mxu0 %v4954
    %7670 = vmatprep.subr.bf16.mxu0 %v5075
    %7671 = vmatpush2.bf16.msra.mxu0 %v5074
    %7672 = vmatprep.subr.bf16.mxu0 %v5067
    %7673 = vmatpush2.bf16.msra.mxu0 %v5066
    %7674 = vmatprep.subr.bf16.mxu0 %v5059
    %7675 = vmatpush2.bf16.msra.mxu0 %v5058
    %7676 = vmatprep.subr.bf16.mxu0 %v5051
    %7677 = vmatpush2.bf16.msra.mxu0 %v5050
    %7678 = vmatprep.subr.bf16.mxu0 %v5043
    %7679 = vmatpush2.bf16.msra.mxu0 %v5042
    %7680 = vmatprep.subr.bf16.mxu0 %v5035
    %7681 = vmatpush2.bf16.msra.mxu0 %v5034
    %7682 = vmatprep.subr.bf16.mxu0 %v5027
    %7683 = vmatpush2.bf16.msra.mxu0 %v5026
    %7684 = vmatprep.subr.bf16.mxu0 %v5019
    %7685 = vmatpush2.bf16.msra.mxu0 %v5018
    %7686 = vmatprep.mubr.bf16.mxu0 %v797
    %7687 = vmatmul.mubr.bf16.gmra.mxu0 %v796
    %v7688 = vpop.f32.mrf.mxu0
    %v7689 = vadd.f32 %v1857, %v7688
    %v7690 = vpop.f32.mrf.mxu0
    %v7691 = vadd.f32 %v1861, %v7690
    %v7692 = vpop.f32.mrf.mxu0
    %v7693 = vpop.f32.mrf.mxu0
    %7694 = vdwg.mxu0
    %7695 = vmatprep.subr.bf16.mxu0 %v5139
    %7696 = vmatpush1.bf16.msra.mxu0 %v5138
    %7697 = vmatprep.subr.bf16.mxu0 %v5131
    %7698 = vmatpush1.bf16.msra.mxu0 %v5130
    %7699 = vmatprep.subr.bf16.mxu0 %v5123
    %7700 = vmatpush1.bf16.msra.mxu0 %v5122
    %7701 = vmatprep.subr.bf16.mxu0 %v5115
    %7702 = vmatpush1.bf16.msra.mxu0 %v5114
    %7703 = vmatprep.subr.bf16.mxu0 %v5107
    %7704 = vmatpush1.bf16.msra.mxu0 %v5106
    %7705 = vmatprep.subr.bf16.mxu0 %v5099
    %7706 = vmatpush1.bf16.msra.mxu0 %v5098
    %7707 = vmatprep.subr.bf16.mxu0 %v5091
    %7708 = vmatpush1.bf16.msra.mxu0 %v5090
    %7709 = vmatprep.subr.bf16.mxu0 %v5083
    %7710 = vmatpush1.bf16.msra.mxu0 %v5082
    %7711 = vmatprep.subr.bf16.mxu0 %v5203
    %7712 = vmatpush2.bf16.msra.mxu0 %v5202
    %7713 = vmatprep.subr.bf16.mxu0 %v5195
    %7714 = vmatpush2.bf16.msra.mxu0 %v5194
    %7715 = vmatprep.subr.bf16.mxu0 %v5187
    %7716 = vmatpush2.bf16.msra.mxu0 %v5186
    %7717 = vmatprep.subr.bf16.mxu0 %v5179
    %7718 = vmatpush2.bf16.msra.mxu0 %v5178
    %7719 = vmatprep.subr.bf16.mxu0 %v5171
    %7720 = vmatpush2.bf16.msra.mxu0 %v5170
    %7721 = vmatprep.subr.bf16.mxu0 %v5163
    %7722 = vmatpush2.bf16.msra.mxu0 %v5162
    %7723 = vmatprep.subr.bf16.mxu0 %v5155
    %7724 = vmatpush2.bf16.msra.mxu0 %v5154
    %7725 = vmatprep.subr.bf16.mxu0 %v5147
    %7726 = vmatpush2.bf16.msra.mxu0 %v5146
    %7727 = vmatprep.mubr.bf16.mxu0 %v799
    %7728 = vmatmul.mubr.bf16.gmra.mxu0 %v798
    %v7729 = vpop.f32.mrf.mxu0
    %v7730 = vadd.f32 %v7689, %v7729
    %v7731 = vpop.f32.mrf.mxu0
    %v7732 = vadd.f32 %v7691, %v7731
    %v7733 = vpop.f32.mrf.mxu0
    %v7734 = vpop.f32.mrf.mxu0
    %7735 = vdwg.mxu0
    %7736 = vmatprep.subr.bf16.mxu0 %v5267
    %7737 = vmatpush1.bf16.msra.mxu0 %v5266
    %7738 = vmatprep.subr.bf16.mxu0 %v5259
    %7739 = vmatpush1.bf16.msra.mxu0 %v5258
    %7740 = vmatprep.subr.bf16.mxu0 %v5251
    %7741 = vmatpush1.bf16.msra.mxu0 %v5250
    %7742 = vmatprep.subr.bf16.mxu0 %v5243
    %7743 = vmatpush1.bf16.msra.mxu0 %v5242
    %7744 = vmatprep.subr.bf16.mxu0 %v5235
    %7745 = vmatpush1.bf16.msra.mxu0 %v5234
    %7746 = vmatprep.subr.bf16.mxu0 %v5227
    %7747 = vmatpush1.bf16.msra.mxu0 %v5226
    %7748 = vmatprep.subr.bf16.mxu0 %v5219
    %7749 = vmatpush1.bf16.msra.mxu0 %v5218
    %7750 = vmatprep.subr.bf16.mxu0 %v5211
    %7751 = vmatpush1.bf16.msra.mxu0 %v5210
    %7752 = vmatprep.subr.bf16.mxu0 %v5331
    %7753 = vmatpush2.bf16.msra.mxu0 %v5330
    %7754 = vmatprep.subr.bf16.mxu0 %v5323
    %7755 = vmatpush2.bf16.msra.mxu0 %v5322
    %7756 = vmatprep.subr.bf16.mxu0 %v5315
    %7757 = vmatpush2.bf16.msra.mxu0 %v5314
    %7758 = vmatprep.subr.bf16.mxu0 %v5307
    %7759 = vmatpush2.bf16.msra.mxu0 %v5306
    %7760 = vmatprep.subr.bf16.mxu0 %v5299
    %7761 = vmatpush2.bf16.msra.mxu0 %v5298
    %7762 = vmatprep.subr.bf16.mxu0 %v5291
    %7763 = vmatpush2.bf16.msra.mxu0 %v5290
    %7764 = vmatprep.subr.bf16.mxu0 %v5283
    %7765 = vmatpush2.bf16.msra.mxu0 %v5282
    %7766 = vmatprep.subr.bf16.mxu0 %v5275
    %7767 = vmatpush2.bf16.msra.mxu0 %v5274
    %7768 = vmatprep.mubr.bf16.mxu0 %v801
    %7769 = vmatmul.mubr.bf16.gmra.mxu0 %v800
    %v7770 = vpop.f32.mrf.mxu0
    %v7771 = vadd.f32 %v7730, %v7770
    %v7772 = vpop.f32.mrf.mxu0
    %v7773 = vadd.f32 %v7732, %v7772
    %v7774 = vpop.f32.mrf.mxu0
    %v7775 = vpop.f32.mrf.mxu0
    %7776 = vdwg.mxu0
    %7777 = vmatprep.subr.bf16.mxu0 %v5395
    %7778 = vmatpush1.bf16.msra.mxu0 %v5394
    %7779 = vmatprep.subr.bf16.mxu0 %v5387
    %7780 = vmatpush1.bf16.msra.mxu0 %v5386
    %7781 = vmatprep.subr.bf16.mxu0 %v5379
    %7782 = vmatpush1.bf16.msra.mxu0 %v5378
    %7783 = vmatprep.subr.bf16.mxu0 %v5371
    %7784 = vmatpush1.bf16.msra.mxu0 %v5370
    %7785 = vmatprep.subr.bf16.mxu0 %v5363
    %7786 = vmatpush1.bf16.msra.mxu0 %v5362
    %7787 = vmatprep.subr.bf16.mxu0 %v5355
    %7788 = vmatpush1.bf16.msra.mxu0 %v5354
    %7789 = vmatprep.subr.bf16.mxu0 %v5347
    %7790 = vmatpush1.bf16.msra.mxu0 %v5346
    %7791 = vmatprep.subr.bf16.mxu0 %v5339
    %7792 = vmatpush1.bf16.msra.mxu0 %v5338
    %7793 = vmatprep.subr.bf16.mxu0 %v5459
    %7794 = vmatpush2.bf16.msra.mxu0 %v5458
    %7795 = vmatprep.subr.bf16.mxu0 %v5451
    %7796 = vmatpush2.bf16.msra.mxu0 %v5450
    %7797 = vmatprep.subr.bf16.mxu0 %v5443
    %7798 = vmatpush2.bf16.msra.mxu0 %v5442
    %7799 = vmatprep.subr.bf16.mxu0 %v5435
    %7800 = vmatpush2.bf16.msra.mxu0 %v5434
    %7801 = vmatprep.subr.bf16.mxu0 %v5427
    %7802 = vmatpush2.bf16.msra.mxu0 %v5426
    %7803 = vmatprep.subr.bf16.mxu0 %v5419
    %7804 = vmatpush2.bf16.msra.mxu0 %v5418
    %7805 = vmatprep.subr.bf16.mxu0 %v5411
    %7806 = vmatpush2.bf16.msra.mxu0 %v5410
    %7807 = vmatprep.subr.bf16.mxu0 %v5403
    %7808 = vmatpush2.bf16.msra.mxu0 %v5402
    %7809 = vmatprep.mubr.bf16.mxu0 %v803
    %7810 = vmatmul.mubr.bf16.gmra.mxu0 %v802
    %v7811 = vpop.f32.mrf.mxu0
    %v7812 = vadd.f32 %v7771, %v7811
    %v7813 = vpop.f32.mrf.mxu0
    %v7814 = vadd.f32 %v7773, %v7813
    %v7815 = vpop.f32.mrf.mxu0
    %v7816 = vpop.f32.mrf.mxu0
    %7817 = vdwg.mxu0
    %7818 = vmatprep.subr.bf16.mxu0 %v5523
    %7819 = vmatpush1.bf16.msra.mxu0 %v5522
    %7820 = vmatprep.subr.bf16.mxu0 %v5515
    %7821 = vmatpush1.bf16.msra.mxu0 %v5514
    %7822 = vmatprep.subr.bf16.mxu0 %v5507
    %7823 = vmatpush1.bf16.msra.mxu0 %v5506
    %7824 = vmatprep.subr.bf16.mxu0 %v5499
    %7825 = vmatpush1.bf16.msra.mxu0 %v5498
    %7826 = vmatprep.subr.bf16.mxu0 %v5491
    %7827 = vmatpush1.bf16.msra.mxu0 %v5490
    %7828 = vmatprep.subr.bf16.mxu0 %v5483
    %7829 = vmatpush1.bf16.msra.mxu0 %v5482
    %7830 = vmatprep.subr.bf16.mxu0 %v5475
    %7831 = vmatpush1.bf16.msra.mxu0 %v5474
    %7832 = vmatprep.subr.bf16.mxu0 %v5467
    %7833 = vmatpush1.bf16.msra.mxu0 %v5466
    %7834 = vmatprep.subr.bf16.mxu0 %v5587
    %7835 = vmatpush2.bf16.msra.mxu0 %v5586
    %7836 = vmatprep.subr.bf16.mxu0 %v5579
    %7837 = vmatpush2.bf16.msra.mxu0 %v5578
    %7838 = vmatprep.subr.bf16.mxu0 %v5571
    %7839 = vmatpush2.bf16.msra.mxu0 %v5570
    %7840 = vmatprep.subr.bf16.mxu0 %v5563
    %7841 = vmatpush2.bf16.msra.mxu0 %v5562
    %7842 = vmatprep.subr.bf16.mxu0 %v5555
    %7843 = vmatpush2.bf16.msra.mxu0 %v5554
    %7844 = vmatprep.subr.bf16.mxu0 %v5547
    %7845 = vmatpush2.bf16.msra.mxu0 %v5546
    %7846 = vmatprep.subr.bf16.mxu0 %v5539
    %7847 = vmatpush2.bf16.msra.mxu0 %v5538
    %7848 = vmatprep.subr.bf16.mxu0 %v5531
    %7849 = vmatpush2.bf16.msra.mxu0 %v5530
    %7850 = vmatprep.mubr.bf16.mxu0 %v805
    %7851 = vmatmul.mubr.bf16.gmra.mxu0 %v804
    %v7852 = vpop.f32.mrf.mxu0
    %v7853 = vadd.f32 %v7812, %v7852
    %v7854 = vpop.f32.mrf.mxu0
    %v7855 = vadd.f32 %v7814, %v7854
    %v7856 = vpop.f32.mrf.mxu0
    %v7857 = vpop.f32.mrf.mxu0
    %7858 = vdwg.mxu0
    %7859 = vmatprep.subr.bf16.mxu0 %v5651
    %7860 = vmatpush1.bf16.msra.mxu0 %v5650
    %7861 = vmatprep.subr.bf16.mxu0 %v5643
    %7862 = vmatpush1.bf16.msra.mxu0 %v5642
    %7863 = vmatprep.subr.bf16.mxu0 %v5635
    %7864 = vmatpush1.bf16.msra.mxu0 %v5634
    %7865 = vmatprep.subr.bf16.mxu0 %v5627
    %7866 = vmatpush1.bf16.msra.mxu0 %v5626
    %7867 = vmatprep.subr.bf16.mxu0 %v5619
    %7868 = vmatpush1.bf16.msra.mxu0 %v5618
    %7869 = vmatprep.subr.bf16.mxu0 %v5611
    %7870 = vmatpush1.bf16.msra.mxu0 %v5610
    %7871 = vmatprep.subr.bf16.mxu0 %v5603
    %7872 = vmatpush1.bf16.msra.mxu0 %v5602
    %7873 = vmatprep.subr.bf16.mxu0 %v5595
    %7874 = vmatpush1.bf16.msra.mxu0 %v5594
    %7875 = vmatprep.subr.bf16.mxu0 %v5715
    %7876 = vmatpush2.bf16.msra.mxu0 %v5714
    %7877 = vmatprep.subr.bf16.mxu0 %v5707
    %7878 = vmatpush2.bf16.msra.mxu0 %v5706
    %7879 = vmatprep.subr.bf16.mxu0 %v5699
    %7880 = vmatpush2.bf16.msra.mxu0 %v5698
    %7881 = vmatprep.subr.bf16.mxu0 %v5691
    %7882 = vmatpush2.bf16.msra.mxu0 %v5690
    %7883 = vmatprep.subr.bf16.mxu0 %v5683
    %7884 = vmatpush2.bf16.msra.mxu0 %v5682
    %7885 = vmatprep.subr.bf16.mxu0 %v5675
    %7886 = vmatpush2.bf16.msra.mxu0 %v5674
    %7887 = vmatprep.subr.bf16.mxu0 %v5667
    %7888 = vmatpush2.bf16.msra.mxu0 %v5666
    %7889 = vmatprep.subr.bf16.mxu0 %v5659
    %7890 = vmatpush2.bf16.msra.mxu0 %v5658
    %7891 = vmatprep.mubr.bf16.mxu0 %v807
    %7892 = vmatmul.mubr.bf16.gmra.mxu0 %v806
    %v7893 = vpop.f32.mrf.mxu0
    %v7894 = vadd.f32 %v7853, %v7893
    %v7895 = vpop.f32.mrf.mxu0
    %v7896 = vadd.f32 %v7855, %v7895
    %v7897 = vpop.f32.mrf.mxu0
    %v7898 = vpop.f32.mrf.mxu0
    %7899 = vdwg.mxu0
    %7900 = vmatprep.subr.bf16.mxu0 %v5779
    %7901 = vmatpush1.bf16.msra.mxu0 %v5778
    %7902 = vmatprep.subr.bf16.mxu0 %v5771
    %7903 = vmatpush1.bf16.msra.mxu0 %v5770
    %7904 = vmatprep.subr.bf16.mxu0 %v5763
    %7905 = vmatpush1.bf16.msra.mxu0 %v5762
    %7906 = vmatprep.subr.bf16.mxu0 %v5755
    %7907 = vmatpush1.bf16.msra.mxu0 %v5754
    %7908 = vmatprep.subr.bf16.mxu0 %v5747
    %7909 = vmatpush1.bf16.msra.mxu0 %v5746
    %7910 = vmatprep.subr.bf16.mxu0 %v5739
    %7911 = vmatpush1.bf16.msra.mxu0 %v5738
    %7912 = vmatprep.subr.bf16.mxu0 %v5731
    %7913 = vmatpush1.bf16.msra.mxu0 %v5730
    %7914 = vmatprep.subr.bf16.mxu0 %v5723
    %7915 = vmatpush1.bf16.msra.mxu0 %v5722
    %7916 = vmatprep.subr.bf16.mxu0 %v5843
    %7917 = vmatpush2.bf16.msra.mxu0 %v5842
    %7918 = vmatprep.subr.bf16.mxu0 %v5835
    %7919 = vmatpush2.bf16.msra.mxu0 %v5834
    %7920 = vmatprep.subr.bf16.mxu0 %v5827
    %7921 = vmatpush2.bf16.msra.mxu0 %v5826
    %7922 = vmatprep.subr.bf16.mxu0 %v5819
    %7923 = vmatpush2.bf16.msra.mxu0 %v5818
    %7924 = vmatprep.subr.bf16.mxu0 %v5811
    %7925 = vmatpush2.bf16.msra.mxu0 %v5810
    %7926 = vmatprep.subr.bf16.mxu0 %v5803
    %7927 = vmatpush2.bf16.msra.mxu0 %v5802
    %7928 = vmatprep.subr.bf16.mxu0 %v5795
    %7929 = vmatpush2.bf16.msra.mxu0 %v5794
    %7930 = vmatprep.subr.bf16.mxu0 %v5787
    %7931 = vmatpush2.bf16.msra.mxu0 %v5786
    %7932 = vmatprep.mubr.bf16.mxu0 %v809
    %7933 = vmatmul.mubr.bf16.gmra.mxu0 %v808
    %v7934 = vpop.f32.mrf.mxu0
    %v7935 = vadd.f32 %v7894, %v7934
    %v7936 = vpop.f32.mrf.mxu0
    %v7937 = vadd.f32 %v7896, %v7936
    %v7938 = vpop.f32.mrf.mxu0
    %v7939 = vpop.f32.mrf.mxu0
    %7940 = vdwg.mxu0
    %7941 = vmatprep.subr.bf16.mxu0 %v5907
    %7942 = vmatpush1.bf16.msra.mxu0 %v5906
    %7943 = vmatprep.subr.bf16.mxu0 %v5899
    %7944 = vmatpush1.bf16.msra.mxu0 %v5898
    %7945 = vmatprep.subr.bf16.mxu0 %v5891
    %7946 = vmatpush1.bf16.msra.mxu0 %v5890
    %7947 = vmatprep.subr.bf16.mxu0 %v5883
    %7948 = vmatpush1.bf16.msra.mxu0 %v5882
    %7949 = vmatprep.subr.bf16.mxu0 %v5875
    %7950 = vmatpush1.bf16.msra.mxu0 %v5874
    %7951 = vmatprep.subr.bf16.mxu0 %v5867
    %7952 = vmatpush1.bf16.msra.mxu0 %v5866
    %7953 = vmatprep.subr.bf16.mxu0 %v5859
    %7954 = vmatpush1.bf16.msra.mxu0 %v5858
    %7955 = vmatprep.subr.bf16.mxu0 %v5851
    %7956 = vmatpush1.bf16.msra.mxu0 %v5850
    %7957 = vmatprep.subr.bf16.mxu0 %v5971
    %7958 = vmatpush2.bf16.msra.mxu0 %v5970
    %7959 = vmatprep.subr.bf16.mxu0 %v5963
    %7960 = vmatpush2.bf16.msra.mxu0 %v5962
    %7961 = vmatprep.subr.bf16.mxu0 %v5955
    %7962 = vmatpush2.bf16.msra.mxu0 %v5954
    %7963 = vmatprep.subr.bf16.mxu0 %v5947
    %7964 = vmatpush2.bf16.msra.mxu0 %v5946
    %7965 = vmatprep.subr.bf16.mxu0 %v5939
    %7966 = vmatpush2.bf16.msra.mxu0 %v5938
    %7967 = vmatprep.subr.bf16.mxu0 %v5931
    %7968 = vmatpush2.bf16.msra.mxu0 %v5930
    %7969 = vmatprep.subr.bf16.mxu0 %v5923
    %7970 = vmatpush2.bf16.msra.mxu0 %v5922
    %7971 = vmatprep.subr.bf16.mxu0 %v5915
    %7972 = vmatpush2.bf16.msra.mxu0 %v5914
    %7973 = vmatprep.mubr.bf16.mxu0 %v811
    %7974 = vmatmul.mubr.bf16.gmra.mxu0 %v810
    %v7975 = vpop.f32.mrf.mxu0
    %v7976 = vadd.f32 %v7935, %v7975
    %v7977 = vpop.f32.mrf.mxu0
    %v7978 = vadd.f32 %v7937, %v7977
    %v7979 = vpop.f32.mrf.mxu0
    %v7980 = vpop.f32.mrf.mxu0
    %7981 = vdwg.mxu0
    %7982 = vmatprep.subr.bf16.mxu0 %v5013
    %7983 = vmatpush1.bf16.msra.mxu0 %v5012
    %7984 = vmatprep.subr.bf16.mxu0 %v5005
    %7985 = vmatpush1.bf16.msra.mxu0 %v5004
    %7986 = vmatprep.subr.bf16.mxu0 %v4997
    %7987 = vmatpush1.bf16.msra.mxu0 %v4996
    %7988 = vmatprep.subr.bf16.mxu0 %v4989
    %7989 = vmatpush1.bf16.msra.mxu0 %v4988
    %7990 = vmatprep.subr.bf16.mxu0 %v4981
    %7991 = vmatpush1.bf16.msra.mxu0 %v4980
    %7992 = vmatprep.subr.bf16.mxu0 %v4973
    %7993 = vmatpush1.bf16.msra.mxu0 %v4972
    %7994 = vmatprep.subr.bf16.mxu0 %v4965
    %7995 = vmatpush1.bf16.msra.mxu0 %v4964
    %7996 = vmatprep.subr.bf16.mxu0 %v4957
    %7997 = vmatpush1.bf16.msra.mxu0 %v4956
    %7998 = vmatprep.subr.bf16.mxu0 %v5077
    %7999 = vmatpush2.bf16.msra.mxu0 %v5076
    %8000 = vmatprep.subr.bf16.mxu0 %v5069
    %8001 = vmatpush2.bf16.msra.mxu0 %v5068
    %8002 = vmatprep.subr.bf16.mxu0 %v5061
    %8003 = vmatpush2.bf16.msra.mxu0 %v5060
    %8004 = vmatprep.subr.bf16.mxu0 %v5053
    %8005 = vmatpush2.bf16.msra.mxu0 %v5052
    %8006 = vmatprep.subr.bf16.mxu0 %v5045
    %8007 = vmatpush2.bf16.msra.mxu0 %v5044
    %8008 = vmatprep.subr.bf16.mxu0 %v5037
    %8009 = vmatpush2.bf16.msra.mxu0 %v5036
    %8010 = vmatprep.subr.bf16.mxu0 %v5029
    %8011 = vmatpush2.bf16.msra.mxu0 %v5028
    %8012 = vmatprep.subr.bf16.mxu0 %v5021
    %8013 = vmatpush2.bf16.msra.mxu0 %v5020
    %8014 = vmatprep.mubr.bf16.mxu0 %v797
    %8015 = vmatmul.mubr.bf16.gmra.mxu0 %v796
    %v8016 = vpop.f32.mrf.mxu0
    %v8017 = vadd.f32 %v1865, %v8016
    %v8018 = vpop.f32.mrf.mxu0
    %v8019 = vadd.f32 %v1869, %v8018
    %v8020 = vpop.f32.mrf.mxu0
    %v8021 = vpop.f32.mrf.mxu0
    %8022 = vdwg.mxu0
    %8023 = vmatprep.subr.bf16.mxu0 %v5141
    %8024 = vmatpush1.bf16.msra.mxu0 %v5140
    %8025 = vmatprep.subr.bf16.mxu0 %v5133
    %8026 = vmatpush1.bf16.msra.mxu0 %v5132
    %8027 = vmatprep.subr.bf16.mxu0 %v5125
    %8028 = vmatpush1.bf16.msra.mxu0 %v5124
    %8029 = vmatprep.subr.bf16.mxu0 %v5117
    %8030 = vmatpush1.bf16.msra.mxu0 %v5116
    %8031 = vmatprep.subr.bf16.mxu0 %v5109
    %8032 = vmatpush1.bf16.msra.mxu0 %v5108
    %8033 = vmatprep.subr.bf16.mxu0 %v5101
    %8034 = vmatpush1.bf16.msra.mxu0 %v5100
    %8035 = vmatprep.subr.bf16.mxu0 %v5093
    %8036 = vmatpush1.bf16.msra.mxu0 %v5092
    %8037 = vmatprep.subr.bf16.mxu0 %v5085
    %8038 = vmatpush1.bf16.msra.mxu0 %v5084
    %8039 = vmatprep.subr.bf16.mxu0 %v5205
    %8040 = vmatpush2.bf16.msra.mxu0 %v5204
    %8041 = vmatprep.subr.bf16.mxu0 %v5197
    %8042 = vmatpush2.bf16.msra.mxu0 %v5196
    %8043 = vmatprep.subr.bf16.mxu0 %v5189
    %8044 = vmatpush2.bf16.msra.mxu0 %v5188
    %8045 = vmatprep.subr.bf16.mxu0 %v5181
    %8046 = vmatpush2.bf16.msra.mxu0 %v5180
    %8047 = vmatprep.subr.bf16.mxu0 %v5173
    %8048 = vmatpush2.bf16.msra.mxu0 %v5172
    %8049 = vmatprep.subr.bf16.mxu0 %v5165
    %8050 = vmatpush2.bf16.msra.mxu0 %v5164
    %8051 = vmatprep.subr.bf16.mxu0 %v5157
    %8052 = vmatpush2.bf16.msra.mxu0 %v5156
    %8053 = vmatprep.subr.bf16.mxu0 %v5149
    %8054 = vmatpush2.bf16.msra.mxu0 %v5148
    %8055 = vmatprep.mubr.bf16.mxu0 %v799
    %8056 = vmatmul.mubr.bf16.gmra.mxu0 %v798
    %v8057 = vpop.f32.mrf.mxu0
    %v8058 = vadd.f32 %v8017, %v8057
    %v8059 = vpop.f32.mrf.mxu0
    %v8060 = vadd.f32 %v8019, %v8059
    %v8061 = vpop.f32.mrf.mxu0
    %v8062 = vpop.f32.mrf.mxu0
    %8063 = vdwg.mxu0
    %8064 = vmatprep.subr.bf16.mxu0 %v5269
    %8065 = vmatpush1.bf16.msra.mxu0 %v5268
    %8066 = vmatprep.subr.bf16.mxu0 %v5261
    %8067 = vmatpush1.bf16.msra.mxu0 %v5260
    %8068 = vmatprep.subr.bf16.mxu0 %v5253
    %8069 = vmatpush1.bf16.msra.mxu0 %v5252
    %8070 = vmatprep.subr.bf16.mxu0 %v5245
    %8071 = vmatpush1.bf16.msra.mxu0 %v5244
    %8072 = vmatprep.subr.bf16.mxu0 %v5237
    %8073 = vmatpush1.bf16.msra.mxu0 %v5236
    %8074 = vmatprep.subr.bf16.mxu0 %v5229
    %8075 = vmatpush1.bf16.msra.mxu0 %v5228
    %8076 = vmatprep.subr.bf16.mxu0 %v5221
    %8077 = vmatpush1.bf16.msra.mxu0 %v5220
    %8078 = vmatprep.subr.bf16.mxu0 %v5213
    %8079 = vmatpush1.bf16.msra.mxu0 %v5212
    %8080 = vmatprep.subr.bf16.mxu0 %v5333
    %8081 = vmatpush2.bf16.msra.mxu0 %v5332
    %8082 = vmatprep.subr.bf16.mxu0 %v5325
    %8083 = vmatpush2.bf16.msra.mxu0 %v5324
    %8084 = vmatprep.subr.bf16.mxu0 %v5317
    %8085 = vmatpush2.bf16.msra.mxu0 %v5316
    %8086 = vmatprep.subr.bf16.mxu0 %v5309
    %8087 = vmatpush2.bf16.msra.mxu0 %v5308
    %8088 = vmatprep.subr.bf16.mxu0 %v5301
    %8089 = vmatpush2.bf16.msra.mxu0 %v5300
    %8090 = vmatprep.subr.bf16.mxu0 %v5293
    %8091 = vmatpush2.bf16.msra.mxu0 %v5292
    %8092 = vmatprep.subr.bf16.mxu0 %v5285
    %8093 = vmatpush2.bf16.msra.mxu0 %v5284
    %8094 = vmatprep.subr.bf16.mxu0 %v5277
    %8095 = vmatpush2.bf16.msra.mxu0 %v5276
    %8096 = vmatprep.mubr.bf16.mxu0 %v801
    %8097 = vmatmul.mubr.bf16.gmra.mxu0 %v800
    %v8098 = vpop.f32.mrf.mxu0
    %v8099 = vadd.f32 %v8058, %v8098
    %v8100 = vpop.f32.mrf.mxu0
    %v8101 = vadd.f32 %v8060, %v8100
    %v8102 = vpop.f32.mrf.mxu0
    %v8103 = vpop.f32.mrf.mxu0
    %8104 = vdwg.mxu0
    %8105 = vmatprep.subr.bf16.mxu0 %v5397
    %8106 = vmatpush1.bf16.msra.mxu0 %v5396
    %8107 = vmatprep.subr.bf16.mxu0 %v5389
    %8108 = vmatpush1.bf16.msra.mxu0 %v5388
    %8109 = vmatprep.subr.bf16.mxu0 %v5381
    %8110 = vmatpush1.bf16.msra.mxu0 %v5380
    %8111 = vmatprep.subr.bf16.mxu0 %v5373
    %8112 = vmatpush1.bf16.msra.mxu0 %v5372
    %8113 = vmatprep.subr.bf16.mxu0 %v5365
    %8114 = vmatpush1.bf16.msra.mxu0 %v5364
    %8115 = vmatprep.subr.bf16.mxu0 %v5357
    %8116 = vmatpush1.bf16.msra.mxu0 %v5356
    %8117 = vmatprep.subr.bf16.mxu0 %v5349
    %8118 = vmatpush1.bf16.msra.mxu0 %v5348
    %8119 = vmatprep.subr.bf16.mxu0 %v5341
    %8120 = vmatpush1.bf16.msra.mxu0 %v5340
    %8121 = vmatprep.subr.bf16.mxu0 %v5461
    %8122 = vmatpush2.bf16.msra.mxu0 %v5460
    %8123 = vmatprep.subr.bf16.mxu0 %v5453
    %8124 = vmatpush2.bf16.msra.mxu0 %v5452
    %8125 = vmatprep.subr.bf16.mxu0 %v5445
    %8126 = vmatpush2.bf16.msra.mxu0 %v5444
    %8127 = vmatprep.subr.bf16.mxu0 %v5437
    %8128 = vmatpush2.bf16.msra.mxu0 %v5436
    %8129 = vmatprep.subr.bf16.mxu0 %v5429
    %8130 = vmatpush2.bf16.msra.mxu0 %v5428
    %8131 = vmatprep.subr.bf16.mxu0 %v5421
    %8132 = vmatpush2.bf16.msra.mxu0 %v5420
    %8133 = vmatprep.subr.bf16.mxu0 %v5413
    %8134 = vmatpush2.bf16.msra.mxu0 %v5412
    %8135 = vmatprep.subr.bf16.mxu0 %v5405
    %8136 = vmatpush2.bf16.msra.mxu0 %v5404
    %8137 = vmatprep.mubr.bf16.mxu0 %v803
    %8138 = vmatmul.mubr.bf16.gmra.mxu0 %v802
    %v8139 = vpop.f32.mrf.mxu0
    %v8140 = vadd.f32 %v8099, %v8139
    %v8141 = vpop.f32.mrf.mxu0
    %v8142 = vadd.f32 %v8101, %v8141
    %v8143 = vpop.f32.mrf.mxu0
    %v8144 = vpop.f32.mrf.mxu0
    %8145 = vdwg.mxu0
    %8146 = vmatprep.subr.bf16.mxu0 %v5525
    %8147 = vmatpush1.bf16.msra.mxu0 %v5524
    %8148 = vmatprep.subr.bf16.mxu0 %v5517
    %8149 = vmatpush1.bf16.msra.mxu0 %v5516
    %8150 = vmatprep.subr.bf16.mxu0 %v5509
    %8151 = vmatpush1.bf16.msra.mxu0 %v5508
    %8152 = vmatprep.subr.bf16.mxu0 %v5501
    %8153 = vmatpush1.bf16.msra.mxu0 %v5500
    %8154 = vmatprep.subr.bf16.mxu0 %v5493
    %8155 = vmatpush1.bf16.msra.mxu0 %v5492
    %8156 = vmatprep.subr.bf16.mxu0 %v5485
    %8157 = vmatpush1.bf16.msra.mxu0 %v5484
    %8158 = vmatprep.subr.bf16.mxu0 %v5477
    %8159 = vmatpush1.bf16.msra.mxu0 %v5476
    %8160 = vmatprep.subr.bf16.mxu0 %v5469
    %8161 = vmatpush1.bf16.msra.mxu0 %v5468
    %8162 = vmatprep.subr.bf16.mxu0 %v5589
    %8163 = vmatpush2.bf16.msra.mxu0 %v5588
    %8164 = vmatprep.subr.bf16.mxu0 %v5581
    %8165 = vmatpush2.bf16.msra.mxu0 %v5580
    %8166 = vmatprep.subr.bf16.mxu0 %v5573
    %8167 = vmatpush2.bf16.msra.mxu0 %v5572
    %8168 = vmatprep.subr.bf16.mxu0 %v5565
    %8169 = vmatpush2.bf16.msra.mxu0 %v5564
    %8170 = vmatprep.subr.bf16.mxu0 %v5557
    %8171 = vmatpush2.bf16.msra.mxu0 %v5556
    %8172 = vmatprep.subr.bf16.mxu0 %v5549
    %8173 = vmatpush2.bf16.msra.mxu0 %v5548
    %8174 = vmatprep.subr.bf16.mxu0 %v5541
    %8175 = vmatpush2.bf16.msra.mxu0 %v5540
    %8176 = vmatprep.subr.bf16.mxu0 %v5533
    %8177 = vmatpush2.bf16.msra.mxu0 %v5532
    %8178 = vmatprep.mubr.bf16.mxu0 %v805
    %8179 = vmatmul.mubr.bf16.gmra.mxu0 %v804
    %v8180 = vpop.f32.mrf.mxu0
    %v8181 = vadd.f32 %v8140, %v8180
    %v8182 = vpop.f32.mrf.mxu0
    %v8183 = vadd.f32 %v8142, %v8182
    %v8184 = vpop.f32.mrf.mxu0
    %v8185 = vpop.f32.mrf.mxu0
    %8186 = vdwg.mxu0
    %8187 = vmatprep.subr.bf16.mxu0 %v5653
    %8188 = vmatpush1.bf16.msra.mxu0 %v5652
    %8189 = vmatprep.subr.bf16.mxu0 %v5645
    %8190 = vmatpush1.bf16.msra.mxu0 %v5644
    %8191 = vmatprep.subr.bf16.mxu0 %v5637
    %8192 = vmatpush1.bf16.msra.mxu0 %v5636
    %8193 = vmatprep.subr.bf16.mxu0 %v5629
    %8194 = vmatpush1.bf16.msra.mxu0 %v5628
    %8195 = vmatprep.subr.bf16.mxu0 %v5621
    %8196 = vmatpush1.bf16.msra.mxu0 %v5620
    %8197 = vmatprep.subr.bf16.mxu0 %v5613
    %8198 = vmatpush1.bf16.msra.mxu0 %v5612
    %8199 = vmatprep.subr.bf16.mxu0 %v5605
    %8200 = vmatpush1.bf16.msra.mxu0 %v5604
    %8201 = vmatprep.subr.bf16.mxu0 %v5597
    %8202 = vmatpush1.bf16.msra.mxu0 %v5596
    %8203 = vmatprep.subr.bf16.mxu0 %v5717
    %8204 = vmatpush2.bf16.msra.mxu0 %v5716
    %8205 = vmatprep.subr.bf16.mxu0 %v5709
    %8206 = vmatpush2.bf16.msra.mxu0 %v5708
    %8207 = vmatprep.subr.bf16.mxu0 %v5701
    %8208 = vmatpush2.bf16.msra.mxu0 %v5700
    %8209 = vmatprep.subr.bf16.mxu0 %v5693
    %8210 = vmatpush2.bf16.msra.mxu0 %v5692
    %8211 = vmatprep.subr.bf16.mxu0 %v5685
    %8212 = vmatpush2.bf16.msra.mxu0 %v5684
    %8213 = vmatprep.subr.bf16.mxu0 %v5677
    %8214 = vmatpush2.bf16.msra.mxu0 %v5676
    %8215 = vmatprep.subr.bf16.mxu0 %v5669
    %8216 = vmatpush2.bf16.msra.mxu0 %v5668
    %8217 = vmatprep.subr.bf16.mxu0 %v5661
    %8218 = vmatpush2.bf16.msra.mxu0 %v5660
    %8219 = vmatprep.mubr.bf16.mxu0 %v807
    %8220 = vmatmul.mubr.bf16.gmra.mxu0 %v806
    %v8221 = vpop.f32.mrf.mxu0
    %v8222 = vadd.f32 %v8181, %v8221
    %v8223 = vpop.f32.mrf.mxu0
    %v8224 = vadd.f32 %v8183, %v8223
    %v8225 = vpop.f32.mrf.mxu0
    %v8226 = vpop.f32.mrf.mxu0
    %8227 = vdwg.mxu0
    %8228 = vmatprep.subr.bf16.mxu0 %v5781
    %8229 = vmatpush1.bf16.msra.mxu0 %v5780
    %8230 = vmatprep.subr.bf16.mxu0 %v5773
    %8231 = vmatpush1.bf16.msra.mxu0 %v5772
    %8232 = vmatprep.subr.bf16.mxu0 %v5765
    %8233 = vmatpush1.bf16.msra.mxu0 %v5764
    %8234 = vmatprep.subr.bf16.mxu0 %v5757
    %8235 = vmatpush1.bf16.msra.mxu0 %v5756
    %8236 = vmatprep.subr.bf16.mxu0 %v5749
    %8237 = vmatpush1.bf16.msra.mxu0 %v5748
    %8238 = vmatprep.subr.bf16.mxu0 %v5741
    %8239 = vmatpush1.bf16.msra.mxu0 %v5740
    %8240 = vmatprep.subr.bf16.mxu0 %v5733
    %8241 = vmatpush1.bf16.msra.mxu0 %v5732
    %8242 = vmatprep.subr.bf16.mxu0 %v5725
    %8243 = vmatpush1.bf16.msra.mxu0 %v5724
    %8244 = vmatprep.subr.bf16.mxu0 %v5845
    %8245 = vmatpush2.bf16.msra.mxu0 %v5844
    %8246 = vmatprep.subr.bf16.mxu0 %v5837
    %8247 = vmatpush2.bf16.msra.mxu0 %v5836
    %8248 = vmatprep.subr.bf16.mxu0 %v5829
    %8249 = vmatpush2.bf16.msra.mxu0 %v5828
    %8250 = vmatprep.subr.bf16.mxu0 %v5821
    %8251 = vmatpush2.bf16.msra.mxu0 %v5820
    %8252 = vmatprep.subr.bf16.mxu0 %v5813
    %8253 = vmatpush2.bf16.msra.mxu0 %v5812
    %8254 = vmatprep.subr.bf16.mxu0 %v5805
    %8255 = vmatpush2.bf16.msra.mxu0 %v5804
    %8256 = vmatprep.subr.bf16.mxu0 %v5797
    %8257 = vmatpush2.bf16.msra.mxu0 %v5796
    %8258 = vmatprep.subr.bf16.mxu0 %v5789
    %8259 = vmatpush2.bf16.msra.mxu0 %v5788
    %8260 = vmatprep.mubr.bf16.mxu0 %v809
    %8261 = vmatmul.mubr.bf16.gmra.mxu0 %v808
    %v8262 = vpop.f32.mrf.mxu0
    %v8263 = vadd.f32 %v8222, %v8262
    %v8264 = vpop.f32.mrf.mxu0
    %v8265 = vadd.f32 %v8224, %v8264
    %v8266 = vpop.f32.mrf.mxu0
    %v8267 = vpop.f32.mrf.mxu0
    %8268 = vdwg.mxu0
    %8269 = vmatprep.subr.bf16.mxu0 %v5909
    %8270 = vmatpush1.bf16.msra.mxu0 %v5908
    %8271 = vmatprep.subr.bf16.mxu0 %v5901
    %8272 = vmatpush1.bf16.msra.mxu0 %v5900
    %8273 = vmatprep.subr.bf16.mxu0 %v5893
    %8274 = vmatpush1.bf16.msra.mxu0 %v5892
    %8275 = vmatprep.subr.bf16.mxu0 %v5885
    %8276 = vmatpush1.bf16.msra.mxu0 %v5884
    %8277 = vmatprep.subr.bf16.mxu0 %v5877
    %8278 = vmatpush1.bf16.msra.mxu0 %v5876
    %8279 = vmatprep.subr.bf16.mxu0 %v5869
    %8280 = vmatpush1.bf16.msra.mxu0 %v5868
    %8281 = vmatprep.subr.bf16.mxu0 %v5861
    %8282 = vmatpush1.bf16.msra.mxu0 %v5860
    %8283 = vmatprep.subr.bf16.mxu0 %v5853
    %8284 = vmatpush1.bf16.msra.mxu0 %v5852
    %8285 = vmatprep.subr.bf16.mxu0 %v5973
    %8286 = vmatpush2.bf16.msra.mxu0 %v5972
    %8287 = vmatprep.subr.bf16.mxu0 %v5965
    %8288 = vmatpush2.bf16.msra.mxu0 %v5964
    %8289 = vmatprep.subr.bf16.mxu0 %v5957
    %8290 = vmatpush2.bf16.msra.mxu0 %v5956
    %8291 = vmatprep.subr.bf16.mxu0 %v5949
    %8292 = vmatpush2.bf16.msra.mxu0 %v5948
    %8293 = vmatprep.subr.bf16.mxu0 %v5941
    %8294 = vmatpush2.bf16.msra.mxu0 %v5940
    %8295 = vmatprep.subr.bf16.mxu0 %v5933
    %8296 = vmatpush2.bf16.msra.mxu0 %v5932
    %8297 = vmatprep.subr.bf16.mxu0 %v5925
    %8298 = vmatpush2.bf16.msra.mxu0 %v5924
    %8299 = vmatprep.subr.bf16.mxu0 %v5917
    %8300 = vmatpush2.bf16.msra.mxu0 %v5916
    %8301 = vmatprep.mubr.bf16.mxu0 %v811
    %8302 = vmatmul.mubr.bf16.gmra.mxu0 %v810
    %v8303 = vpop.f32.mrf.mxu0
    %v8304 = vadd.f32 %v8263, %v8303
    %v8305 = vpop.f32.mrf.mxu0
    %v8306 = vadd.f32 %v8265, %v8305
    %v8307 = vpop.f32.mrf.mxu0
    %v8308 = vpop.f32.mrf.mxu0
    %8309 = vdwg.mxu0
    %v8310 = vmax.f32 %v7320, 0.0
    %v8311 = vmax.f32 %v7322, 0.0
    %v8312 = vmax.f32 %v7648, 0.0
    %v8313 = vmax.f32 %v7650, 0.0
    %v8314 = vmax.f32 %v7976, 0.0
    %v8315 = vmax.f32 %v7978, 0.0
    %v8316 = vmax.f32 %v8304, 0.0
    %v8317 = vmax.f32 %v8306, 0.0
    %v8318 = vpack.c.bf16 %v8310, %v8310
    %v8319 = vpack.c.bf16 %v8311, %v8311
    %v8320 = vpack.c.bf16 %v8312, %v8312
    %v8321 = vpack.c.bf16 %v8313, %v8313
    %v8322 = vpack.c.bf16 %v8314, %v8314
    %v8323 = vpack.c.bf16 %v8315, %v8315
    %v8324 = vpack.c.bf16 %v8316, %v8316
    %v8325 = vpack.c.bf16 %v8317, %v8317
    %v8326 = vld [vmem:[#allocation10] sm:$0xff]
    %v8327 = vld [vmem:[#allocation10 + $0x8] sm:$0xff]
    %v8328 = vld [vmem:[#allocation10 + $0x10] sm:$0xff]
    %v8329 = vld [vmem:[#allocation10 + $0x18] sm:$0xff]
    %v8330 = vld [vmem:[#allocation10 + $0x20] sm:$0xff]
    %v8331 = vld [vmem:[#allocation10 + $0x28] sm:$0xff]
    %v8332 = vld [vmem:[#allocation10 + $0x30] sm:$0xff]
    %v8333 = vld [vmem:[#allocation10 + $0x38] sm:$0xff]
    %v8334 = vld [vmem:[#allocation10 + $0x40] sm:$0xff]
    %v8335 = vld [vmem:[#allocation10 + $0x48] sm:$0xff]
    %v8336 = vld [vmem:[#allocation10 + $0x50] sm:$0xff]
    %v8337 = vld [vmem:[#allocation10 + $0x58] sm:$0xff]
    %v8338 = vld [vmem:[#allocation10 + $0x60] sm:$0xff]
    %v8339 = vld [vmem:[#allocation10 + $0x68] sm:$0xff]
    %v8340 = vld [vmem:[#allocation10 + $0x70] sm:$0xff]
    %v8341 = vld [vmem:[#allocation10 + $0x78] sm:$0xff]
    %v8342 = vld [vmem:[#allocation10 + $0x80] sm:$0xff]
    %v8343 = vld [vmem:[#allocation10 + $0x88] sm:$0xff]
    %v8344 = vld [vmem:[#allocation10 + $0x90] sm:$0xff]
    %v8345 = vld [vmem:[#allocation10 + $0x98] sm:$0xff]
    %v8346 = vld [vmem:[#allocation10 + $0xa0] sm:$0xff]
    %v8347 = vld [vmem:[#allocation10 + $0xa8] sm:$0xff]
    %v8348 = vld [vmem:[#allocation10 + $0xb0] sm:$0xff]
    %v8349 = vld [vmem:[#allocation10 + $0xb8] sm:$0xff]
    %v8350 = vld [vmem:[#allocation10 + $0xc0] sm:$0xff]
    %v8351 = vld [vmem:[#allocation10 + $0xc8] sm:$0xff]
    %v8352 = vld [vmem:[#allocation10 + $0xd0] sm:$0xff]
    %v8353 = vld [vmem:[#allocation10 + $0xd8] sm:$0xff]
    %v8354 = vld [vmem:[#allocation10 + $0xe0] sm:$0xff]
    %v8355 = vld [vmem:[#allocation10 + $0xe8] sm:$0xff]
    %v8356 = vld [vmem:[#allocation10 + $0xf0] sm:$0xff]
    %v8357 = vld [vmem:[#allocation10 + $0xf8] sm:$0xff]
    %v8358 = vld [vmem:[#allocation10 + $0x100] sm:$0xff]
    %v8359 = vld [vmem:[#allocation10 + $0x108] sm:$0xff]
    %v8360 = vld [vmem:[#allocation10 + $0x110] sm:$0xff]
    %v8361 = vld [vmem:[#allocation10 + $0x118] sm:$0xff]
    %v8362 = vld [vmem:[#allocation10 + $0x120] sm:$0xff]
    %v8363 = vld [vmem:[#allocation10 + $0x128] sm:$0xff]
    %v8364 = vld [vmem:[#allocation10 + $0x130] sm:$0xff]
    %v8365 = vld [vmem:[#allocation10 + $0x138] sm:$0xff]
    %v8366 = vld [vmem:[#allocation10 + $0x140] sm:$0xff]
    %v8367 = vld [vmem:[#allocation10 + $0x148] sm:$0xff]
    %v8368 = vld [vmem:[#allocation10 + $0x150] sm:$0xff]
    %v8369 = vld [vmem:[#allocation10 + $0x158] sm:$0xff]
    %v8370 = vld [vmem:[#allocation10 + $0x160] sm:$0xff]
    %v8371 = vld [vmem:[#allocation10 + $0x168] sm:$0xff]
    %v8372 = vld [vmem:[#allocation10 + $0x170] sm:$0xff]
    %v8373 = vld [vmem:[#allocation10 + $0x178] sm:$0xff]
    %v8374 = vld [vmem:[#allocation10 + $0x180] sm:$0xff]
    %v8375 = vld [vmem:[#allocation10 + $0x188] sm:$0xff]
    %v8376 = vld [vmem:[#allocation10 + $0x190] sm:$0xff]
    %v8377 = vld [vmem:[#allocation10 + $0x198] sm:$0xff]
    %v8378 = vld [vmem:[#allocation10 + $0x1a0] sm:$0xff]
    %v8379 = vld [vmem:[#allocation10 + $0x1a8] sm:$0xff]
    %v8380 = vld [vmem:[#allocation10 + $0x1b0] sm:$0xff]
    %v8381 = vld [vmem:[#allocation10 + $0x1b8] sm:$0xff]
    %v8382 = vld [vmem:[#allocation10 + $0x1c0] sm:$0xff]
    %v8383 = vld [vmem:[#allocation10 + $0x1c8] sm:$0xff]
    %v8384 = vld [vmem:[#allocation10 + $0x1d0] sm:$0xff]
    %v8385 = vld [vmem:[#allocation10 + $0x1d8] sm:$0xff]
    %v8386 = vld [vmem:[#allocation10 + $0x1e0] sm:$0xff]
    %v8387 = vld [vmem:[#allocation10 + $0x1e8] sm:$0xff]
    %v8388 = vld [vmem:[#allocation10 + $0x1f0] sm:$0xff]
    %v8389 = vld [vmem:[#allocation10 + $0x1f8] sm:$0xff]
    %v8390 = vld [vmem:[#allocation10 + $0x200] sm:$0xff]
    %v8391 = vld [vmem:[#allocation10 + $0x208] sm:$0xff]
    %v8392 = vld [vmem:[#allocation10 + $0x210] sm:$0xff]
    %v8393 = vld [vmem:[#allocation10 + $0x218] sm:$0xff]
    %v8394 = vld [vmem:[#allocation10 + $0x220] sm:$0xff]
    %v8395 = vld [vmem:[#allocation10 + $0x228] sm:$0xff]
    %v8396 = vld [vmem:[#allocation10 + $0x230] sm:$0xff]
    %v8397 = vld [vmem:[#allocation10 + $0x238] sm:$0xff]
    %v8398 = vld [vmem:[#allocation10 + $0x240] sm:$0xff]
    %v8399 = vld [vmem:[#allocation10 + $0x248] sm:$0xff]
    %v8400 = vld [vmem:[#allocation10 + $0x250] sm:$0xff]
    %v8401 = vld [vmem:[#allocation10 + $0x258] sm:$0xff]
    %v8402 = vld [vmem:[#allocation10 + $0x260] sm:$0xff]
    %v8403 = vld [vmem:[#allocation10 + $0x268] sm:$0xff]
    %v8404 = vld [vmem:[#allocation10 + $0x270] sm:$0xff]
    %v8405 = vld [vmem:[#allocation10 + $0x278] sm:$0xff]
    %v8406 = vld [vmem:[#allocation10 + $0x280] sm:$0xff]
    %v8407 = vld [vmem:[#allocation10 + $0x288] sm:$0xff]
    %v8408 = vld [vmem:[#allocation10 + $0x290] sm:$0xff]
    %v8409 = vld [vmem:[#allocation10 + $0x298] sm:$0xff]
    %v8410 = vld [vmem:[#allocation10 + $0x2a0] sm:$0xff]
    %v8411 = vld [vmem:[#allocation10 + $0x2a8] sm:$0xff]
    %v8412 = vld [vmem:[#allocation10 + $0x2b0] sm:$0xff]
    %v8413 = vld [vmem:[#allocation10 + $0x2b8] sm:$0xff]
    %v8414 = vld [vmem:[#allocation10 + $0x2c0] sm:$0xff]
    %v8415 = vld [vmem:[#allocation10 + $0x2c8] sm:$0xff]
    %v8416 = vld [vmem:[#allocation10 + $0x2d0] sm:$0xff]
    %v8417 = vld [vmem:[#allocation10 + $0x2d8] sm:$0xff]
    %v8418 = vld [vmem:[#allocation10 + $0x2e0] sm:$0xff]
    %v8419 = vld [vmem:[#allocation10 + $0x2e8] sm:$0xff]
    %v8420 = vld [vmem:[#allocation10 + $0x2f0] sm:$0xff]
    %v8421 = vld [vmem:[#allocation10 + $0x2f8] sm:$0xff]
    %v8422 = vld [vmem:[#allocation10 + $0x300] sm:$0xff]
    %v8423 = vld [vmem:[#allocation10 + $0x308] sm:$0xff]
    %v8424 = vld [vmem:[#allocation10 + $0x310] sm:$0xff]
    %v8425 = vld [vmem:[#allocation10 + $0x318] sm:$0xff]
    %v8426 = vld [vmem:[#allocation10 + $0x320] sm:$0xff]
    %v8427 = vld [vmem:[#allocation10 + $0x328] sm:$0xff]
    %v8428 = vld [vmem:[#allocation10 + $0x330] sm:$0xff]
    %v8429 = vld [vmem:[#allocation10 + $0x338] sm:$0xff]
    %v8430 = vld [vmem:[#allocation10 + $0x340] sm:$0xff]
    %v8431 = vld [vmem:[#allocation10 + $0x348] sm:$0xff]
    %v8432 = vld [vmem:[#allocation10 + $0x350] sm:$0xff]
    %v8433 = vld [vmem:[#allocation10 + $0x358] sm:$0xff]
    %v8434 = vld [vmem:[#allocation10 + $0x360] sm:$0xff]
    %v8435 = vld [vmem:[#allocation10 + $0x368] sm:$0xff]
    %v8436 = vld [vmem:[#allocation10 + $0x370] sm:$0xff]
    %v8437 = vld [vmem:[#allocation10 + $0x378] sm:$0xff]
    %v8438 = vld [vmem:[#allocation10 + $0x380] sm:$0xff]
    %v8439 = vld [vmem:[#allocation10 + $0x388] sm:$0xff]
    %v8440 = vld [vmem:[#allocation10 + $0x390] sm:$0xff]
    %v8441 = vld [vmem:[#allocation10 + $0x398] sm:$0xff]
    %v8442 = vld [vmem:[#allocation10 + $0x3a0] sm:$0xff]
    %v8443 = vld [vmem:[#allocation10 + $0x3a8] sm:$0xff]
    %v8444 = vld [vmem:[#allocation10 + $0x3b0] sm:$0xff]
    %v8445 = vld [vmem:[#allocation10 + $0x3b8] sm:$0xff]
    %v8446 = vld [vmem:[#allocation10 + $0x3c0] sm:$0xff]
    %v8447 = vld [vmem:[#allocation10 + $0x3c8] sm:$0xff]
    %v8448 = vld [vmem:[#allocation10 + $0x3d0] sm:$0xff]
    %v8449 = vld [vmem:[#allocation10 + $0x3d8] sm:$0xff]
    %v8450 = vld [vmem:[#allocation10 + $0x3e0] sm:$0xff]
    %v8451 = vld [vmem:[#allocation10 + $0x3e8] sm:$0xff]
    %v8452 = vld [vmem:[#allocation10 + $0x3f0] sm:$0xff]
    %v8453 = vld [vmem:[#allocation10 + $0x3f8] sm:$0xff]
    %v8454 = vld [vmem:[#allocation11] sm:$0x3]
    %v8456 = vlaneseq
    %v8457 = vshrl.u32 %v8456, 7
    %v8458 = vsub.s32 0, %v8457
    %v8459 = vrot.slane %v8454, %v8458
    %v8460 = vlaneseq
    %v8461 = vshrl.u32 %v8460, 7
    %v8462 = vsub.s32 1, %v8461
    %v8463 = vrot.slane %v8454, %v8462
    %v8594 = vunpack.c.l.b16 %v8326
    %v8595 = vunpack.c.h.b16 %v8326
    %v8596 = vunpack.c.l.b16 %v8327
    %v8597 = vunpack.c.h.b16 %v8327
    %v8598 = vunpack.c.l.b16 %v8328
    %v8599 = vunpack.c.h.b16 %v8328
    %v8600 = vunpack.c.l.b16 %v8329
    %v8601 = vunpack.c.h.b16 %v8329
    %v8602 = vunpack.c.l.b16 %v8330
    %v8603 = vunpack.c.h.b16 %v8330
    %v8604 = vunpack.c.l.b16 %v8331
    %v8605 = vunpack.c.h.b16 %v8331
    %v8606 = vunpack.c.l.b16 %v8332
    %v8607 = vunpack.c.h.b16 %v8332
    %v8608 = vunpack.c.l.b16 %v8333
    %v8609 = vunpack.c.h.b16 %v8333
    %v8610 = vunpack.c.l.b16 %v8334
    %v8611 = vunpack.c.h.b16 %v8334
    %v8612 = vunpack.c.l.b16 %v8335
    %v8613 = vunpack.c.h.b16 %v8335
    %v8614 = vunpack.c.l.b16 %v8336
    %v8615 = vunpack.c.h.b16 %v8336
    %v8616 = vunpack.c.l.b16 %v8337
    %v8617 = vunpack.c.h.b16 %v8337
    %v8618 = vunpack.c.l.b16 %v8338
    %v8619 = vunpack.c.h.b16 %v8338
    %v8620 = vunpack.c.l.b16 %v8339
    %v8621 = vunpack.c.h.b16 %v8339
    %v8622 = vunpack.c.l.b16 %v8340
    %v8623 = vunpack.c.h.b16 %v8340
    %v8624 = vunpack.c.l.b16 %v8341
    %v8625 = vunpack.c.h.b16 %v8341
    %v8626 = vunpack.c.l.b16 %v8342
    %v8627 = vunpack.c.h.b16 %v8342
    %v8628 = vunpack.c.l.b16 %v8343
    %v8629 = vunpack.c.h.b16 %v8343
    %v8630 = vunpack.c.l.b16 %v8344
    %v8631 = vunpack.c.h.b16 %v8344
    %v8632 = vunpack.c.l.b16 %v8345
    %v8633 = vunpack.c.h.b16 %v8345
    %v8634 = vunpack.c.l.b16 %v8346
    %v8635 = vunpack.c.h.b16 %v8346
    %v8636 = vunpack.c.l.b16 %v8347
    %v8637 = vunpack.c.h.b16 %v8347
    %v8638 = vunpack.c.l.b16 %v8348
    %v8639 = vunpack.c.h.b16 %v8348
    %v8640 = vunpack.c.l.b16 %v8349
    %v8641 = vunpack.c.h.b16 %v8349
    %v8642 = vunpack.c.l.b16 %v8350
    %v8643 = vunpack.c.h.b16 %v8350
    %v8644 = vunpack.c.l.b16 %v8351
    %v8645 = vunpack.c.h.b16 %v8351
    %v8646 = vunpack.c.l.b16 %v8352
    %v8647 = vunpack.c.h.b16 %v8352
    %v8648 = vunpack.c.l.b16 %v8353
    %v8649 = vunpack.c.h.b16 %v8353
    %v8650 = vunpack.c.l.b16 %v8354
    %v8651 = vunpack.c.h.b16 %v8354
    %v8652 = vunpack.c.l.b16 %v8355
    %v8653 = vunpack.c.h.b16 %v8355
    %v8654 = vunpack.c.l.b16 %v8356
    %v8655 = vunpack.c.h.b16 %v8356
    %v8656 = vunpack.c.l.b16 %v8357
    %v8657 = vunpack.c.h.b16 %v8357
    %v8658 = vunpack.c.l.b16 %v8358
    %v8659 = vunpack.c.h.b16 %v8358
    %v8660 = vunpack.c.l.b16 %v8359
    %v8661 = vunpack.c.h.b16 %v8359
    %v8662 = vunpack.c.l.b16 %v8360
    %v8663 = vunpack.c.h.b16 %v8360
    %v8664 = vunpack.c.l.b16 %v8361
    %v8665 = vunpack.c.h.b16 %v8361
    %v8666 = vunpack.c.l.b16 %v8362
    %v8667 = vunpack.c.h.b16 %v8362
    %v8668 = vunpack.c.l.b16 %v8363
    %v8669 = vunpack.c.h.b16 %v8363
    %v8670 = vunpack.c.l.b16 %v8364
    %v8671 = vunpack.c.h.b16 %v8364
    %v8672 = vunpack.c.l.b16 %v8365
    %v8673 = vunpack.c.h.b16 %v8365
    %v8674 = vunpack.c.l.b16 %v8366
    %v8675 = vunpack.c.h.b16 %v8366
    %v8676 = vunpack.c.l.b16 %v8367
    %v8677 = vunpack.c.h.b16 %v8367
    %v8678 = vunpack.c.l.b16 %v8368
    %v8679 = vunpack.c.h.b16 %v8368
    %v8680 = vunpack.c.l.b16 %v8369
    %v8681 = vunpack.c.h.b16 %v8369
    %v8682 = vunpack.c.l.b16 %v8370
    %v8683 = vunpack.c.h.b16 %v8370
    %v8684 = vunpack.c.l.b16 %v8371
    %v8685 = vunpack.c.h.b16 %v8371
    %v8686 = vunpack.c.l.b16 %v8372
    %v8687 = vunpack.c.h.b16 %v8372
    %v8688 = vunpack.c.l.b16 %v8373
    %v8689 = vunpack.c.h.b16 %v8373
    %v8690 = vunpack.c.l.b16 %v8374
    %v8691 = vunpack.c.h.b16 %v8374
    %v8692 = vunpack.c.l.b16 %v8375
    %v8693 = vunpack.c.h.b16 %v8375
    %v8694 = vunpack.c.l.b16 %v8376
    %v8695 = vunpack.c.h.b16 %v8376
    %v8696 = vunpack.c.l.b16 %v8377
    %v8697 = vunpack.c.h.b16 %v8377
    %v8698 = vunpack.c.l.b16 %v8378
    %v8699 = vunpack.c.h.b16 %v8378
    %v8700 = vunpack.c.l.b16 %v8379
    %v8701 = vunpack.c.h.b16 %v8379
    %v8702 = vunpack.c.l.b16 %v8380
    %v8703 = vunpack.c.h.b16 %v8380
    %v8704 = vunpack.c.l.b16 %v8381
    %v8705 = vunpack.c.h.b16 %v8381
    %v8706 = vunpack.c.l.b16 %v8382
    %v8707 = vunpack.c.h.b16 %v8382
    %v8708 = vunpack.c.l.b16 %v8383
    %v8709 = vunpack.c.h.b16 %v8383
    %v8710 = vunpack.c.l.b16 %v8384
    %v8711 = vunpack.c.h.b16 %v8384
    %v8712 = vunpack.c.l.b16 %v8385
    %v8713 = vunpack.c.h.b16 %v8385
    %v8714 = vunpack.c.l.b16 %v8386
    %v8715 = vunpack.c.h.b16 %v8386
    %v8716 = vunpack.c.l.b16 %v8387
    %v8717 = vunpack.c.h.b16 %v8387
    %v8718 = vunpack.c.l.b16 %v8388
    %v8719 = vunpack.c.h.b16 %v8388
    %v8720 = vunpack.c.l.b16 %v8389
    %v8721 = vunpack.c.h.b16 %v8389
    %v8722 = vunpack.c.l.b16 %v8390
    %v8723 = vunpack.c.h.b16 %v8390
    %v8724 = vunpack.c.l.b16 %v8391
    %v8725 = vunpack.c.h.b16 %v8391
    %v8726 = vunpack.c.l.b16 %v8392
    %v8727 = vunpack.c.h.b16 %v8392
    %v8728 = vunpack.c.l.b16 %v8393
    %v8729 = vunpack.c.h.b16 %v8393
    %v8730 = vunpack.c.l.b16 %v8394
    %v8731 = vunpack.c.h.b16 %v8394
    %v8732 = vunpack.c.l.b16 %v8395
    %v8733 = vunpack.c.h.b16 %v8395
    %v8734 = vunpack.c.l.b16 %v8396
    %v8735 = vunpack.c.h.b16 %v8396
    %v8736 = vunpack.c.l.b16 %v8397
    %v8737 = vunpack.c.h.b16 %v8397
    %v8738 = vunpack.c.l.b16 %v8398
    %v8739 = vunpack.c.h.b16 %v8398
    %v8740 = vunpack.c.l.b16 %v8399
    %v8741 = vunpack.c.h.b16 %v8399
    %v8742 = vunpack.c.l.b16 %v8400
    %v8743 = vunpack.c.h.b16 %v8400
    %v8744 = vunpack.c.l.b16 %v8401
    %v8745 = vunpack.c.h.b16 %v8401
    %v8746 = vunpack.c.l.b16 %v8402
    %v8747 = vunpack.c.h.b16 %v8402
    %v8748 = vunpack.c.l.b16 %v8403
    %v8749 = vunpack.c.h.b16 %v8403
    %v8750 = vunpack.c.l.b16 %v8404
    %v8751 = vunpack.c.h.b16 %v8404
    %v8752 = vunpack.c.l.b16 %v8405
    %v8753 = vunpack.c.h.b16 %v8405
    %v8754 = vunpack.c.l.b16 %v8406
    %v8755 = vunpack.c.h.b16 %v8406
    %v8756 = vunpack.c.l.b16 %v8407
    %v8757 = vunpack.c.h.b16 %v8407
    %v8758 = vunpack.c.l.b16 %v8408
    %v8759 = vunpack.c.h.b16 %v8408
    %v8760 = vunpack.c.l.b16 %v8409
    %v8761 = vunpack.c.h.b16 %v8409
    %v8762 = vunpack.c.l.b16 %v8410
    %v8763 = vunpack.c.h.b16 %v8410
    %v8764 = vunpack.c.l.b16 %v8411
    %v8765 = vunpack.c.h.b16 %v8411
    %v8766 = vunpack.c.l.b16 %v8412
    %v8767 = vunpack.c.h.b16 %v8412
    %v8768 = vunpack.c.l.b16 %v8413
    %v8769 = vunpack.c.h.b16 %v8413
    %v8770 = vunpack.c.l.b16 %v8414
    %v8771 = vunpack.c.h.b16 %v8414
    %v8772 = vunpack.c.l.b16 %v8415
    %v8773 = vunpack.c.h.b16 %v8415
    %v8774 = vunpack.c.l.b16 %v8416
    %v8775 = vunpack.c.h.b16 %v8416
    %v8776 = vunpack.c.l.b16 %v8417
    %v8777 = vunpack.c.h.b16 %v8417
    %v8778 = vunpack.c.l.b16 %v8418
    %v8779 = vunpack.c.h.b16 %v8418
    %v8780 = vunpack.c.l.b16 %v8419
    %v8781 = vunpack.c.h.b16 %v8419
    %v8782 = vunpack.c.l.b16 %v8420
    %v8783 = vunpack.c.h.b16 %v8420
    %v8784 = vunpack.c.l.b16 %v8421
    %v8785 = vunpack.c.h.b16 %v8421
    %v8786 = vunpack.c.l.b16 %v8422
    %v8787 = vunpack.c.h.b16 %v8422
    %v8788 = vunpack.c.l.b16 %v8423
    %v8789 = vunpack.c.h.b16 %v8423
    %v8790 = vunpack.c.l.b16 %v8424
    %v8791 = vunpack.c.h.b16 %v8424
    %v8792 = vunpack.c.l.b16 %v8425
    %v8793 = vunpack.c.h.b16 %v8425
    %v8794 = vunpack.c.l.b16 %v8426
    %v8795 = vunpack.c.h.b16 %v8426
    %v8796 = vunpack.c.l.b16 %v8427
    %v8797 = vunpack.c.h.b16 %v8427
    %v8798 = vunpack.c.l.b16 %v8428
    %v8799 = vunpack.c.h.b16 %v8428
    %v8800 = vunpack.c.l.b16 %v8429
    %v8801 = vunpack.c.h.b16 %v8429
    %v8802 = vunpack.c.l.b16 %v8430
    %v8803 = vunpack.c.h.b16 %v8430
    %v8804 = vunpack.c.l.b16 %v8431
    %v8805 = vunpack.c.h.b16 %v8431
    %v8806 = vunpack.c.l.b16 %v8432
    %v8807 = vunpack.c.h.b16 %v8432
    %v8808 = vunpack.c.l.b16 %v8433
    %v8809 = vunpack.c.h.b16 %v8433
    %v8810 = vunpack.c.l.b16 %v8434
    %v8811 = vunpack.c.h.b16 %v8434
    %v8812 = vunpack.c.l.b16 %v8435
    %v8813 = vunpack.c.h.b16 %v8435
    %v8814 = vunpack.c.l.b16 %v8436
    %v8815 = vunpack.c.h.b16 %v8436
    %v8816 = vunpack.c.l.b16 %v8437
    %v8817 = vunpack.c.h.b16 %v8437
    %v8818 = vunpack.c.l.b16 %v8438
    %v8819 = vunpack.c.h.b16 %v8438
    %v8820 = vunpack.c.l.b16 %v8439
    %v8821 = vunpack.c.h.b16 %v8439
    %v8822 = vunpack.c.l.b16 %v8440
    %v8823 = vunpack.c.h.b16 %v8440
    %v8824 = vunpack.c.l.b16 %v8441
    %v8825 = vunpack.c.h.b16 %v8441
    %v8826 = vunpack.c.l.b16 %v8442
    %v8827 = vunpack.c.h.b16 %v8442
    %v8828 = vunpack.c.l.b16 %v8443
    %v8829 = vunpack.c.h.b16 %v8443
    %v8830 = vunpack.c.l.b16 %v8444
    %v8831 = vunpack.c.h.b16 %v8444
    %v8832 = vunpack.c.l.b16 %v8445
    %v8833 = vunpack.c.h.b16 %v8445
    %v8834 = vunpack.c.l.b16 %v8446
    %v8835 = vunpack.c.h.b16 %v8446
    %v8836 = vunpack.c.l.b16 %v8447
    %v8837 = vunpack.c.h.b16 %v8447
    %v8838 = vunpack.c.l.b16 %v8448
    %v8839 = vunpack.c.h.b16 %v8448
    %v8840 = vunpack.c.l.b16 %v8449
    %v8841 = vunpack.c.h.b16 %v8449
    %v8842 = vunpack.c.l.b16 %v8450
    %v8843 = vunpack.c.h.b16 %v8450
    %v8844 = vunpack.c.l.b16 %v8451
    %v8845 = vunpack.c.h.b16 %v8451
    %v8846 = vunpack.c.l.b16 %v8452
    %v8847 = vunpack.c.h.b16 %v8452
    %v8848 = vunpack.c.l.b16 %v8453
    %v8849 = vunpack.c.h.b16 %v8453
    %v8850 = vpack.c.b16 %v8596, %v8594
    %v8851 = vpack.c.b16 %v8597, %v8595
    %v8852 = vpack.c.b16 %v8600, %v8598
    %v8853 = vpack.c.b16 %v8601, %v8599
    %v8854 = vpack.c.b16 %v8604, %v8602
    %v8855 = vpack.c.b16 %v8605, %v8603
    %v8856 = vpack.c.b16 %v8608, %v8606
    %v8857 = vpack.c.b16 %v8609, %v8607
    %v8858 = vpack.c.b16 %v8612, %v8610
    %v8859 = vpack.c.b16 %v8613, %v8611
    %v8860 = vpack.c.b16 %v8616, %v8614
    %v8861 = vpack.c.b16 %v8617, %v8615
    %v8862 = vpack.c.b16 %v8620, %v8618
    %v8863 = vpack.c.b16 %v8621, %v8619
    %v8864 = vpack.c.b16 %v8624, %v8622
    %v8865 = vpack.c.b16 %v8625, %v8623
    %v8866 = vpack.c.b16 %v8628, %v8626
    %v8867 = vpack.c.b16 %v8629, %v8627
    %v8868 = vpack.c.b16 %v8632, %v8630
    %v8869 = vpack.c.b16 %v8633, %v8631
    %v8870 = vpack.c.b16 %v8636, %v8634
    %v8871 = vpack.c.b16 %v8637, %v8635
    %v8872 = vpack.c.b16 %v8640, %v8638
    %v8873 = vpack.c.b16 %v8641, %v8639
    %v8874 = vpack.c.b16 %v8644, %v8642
    %v8875 = vpack.c.b16 %v8645, %v8643
    %v8876 = vpack.c.b16 %v8648, %v8646
    %v8877 = vpack.c.b16 %v8649, %v8647
    %v8878 = vpack.c.b16 %v8652, %v8650
    %v8879 = vpack.c.b16 %v8653, %v8651
    %v8880 = vpack.c.b16 %v8656, %v8654
    %v8881 = vpack.c.b16 %v8657, %v8655
    %v8882 = vpack.c.b16 %v8660, %v8658
    %v8883 = vpack.c.b16 %v8661, %v8659
    %v8884 = vpack.c.b16 %v8664, %v8662
    %v8885 = vpack.c.b16 %v8665, %v8663
    %v8886 = vpack.c.b16 %v8668, %v8666
    %v8887 = vpack.c.b16 %v8669, %v8667
    %v8888 = vpack.c.b16 %v8672, %v8670
    %v8889 = vpack.c.b16 %v8673, %v8671
    %v8890 = vpack.c.b16 %v8676, %v8674
    %v8891 = vpack.c.b16 %v8677, %v8675
    %v8892 = vpack.c.b16 %v8680, %v8678
    %v8893 = vpack.c.b16 %v8681, %v8679
    %v8894 = vpack.c.b16 %v8684, %v8682
    %v8895 = vpack.c.b16 %v8685, %v8683
    %v8896 = vpack.c.b16 %v8688, %v8686
    %v8897 = vpack.c.b16 %v8689, %v8687
    %v8898 = vpack.c.b16 %v8692, %v8690
    %v8899 = vpack.c.b16 %v8693, %v8691
    %v8900 = vpack.c.b16 %v8696, %v8694
    %v8901 = vpack.c.b16 %v8697, %v8695
    %v8902 = vpack.c.b16 %v8700, %v8698
    %v8903 = vpack.c.b16 %v8701, %v8699
    %v8904 = vpack.c.b16 %v8704, %v8702
    %v8905 = vpack.c.b16 %v8705, %v8703
    %v8906 = vpack.c.b16 %v8708, %v8706
    %v8907 = vpack.c.b16 %v8709, %v8707
    %v8908 = vpack.c.b16 %v8712, %v8710
    %v8909 = vpack.c.b16 %v8713, %v8711
    %v8910 = vpack.c.b16 %v8716, %v8714
    %v8911 = vpack.c.b16 %v8717, %v8715
    %v8912 = vpack.c.b16 %v8720, %v8718
    %v8913 = vpack.c.b16 %v8721, %v8719
    %v8914 = vpack.c.b16 %v8724, %v8722
    %v8915 = vpack.c.b16 %v8725, %v8723
    %v8916 = vpack.c.b16 %v8728, %v8726
    %v8917 = vpack.c.b16 %v8729, %v8727
    %v8918 = vpack.c.b16 %v8732, %v8730
    %v8919 = vpack.c.b16 %v8733, %v8731
    %v8920 = vpack.c.b16 %v8736, %v8734
    %v8921 = vpack.c.b16 %v8737, %v8735
    %v8922 = vpack.c.b16 %v8740, %v8738
    %v8923 = vpack.c.b16 %v8741, %v8739
    %v8924 = vpack.c.b16 %v8744, %v8742
    %v8925 = vpack.c.b16 %v8745, %v8743
    %v8926 = vpack.c.b16 %v8748, %v8746
    %v8927 = vpack.c.b16 %v8749, %v8747
    %v8928 = vpack.c.b16 %v8752, %v8750
    %v8929 = vpack.c.b16 %v8753, %v8751
    %v8930 = vpack.c.b16 %v8756, %v8754
    %v8931 = vpack.c.b16 %v8757, %v8755
    %v8932 = vpack.c.b16 %v8760, %v8758
    %v8933 = vpack.c.b16 %v8761, %v8759
    %v8934 = vpack.c.b16 %v8764, %v8762
    %v8935 = vpack.c.b16 %v8765, %v8763
    %v8936 = vpack.c.b16 %v8768, %v8766
    %v8937 = vpack.c.b16 %v8769, %v8767
    %v8938 = vpack.c.b16 %v8772, %v8770
    %v8939 = vpack.c.b16 %v8773, %v8771
    %v8940 = vpack.c.b16 %v8776, %v8774
    %v8941 = vpack.c.b16 %v8777, %v8775
    %v8942 = vpack.c.b16 %v8780, %v8778
    %v8943 = vpack.c.b16 %v8781, %v8779
    %v8944 = vpack.c.b16 %v8784, %v8782
    %v8945 = vpack.c.b16 %v8785, %v8783
    %v8946 = vpack.c.b16 %v8788, %v8786
    %v8947 = vpack.c.b16 %v8789, %v8787
    %v8948 = vpack.c.b16 %v8792, %v8790
    %v8949 = vpack.c.b16 %v8793, %v8791
    %v8950 = vpack.c.b16 %v8796, %v8794
    %v8951 = vpack.c.b16 %v8797, %v8795
    %v8952 = vpack.c.b16 %v8800, %v8798
    %v8953 = vpack.c.b16 %v8801, %v8799
    %v8954 = vpack.c.b16 %v8804, %v8802
    %v8955 = vpack.c.b16 %v8805, %v8803
    %v8956 = vpack.c.b16 %v8808, %v8806
    %v8957 = vpack.c.b16 %v8809, %v8807
    %v8958 = vpack.c.b16 %v8812, %v8810
    %v8959 = vpack.c.b16 %v8813, %v8811
    %v8960 = vpack.c.b16 %v8816, %v8814
    %v8961 = vpack.c.b16 %v8817, %v8815
    %v8962 = vpack.c.b16 %v8820, %v8818
    %v8963 = vpack.c.b16 %v8821, %v8819
    %v8964 = vpack.c.b16 %v8824, %v8822
    %v8965 = vpack.c.b16 %v8825, %v8823
    %v8966 = vpack.c.b16 %v8828, %v8826
    %v8967 = vpack.c.b16 %v8829, %v8827
    %v8968 = vpack.c.b16 %v8832, %v8830
    %v8969 = vpack.c.b16 %v8833, %v8831
    %v8970 = vpack.c.b16 %v8836, %v8834
    %v8971 = vpack.c.b16 %v8837, %v8835
    %v8972 = vpack.c.b16 %v8840, %v8838
    %v8973 = vpack.c.b16 %v8841, %v8839
    %v8974 = vpack.c.b16 %v8844, %v8842
    %v8975 = vpack.c.b16 %v8845, %v8843
    %v8976 = vpack.c.b16 %v8848, %v8846
    %v8977 = vpack.c.b16 %v8849, %v8847
    %9106 = vmatprep.subr.bf16.mxu0 %v8865
    %9107 = vmatpush1.bf16.msra.mxu0 %v8864
    %9108 = vmatprep.subr.bf16.mxu0 %v8863
    %9109 = vmatpush1.bf16.msra.mxu0 %v8862
    %9110 = vmatprep.subr.bf16.mxu0 %v8861
    %9111 = vmatpush1.bf16.msra.mxu0 %v8860
    %9112 = vmatprep.subr.bf16.mxu0 %v8859
    %9113 = vmatpush1.bf16.msra.mxu0 %v8858
    %9114 = vmatprep.subr.bf16.mxu0 %v8857
    %9115 = vmatpush1.bf16.msra.mxu0 %v8856
    %9116 = vmatprep.subr.bf16.mxu0 %v8855
    %9117 = vmatpush1.bf16.msra.mxu0 %v8854
    %9118 = vmatprep.subr.bf16.mxu0 %v8853
    %9119 = vmatpush1.bf16.msra.mxu0 %v8852
    %9120 = vmatprep.subr.bf16.mxu0 %v8851
    %9121 = vmatpush1.bf16.msra.mxu0 %v8850
    %9122 = vmatprep.subr.bf16.mxu0 %v8881
    %9123 = vmatpush2.bf16.msra.mxu0 %v8880
    %9124 = vmatprep.subr.bf16.mxu0 %v8879
    %9125 = vmatpush2.bf16.msra.mxu0 %v8878
    %9126 = vmatprep.subr.bf16.mxu0 %v8877
    %9127 = vmatpush2.bf16.msra.mxu0 %v8876
    %9128 = vmatprep.subr.bf16.mxu0 %v8875
    %9129 = vmatpush2.bf16.msra.mxu0 %v8874
    %9130 = vmatprep.subr.bf16.mxu0 %v8873
    %9131 = vmatpush2.bf16.msra.mxu0 %v8872
    %9132 = vmatprep.subr.bf16.mxu0 %v8871
    %9133 = vmatpush2.bf16.msra.mxu0 %v8870
    %9134 = vmatprep.subr.bf16.mxu0 %v8869
    %9135 = vmatpush2.bf16.msra.mxu0 %v8868
    %9136 = vmatprep.subr.bf16.mxu0 %v8867
    %9137 = vmatpush2.bf16.msra.mxu0 %v8866
    %9138 = vmatprep.mubr.bf16.mxu0 %v8319
    %9139 = vmatmul.mubr.bf16.gmra.mxu0 %v8318
    %v9140 = vpop.f32.mrf.mxu0
    %v9141 = vadd.f32 %v8459, %v9140
    %v9142 = vpop.f32.mrf.mxu0
    %v9143 = vadd.f32 %v8463, %v9142
    %v9144 = vpop.f32.mrf.mxu0
    %v9145 = vpop.f32.mrf.mxu0
    %9146 = vdwg.mxu0
    %9147 = vmatprep.subr.bf16.mxu0 %v8897
    %9148 = vmatpush1.bf16.msra.mxu0 %v8896
    %9149 = vmatprep.subr.bf16.mxu0 %v8895
    %9150 = vmatpush1.bf16.msra.mxu0 %v8894
    %9151 = vmatprep.subr.bf16.mxu0 %v8893
    %9152 = vmatpush1.bf16.msra.mxu0 %v8892
    %9153 = vmatprep.subr.bf16.mxu0 %v8891
    %9154 = vmatpush1.bf16.msra.mxu0 %v8890
    %9155 = vmatprep.subr.bf16.mxu0 %v8889
    %9156 = vmatpush1.bf16.msra.mxu0 %v8888
    %9157 = vmatprep.subr.bf16.mxu0 %v8887
    %9158 = vmatpush1.bf16.msra.mxu0 %v8886
    %9159 = vmatprep.subr.bf16.mxu0 %v8885
    %9160 = vmatpush1.bf16.msra.mxu0 %v8884
    %9161 = vmatprep.subr.bf16.mxu0 %v8883
    %9162 = vmatpush1.bf16.msra.mxu0 %v8882
    %9163 = vmatprep.subr.bf16.mxu0 %v8913
    %9164 = vmatpush2.bf16.msra.mxu0 %v8912
    %9165 = vmatprep.subr.bf16.mxu0 %v8911
    %9166 = vmatpush2.bf16.msra.mxu0 %v8910
    %9167 = vmatprep.subr.bf16.mxu0 %v8909
    %9168 = vmatpush2.bf16.msra.mxu0 %v8908
    %9169 = vmatprep.subr.bf16.mxu0 %v8907
    %9170 = vmatpush2.bf16.msra.mxu0 %v8906
    %9171 = vmatprep.subr.bf16.mxu0 %v8905
    %9172 = vmatpush2.bf16.msra.mxu0 %v8904
    %9173 = vmatprep.subr.bf16.mxu0 %v8903
    %9174 = vmatpush2.bf16.msra.mxu0 %v8902
    %9175 = vmatprep.subr.bf16.mxu0 %v8901
    %9176 = vmatpush2.bf16.msra.mxu0 %v8900
    %9177 = vmatprep.subr.bf16.mxu0 %v8899
    %9178 = vmatpush2.bf16.msra.mxu0 %v8898
    %9179 = vmatprep.mubr.bf16.mxu0 %v8321
    %9180 = vmatmul.mubr.bf16.gmra.mxu0 %v8320
    %v9181 = vpop.f32.mrf.mxu0
    %v9182 = vadd.f32 %v9141, %v9181
    %v9183 = vpop.f32.mrf.mxu0
    %v9184 = vadd.f32 %v9143, %v9183
    %v9185 = vpop.f32.mrf.mxu0
    %v9186 = vpop.f32.mrf.mxu0
    %9187 = vdwg.mxu0
    %9188 = vmatprep.subr.bf16.mxu0 %v8929
    %9189 = vmatpush1.bf16.msra.mxu0 %v8928
    %9190 = vmatprep.subr.bf16.mxu0 %v8927
    %9191 = vmatpush1.bf16.msra.mxu0 %v8926
    %9192 = vmatprep.subr.bf16.mxu0 %v8925
    %9193 = vmatpush1.bf16.msra.mxu0 %v8924
    %9194 = vmatprep.subr.bf16.mxu0 %v8923
    %9195 = vmatpush1.bf16.msra.mxu0 %v8922
    %9196 = vmatprep.subr.bf16.mxu0 %v8921
    %9197 = vmatpush1.bf16.msra.mxu0 %v8920
    %9198 = vmatprep.subr.bf16.mxu0 %v8919
    %9199 = vmatpush1.bf16.msra.mxu0 %v8918
    %9200 = vmatprep.subr.bf16.mxu0 %v8917
    %9201 = vmatpush1.bf16.msra.mxu0 %v8916
    %9202 = vmatprep.subr.bf16.mxu0 %v8915
    %9203 = vmatpush1.bf16.msra.mxu0 %v8914
    %9204 = vmatprep.subr.bf16.mxu0 %v8945
    %9205 = vmatpush2.bf16.msra.mxu0 %v8944
    %9206 = vmatprep.subr.bf16.mxu0 %v8943
    %9207 = vmatpush2.bf16.msra.mxu0 %v8942
    %9208 = vmatprep.subr.bf16.mxu0 %v8941
    %9209 = vmatpush2.bf16.msra.mxu0 %v8940
    %9210 = vmatprep.subr.bf16.mxu0 %v8939
    %9211 = vmatpush2.bf16.msra.mxu0 %v8938
    %9212 = vmatprep.subr.bf16.mxu0 %v8937
    %9213 = vmatpush2.bf16.msra.mxu0 %v8936
    %9214 = vmatprep.subr.bf16.mxu0 %v8935
    %9215 = vmatpush2.bf16.msra.mxu0 %v8934
    %9216 = vmatprep.subr.bf16.mxu0 %v8933
    %9217 = vmatpush2.bf16.msra.mxu0 %v8932
    %9218 = vmatprep.subr.bf16.mxu0 %v8931
    %9219 = vmatpush2.bf16.msra.mxu0 %v8930
    %9220 = vmatprep.mubr.bf16.mxu0 %v8323
    %9221 = vmatmul.mubr.bf16.gmra.mxu0 %v8322
    %v9222 = vpop.f32.mrf.mxu0
    %v9223 = vadd.f32 %v9182, %v9222
    %v9224 = vpop.f32.mrf.mxu0
    %v9225 = vadd.f32 %v9184, %v9224
    %v9226 = vpop.f32.mrf.mxu0
    %v9227 = vpop.f32.mrf.mxu0
    %9228 = vdwg.mxu0
    %9229 = vmatprep.subr.bf16.mxu0 %v8961
    %9230 = vmatpush1.bf16.msra.mxu0 %v8960
    %9231 = vmatprep.subr.bf16.mxu0 %v8959
    %9232 = vmatpush1.bf16.msra.mxu0 %v8958
    %9233 = vmatprep.subr.bf16.mxu0 %v8957
    %9234 = vmatpush1.bf16.msra.mxu0 %v8956
    %9235 = vmatprep.subr.bf16.mxu0 %v8955
    %9236 = vmatpush1.bf16.msra.mxu0 %v8954
    %9237 = vmatprep.subr.bf16.mxu0 %v8953
    %9238 = vmatpush1.bf16.msra.mxu0 %v8952
    %9239 = vmatprep.subr.bf16.mxu0 %v8951
    %9240 = vmatpush1.bf16.msra.mxu0 %v8950
    %9241 = vmatprep.subr.bf16.mxu0 %v8949
    %9242 = vmatpush1.bf16.msra.mxu0 %v8948
    %9243 = vmatprep.subr.bf16.mxu0 %v8947
    %9244 = vmatpush1.bf16.msra.mxu0 %v8946
    %9245 = vmatprep.subr.bf16.mxu0 %v8977
    %9246 = vmatpush2.bf16.msra.mxu0 %v8976
    %9247 = vmatprep.subr.bf16.mxu0 %v8975
    %9248 = vmatpush2.bf16.msra.mxu0 %v8974
    %9249 = vmatprep.subr.bf16.mxu0 %v8973
    %9250 = vmatpush2.bf16.msra.mxu0 %v8972
    %9251 = vmatprep.subr.bf16.mxu0 %v8971
    %9252 = vmatpush2.bf16.msra.mxu0 %v8970
    %9253 = vmatprep.subr.bf16.mxu0 %v8969
    %9254 = vmatpush2.bf16.msra.mxu0 %v8968
    %9255 = vmatprep.subr.bf16.mxu0 %v8967
    %9256 = vmatpush2.bf16.msra.mxu0 %v8966
    %9257 = vmatprep.subr.bf16.mxu0 %v8965
    %9258 = vmatpush2.bf16.msra.mxu0 %v8964
    %9259 = vmatprep.subr.bf16.mxu0 %v8963
    %9260 = vmatpush2.bf16.msra.mxu0 %v8962
    %9261 = vmatprep.mubr.bf16.mxu0 %v8325
    %9262 = vmatmul.mubr.bf16.gmra.mxu0 %v8324
    %v9263 = vpop.f32.mrf.mxu0
    %v9264 = vadd.f32 %v9223, %v9263
    %v9265 = vpop.f32.mrf.mxu0
    %v9266 = vadd.f32 %v9225, %v9265
    %v9267 = vpop.f32.mrf.mxu0
    %v9268 = vpop.f32.mrf.mxu0
    %9269 = vdwg.mxu0
    %v9270 = vmax.f32 %v9264, 0.0
    %v9271 = vmax.f32 %v9266, 0.0
    %v9272 = vpack.c.bf16 %v9270, %v9270
    %v9273 = vpack.c.bf16 %v9271, %v9271
    %v9274 = vld [vmem:[#allocation13] sm:$0xff]
    %v9275 = vld [vmem:[#allocation13 + $0x8] sm:$0xff]
    %v9276 = vld [vmem:[#allocation13 + $0x10] sm:$0xff]
    %v9277 = vld [vmem:[#allocation13 + $0x18] sm:$0xff]
    %v9278 = vld [vmem:[#allocation13 + $0x20] sm:$0xff]
    %v9279 = vld [vmem:[#allocation13 + $0x28] sm:$0xff]
    %v9280 = vld [vmem:[#allocation13 + $0x30] sm:$0xff]
    %v9281 = vld [vmem:[#allocation13 + $0x38] sm:$0xff]
    %v9282 = vld [vmem:[#allocation13 + $0x40] sm:$0xff]
    %v9283 = vld [vmem:[#allocation13 + $0x48] sm:$0xff]
    %v9284 = vld [vmem:[#allocation13 + $0x50] sm:$0xff]
    %v9285 = vld [vmem:[#allocation13 + $0x58] sm:$0xff]
    %v9286 = vld [vmem:[#allocation13 + $0x60] sm:$0xff]
    %v9287 = vld [vmem:[#allocation13 + $0x68] sm:$0xff]
    %v9288 = vld [vmem:[#allocation13 + $0x70] sm:$0xff]
    %v9289 = vld [vmem:[#allocation13 + $0x78] sm:$0xff]
    %v9290 = vld [vmem:[#allocation13 + $0x80] sm:$0xff]
    %v9291 = vld [vmem:[#allocation13 + $0x88] sm:$0xff]
    %v9292 = vld [vmem:[#allocation13 + $0x90] sm:$0xff]
    %v9293 = vld [vmem:[#allocation13 + $0x98] sm:$0xff]
    %v9294 = vld [vmem:[#allocation13 + $0xa0] sm:$0xff]
    %v9295 = vld [vmem:[#allocation13 + $0xa8] sm:$0xff]
    %v9296 = vld [vmem:[#allocation13 + $0xb0] sm:$0xff]
    %v9297 = vld [vmem:[#allocation13 + $0xb8] sm:$0xff]
    %v9298 = vld [vmem:[#allocation13 + $0xc0] sm:$0xff]
    %v9299 = vld [vmem:[#allocation13 + $0xc8] sm:$0xff]
    %v9300 = vld [vmem:[#allocation13 + $0xd0] sm:$0xff]
    %v9301 = vld [vmem:[#allocation13 + $0xd8] sm:$0xff]
    %v9302 = vld [vmem:[#allocation13 + $0xe0] sm:$0xff]
    %v9303 = vld [vmem:[#allocation13 + $0xe8] sm:$0xff]
    %v9304 = vld [vmem:[#allocation13 + $0xf0] sm:$0xff]
    %v9305 = vld [vmem:[#allocation13 + $0xf8] sm:$0xff]
    %v9306 = vld [vmem:[#allocation14] sm:$0xff]
    %v9307 = vld [vmem:[#allocation14 + $0x8] sm:$0xff]
    %v9308 = vld [vmem:[#allocation14 + $0x10] sm:$0xff]
    %v9309 = vld [vmem:[#allocation14 + $0x18] sm:$0xff]
    %v9310 = vld [vmem:[#allocation14 + $0x20] sm:$0xff]
    %v9311 = vld [vmem:[#allocation14 + $0x28] sm:$0xff]
    %v9312 = vld [vmem:[#allocation14 + $0x30] sm:$0xff]
    %v9313 = vld [vmem:[#allocation14 + $0x38] sm:$0xff]
    %v9314 = vld [vmem:[#allocation14 + $0x40] sm:$0xff]
    %v9315 = vld [vmem:[#allocation14 + $0x48] sm:$0xff]
    %v9316 = vld [vmem:[#allocation14 + $0x50] sm:$0xff]
    %v9317 = vld [vmem:[#allocation14 + $0x58] sm:$0xff]
    %v9318 = vld [vmem:[#allocation14 + $0x60] sm:$0xff]
    %v9319 = vld [vmem:[#allocation14 + $0x68] sm:$0xff]
    %v9320 = vld [vmem:[#allocation14 + $0x70] sm:$0xff]
    %v9321 = vld [vmem:[#allocation14 + $0x78] sm:$0xff]
    %v9322 = vld [vmem:[#allocation14 + $0x80] sm:$0xff]
    %v9323 = vld [vmem:[#allocation14 + $0x88] sm:$0xff]
    %v9324 = vld [vmem:[#allocation14 + $0x90] sm:$0xff]
    %v9325 = vld [vmem:[#allocation14 + $0x98] sm:$0xff]
    %v9326 = vld [vmem:[#allocation14 + $0xa0] sm:$0xff]
    %v9327 = vld [vmem:[#allocation14 + $0xa8] sm:$0xff]
    %v9328 = vld [vmem:[#allocation14 + $0xb0] sm:$0xff]
    %v9329 = vld [vmem:[#allocation14 + $0xb8] sm:$0xff]
    %v9330 = vld [vmem:[#allocation14 + $0xc0] sm:$0xff]
    %v9331 = vld [vmem:[#allocation14 + $0xc8] sm:$0xff]
    %v9332 = vld [vmem:[#allocation14 + $0xd0] sm:$0xff]
    %v9333 = vld [vmem:[#allocation14 + $0xd8] sm:$0xff]
    %v9334 = vld [vmem:[#allocation14 + $0xe0] sm:$0xff]
    %v9335 = vld [vmem:[#allocation14 + $0xe8] sm:$0xff]
    %v9336 = vld [vmem:[#allocation14 + $0xf0] sm:$0xff]
    %v9337 = vld [vmem:[#allocation14 + $0xf8] sm:$0xff]
    %v9340 = vrot.slane %v9272, 1
    %v9341 = vrot.slane %v9273, 1
    %v9376 = vunpack.c.l.b16 %v9306
    %v9377 = vunpack.c.h.b16 %v9306
    %v9378 = vunpack.c.l.b16 %v9307
    %v9379 = vunpack.c.h.b16 %v9307
    %v9380 = vunpack.c.l.b16 %v9308
    %v9381 = vunpack.c.h.b16 %v9308
    %v9382 = vunpack.c.l.b16 %v9309
    %v9383 = vunpack.c.h.b16 %v9309
    %v9384 = vunpack.c.l.b16 %v9310
    %v9385 = vunpack.c.h.b16 %v9310
    %v9386 = vunpack.c.l.b16 %v9311
    %v9387 = vunpack.c.h.b16 %v9311
    %v9388 = vunpack.c.l.b16 %v9312
    %v9389 = vunpack.c.h.b16 %v9312
    %v9390 = vunpack.c.l.b16 %v9313
    %v9391 = vunpack.c.h.b16 %v9313
    %v9392 = vunpack.c.l.b16 %v9314
    %v9393 = vunpack.c.h.b16 %v9314
    %v9394 = vunpack.c.l.b16 %v9315
    %v9395 = vunpack.c.h.b16 %v9315
    %v9396 = vunpack.c.l.b16 %v9316
    %v9397 = vunpack.c.h.b16 %v9316
    %v9398 = vunpack.c.l.b16 %v9317
    %v9399 = vunpack.c.h.b16 %v9317
    %v9400 = vunpack.c.l.b16 %v9318
    %v9401 = vunpack.c.h.b16 %v9318
    %v9402 = vunpack.c.l.b16 %v9319
    %v9403 = vunpack.c.h.b16 %v9319
    %v9404 = vunpack.c.l.b16 %v9320
    %v9405 = vunpack.c.h.b16 %v9320
    %v9406 = vunpack.c.l.b16 %v9321
    %v9407 = vunpack.c.h.b16 %v9321
    %v9408 = vunpack.c.l.b16 %v9322
    %v9409 = vunpack.c.h.b16 %v9322
    %v9410 = vunpack.c.l.b16 %v9323
    %v9411 = vunpack.c.h.b16 %v9323
    %v9412 = vunpack.c.l.b16 %v9324
    %v9413 = vunpack.c.h.b16 %v9324
    %v9414 = vunpack.c.l.b16 %v9325
    %v9415 = vunpack.c.h.b16 %v9325
    %v9416 = vunpack.c.l.b16 %v9326
    %v9417 = vunpack.c.h.b16 %v9326
    %v9418 = vunpack.c.l.b16 %v9327
    %v9419 = vunpack.c.h.b16 %v9327
    %v9420 = vunpack.c.l.b16 %v9328
    %v9421 = vunpack.c.h.b16 %v9328
    %v9422 = vunpack.c.l.b16 %v9329
    %v9423 = vunpack.c.h.b16 %v9329
    %v9424 = vunpack.c.l.b16 %v9330
    %v9425 = vunpack.c.h.b16 %v9330
    %v9426 = vunpack.c.l.b16 %v9331
    %v9427 = vunpack.c.h.b16 %v9331
    %v9428 = vunpack.c.l.b16 %v9332
    %v9429 = vunpack.c.h.b16 %v9332
    %v9430 = vunpack.c.l.b16 %v9333
    %v9431 = vunpack.c.h.b16 %v9333
    %v9432 = vunpack.c.l.b16 %v9334
    %v9433 = vunpack.c.h.b16 %v9334
    %v9434 = vunpack.c.l.b16 %v9335
    %v9435 = vunpack.c.h.b16 %v9335
    %v9436 = vunpack.c.l.b16 %v9336
    %v9437 = vunpack.c.h.b16 %v9336
    %v9438 = vunpack.c.l.b16 %v9337
    %v9439 = vunpack.c.h.b16 %v9337
    %v9440 = vpack.c.b16 %v9378, %v9376
    %v9441 = vpack.c.b16 %v9379, %v9377
    %v9442 = vpack.c.b16 %v9382, %v9380
    %v9443 = vpack.c.b16 %v9383, %v9381
    %v9444 = vpack.c.b16 %v9386, %v9384
    %v9445 = vpack.c.b16 %v9387, %v9385
    %v9446 = vpack.c.b16 %v9390, %v9388
    %v9447 = vpack.c.b16 %v9391, %v9389
    %v9448 = vpack.c.b16 %v9394, %v9392
    %v9449 = vpack.c.b16 %v9395, %v9393
    %v9450 = vpack.c.b16 %v9398, %v9396
    %v9451 = vpack.c.b16 %v9399, %v9397
    %v9452 = vpack.c.b16 %v9402, %v9400
    %v9453 = vpack.c.b16 %v9403, %v9401
    %v9454 = vpack.c.b16 %v9406, %v9404
    %v9455 = vpack.c.b16 %v9407, %v9405
    %v9456 = vpack.c.b16 %v9410, %v9408
    %v9457 = vpack.c.b16 %v9411, %v9409
    %v9458 = vpack.c.b16 %v9414, %v9412
    %v9459 = vpack.c.b16 %v9415, %v9413
    %v9460 = vpack.c.b16 %v9418, %v9416
    %v9461 = vpack.c.b16 %v9419, %v9417
    %v9462 = vpack.c.b16 %v9422, %v9420
    %v9463 = vpack.c.b16 %v9423, %v9421
    %v9464 = vpack.c.b16 %v9426, %v9424
    %v9465 = vpack.c.b16 %v9427, %v9425
    %v9466 = vpack.c.b16 %v9430, %v9428
    %v9467 = vpack.c.b16 %v9431, %v9429
    %v9468 = vpack.c.b16 %v9434, %v9432
    %v9469 = vpack.c.b16 %v9435, %v9433
    %v9470 = vpack.c.b16 %v9438, %v9436
    %v9471 = vpack.c.b16 %v9439, %v9437
    %9504 = vmatprep.subr.bf16.mxu0 %v9455
    %9505 = vmatpush1.bf16.msra.mxu0 %v9454
    %9506 = vmatprep.subr.bf16.mxu0 %v9453
    %9507 = vmatpush1.bf16.msra.mxu0 %v9452
    %9508 = vmatprep.subr.bf16.mxu0 %v9451
    %9509 = vmatpush1.bf16.msra.mxu0 %v9450
    %9510 = vmatprep.subr.bf16.mxu0 %v9449
    %9511 = vmatpush1.bf16.msra.mxu0 %v9448
    %9512 = vmatprep.subr.bf16.mxu0 %v9447
    %9513 = vmatpush1.bf16.msra.mxu0 %v9446
    %9514 = vmatprep.subr.bf16.mxu0 %v9445
    %9515 = vmatpush1.bf16.msra.mxu0 %v9444
    %9516 = vmatprep.subr.bf16.mxu0 %v9443
    %9517 = vmatpush1.bf16.msra.mxu0 %v9442
    %9518 = vmatprep.subr.bf16.mxu0 %v9441
    %9519 = vmatpush1.bf16.msra.mxu0 %v9440
    %9520 = vmatprep.subr.bf16.mxu0 %v9471
    %9521 = vmatpush2.bf16.msra.mxu0 %v9470
    %9522 = vmatprep.subr.bf16.mxu0 %v9469
    %9523 = vmatpush2.bf16.msra.mxu0 %v9468
    %9524 = vmatprep.subr.bf16.mxu0 %v9467
    %9525 = vmatpush2.bf16.msra.mxu0 %v9466
    %9526 = vmatprep.subr.bf16.mxu0 %v9465
    %9527 = vmatpush2.bf16.msra.mxu0 %v9464
    %9528 = vmatprep.subr.bf16.mxu0 %v9463
    %9529 = vmatpush2.bf16.msra.mxu0 %v9462
    %9530 = vmatprep.subr.bf16.mxu0 %v9461
    %9531 = vmatpush2.bf16.msra.mxu0 %v9460
    %9532 = vmatprep.subr.bf16.mxu0 %v9459
    %9533 = vmatpush2.bf16.msra.mxu0 %v9458
    %9534 = vmatprep.subr.bf16.mxu0 %v9457
    %9535 = vmatpush2.bf16.msra.mxu0 %v9456
    %9536 = vmatprep.mubr.bf16.mxu0 %v9341
    %9537 = vmatmul.mubr.bf16.gmra.mxu0 %v9340
    %v9538 = vpop.f32.mrf.mxu0
    %v9539 = vadd.f32 0.0, %v9538
    %v9540 = vpop.f32.mrf.mxu0
    %v9541 = vadd.f32 0.0, %v9540
    %v9542 = vpop.f32.mrf.mxu0
    %v9543 = vpop.f32.mrf.mxu0
    %9544 = vdwg.mxu0
    %v9577 = vunpack.c.l.b16 %v9274
    %v9578 = vunpack.c.h.b16 %v9274
    %v9579 = vunpack.c.l.b16 %v9275
    %v9580 = vunpack.c.h.b16 %v9275
    %v9581 = vunpack.c.l.b16 %v9276
    %v9582 = vunpack.c.h.b16 %v9276
    %v9583 = vunpack.c.l.b16 %v9277
    %v9584 = vunpack.c.h.b16 %v9277
    %v9585 = vunpack.c.l.b16 %v9278
    %v9586 = vunpack.c.h.b16 %v9278
    %v9587 = vunpack.c.l.b16 %v9279
    %v9588 = vunpack.c.h.b16 %v9279
    %v9589 = vunpack.c.l.b16 %v9280
    %v9590 = vunpack.c.h.b16 %v9280
    %v9591 = vunpack.c.l.b16 %v9281
    %v9592 = vunpack.c.h.b16 %v9281
    %v9593 = vunpack.c.l.b16 %v9282
    %v9594 = vunpack.c.h.b16 %v9282
    %v9595 = vunpack.c.l.b16 %v9283
    %v9596 = vunpack.c.h.b16 %v9283
    %v9597 = vunpack.c.l.b16 %v9284
    %v9598 = vunpack.c.h.b16 %v9284
    %v9599 = vunpack.c.l.b16 %v9285
    %v9600 = vunpack.c.h.b16 %v9285
    %v9601 = vunpack.c.l.b16 %v9286
    %v9602 = vunpack.c.h.b16 %v9286
    %v9603 = vunpack.c.l.b16 %v9287
    %v9604 = vunpack.c.h.b16 %v9287
    %v9605 = vunpack.c.l.b16 %v9288
    %v9606 = vunpack.c.h.b16 %v9288
    %v9607 = vunpack.c.l.b16 %v9289
    %v9608 = vunpack.c.h.b16 %v9289
    %v9609 = vunpack.c.l.b16 %v9290
    %v9610 = vunpack.c.h.b16 %v9290
    %v9611 = vunpack.c.l.b16 %v9291
    %v9612 = vunpack.c.h.b16 %v9291
    %v9613 = vunpack.c.l.b16 %v9292
    %v9614 = vunpack.c.h.b16 %v9292
    %v9615 = vunpack.c.l.b16 %v9293
    %v9616 = vunpack.c.h.b16 %v9293
    %v9617 = vunpack.c.l.b16 %v9294
    %v9618 = vunpack.c.h.b16 %v9294
    %v9619 = vunpack.c.l.b16 %v9295
    %v9620 = vunpack.c.h.b16 %v9295
    %v9621 = vunpack.c.l.b16 %v9296
    %v9622 = vunpack.c.h.b16 %v9296
    %v9623 = vunpack.c.l.b16 %v9297
    %v9624 = vunpack.c.h.b16 %v9297
    %v9625 = vunpack.c.l.b16 %v9298
    %v9626 = vunpack.c.h.b16 %v9298
    %v9627 = vunpack.c.l.b16 %v9299
    %v9628 = vunpack.c.h.b16 %v9299
    %v9629 = vunpack.c.l.b16 %v9300
    %v9630 = vunpack.c.h.b16 %v9300
    %v9631 = vunpack.c.l.b16 %v9301
    %v9632 = vunpack.c.h.b16 %v9301
    %v9633 = vunpack.c.l.b16 %v9302
    %v9634 = vunpack.c.h.b16 %v9302
    %v9635 = vunpack.c.l.b16 %v9303
    %v9636 = vunpack.c.h.b16 %v9303
    %v9637 = vunpack.c.l.b16 %v9304
    %v9638 = vunpack.c.h.b16 %v9304
    %v9639 = vunpack.c.l.b16 %v9305
    %v9640 = vunpack.c.h.b16 %v9305
    %v9641 = vpack.c.b16 %v9579, %v9577
    %v9642 = vpack.c.b16 %v9580, %v9578
    %v9643 = vpack.c.b16 %v9583, %v9581
    %v9644 = vpack.c.b16 %v9584, %v9582
    %v9645 = vpack.c.b16 %v9587, %v9585
    %v9646 = vpack.c.b16 %v9588, %v9586
    %v9647 = vpack.c.b16 %v9591, %v9589
    %v9648 = vpack.c.b16 %v9592, %v9590
    %v9649 = vpack.c.b16 %v9595, %v9593
    %v9650 = vpack.c.b16 %v9596, %v9594
    %v9651 = vpack.c.b16 %v9599, %v9597
    %v9652 = vpack.c.b16 %v9600, %v9598
    %v9653 = vpack.c.b16 %v9603, %v9601
    %v9654 = vpack.c.b16 %v9604, %v9602
    %v9655 = vpack.c.b16 %v9607, %v9605
    %v9656 = vpack.c.b16 %v9608, %v9606
    %v9657 = vpack.c.b16 %v9611, %v9609
    %v9658 = vpack.c.b16 %v9612, %v9610
    %v9659 = vpack.c.b16 %v9615, %v9613
    %v9660 = vpack.c.b16 %v9616, %v9614
    %v9661 = vpack.c.b16 %v9619, %v9617
    %v9662 = vpack.c.b16 %v9620, %v9618
    %v9663 = vpack.c.b16 %v9623, %v9621
    %v9664 = vpack.c.b16 %v9624, %v9622
    %v9665 = vpack.c.b16 %v9627, %v9625
    %v9666 = vpack.c.b16 %v9628, %v9626
    %v9667 = vpack.c.b16 %v9631, %v9629
    %v9668 = vpack.c.b16 %v9632, %v9630
    %v9669 = vpack.c.b16 %v9635, %v9633
    %v9670 = vpack.c.b16 %v9636, %v9634
    %v9671 = vpack.c.b16 %v9639, %v9637
    %v9672 = vpack.c.b16 %v9640, %v9638
    %9705 = vmatprep.subr.bf16.mxu0 %v9656
    %9706 = vmatpush1.bf16.msra.mxu0 %v9655
    %9707 = vmatprep.subr.bf16.mxu0 %v9654
    %9708 = vmatpush1.bf16.msra.mxu0 %v9653
    %9709 = vmatprep.subr.bf16.mxu0 %v9652
    %9710 = vmatpush1.bf16.msra.mxu0 %v9651
    %9711 = vmatprep.subr.bf16.mxu0 %v9650
    %9712 = vmatpush1.bf16.msra.mxu0 %v9649
    %9713 = vmatprep.subr.bf16.mxu0 %v9648
    %9714 = vmatpush1.bf16.msra.mxu0 %v9647
    %9715 = vmatprep.subr.bf16.mxu0 %v9646
    %9716 = vmatpush1.bf16.msra.mxu0 %v9645
    %9717 = vmatprep.subr.bf16.mxu0 %v9644
    %9718 = vmatpush1.bf16.msra.mxu0 %v9643
    %9719 = vmatprep.subr.bf16.mxu0 %v9642
    %9720 = vmatpush1.bf16.msra.mxu0 %v9641
    %9721 = vmatprep.subr.bf16.mxu0 %v9672
    %9722 = vmatpush2.bf16.msra.mxu0 %v9671
    %9723 = vmatprep.subr.bf16.mxu0 %v9670
    %9724 = vmatpush2.bf16.msra.mxu0 %v9669
    %9725 = vmatprep.subr.bf16.mxu0 %v9668
    %9726 = vmatpush2.bf16.msra.mxu0 %v9667
    %9727 = vmatprep.subr.bf16.mxu0 %v9666
    %9728 = vmatpush2.bf16.msra.mxu0 %v9665
    %9729 = vmatprep.subr.bf16.mxu0 %v9664
    %9730 = vmatpush2.bf16.msra.mxu0 %v9663
    %9731 = vmatprep.subr.bf16.mxu0 %v9662
    %9732 = vmatpush2.bf16.msra.mxu0 %v9661
    %9733 = vmatprep.subr.bf16.mxu0 %v9660
    %9734 = vmatpush2.bf16.msra.mxu0 %v9659
    %9735 = vmatprep.subr.bf16.mxu0 %v9658
    %9736 = vmatpush2.bf16.msra.mxu0 %v9657
    %9737 = vmatprep.mubr.bf16.mxu0 %v9273
    %9738 = vmatmul.mubr.bf16.gmra.mxu0 %v9272
    %v9739 = vpop.f32.mrf.mxu0
    %v9740 = vadd.f32 %v9539, %v9739
    %v9741 = vpop.f32.mrf.mxu0
    %v9742 = vadd.f32 %v9541, %v9741
    %v9743 = vpop.f32.mrf.mxu0
    %v9744 = vpop.f32.mrf.mxu0
    %9745 = vdwg.mxu0
    %v9746 = vld [vmem:[#allocation16] sm:$0x3]
    %v9748 = vlaneseq
    %v9749 = vshrl.u32 %v9748, 7
    %v9750 = vsub.s32 0, %v9749
    %v9751 = vrot.slane %v9746, %v9750
    %v9752 = vlaneseq
    %v9753 = vshrl.u32 %v9752, 7
    %v9754 = vsub.s32 1, %v9753
    %v9755 = vrot.slane %v9746, %v9754
    %v9758 = vadd.f32 %v9740, %v9751
    %v9759 = vadd.f32 %v9742, %v9755
    %v9760 = vmax.f32 %v9758, 0.0
    %v9761 = vmax.f32 %v9759, 0.0
    %v9762 = vld [vmem:[#allocation17] sm:$0x3]
    %v9764 = vlaneseq
    %v9765 = vshrl.u32 %v9764, 7
    %v9766 = vsub.s32 0, %v9765
    %v9767 = vrot.slane %v9762, %v9766
    %v9768 = vlaneseq
    %v9769 = vshrl.u32 %v9768, 7
    %v9770 = vsub.s32 1, %v9769
    %v9771 = vrot.slane %v9762, %v9770
    %v9774 = vmul.f32 %v9760, %v9767
    %v9775 = vmul.f32 %v9761, %v9771
    %vm9776 = vcmask 1041408
    %v9777 = vsel %vm9776, %v9774, 0.0
    %v9778 = vsel %vm9776, %v9775, 0.0
    %v9779 = vadd.f32 %v9777, %v9778
    %9780 = vadd.xlane.f32.xlu0 %v9779
    %v9781 = vpop.xlane.xlu0 %9780
    %v9782 = vld [vmem:[#allocation2] sm:$0x1]
    %v9784 = vlaneseq
    %v9785 = vshrl.u32 %v9784, 7
    %v9786 = vsub.s32 0, %v9785
    %v9787 = vrot.slane %v9782, %v9786
    %v9789 = vadd.f32 %v9781, %v9787
    %v9790 = vxor.u32 %v9789, 2147483648
    %v9791 = vmul.f32 %v9790, 1.442695
    %v9792 = vpow.pop %v9791
    %v9793 = vadd.f32 %v9792, 1.0
    %v9794 = vrcp.pop %v9793
    %v9795 = vmul.f32 1.0, %v9794
    %vm9796 = vcmask 1024
    %9797 = vst.msk [vmem:[%s12] sm:$0x3] %vm9796, %v9795
    // Predicated region
    $region90: #{ranknet_forward.1} parent=1 // pred_check
      _
    $region91: #{ranknet_forward.1} parent=1 // pred_check_branch
      %9799 = sbr.rel (0) target = $region93
    $region92: #{ranknet_forward.1} parent=1 // pred_region
      _
    $region93: #{ranknet_forward.1} parent=1 // pred_fallthru
      _
    // Predicated region
    $region94: #{ranknet_forward.1} parent=1 // pred_check
      _
    $region95: #{ranknet_forward.1} parent=1 // pred_check_branch
      %9801 = sbr.rel (0) target = $region97
    $region96: #{ranknet_forward.1} parent=1 // pred_region
      _
    $region97: #{ranknet_forward.1} parent=1 // pred_fallthru
      _
    %9802 = vsyncpa [#allocation4], 1
    %9803 = vsyncpa [#allocation6], 1
    %9804 = vsyncpa [#allocation9], 1
    %9805 = vsyncpa [#allocation12], 1
    %9806 = vsyncpa [#allocation15], 1
    %9807 = vsyncpa [#allocation18], 1

</llo_original>
